<compile_context>
chip_gen: v7x
topology: tpu7x:2x2x1
jax: 0.10.0
libtpu: 0.0.40
codegen_flags: <defaults>
</compile_context>

<pallas_src>
from functools import partial

import jax
import jax.numpy as jnp
from jax import lax
from jax.experimental import pallas as pl
from jax.experimental.pallas import tpu as pltpu


def _vmem_limit_bytes():
    """Per-generation VMEM budget: ~3/4 of physical, capped at 100 MiB.
    v5e/v6e (128 MiB physical) -> ~96-100 MiB; v7x (64 MiB) -> 48 MiB.  Safe fallback 48 MiB."""
    try:
        cap = pltpu.get_tpu_info().vmem_capacity_bytes
        return int(min(cap * 3 // 4, 100 * 1024 * 1024))
    except Exception:
        return 48 * 1024 * 1024


VMEM_LIMIT_BYTES = _vmem_limit_bytes()


# ---------------------------------------------------------------------------
# Pallas kernels
# ---------------------------------------------------------------------------

def conv3x3_kernel(x0_ref, x1_ref, x2_ref, w_ref, b_ref, o_ref, s1_ref, s2_ref, *, H, W):
    """One (batch, out-depth) step: full 27-tap zero-padded 3x3x3 conv for one depth plane.

    Per depth tap, the 9 shifted in-plane patches are concatenated into a [H*W, 9*Cin]
    bf16 slab and hit the MXU as a single dot with K = 9*Cin against the VMEM-resident
    weight slab w_ref[kd] ([9*Cin, Cout]).  Accumulation stays f32 in-register.
    GroupNorm pass-1 (per-channel sum / sum-of-squares over this plane) is fused into the
    epilogue so the conv output never has to be re-read from HBM for statistics."""
    HW = H * W
    Cin = x0_ref.shape[-1]
    acc = None
    for kd, xr in enumerate((x0_ref, x1_ref, x2_ref)):
        x = xr[0].astype(jnp.bfloat16)                       # cast the whole slab once
        patch = jnp.concatenate(
            [x[kh:kh + H, kw:kw + W, :].reshape(HW, Cin)
             for kh in range(3) for kw in range(3)], axis=-1)   # [HW, 9*Cin] bf16
        d = jnp.dot(patch, w_ref[kd], preferred_element_type=jnp.float32)
        acc = d if acc is None else acc + d
    y = acc + b_ref[...]                                     # [HW, Cout] f32
    o_ref[0] = y.astype(o_ref.dtype)
    s1_ref[0] = jnp.sum(y, axis=0, keepdims=True)            # [1, Cout]
    s2_ref[0] = jnp.sum(y * y, axis=0, keepdims=True)


def gn_apply_kernel(x_ref, a_ref, b_ref, add_ref, o_ref):
    """y = SiLU(x*a + b) + add.  a/b fold GroupNorm mean/rstd and the affine params; add is
    either a per-batch [1, C] broadcast (time-emb) or a full [ts, C] tile (identity residual).
    x may arrive bf16; all math is f32 on the VPU/EUP."""
    y = x_ref[...].astype(jnp.float32) * a_ref[...] + b_ref[...]
    y = y * jax.nn.sigmoid(y)                                # SiLU
    o_ref[...] = (y + add_ref[...].astype(jnp.float32)).astype(o_ref.dtype)


def gn_apply_resconv_kernel(x_ref, a_ref, b_ref, xin_ref, w_ref, rb_ref, o_ref):
    """y = SiLU(x*a + b) + (xin @ w + rb).  The 1x1x1 residual projection is fused here
    (the MXU is otherwise idle in this kernel), so the projected residual never
    round-trips HBM."""
    y = x_ref[0].astype(jnp.float32) * a_ref[0] + b_ref[0]
    y = y * jax.nn.sigmoid(y)
    res = jnp.dot(xin_ref[0].astype(jnp.bfloat16), w_ref[...],
                  preferred_element_type=jnp.float32) + rb_ref[...]
    o_ref[0] = (y + res).astype(o_ref.dtype)


# ---------------------------------------------------------------------------
# Wrappers
# ---------------------------------------------------------------------------

def _pick_spatial_tile(S, C, max_bytes):
    """Largest row-tile of [S, C] that divides S, is a multiple of 8 and fits max_bytes."""
    cap = max(8, max_bytes // (4 * C))
    if S <= cap:
        return S
    t = (cap // 8) * 8
    while t >= 8:
        if S % t == 0:
            return t
        t -= 8
    return S   # no multiple-of-8 divisor under cap; fall back to full extent


def conv3d_3x3_same(x_cl, wk, b, *, out_dtype=jnp.bfloat16):
    """Fused zero-padded 3x3x3 conv with fused GroupNorm pass-1.
    x_cl: [B, D, H, W, Cin] channels-last (f32 or bf16); wk: [3, 9*Cin, Cout] bf16;
    b: [Cout] f32.
    Returns (y [B, D*H*W, Cout] out_dtype, chan_sum [B, D, Cout] f32, chan_sumsq [...] f32)."""
    B, D, H, W, Cin = x_cl.shape
    Cout = wk.shape[-1]
    HW = H * W

    xp = jnp.pad(x_cl, ((0, 0), (1, 1), (1, 1), (1, 1), (0, 0)))
    xp = xp.reshape(B * (D + 2), H + 2, W + 2, Cin)          # free row-major reshape

    def plane_spec(kd):
        return pl.BlockSpec((1, H + 2, W + 2, Cin),
                            lambda bb, d, kd=kd: (bb * (D + 2) + d + kd, 0, 0, 0))

    y, s1, s2 = pl.pallas_call(
        partial(conv3x3_kernel, H=H, W=W),
        out_shape=(jax.ShapeDtypeStruct((B * D, HW, Cout), out_dtype),
                   jax.ShapeDtypeStruct((B * D, 1, Cout), jnp.float32),
                   jax.ShapeDtypeStruct((B * D, 1, Cout), jnp.float32)),
        grid=(B, D),
        in_specs=[plane_spec(0), plane_spec(1), plane_spec(2),
                  # all 27 taps resident in VMEM (constant block index -> single fetch)
                  pl.BlockSpec((3, 9 * Cin, Cout), lambda bb, d: (0, 0, 0)),
                  pl.BlockSpec((1, Cout), lambda bb, d: (0, 0))],
        out_specs=(pl.BlockSpec((1, HW, Cout), lambda bb, d: (bb * D + d, 0, 0)),
                   pl.BlockSpec((1, 1, Cout), lambda bb, d: (bb * D + d, 0, 0)),
                   pl.BlockSpec((1, 1, Cout), lambda bb, d: (bb * D + d, 0, 0))),
        compiler_params=pltpu.CompilerParams(
            dimension_semantics=("parallel", "parallel"),
            vmem_limit_bytes=VMEM_LIMIT_BYTES),
    )(xp, xp, xp, wk, b.reshape(1, Cout))

    return (y.reshape(B, D * HW, Cout),
            s1.reshape(B, D, Cout),
            s2.reshape(B, D, Cout))


def gn_fold_affine(s1, s2, gamma, beta, *, groups, eps, S):
    """Tiny O(B*C) plain-JAX group combine: fold GroupNorm mean/rstd + affine into (a, b)
    such that GN(x)*gamma + beta == x*a + b.  nn.GroupNorm semantics (biased variance)."""
    B, D, C = s1.shape
    cg = C // groups
    n = float(cg * S)
    gs1 = s1.sum(1).reshape(B, groups, cg).sum(-1)           # [B, groups]
    gs2 = s2.sum(1).reshape(B, groups, cg).sum(-1)
    mean = gs1 / n
    var = jnp.maximum(gs2 / n - mean * mean, 0.0)            # clamp: cancellation safety
    rstd = lax.rsqrt(var + eps)
    mean_c = jnp.repeat(mean, cg, axis=1)                    # [B, C]
    rstd_c = jnp.repeat(rstd, cg, axis=1)
    a = (gamma[None, :] * rstd_c).reshape(B, 1, C)
    bshift = (beta[None, :] - gamma[None, :] * rstd_c * mean_c).reshape(B, 1, C)
    return a.astype(jnp.float32), bshift.astype(jnp.float32)


def _gn_tile_bytes():
    return min(8 << 20, VMEM_LIMIT_BYTES // 12)


def gn_silu_add(x_bsc, a, bshift, add, *, broadcast_add, out_dtype):
    """Normalize (x*a + b) -> SiLU -> + add, channels-last [B, S, C], spatially tiled."""
    B, S, C = x_bsc.shape
    ts = _pick_spatial_tile(S, C, max_bytes=_gn_tile_bytes())
    nS = S // ts
    if broadcast_add:
        add_spec = pl.BlockSpec((1, 1, add.shape[-1]), lambda bb, s: (bb, 0, 0))
    else:
        add_spec = pl.BlockSpec((1, ts, add.shape[-1]), lambda bb, s: (bb, s, 0))
    return pl.pallas_call(
        gn_apply_kernel,
        out_shape=jax.ShapeDtypeStruct((B, S, C), out_dtype),
        grid=(B, nS),
        in_specs=[pl.BlockSpec((1, ts, C), lambda bb, s: (bb, s, 0)),
                  pl.BlockSpec((1, 1, C), lambda bb, s: (bb, 0, 0)),
                  pl.BlockSpec((1, 1, C), lambda bb, s: (bb, 0, 0)),
                  add_spec],
        out_specs=pl.BlockSpec((1, ts, C), lambda bb, s: (bb, s, 0)),
        compiler_params=pltpu.CompilerParams(
            dimension_semantics=("parallel", "parallel"),
            vmem_limit_bytes=VMEM_LIMIT_BYTES),
    )(x_bsc, a, bshift, add)


def gn_silu_resconv(x_bsc, a, bshift, xin_bsc, w_t, rb, *, out_dtype):
    """Normalize -> SiLU -> + (xin @ w_t + rb), with the 1x1x1 residual conv fused in-kernel."""
    B, S, C = x_bsc.shape
    Cin = xin_bsc.shape[-1]
    ts = _pick_spatial_tile(S, C + Cin, max_bytes=_gn_tile_bytes())
    nS = S // ts
    return pl.pallas_call(
        gn_apply_resconv_kernel,
        out_shape=jax.ShapeDtypeStruct((B, S, C), out_dtype),
        grid=(B, nS),
        in_specs=[pl.BlockSpec((1, ts, C), lambda bb, s: (bb, s, 0)),
                  pl.BlockSpec((1, 1, C), lambda bb, s: (bb, 0, 0)),
                  pl.BlockSpec((1, 1, C), lambda bb, s: (bb, 0, 0)),
                  pl.BlockSpec((1, ts, Cin), lambda bb, s: (bb, s, 0)),
                  pl.BlockSpec((Cin, C), lambda bb, s: (0, 0)),      # resident bf16 weight
                  pl.BlockSpec((1, C), lambda bb, s: (0, 0))],
        out_specs=pl.BlockSpec((1, ts, C), lambda bb, s: (bb, s, 0)),
        compiler_params=pltpu.CompilerParams(
            dimension_semantics=("parallel", "parallel"),
            vmem_limit_bytes=VMEM_LIMIT_BYTES),
    )(x_bsc, a, bshift, xin_bsc, w_t, rb)


# ---------------------------------------------------------------------------
# ResnetBlock forward
# ---------------------------------------------------------------------------

def resnet_block_forward(x, time_emb, params, *, groups=8, eps=1e-5):
    """x: [B, Cin, D, H, W] (NCDHW), time_emb: [B, cond] or None."""
    B, Cin, D, H, W = x.shape
    S = D * H * W
    Cout = params["conv1_wk"].shape[-1]

    x_cl = jnp.transpose(x, (0, 2, 3, 4, 1))                          # single entry relayout
    x_bsc = x_cl.reshape(B, S, Cin)

    # block1: conv3x3 (+fused GN sums) -> GN -> SiLU ; then + time_emb (spatial broadcast)
    h, s1, s2 = conv3d_3x3_same(x_cl, params["conv1_wk"], params["conv1_b"])
    a1, b1 = gn_fold_affine(s1, s2, params["gn1_g"], params["gn1_b"],
                            groups=groups, eps=eps, S=S)
    if time_emb is not None:
        # [B, cond] x [cond, Cout] with B rows is below the (8,128) tile: plain JAX is cheaper
        te = time_emb * jax.nn.sigmoid(time_emb)                      # SiLU
        t = (te @ params["mlp_w"].T + params["mlp_b"]).reshape(B, 1, Cout)
    else:
        t = jnp.zeros((B, 1, Cout), jnp.float32)
    h = gn_silu_add(h, a1, b1, t, broadcast_add=True, out_dtype=jnp.bfloat16)

    # block2: conv3x3 (+fused GN sums) -> GN -> SiLU ; then + residual (identity or 1x1x1)
    h2, s1b, s2b = conv3d_3x3_same(h.reshape(B, D, H, W, Cout),
                                   params["conv2_wk"], params["conv2_b"])
    a2, b2 = gn_fold_affine(s1b, s2b, params["gn2_g"], params["gn2_b"],
                            groups=groups, eps=eps, S=S)
    if "res_w_t" in params:
        out = gn_silu_resconv(h2, a2, b2, x_bsc, params["res_w_t"],
                              params["res_b"].reshape(1, Cout), out_dtype=jnp.float32)
    else:
        out = gn_silu_add(h2, a2, b2, x_bsc, broadcast_add=False, out_dtype=jnp.float32)

    return jnp.transpose(out.reshape(B, D, H, W, Cout), (0, 4, 1, 2, 3))  # single exit relayout


# ---------------------------------------------------------------------------
# Params: deterministic init (PyTorch layouts) + one-time kernel-ready prep
# ---------------------------------------------------------------------------

def init_params(key, dim, dim_out, cond_emb_dim):
    ks = jax.random.split(key, 10)
    n = lambda k, s, sc=0.1: (sc * jax.random.normal(k, s)).astype(jnp.float32)
    params = {
        "conv1_w": n(ks[0], (dim_out, dim, 3, 3, 3)),
        "conv1_b": n(ks[1], (dim_out,)),
        "gn1_g": 1.0 + n(ks[2], (dim_out,)),
        "gn1_b": n(ks[3], (dim_out,)),
        "conv2_w": n(ks[4], (dim_out, dim_out, 3, 3, 3)),
        "conv2_b": n(ks[5], (dim_out,)),
        "gn2_g": 1.0 + n(ks[6], (dim_out,)),
        "gn2_b": n(ks[7], (dim_out,)),
        "mlp_w": n(ks[8], (dim_out, cond_emb_dim)),
        "mlp_b": n(ks[9], (dim_out,)),
    }
    if dim != dim_out:
        kr1, kr2 = jax.random.split(ks[0])
        params["res_w"] = n(kr1, (dim_out, dim))             # 1x1x1 conv weight, squeezed
        params["res_b"] = n(kr2, (dim_out,))
    return params


def prepare_params(p):
    """One-time prep: conv kernels repacked to depth-tap-major [3, 9*Cin, Cout] bf16
    (VMEM-resident, K = 9*Cin MXU layout); pre-transposed bf16 residual weight."""
    def conv_pack(w):                                        # [Cout,Cin,kd,kh,kw] -> [3,9*Cin,Cout]
        co, ci = w.shape[:2]
        return (jnp.transpose(w, (2, 3, 4, 1, 0))
                  .reshape(3, 9 * ci, co).astype(jnp.bfloat16))

    q = {
        "conv1_wk": conv_pack(p["conv1_w"]),
        "conv1_b": p["conv1_b"].astype(jnp.float32),
        "conv2_wk": conv_pack(p["conv2_w"]),
        "conv2_b": p["conv2_b"].astype(jnp.float32),
        "gn1_g": p["gn1_g"].astype(jnp.float32), "gn1_b": p["gn1_b"].astype(jnp.float32),
        "gn2_g": p["gn2_g"].astype(jnp.float32), "gn2_b": p["gn2_b"].astype(jnp.float32),
        "mlp_w": p["mlp_w"].astype(jnp.float32),             # tiny, stays in plain JAX
        "mlp_b": p["mlp_b"].astype(jnp.float32),
    }
    if "res_w" in p:
        q["res_w_t"] = p["res_w"].T.astype(jnp.bfloat16)     # [dim, dim_out]
        q["res_b"] = p["res_b"].astype(jnp.float32)
    return q


# ---------------------------------------------------------------------------
# Pure-JAX reference (f32) for a numerical sanity check
# ---------------------------------------------------------------------------

def ref_forward(x, time_emb, p, *, groups=8, eps=1e-5):
    def conv3(z, w, b):
        y = lax.conv_general_dilated(z, w, (1, 1, 1), [(1, 1)] * 3,
                                     dimension_numbers=("NCDHW", "OIDHW", "NCDHW"))
        return y + b[None, :, None, None, None]

    def gn(z, g, bta):
        B = z.shape[0]
        zr = z.reshape(B, groups, -1)
        m = zr.mean(-1, keepdims=True)
        v = ((zr - m) ** 2).mean(-1, keepdims=True)
        zn = ((zr - m) * lax.rsqrt(v + eps)).reshape(z.shape)
        return zn * g[None, :, None, None, None] + bta[None, :, None, None, None]

    silu = lambda z: z * jax.nn.sigmoid(z)
    h = silu(gn(conv3(x, p["conv1_w"], p["conv1_b"]), p["gn1_g"], p["gn1_b"]))
    if time_emb is not None:
        t = silu(time_emb) @ p["mlp_w"].T + p["mlp_b"]
        h = h + t[:, :, None, None, None]
    h = silu(gn(conv3(h, p["conv2_w"], p["conv2_b"]), p["gn2_g"], p["gn2_b"]))
    if "res_w" in p:
        res = jnp.einsum("bcdhw,oc->bodhw", x, p["res_w"]) \
            + p["res_b"][None, :, None, None, None]
    else:
        res = x
    return h + res


if __name__ == "__main__":
    B, dim, dim_out = 2, 4, 8
    D = H = W = 8
    cond_emb_dim = 16
    groups = 8

    key = jax.random.PRNGKey(0)
    kx, kt, kp = jax.random.split(key, 3)
    x = jax.random.normal(kx, (B, dim, D, H, W), dtype=jnp.float32)
    time_emb = jax.random.normal(kt, (B, cond_emb_dim), dtype=jnp.float32)
    raw_params = init_params(kp, dim, dim_out, cond_emb_dim)
    params = prepare_params(raw_params)

    fwd = jax.jit(partial(resnet_block_forward, groups=groups))
    out = fwd(x, time_emb, params)
    jax.block_until_ready(out)
    assert out.shape == (B, dim_out, D, H, W)

    # loose-tolerance check vs f32 XLA reference (kernel uses bf16 MXU inputs and bf16
    # cross-stage intermediates; stats/accumulation stay f32)
    ref = ref_forward(x, time_emb, raw_params, groups=groups)
    max_err = float(jnp.max(jnp.abs(out - ref)))
    assert max_err < 0.3, f"max abs err too large: {max_err}"

    print("KERNEL_OK")
</pallas_src>

<mosaic_0001>
module attributes {stable_mosaic.version = 11 : i64} {
  func.func @conv3x3_kernel(%arg0: i32, %arg1: i32, %arg2: memref<1x10x10x4xf32, #tpu.memory_space<vmem>>, %arg3: memref<1x10x10x4xf32, #tpu.memory_space<vmem>>, %arg4: memref<1x10x10x4xf32, #tpu.memory_space<vmem>>, %arg5: memref<3x36x8xbf16, #tpu.memory_space<vmem>>, %arg6: memref<1x8xf32, #tpu.memory_space<vmem>>, %arg7: memref<1x64x8xbf16, #tpu.memory_space<vmem>>, %arg8: memref<1x1x8xf32, #tpu.memory_space<vmem>>, %arg9: memref<1x1x8xf32, #tpu.memory_space<vmem>>) attributes {dimension_semantics = [#tpu.dimension_semantics<parallel>, #tpu.dimension_semantics<parallel>], iteration_bounds = array<i64: 2, 8>, scalar_prefetch = 0 : i64, scratch_operands = 0 : i64, tpu.core_type = #tpu.core_type<tc>, window_params = [{transform_indices = @transform_0, window_bounds = array<i64: 1, 10, 10, 4>}, {transform_indices = @transform_1, window_bounds = array<i64: 1, 10, 10, 4>}, {transform_indices = @transform_2, window_bounds = array<i64: 1, 10, 10, 4>}, {pipeline_mode = #tpu.pipeline_mode<synchronous>, transform_indices = @transform_3, window_bounds = array<i64: 3, 36, 8>}, {pipeline_mode = #tpu.pipeline_mode<synchronous>, transform_indices = @transform_4, window_bounds = array<i64: 1, 8>}, {transform_indices = @transform_5, window_bounds = array<i64: 1, 64, 8>}, {transform_indices = @transform_6, window_bounds = array<i64: 1, 1, 8>}, {transform_indices = @transform_7, window_bounds = array<i64: 1, 1, 8>}]} {
    %c0 = arith.constant 0 : index
    %c0_0 = arith.constant 0 : index
    %c0_1 = arith.constant 0 : index
    %c0_2 = arith.constant 0 : index
    %0 = vector.load %arg2[%c0, %c0_0, %c0_1, %c0_2] : memref<1x10x10x4xf32, #tpu.memory_space<vmem>>, vector<1x10x10x4xf32>
    %1 = vector.shape_cast %0 : vector<1x10x10x4xf32> to vector<10x10x4xf32>
    %2 = arith.truncf %1 : vector<10x10x4xf32> to vector<10x10x4xbf16>
    %3 = vector.extract_strided_slice %2 {offsets = [0, 0, 0], sizes = [8, 8, 4], strides = [1, 1, 1]} : vector<10x10x4xbf16> to vector<8x8x4xbf16>
    %4 = vector.shape_cast %3 : vector<8x8x4xbf16> to vector<64x4xbf16>
    %5 = vector.extract_strided_slice %2 {offsets = [0, 1, 0], sizes = [8, 8, 4], strides = [1, 1, 1]} : vector<10x10x4xbf16> to vector<8x8x4xbf16>
    %6 = vector.shape_cast %5 : vector<8x8x4xbf16> to vector<64x4xbf16>
    %7 = vector.extract_strided_slice %2 {offsets = [0, 2, 0], sizes = [8, 8, 4], strides = [1, 1, 1]} : vector<10x10x4xbf16> to vector<8x8x4xbf16>
    %8 = vector.shape_cast %7 : vector<8x8x4xbf16> to vector<64x4xbf16>
    %9 = vector.extract_strided_slice %2 {offsets = [1, 0, 0], sizes = [8, 8, 4], strides = [1, 1, 1]} : vector<10x10x4xbf16> to vector<8x8x4xbf16>
    %10 = vector.shape_cast %9 : vector<8x8x4xbf16> to vector<64x4xbf16>
    %11 = vector.extract_strided_slice %2 {offsets = [1, 1, 0], sizes = [8, 8, 4], strides = [1, 1, 1]} : vector<10x10x4xbf16> to vector<8x8x4xbf16>
    %12 = vector.shape_cast %11 : vector<8x8x4xbf16> to vector<64x4xbf16>
    %13 = vector.extract_strided_slice %2 {offsets = [1, 2, 0], sizes = [8, 8, 4], strides = [1, 1, 1]} : vector<10x10x4xbf16> to vector<8x8x4xbf16>
    %14 = vector.shape_cast %13 : vector<8x8x4xbf16> to vector<64x4xbf16>
    %15 = vector.extract_strided_slice %2 {offsets = [2, 0, 0], sizes = [8, 8, 4], strides = [1, 1, 1]} : vector<10x10x4xbf16> to vector<8x8x4xbf16>
    %16 = vector.shape_cast %15 : vector<8x8x4xbf16> to vector<64x4xbf16>
    %17 = vector.extract_strided_slice %2 {offsets = [2, 1, 0], sizes = [8, 8, 4], strides = [1, 1, 1]} : vector<10x10x4xbf16> to vector<8x8x4xbf16>
    %18 = vector.shape_cast %17 : vector<8x8x4xbf16> to vector<64x4xbf16>
    %19 = vector.extract_strided_slice %2 {offsets = [2, 2, 0], sizes = [8, 8, 4], strides = [1, 1, 1]} : vector<10x10x4xbf16> to vector<8x8x4xbf16>
    %20 = vector.shape_cast %19 : vector<8x8x4xbf16> to vector<64x4xbf16>
    %21 = tpu.concatenate %4, %6, %8, %10, %12, %14, %16, %18, %20 in 1 : vector<64x4xbf16>, vector<64x4xbf16>, vector<64x4xbf16>, vector<64x4xbf16>, vector<64x4xbf16>, vector<64x4xbf16>, vector<64x4xbf16>, vector<64x4xbf16>, vector<64x4xbf16> -> vector<64x36xbf16>
    %c0_3 = arith.constant 0 : index
    %c0_4 = arith.constant 0 : index
    %c0_5 = arith.constant 0 : index
    %22 = vector.load %arg5[%c0_3, %c0_4, %c0_5] : memref<3x36x8xbf16, #tpu.memory_space<vmem>>, vector<1x36x8xbf16>
    %23 = vector.shape_cast %22 : vector<1x36x8xbf16> to vector<36x8xbf16>
    %cst = arith.constant dense<0.000000e+00> : vector<64x8xf32>
    %24 = tpu.matmul %21, %23, %cst {dimension_numbers = #tpu.dot_dimension_numbers<[1], [0], [0], [1], [0, 0, 1, 1], [], []>} : vector<64x36xbf16>, vector<36x8xbf16>, vector<64x8xf32> -> vector<64x8xf32>
    %c0_6 = arith.constant 0 : index
    %c0_7 = arith.constant 0 : index
    %c0_8 = arith.constant 0 : index
    %c0_9 = arith.constant 0 : index
    %25 = vector.load %arg3[%c0_6, %c0_7, %c0_8, %c0_9] : memref<1x10x10x4xf32, #tpu.memory_space<vmem>>, vector<1x10x10x4xf32>
    %26 = vector.shape_cast %25 : vector<1x10x10x4xf32> to vector<10x10x4xf32>
    %27 = arith.truncf %26 : vector<10x10x4xf32> to vector<10x10x4xbf16>
    %28 = vector.extract_strided_slice %27 {offsets = [0, 0, 0], sizes = [8, 8, 4], strides = [1, 1, 1]} : vector<10x10x4xbf16> to vector<8x8x4xbf16>
    %29 = vector.shape_cast %28 : vector<8x8x4xbf16> to vector<64x4xbf16>
    %30 = vector.extract_strided_slice %27 {offsets = [0, 1, 0], sizes = [8, 8, 4], strides = [1, 1, 1]} : vector<10x10x4xbf16> to vector<8x8x4xbf16>
    %31 = vector.shape_cast %30 : vector<8x8x4xbf16> to vector<64x4xbf16>
    %32 = vector.extract_strided_slice %27 {offsets = [0, 2, 0], sizes = [8, 8, 4], strides = [1, 1, 1]} : vector<10x10x4xbf16> to vector<8x8x4xbf16>
    %33 = vector.shape_cast %32 : vector<8x8x4xbf16> to vector<64x4xbf16>
    %34 = vector.extract_strided_slice %27 {offsets = [1, 0, 0], sizes = [8, 8, 4], strides = [1, 1, 1]} : vector<10x10x4xbf16> to vector<8x8x4xbf16>
    %35 = vector.shape_cast %34 : vector<8x8x4xbf16> to vector<64x4xbf16>
    %36 = vector.extract_strided_slice %27 {offsets = [1, 1, 0], sizes = [8, 8, 4], strides = [1, 1, 1]} : vector<10x10x4xbf16> to vector<8x8x4xbf16>
    %37 = vector.shape_cast %36 : vector<8x8x4xbf16> to vector<64x4xbf16>
    %38 = vector.extract_strided_slice %27 {offsets = [1, 2, 0], sizes = [8, 8, 4], strides = [1, 1, 1]} : vector<10x10x4xbf16> to vector<8x8x4xbf16>
    %39 = vector.shape_cast %38 : vector<8x8x4xbf16> to vector<64x4xbf16>
    %40 = vector.extract_strided_slice %27 {offsets = [2, 0, 0], sizes = [8, 8, 4], strides = [1, 1, 1]} : vector<10x10x4xbf16> to vector<8x8x4xbf16>
    %41 = vector.shape_cast %40 : vector<8x8x4xbf16> to vector<64x4xbf16>
    %42 = vector.extract_strided_slice %27 {offsets = [2, 1, 0], sizes = [8, 8, 4], strides = [1, 1, 1]} : vector<10x10x4xbf16> to vector<8x8x4xbf16>
    %43 = vector.shape_cast %42 : vector<8x8x4xbf16> to vector<64x4xbf16>
    %44 = vector.extract_strided_slice %27 {offsets = [2, 2, 0], sizes = [8, 8, 4], strides = [1, 1, 1]} : vector<10x10x4xbf16> to vector<8x8x4xbf16>
    %45 = vector.shape_cast %44 : vector<8x8x4xbf16> to vector<64x4xbf16>
    %46 = tpu.concatenate %29, %31, %33, %35, %37, %39, %41, %43, %45 in 1 : vector<64x4xbf16>, vector<64x4xbf16>, vector<64x4xbf16>, vector<64x4xbf16>, vector<64x4xbf16>, vector<64x4xbf16>, vector<64x4xbf16>, vector<64x4xbf16>, vector<64x4xbf16> -> vector<64x36xbf16>
    %c1 = arith.constant 1 : index
    %c0_10 = arith.constant 0 : index
    %c0_11 = arith.constant 0 : index
    %47 = vector.load %arg5[%c1, %c0_10, %c0_11] : memref<3x36x8xbf16, #tpu.memory_space<vmem>>, vector<1x36x8xbf16>
    %48 = vector.shape_cast %47 : vector<1x36x8xbf16> to vector<36x8xbf16>
    %cst_12 = arith.constant dense<0.000000e+00> : vector<64x8xf32>
    %49 = tpu.matmul %46, %48, %cst_12 {dimension_numbers = #tpu.dot_dimension_numbers<[1], [0], [0], [1], [0, 0, 1, 1], [], []>} : vector<64x36xbf16>, vector<36x8xbf16>, vector<64x8xf32> -> vector<64x8xf32>
    %50 = arith.addf %24, %49 : vector<64x8xf32>
    %c0_13 = arith.constant 0 : index
    %c0_14 = arith.constant 0 : index
    %c0_15 = arith.constant 0 : index
    %c0_16 = arith.constant 0 : index
    %51 = vector.load %arg4[%c0_13, %c0_14, %c0_15, %c0_16] : memref<1x10x10x4xf32, #tpu.memory_space<vmem>>, vector<1x10x10x4xf32>
    %52 = vector.shape_cast %51 : vector<1x10x10x4xf32> to vector<10x10x4xf32>
    %53 = arith.truncf %52 : vector<10x10x4xf32> to vector<10x10x4xbf16>
    %54 = vector.extract_strided_slice %53 {offsets = [0, 0, 0], sizes = [8, 8, 4], strides = [1, 1, 1]} : vector<10x10x4xbf16> to vector<8x8x4xbf16>
    %55 = vector.shape_cast %54 : vector<8x8x4xbf16> to vector<64x4xbf16>
    %56 = vector.extract_strided_slice %53 {offsets = [0, 1, 0], sizes = [8, 8, 4], strides = [1, 1, 1]} : vector<10x10x4xbf16> to vector<8x8x4xbf16>
    %57 = vector.shape_cast %56 : vector<8x8x4xbf16> to vector<64x4xbf16>
    %58 = vector.extract_strided_slice %53 {offsets = [0, 2, 0], sizes = [8, 8, 4], strides = [1, 1, 1]} : vector<10x10x4xbf16> to vector<8x8x4xbf16>
    %59 = vector.shape_cast %58 : vector<8x8x4xbf16> to vector<64x4xbf16>
    %60 = vector.extract_strided_slice %53 {offsets = [1, 0, 0], sizes = [8, 8, 4], strides = [1, 1, 1]} : vector<10x10x4xbf16> to vector<8x8x4xbf16>
    %61 = vector.shape_cast %60 : vector<8x8x4xbf16> to vector<64x4xbf16>
    %62 = vector.extract_strided_slice %53 {offsets = [1, 1, 0], sizes = [8, 8, 4], strides = [1, 1, 1]} : vector<10x10x4xbf16> to vector<8x8x4xbf16>
    %63 = vector.shape_cast %62 : vector<8x8x4xbf16> to vector<64x4xbf16>
    %64 = vector.extract_strided_slice %53 {offsets = [1, 2, 0], sizes = [8, 8, 4], strides = [1, 1, 1]} : vector<10x10x4xbf16> to vector<8x8x4xbf16>
    %65 = vector.shape_cast %64 : vector<8x8x4xbf16> to vector<64x4xbf16>
    %66 = vector.extract_strided_slice %53 {offsets = [2, 0, 0], sizes = [8, 8, 4], strides = [1, 1, 1]} : vector<10x10x4xbf16> to vector<8x8x4xbf16>
    %67 = vector.shape_cast %66 : vector<8x8x4xbf16> to vector<64x4xbf16>
    %68 = vector.extract_strided_slice %53 {offsets = [2, 1, 0], sizes = [8, 8, 4], strides = [1, 1, 1]} : vector<10x10x4xbf16> to vector<8x8x4xbf16>
    %69 = vector.shape_cast %68 : vector<8x8x4xbf16> to vector<64x4xbf16>
    %70 = vector.extract_strided_slice %53 {offsets = [2, 2, 0], sizes = [8, 8, 4], strides = [1, 1, 1]} : vector<10x10x4xbf16> to vector<8x8x4xbf16>
    %71 = vector.shape_cast %70 : vector<8x8x4xbf16> to vector<64x4xbf16>
    %72 = tpu.concatenate %55, %57, %59, %61, %63, %65, %67, %69, %71 in 1 : vector<64x4xbf16>, vector<64x4xbf16>, vector<64x4xbf16>, vector<64x4xbf16>, vector<64x4xbf16>, vector<64x4xbf16>, vector<64x4xbf16>, vector<64x4xbf16>, vector<64x4xbf16> -> vector<64x36xbf16>
    %c2 = arith.constant 2 : index
    %c0_17 = arith.constant 0 : index
    %c0_18 = arith.constant 0 : index
    %73 = vector.load %arg5[%c2, %c0_17, %c0_18] : memref<3x36x8xbf16, #tpu.memory_space<vmem>>, vector<1x36x8xbf16>
    %74 = vector.shape_cast %73 : vector<1x36x8xbf16> to vector<36x8xbf16>
    %cst_19 = arith.constant dense<0.000000e+00> : vector<64x8xf32>
    %75 = tpu.matmul %72, %74, %cst_19 {dimension_numbers = #tpu.dot_dimension_numbers<[1], [0], [0], [1], [0, 0, 1, 1], [], []>} : vector<64x36xbf16>, vector<36x8xbf16>, vector<64x8xf32> -> vector<64x8xf32>
    %76 = arith.addf %50, %75 : vector<64x8xf32>
    %c0_20 = arith.constant 0 : index
    %c0_21 = arith.constant 0 : index
    %77 = vector.load %arg6[%c0_20, %c0_21] : memref<1x8xf32, #tpu.memory_space<vmem>>, vector<1x8xf32>
    %78 = vector.broadcast %77 : vector<1x8xf32> to vector<64x8xf32>
    %79 = arith.addf %76, %78 : vector<64x8xf32>
    %80 = arith.truncf %79 : vector<64x8xf32> to vector<64x8xbf16>
    %c0_22 = arith.constant 0 : index
    %c0_23 = arith.constant 0 : index
    %c0_24 = arith.constant 0 : index
    %81 = vector.load %arg7[%c0_22, %c0_23, %c0_24] : memref<1x64x8xbf16, #tpu.memory_space<vmem>>, vector<1x64x8xbf16>
    %82 = vector.shape_cast %81 : vector<1x64x8xbf16> to vector<64x8xbf16>
    %83 = vector.shape_cast %80 : vector<64x8xbf16> to vector<1x64x8xbf16>
    tpu.vector_store %arg7[%c0_22, %c0_23, %c0_24], %83 {strides = array<i32>} : memref<1x64x8xbf16, #tpu.memory_space<vmem>>, vector<1x64x8xbf16>,
    %cst_25 = arith.constant dense<0.000000e+00> : vector<8xf32>
    %84 = vector.multi_reduction <add>, %79, %cst_25 [0] : vector<64x8xf32> to vector<8xf32>
    %85 = vector.shape_cast %84 : vector<8xf32> to vector<1x8xf32>
    %c0_26 = arith.constant 0 : index
    %c0_27 = arith.constant 0 : index
    %c0_28 = arith.constant 0 : index
    %86 = vector.load %arg8[%c0_26, %c0_27, %c0_28] : memref<1x1x8xf32, #tpu.memory_space<vmem>>, vector<1x1x8xf32>
    %87 = vector.shape_cast %86 : vector<1x1x8xf32> to vector<1x8xf32>
    %88 = vector.shape_cast %85 : vector<1x8xf32> to vector<1x1x8xf32>
    tpu.vector_store %arg8[%c0_26, %c0_27, %c0_28], %88 {strides = array<i32>} : memref<1x1x8xf32, #tpu.memory_space<vmem>>, vector<1x1x8xf32>,
    %89 = arith.mulf %79, %79 : vector<64x8xf32>
    %cst_29 = arith.constant dense<0.000000e+00> : vector<8xf32>
    %90 = vector.multi_reduction <add>, %89, %cst_29 [0] : vector<64x8xf32> to vector<8xf32>
    %91 = vector.shape_cast %90 : vector<8xf32> to vector<1x8xf32>
    %c0_30 = arith.constant 0 : index
    %c0_31 = arith.constant 0 : index
    %c0_32 = arith.constant 0 : index
    %92 = vector.load %arg9[%c0_30, %c0_31, %c0_32] : memref<1x1x8xf32, #tpu.memory_space<vmem>>, vector<1x1x8xf32>
    %93 = vector.shape_cast %92 : vector<1x1x8xf32> to vector<1x8xf32>
    %94 = vector.shape_cast %91 : vector<1x8xf32> to vector<1x1x8xf32>
    tpu.vector_store %arg9[%c0_30, %c0_31, %c0_32], %94 {strides = array<i32>} : memref<1x1x8xf32, #tpu.memory_space<vmem>>, vector<1x1x8xf32>,
    return
  }
  func.func @transform_0(%arg0: i32, %arg1: i32) -> (i32, i32, i32, i32) {
    %c10_i32 = arith.constant 10 : i32
    %0 = arith.muli %arg0, %c10_i32 : i32
    %1 = arith.addi %0, %arg1 : i32
    %c0_i32 = arith.constant 0 : i32
    %2 = arith.addi %1, %c0_i32 : i32
    %c0_i32_0 = arith.constant 0 : i32
    %c0_i32_1 = arith.constant 0 : i32
    %c0_i32_2 = arith.constant 0 : i32
    %c0_i32_3 = arith.constant 0 : i32
    return %2, %c0_i32_0, %c0_i32_1, %c0_i32_2 : i32, i32, i32, i32
  }
  func.func @transform_1(%arg0: i32, %arg1: i32) -> (i32, i32, i32, i32) {
    %c10_i32 = arith.constant 10 : i32
    %0 = arith.muli %arg0, %c10_i32 : i32
    %1 = arith.addi %0, %arg1 : i32
    %c1_i32 = arith.constant 1 : i32
    %2 = arith.addi %1, %c1_i32 : i32
    %c0_i32 = arith.constant 0 : i32
    %c0_i32_0 = arith.constant 0 : i32
    %c0_i32_1 = arith.constant 0 : i32
    %c0_i32_2 = arith.constant 0 : i32
    return %2, %c0_i32, %c0_i32_0, %c0_i32_1 : i32, i32, i32, i32
  }
  func.func @transform_2(%arg0: i32, %arg1: i32) -> (i32, i32, i32, i32) {
    %c10_i32 = arith.constant 10 : i32
    %0 = arith.muli %arg0, %c10_i32 : i32
    %1 = arith.addi %0, %arg1 : i32
    %c2_i32 = arith.constant 2 : i32
    %2 = arith.addi %1, %c2_i32 : i32
    %c0_i32 = arith.constant 0 : i32
    %c0_i32_0 = arith.constant 0 : i32
    %c0_i32_1 = arith.constant 0 : i32
    %c0_i32_2 = arith.constant 0 : i32
    return %2, %c0_i32, %c0_i32_0, %c0_i32_1 : i32, i32, i32, i32
  }
  func.func @transform_3(%arg0: i32, %arg1: i32) -> (i32, i32, i32) {
    %c0_i32 = arith.constant 0 : i32
    %c0_i32_0 = arith.constant 0 : i32
    %c0_i32_1 = arith.constant 0 : i32
    %c0_i32_2 = arith.constant 0 : i32
    return %c0_i32, %c0_i32_0, %c0_i32_1 : i32, i32, i32
  }
  func.func @transform_4(%arg0: i32, %arg1: i32) -> (i32, i32) {
    %c0_i32 = arith.constant 0 : i32
    %c0_i32_0 = arith.constant 0 : i32
    %c0_i32_1 = arith.constant 0 : i32
    return %c0_i32, %c0_i32_0 : i32, i32
  }
  func.func @transform_5(%arg0: i32, %arg1: i32) -> (i32, i32, i32) {
    %c8_i32 = arith.constant 8 : i32
    %0 = arith.muli %arg0, %c8_i32 : i32
    %1 = arith.addi %0, %arg1 : i32
    %c0_i32 = arith.constant 0 : i32
    %c0_i32_0 = arith.constant 0 : i32
    %c0_i32_1 = arith.constant 0 : i32
    return %1, %c0_i32, %c0_i32_0 : i32, i32, i32
  }
  func.func @transform_6(%arg0: i32, %arg1: i32) -> (i32, i32, i32) {
    %c8_i32 = arith.constant 8 : i32
    %0 = arith.muli %arg0, %c8_i32 : i32
    %1 = arith.addi %0, %arg1 : i32
    %c0_i32 = arith.constant 0 : i32
    %c0_i32_0 = arith.constant 0 : i32
    %c0_i32_1 = arith.constant 0 : i32
    return %1, %c0_i32, %c0_i32_0 : i32, i32, i32
  }
  func.func @transform_7(%arg0: i32, %arg1: i32) -> (i32, i32, i32) {
    %c8_i32 = arith.constant 8 : i32
    %0 = arith.muli %arg0, %c8_i32 : i32
    %1 = arith.addi %0, %arg1 : i32
    %c0_i32 = arith.constant 0 : i32
    %c0_i32_0 = arith.constant 0 : i32
    %c0_i32_1 = arith.constant 0 : i32
    return %1, %c0_i32, %c0_i32_0 : i32, i32, i32
  }
}

module attributes {stable_mosaic.version = 11 : i64} {
  func.func @gn_apply_kernel(%arg0: i32, %arg1: i32, %arg2: memref<1x512x8xbf16, #tpu.memory_space<vmem>>, %arg3: memref<1x1x8xf32, #tpu.memory_space<vmem>>, %arg4: memref<1x1x8xf32, #tpu.memory_space<vmem>>, %arg5: memref<1x1x8xf32, #tpu.memory_space<vmem>>, %arg6: memref<1x512x8xbf16, #tpu.memory_space<vmem>>) attributes {dimension_semantics = [#tpu.dimension_semantics<parallel>, #tpu.dimension_semantics<parallel>], iteration_bounds = array<i64: 2, 1>, scalar_prefetch = 0 : i64, scratch_operands = 0 : i64, tpu.core_type = #tpu.core_type<tc>, window_params = [{transform_indices = @transform_0, window_bounds = array<i64: 1, 512, 8>}, {transform_indices = @transform_1, window_bounds = array<i64: 1, 1, 8>}, {transform_indices = @transform_2, window_bounds = array<i64: 1, 1, 8>}, {transform_indices = @transform_3, window_bounds = array<i64: 1, 1, 8>}, {transform_indices = @transform_4, window_bounds = array<i64: 1, 512, 8>}]} {
    %c0 = arith.constant 0 : index
    %c0_0 = arith.constant 0 : index
    %c0_1 = arith.constant 0 : index
    %0 = vector.load %arg2[%c0, %c0_0, %c0_1] : memref<1x512x8xbf16, #tpu.memory_space<vmem>>, vector<1x512x8xbf16>
    %1 = arith.extf %0 : vector<1x512x8xbf16> to vector<1x512x8xf32>
    %c0_2 = arith.constant 0 : index
    %c0_3 = arith.constant 0 : index
    %c0_4 = arith.constant 0 : index
    %2 = vector.load %arg3[%c0_2, %c0_3, %c0_4] : memref<1x1x8xf32, #tpu.memory_space<vmem>>, vector<1x1x8xf32>
    %3 = vector.broadcast %2 : vector<1x1x8xf32> to vector<1x512x8xf32>
    %4 = arith.mulf %1, %3 : vector<1x512x8xf32>
    %c0_5 = arith.constant 0 : index
    %c0_6 = arith.constant 0 : index
    %c0_7 = arith.constant 0 : index
    %5 = vector.load %arg4[%c0_5, %c0_6, %c0_7] : memref<1x1x8xf32, #tpu.memory_space<vmem>>, vector<1x1x8xf32>
    %6 = vector.broadcast %5 : vector<1x1x8xf32> to vector<1x512x8xf32>
    %7 = arith.addf %4, %6 : vector<1x512x8xf32>
    %8 = arith.negf %7 : vector<1x512x8xf32>
    %9 = math.exp %8 : vector<1x512x8xf32>
    %cst = arith.constant 1.000000e+00 : f32
    %10 = vector.broadcast %cst : f32 to vector<1x512x8xf32>
    %11 = arith.addf %10, %9 : vector<1x512x8xf32>
    %12 = arith.divf %10, %11 : vector<1x512x8xf32>
    %13 = arith.mulf %7, %12 : vector<1x512x8xf32>
    %c0_8 = arith.constant 0 : index
    %c0_9 = arith.constant 0 : index
    %c0_10 = arith.constant 0 : index
    %14 = vector.load %arg5[%c0_8, %c0_9, %c0_10] : memref<1x1x8xf32, #tpu.memory_space<vmem>>, vector<1x1x8xf32>
    %15 = vector.broadcast %14 : vector<1x1x8xf32> to vector<1x512x8xf32>
    %16 = arith.addf %13, %15 : vector<1x512x8xf32>
    %17 = arith.truncf %16 : vector<1x512x8xf32> to vector<1x512x8xbf16>
    %c0_11 = arith.constant 0 : index
    %c0_12 = arith.constant 0 : index
    %c0_13 = arith.constant 0 : index
    %18 = vector.load %arg6[%c0_11, %c0_12, %c0_13] : memref<1x512x8xbf16, #tpu.memory_space<vmem>>, vector<1x512x8xbf16>
    tpu.vector_store %arg6[%c0_11, %c0_12, %c0_13], %17 {strides = array<i32>} : memref<1x512x8xbf16, #tpu.memory_space<vmem>>, vector<1x512x8xbf16>,
    return
  }
  func.func @transform_0(%arg0: i32, %arg1: i32) -> (i32, i32, i32) {
    %c0_i32 = arith.constant 0 : i32
    %c0_i32_0 = arith.constant 0 : i32
    return %arg0, %arg1, %c0_i32 : i32, i32, i32
  }
  func.func @transform_1(%arg0: i32, %arg1: i32) -> (i32, i32, i32) {
    %c0_i32 = arith.constant 0 : i32
    %c0_i32_0 = arith.constant 0 : i32
    %c0_i32_1 = arith.constant 0 : i32
    return %arg0, %c0_i32, %c0_i32_0 : i32, i32, i32
  }
  func.func @transform_2(%arg0: i32, %arg1: i32) -> (i32, i32, i32) {
    %c0_i32 = arith.constant 0 : i32
    %c0_i32_0 = arith.constant 0 : i32
    %c0_i32_1 = arith.constant 0 : i32
    return %arg0, %c0_i32, %c0_i32_0 : i32, i32, i32
  }
  func.func @transform_3(%arg0: i32, %arg1: i32) -> (i32, i32, i32) {
    %c0_i32 = arith.constant 0 : i32
    %c0_i32_0 = arith.constant 0 : i32
    %c0_i32_1 = arith.constant 0 : i32
    return %arg0, %c0_i32, %c0_i32_0 : i32, i32, i32
  }
  func.func @transform_4(%arg0: i32, %arg1: i32) -> (i32, i32, i32) {
    %c0_i32 = arith.constant 0 : i32
    %c0_i32_0 = arith.constant 0 : i32
    return %arg0, %arg1, %c0_i32 : i32, i32, i32
  }
}

module attributes {stable_mosaic.version = 11 : i64} {
  func.func @conv3x3_kernel(%arg0: i32, %arg1: i32, %arg2: memref<1x10x10x8xbf16, #tpu.memory_space<vmem>>, %arg3: memref<1x10x10x8xbf16, #tpu.memory_space<vmem>>, %arg4: memref<1x10x10x8xbf16, #tpu.memory_space<vmem>>, %arg5: memref<3x72x8xbf16, #tpu.memory_space<vmem>>, %arg6: memref<1x8xf32, #tpu.memory_space<vmem>>, %arg7: memref<1x64x8xbf16, #tpu.memory_space<vmem>>, %arg8: memref<1x1x8xf32, #tpu.memory_space<vmem>>, %arg9: memref<1x1x8xf32, #tpu.memory_space<vmem>>) attributes {dimension_semantics = [#tpu.dimension_semantics<parallel>, #tpu.dimension_semantics<parallel>], iteration_bounds = array<i64: 2, 8>, scalar_prefetch = 0 : i64, scratch_operands = 0 : i64, tpu.core_type = #tpu.core_type<tc>, window_params = [{transform_indices = @transform_0, window_bounds = array<i64: 1, 10, 10, 8>}, {transform_indices = @transform_1, window_bounds = array<i64: 1, 10, 10, 8>}, {transform_indices = @transform_2, window_bounds = array<i64: 1, 10, 10, 8>}, {pipeline_mode = #tpu.pipeline_mode<synchronous>, transform_indices = @transform_3, window_bounds = array<i64: 3, 72, 8>}, {pipeline_mode = #tpu.pipeline_mode<synchronous>, transform_indices = @transform_4, window_bounds = array<i64: 1, 8>}, {transform_indices = @transform_5, window_bounds = array<i64: 1, 64, 8>}, {transform_indices = @transform_6, window_bounds = array<i64: 1, 1, 8>}, {transform_indices = @transform_7, window_bounds = array<i64: 1, 1, 8>}]} {
    %c0 = arith.constant 0 : index
    %c0_0 = arith.constant 0 : index
    %c0_1 = arith.constant 0 : index
    %c0_2 = arith.constant 0 : index
    %0 = vector.load %arg2[%c0, %c0_0, %c0_1, %c0_2] : memref<1x10x10x8xbf16, #tpu.memory_space<vmem>>, vector<1x10x10x8xbf16>
    %1 = vector.shape_cast %0 : vector<1x10x10x8xbf16> to vector<10x10x8xbf16>
    %2 = vector.extract_strided_slice %1 {offsets = [0, 0, 0], sizes = [8, 8, 8], strides = [1, 1, 1]} : vector<10x10x8xbf16> to vector<8x8x8xbf16>
    %3 = vector.shape_cast %2 : vector<8x8x8xbf16> to vector<64x8xbf16>
    %4 = vector.extract_strided_slice %1 {offsets = [0, 1, 0], sizes = [8, 8, 8], strides = [1, 1, 1]} : vector<10x10x8xbf16> to vector<8x8x8xbf16>
    %5 = vector.shape_cast %4 : vector<8x8x8xbf16> to vector<64x8xbf16>
    %6 = vector.extract_strided_slice %1 {offsets = [0, 2, 0], sizes = [8, 8, 8], strides = [1, 1, 1]} : vector<10x10x8xbf16> to vector<8x8x8xbf16>
    %7 = vector.shape_cast %6 : vector<8x8x8xbf16> to vector<64x8xbf16>
    %8 = vector.extract_strided_slice %1 {offsets = [1, 0, 0], sizes = [8, 8, 8], strides = [1, 1, 1]} : vector<10x10x8xbf16> to vector<8x8x8xbf16>
    %9 = vector.shape_cast %8 : vector<8x8x8xbf16> to vector<64x8xbf16>
    %10 = vector.extract_strided_slice %1 {offsets = [1, 1, 0], sizes = [8, 8, 8], strides = [1, 1, 1]} : vector<10x10x8xbf16> to vector<8x8x8xbf16>
    %11 = vector.shape_cast %10 : vector<8x8x8xbf16> to vector<64x8xbf16>
    %12 = vector.extract_strided_slice %1 {offsets = [1, 2, 0], sizes = [8, 8, 8], strides = [1, 1, 1]} : vector<10x10x8xbf16> to vector<8x8x8xbf16>
    %13 = vector.shape_cast %12 : vector<8x8x8xbf16> to vector<64x8xbf16>
    %14 = vector.extract_strided_slice %1 {offsets = [2, 0, 0], sizes = [8, 8, 8], strides = [1, 1, 1]} : vector<10x10x8xbf16> to vector<8x8x8xbf16>
    %15 = vector.shape_cast %14 : vector<8x8x8xbf16> to vector<64x8xbf16>
    %16 = vector.extract_strided_slice %1 {offsets = [2, 1, 0], sizes = [8, 8, 8], strides = [1, 1, 1]} : vector<10x10x8xbf16> to vector<8x8x8xbf16>
    %17 = vector.shape_cast %16 : vector<8x8x8xbf16> to vector<64x8xbf16>
    %18 = vector.extract_strided_slice %1 {offsets = [2, 2, 0], sizes = [8, 8, 8], strides = [1, 1, 1]} : vector<10x10x8xbf16> to vector<8x8x8xbf16>
    %19 = vector.shape_cast %18 : vector<8x8x8xbf16> to vector<64x8xbf16>
    %20 = tpu.concatenate %3, %5, %7, %9, %11, %13, %15, %17, %19 in 1 : vector<64x8xbf16>, vector<64x8xbf16>, vector<64x8xbf16>, vector<64x8xbf16>, vector<64x8xbf16>, vector<64x8xbf16>, vector<64x8xbf16>, vector<64x8xbf16>, vector<64x8xbf16> -> vector<64x72xbf16>
    %c0_3 = arith.constant 0 : index
    %c0_4 = arith.constant 0 : index
    %c0_5 = arith.constant 0 : index
    %21 = vector.load %arg5[%c0_3, %c0_4, %c0_5] : memref<3x72x8xbf16, #tpu.memory_space<vmem>>, vector<1x72x8xbf16>
    %22 = vector.shape_cast %21 : vector<1x72x8xbf16> to vector<72x8xbf16>
    %cst = arith.constant dense<0.000000e+00> : vector<64x8xf32>
    %23 = tpu.matmul %20, %22, %cst {dimension_numbers = #tpu.dot_dimension_numbers<[1], [0], [0], [1], [0, 0, 1, 1], [], []>} : vector<64x72xbf16>, vector<72x8xbf16>, vector<64x8xf32> -> vector<64x8xf32>
    %c0_6 = arith.constant 0 : index
    %c0_7 = arith.constant 0 : index
    %c0_8 = arith.constant 0 : index
    %c0_9 = arith.constant 0 : index
    %24 = vector.load %arg3[%c0_6, %c0_7, %c0_8, %c0_9] : memref<1x10x10x8xbf16, #tpu.memory_space<vmem>>, vector<1x10x10x8xbf16>
    %25 = vector.shape_cast %24 : vector<1x10x10x8xbf16> to vector<10x10x8xbf16>
    %26 = vector.extract_strided_slice %25 {offsets = [0, 0, 0], sizes = [8, 8, 8], strides = [1, 1, 1]} : vector<10x10x8xbf16> to vector<8x8x8xbf16>
    %27 = vector.shape_cast %26 : vector<8x8x8xbf16> to vector<64x8xbf16>
    %28 = vector.extract_strided_slice %25 {offsets = [0, 1, 0], sizes = [8, 8, 8], strides = [1, 1, 1]} : vector<10x10x8xbf16> to vector<8x8x8xbf16>
    %29 = vector.shape_cast %28 : vector<8x8x8xbf16> to vector<64x8xbf16>
    %30 = vector.extract_strided_slice %25 {offsets = [0, 2, 0], sizes = [8, 8, 8], strides = [1, 1, 1]} : vector<10x10x8xbf16> to vector<8x8x8xbf16>
    %31 = vector.shape_cast %30 : vector<8x8x8xbf16> to vector<64x8xbf16>
    %32 = vector.extract_strided_slice %25 {offsets = [1, 0, 0], sizes = [8, 8, 8], strides = [1, 1, 1]} : vector<10x10x8xbf16> to vector<8x8x8xbf16>
    %33 = vector.shape_cast %32 : vector<8x8x8xbf16> to vector<64x8xbf16>
    %34 = vector.extract_strided_slice %25 {offsets = [1, 1, 0], sizes = [8, 8, 8], strides = [1, 1, 1]} : vector<10x10x8xbf16> to vector<8x8x8xbf16>
    %35 = vector.shape_cast %34 : vector<8x8x8xbf16> to vector<64x8xbf16>
    %36 = vector.extract_strided_slice %25 {offsets = [1, 2, 0], sizes = [8, 8, 8], strides = [1, 1, 1]} : vector<10x10x8xbf16> to vector<8x8x8xbf16>
    %37 = vector.shape_cast %36 : vector<8x8x8xbf16> to vector<64x8xbf16>
    %38 = vector.extract_strided_slice %25 {offsets = [2, 0, 0], sizes = [8, 8, 8], strides = [1, 1, 1]} : vector<10x10x8xbf16> to vector<8x8x8xbf16>
    %39 = vector.shape_cast %38 : vector<8x8x8xbf16> to vector<64x8xbf16>
    %40 = vector.extract_strided_slice %25 {offsets = [2, 1, 0], sizes = [8, 8, 8], strides = [1, 1, 1]} : vector<10x10x8xbf16> to vector<8x8x8xbf16>
    %41 = vector.shape_cast %40 : vector<8x8x8xbf16> to vector<64x8xbf16>
    %42 = vector.extract_strided_slice %25 {offsets = [2, 2, 0], sizes = [8, 8, 8], strides = [1, 1, 1]} : vector<10x10x8xbf16> to vector<8x8x8xbf16>
    %43 = vector.shape_cast %42 : vector<8x8x8xbf16> to vector<64x8xbf16>
    %44 = tpu.concatenate %27, %29, %31, %33, %35, %37, %39, %41, %43 in 1 : vector<64x8xbf16>, vector<64x8xbf16>, vector<64x8xbf16>, vector<64x8xbf16>, vector<64x8xbf16>, vector<64x8xbf16>, vector<64x8xbf16>, vector<64x8xbf16>, vector<64x8xbf16> -> vector<64x72xbf16>
    %c1 = arith.constant 1 : index
    %c0_10 = arith.constant 0 : index
    %c0_11 = arith.constant 0 : index
    %45 = vector.load %arg5[%c1, %c0_10, %c0_11] : memref<3x72x8xbf16, #tpu.memory_space<vmem>>, vector<1x72x8xbf16>
    %46 = vector.shape_cast %45 : vector<1x72x8xbf16> to vector<72x8xbf16>
    %cst_12 = arith.constant dense<0.000000e+00> : vector<64x8xf32>
    %47 = tpu.matmul %44, %46, %cst_12 {dimension_numbers = #tpu.dot_dimension_numbers<[1], [0], [0], [1], [0, 0, 1, 1], [], []>} : vector<64x72xbf16>, vector<72x8xbf16>, vector<64x8xf32> -> vector<64x8xf32>
    %48 = arith.addf %23, %47 : vector<64x8xf32>
    %c0_13 = arith.constant 0 : index
    %c0_14 = arith.constant 0 : index
    %c0_15 = arith.constant 0 : index
    %c0_16 = arith.constant 0 : index
    %49 = vector.load %arg4[%c0_13, %c0_14, %c0_15, %c0_16] : memref<1x10x10x8xbf16, #tpu.memory_space<vmem>>, vector<1x10x10x8xbf16>
    %50 = vector.shape_cast %49 : vector<1x10x10x8xbf16> to vector<10x10x8xbf16>
    %51 = vector.extract_strided_slice %50 {offsets = [0, 0, 0], sizes = [8, 8, 8], strides = [1, 1, 1]} : vector<10x10x8xbf16> to vector<8x8x8xbf16>
    %52 = vector.shape_cast %51 : vector<8x8x8xbf16> to vector<64x8xbf16>
    %53 = vector.extract_strided_slice %50 {offsets = [0, 1, 0], sizes = [8, 8, 8], strides = [1, 1, 1]} : vector<10x10x8xbf16> to vector<8x8x8xbf16>
    %54 = vector.shape_cast %53 : vector<8x8x8xbf16> to vector<64x8xbf16>
    %55 = vector.extract_strided_slice %50 {offsets = [0, 2, 0], sizes = [8, 8, 8], strides = [1, 1, 1]} : vector<10x10x8xbf16> to vector<8x8x8xbf16>
    %56 = vector.shape_cast %55 : vector<8x8x8xbf16> to vector<64x8xbf16>
    %57 = vector.extract_strided_slice %50 {offsets = [1, 0, 0], sizes = [8, 8, 8], strides = [1, 1, 1]} : vector<10x10x8xbf16> to vector<8x8x8xbf16>
    %58 = vector.shape_cast %57 : vector<8x8x8xbf16> to vector<64x8xbf16>
    %59 = vector.extract_strided_slice %50 {offsets = [1, 1, 0], sizes = [8, 8, 8], strides = [1, 1, 1]} : vector<10x10x8xbf16> to vector<8x8x8xbf16>
    %60 = vector.shape_cast %59 : vector<8x8x8xbf16> to vector<64x8xbf16>
    %61 = vector.extract_strided_slice %50 {offsets = [1, 2, 0], sizes = [8, 8, 8], strides = [1, 1, 1]} : vector<10x10x8xbf16> to vector<8x8x8xbf16>
    %62 = vector.shape_cast %61 : vector<8x8x8xbf16> to vector<64x8xbf16>
    %63 = vector.extract_strided_slice %50 {offsets = [2, 0, 0], sizes = [8, 8, 8], strides = [1, 1, 1]} : vector<10x10x8xbf16> to vector<8x8x8xbf16>
    %64 = vector.shape_cast %63 : vector<8x8x8xbf16> to vector<64x8xbf16>
    %65 = vector.extract_strided_slice %50 {offsets = [2, 1, 0], sizes = [8, 8, 8], strides = [1, 1, 1]} : vector<10x10x8xbf16> to vector<8x8x8xbf16>
    %66 = vector.shape_cast %65 : vector<8x8x8xbf16> to vector<64x8xbf16>
    %67 = vector.extract_strided_slice %50 {offsets = [2, 2, 0], sizes = [8, 8, 8], strides = [1, 1, 1]} : vector<10x10x8xbf16> to vector<8x8x8xbf16>
    %68 = vector.shape_cast %67 : vector<8x8x8xbf16> to vector<64x8xbf16>
    %69 = tpu.concatenate %52, %54, %56, %58, %60, %62, %64, %66, %68 in 1 : vector<64x8xbf16>, vector<64x8xbf16>, vector<64x8xbf16>, vector<64x8xbf16>, vector<64x8xbf16>, vector<64x8xbf16>, vector<64x8xbf16>, vector<64x8xbf16>, vector<64x8xbf16> -> vector<64x72xbf16>
    %c2 = arith.constant 2 : index
    %c0_17 = arith.constant 0 : index
    %c0_18 = arith.constant 0 : index
    %70 = vector.load %arg5[%c2, %c0_17, %c0_18] : memref<3x72x8xbf16, #tpu.memory_space<vmem>>, vector<1x72x8xbf16>
    %71 = vector.shape_cast %70 : vector<1x72x8xbf16> to vector<72x8xbf16>
    %cst_19 = arith.constant dense<0.000000e+00> : vector<64x8xf32>
    %72 = tpu.matmul %69, %71, %cst_19 {dimension_numbers = #tpu.dot_dimension_numbers<[1], [0], [0], [1], [0, 0, 1, 1], [], []>} : vector<64x72xbf16>, vector<72x8xbf16>, vector<64x8xf32> -> vector<64x8xf32>
    %73 = arith.addf %48, %72 : vector<64x8xf32>
    %c0_20 = arith.constant 0 : index
    %c0_21 = arith.constant 0 : index
    %74 = vector.load %arg6[%c0_20, %c0_21] : memref<1x8xf32, #tpu.memory_space<vmem>>, vector<1x8xf32>
    %75 = vector.broadcast %74 : vector<1x8xf32> to vector<64x8xf32>
    %76 = arith.addf %73, %75 : vector<64x8xf32>
    %77 = arith.truncf %76 : vector<64x8xf32> to vector<64x8xbf16>
    %c0_22 = arith.constant 0 : index
    %c0_23 = arith.constant 0 : index
    %c0_24 = arith.constant 0 : index
    %78 = vector.load %arg7[%c0_22, %c0_23, %c0_24] : memref<1x64x8xbf16, #tpu.memory_space<vmem>>, vector<1x64x8xbf16>
    %79 = vector.shape_cast %78 : vector<1x64x8xbf16> to vector<64x8xbf16>
    %80 = vector.shape_cast %77 : vector<64x8xbf16> to vector<1x64x8xbf16>
    tpu.vector_store %arg7[%c0_22, %c0_23, %c0_24], %80 {strides = array<i32>} : memref<1x64x8xbf16, #tpu.memory_space<vmem>>, vector<1x64x8xbf16>,
    %cst_25 = arith.constant dense<0.000000e+00> : vector<8xf32>
    %81 = vector.multi_reduction <add>, %76, %cst_25 [0] : vector<64x8xf32> to vector<8xf32>
    %82 = vector.shape_cast %81 : vector<8xf32> to vector<1x8xf32>
    %c0_26 = arith.constant 0 : index
    %c0_27 = arith.constant 0 : index
    %c0_28 = arith.constant 0 : index
    %83 = vector.load %arg8[%c0_26, %c0_27, %c0_28] : memref<1x1x8xf32, #tpu.memory_space<vmem>>, vector<1x1x8xf32>
    %84 = vector.shape_cast %83 : vector<1x1x8xf32> to vector<1x8xf32>
    %85 = vector.shape_cast %82 : vector<1x8xf32> to vector<1x1x8xf32>
    tpu.vector_store %arg8[%c0_26, %c0_27, %c0_28], %85 {strides = array<i32>} : memref<1x1x8xf32, #tpu.memory_space<vmem>>, vector<1x1x8xf32>,
    %86 = arith.mulf %76, %76 : vector<64x8xf32>
    %cst_29 = arith.constant dense<0.000000e+00> : vector<8xf32>
    %87 = vector.multi_reduction <add>, %86, %cst_29 [0] : vector<64x8xf32> to vector<8xf32>
    %88 = vector.shape_cast %87 : vector<8xf32> to vector<1x8xf32>
    %c0_30 = arith.constant 0 : index
    %c0_31 = arith.constant 0 : index
    %c0_32 = arith.constant 0 : index
    %89 = vector.load %arg9[%c0_30, %c0_31, %c0_32] : memref<1x1x8xf32, #tpu.memory_space<vmem>>, vector<1x1x8xf32>
    %90 = vector.shape_cast %89 : vector<1x1x8xf32> to vector<1x8xf32>
    %91 = vector.shape_cast %88 : vector<1x8xf32> to vector<1x1x8xf32>
    tpu.vector_store %arg9[%c0_30, %c0_31, %c0_32], %91 {strides = array<i32>} : memref<1x1x8xf32, #tpu.memory_space<vmem>>, vector<1x1x8xf32>,
    return
  }
  func.func @transform_0(%arg0: i32, %arg1: i32) -> (i32, i32, i32, i32) {
    %c10_i32 = arith.constant 10 : i32
    %0 = arith.muli %arg0, %c10_i32 : i32
    %1 = arith.addi %0, %arg1 : i32
    %c0_i32 = arith.constant 0 : i32
    %2 = arith.addi %1, %c0_i32 : i32
    %c0_i32_0 = arith.constant 0 : i32
    %c0_i32_1 = arith.constant 0 : i32
    %c0_i32_2 = arith.constant 0 : i32
    %c0_i32_3 = arith.constant 0 : i32
    return %2, %c0_i32_0, %c0_i32_1, %c0_i32_2 : i32, i32, i32, i32
  }
  func.func @transform_1(%arg0: i32, %arg1: i32) -> (i32, i32, i32, i32) {
    %c10_i32 = arith.constant 10 : i32
    %0 = arith.muli %arg0, %c10_i32 : i32
    %1 = arith.addi %0, %arg1 : i32
    %c1_i32 = arith.constant 1 : i32
    %2 = arith.addi %1, %c1_i32 : i32
    %c0_i32 = arith.constant 0 : i32
    %c0_i32_0 = arith.constant 0 : i32
    %c0_i32_1 = arith.constant 0 : i32
    %c0_i32_2 = arith.constant 0 : i32
    return %2, %c0_i32, %c0_i32_0, %c0_i32_1 : i32, i32, i32, i32
  }
  func.func @transform_2(%arg0: i32, %arg1: i32) -> (i32, i32, i32, i32) {
    %c10_i32 = arith.constant 10 : i32
    %0 = arith.muli %arg0, %c10_i32 : i32
    %1 = arith.addi %0, %arg1 : i32
    %c2_i32 = arith.constant 2 : i32
    %2 = arith.addi %1, %c2_i32 : i32
    %c0_i32 = arith.constant 0 : i32
    %c0_i32_0 = arith.constant 0 : i32
    %c0_i32_1 = arith.constant 0 : i32
    %c0_i32_2 = arith.constant 0 : i32
    return %2, %c0_i32, %c0_i32_0, %c0_i32_1 : i32, i32, i32, i32
  }
  func.func @transform_3(%arg0: i32, %arg1: i32) -> (i32, i32, i32) {
    %c0_i32 = arith.constant 0 : i32
    %c0_i32_0 = arith.constant 0 : i32
    %c0_i32_1 = arith.constant 0 : i32
    %c0_i32_2 = arith.constant 0 : i32
    return %c0_i32, %c0_i32_0, %c0_i32_1 : i32, i32, i32
  }
  func.func @transform_4(%arg0: i32, %arg1: i32) -> (i32, i32) {
    %c0_i32 = arith.constant 0 : i32
    %c0_i32_0 = arith.constant 0 : i32
    %c0_i32_1 = arith.constant 0 : i32
    return %c0_i32, %c0_i32_0 : i32, i32
  }
  func.func @transform_5(%arg0: i32, %arg1: i32) -> (i32, i32, i32) {
    %c8_i32 = arith.constant 8 : i32
    %0 = arith.muli %arg0, %c8_i32 : i32
    %1 = arith.addi %0, %arg1 : i32
    %c0_i32 = arith.constant 0 : i32
    %c0_i32_0 = arith.constant 0 : i32
    %c0_i32_1 = arith.constant 0 : i32
    return %1, %c0_i32, %c0_i32_0 : i32, i32, i32
  }
  func.func @transform_6(%arg0: i32, %arg1: i32) -> (i32, i32, i32) {
    %c8_i32 = arith.constant 8 : i32
    %0 = arith.muli %arg0, %c8_i32 : i32
    %1 = arith.addi %0, %arg1 : i32
    %c0_i32 = arith.constant 0 : i32
    %c0_i32_0 = arith.constant 0 : i32
    %c0_i32_1 = arith.constant 0 : i32
    return %1, %c0_i32, %c0_i32_0 : i32, i32, i32
  }
  func.func @transform_7(%arg0: i32, %arg1: i32) -> (i32, i32, i32) {
    %c8_i32 = arith.constant 8 : i32
    %0 = arith.muli %arg0, %c8_i32 : i32
    %1 = arith.addi %0, %arg1 : i32
    %c0_i32 = arith.constant 0 : i32
    %c0_i32_0 = arith.constant 0 : i32
    %c0_i32_1 = arith.constant 0 : i32
    return %1, %c0_i32, %c0_i32_0 : i32, i32, i32
  }
}

module attributes {stable_mosaic.version = 11 : i64} {
  func.func @gn_apply_resconv_kernel(%arg0: i32, %arg1: i32, %arg2: memref<1x512x8xbf16, #tpu.memory_space<vmem>>, %arg3: memref<1x1x8xf32, #tpu.memory_space<vmem>>, %arg4: memref<1x1x8xf32, #tpu.memory_space<vmem>>, %arg5: memref<1x512x4xf32, #tpu.memory_space<vmem>>, %arg6: memref<4x8xbf16, #tpu.memory_space<vmem>>, %arg7: memref<1x8xf32, #tpu.memory_space<vmem>>, %arg8: memref<1x512x8xf32, #tpu.memory_space<vmem>>) attributes {dimension_semantics = [#tpu.dimension_semantics<parallel>, #tpu.dimension_semantics<parallel>], iteration_bounds = array<i64: 2, 1>, scalar_prefetch = 0 : i64, scratch_operands = 0 : i64, tpu.core_type = #tpu.core_type<tc>, window_params = [{transform_indices = @transform_0, window_bounds = array<i64: 1, 512, 8>}, {transform_indices = @transform_1, window_bounds = array<i64: 1, 1, 8>}, {transform_indices = @transform_2, window_bounds = array<i64: 1, 1, 8>}, {transform_indices = @transform_3, window_bounds = array<i64: 1, 512, 4>}, {pipeline_mode = #tpu.pipeline_mode<synchronous>, transform_indices = @transform_4, window_bounds = array<i64: 4, 8>}, {pipeline_mode = #tpu.pipeline_mode<synchronous>, transform_indices = @transform_5, window_bounds = array<i64: 1, 8>}, {transform_indices = @transform_6, window_bounds = array<i64: 1, 512, 8>}]} {
    %c0 = arith.constant 0 : index
    %c0_0 = arith.constant 0 : index
    %c0_1 = arith.constant 0 : index
    %0 = vector.load %arg2[%c0, %c0_0, %c0_1] : memref<1x512x8xbf16, #tpu.memory_space<vmem>>, vector<1x512x8xbf16>
    %1 = vector.shape_cast %0 : vector<1x512x8xbf16> to vector<512x8xbf16>
    %2 = arith.extf %1 : vector<512x8xbf16> to vector<512x8xf32>
    %c0_2 = arith.constant 0 : index
    %c0_3 = arith.constant 0 : index
    %c0_4 = arith.constant 0 : index
    %3 = vector.load %arg3[%c0_2, %c0_3, %c0_4] : memref<1x1x8xf32, #tpu.memory_space<vmem>>, vector<1x1x8xf32>
    %4 = vector.shape_cast %3 : vector<1x1x8xf32> to vector<1x8xf32>
    %5 = vector.broadcast %4 : vector<1x8xf32> to vector<512x8xf32>
    %6 = arith.mulf %2, %5 : vector<512x8xf32>
    %c0_5 = arith.constant 0 : index
    %c0_6 = arith.constant 0 : index
    %c0_7 = arith.constant 0 : index
    %7 = vector.load %arg4[%c0_5, %c0_6, %c0_7] : memref<1x1x8xf32, #tpu.memory_space<vmem>>, vector<1x1x8xf32>
    %8 = vector.shape_cast %7 : vector<1x1x8xf32> to vector<1x8xf32>
    %9 = vector.broadcast %8 : vector<1x8xf32> to vector<512x8xf32>
    %10 = arith.addf %6, %9 : vector<512x8xf32>
    %11 = arith.negf %10 : vector<512x8xf32>
    %12 = math.exp %11 : vector<512x8xf32>
    %cst = arith.constant 1.000000e+00 : f32
    %13 = vector.broadcast %cst : f32 to vector<512x8xf32>
    %14 = arith.addf %13, %12 : vector<512x8xf32>
    %15 = arith.divf %13, %14 : vector<512x8xf32>
    %16 = arith.mulf %10, %15 : vector<512x8xf32>
    %c0_8 = arith.constant 0 : index
    %c0_9 = arith.constant 0 : index
    %c0_10 = arith.constant 0 : index
    %17 = vector.load %arg5[%c0_8, %c0_9, %c0_10] : memref<1x512x4xf32, #tpu.memory_space<vmem>>, vector<1x512x4xf32>
    %18 = vector.shape_cast %17 : vector<1x512x4xf32> to vector<512x4xf32>
    %19 = arith.truncf %18 : vector<512x4xf32> to vector<512x4xbf16>
    %c0_11 = arith.constant 0 : index
    %c0_12 = arith.constant 0 : index
    %20 = vector.load %arg6[%c0_11, %c0_12] : memref<4x8xbf16, #tpu.memory_space<vmem>>, vector<4x8xbf16>
    %cst_13 = arith.constant dense<0.000000e+00> : vector<512x8xf32>
    %21 = tpu.matmul %19, %20, %cst_13 {dimension_numbers = #tpu.dot_dimension_numbers<[1], [0], [0], [1], [0, 0, 1, 1], [], []>} : vector<512x4xbf16>, vector<4x8xbf16>, vector<512x8xf32> -> vector<512x8xf32>
    %c0_14 = arith.constant 0 : index
    %c0_15 = arith.constant 0 : index
    %22 = vector.load %arg7[%c0_14, %c0_15] : memref<1x8xf32, #tpu.memory_space<vmem>>, vector<1x8xf32>
    %23 = vector.broadcast %22 : vector<1x8xf32> to vector<512x8xf32>
    %24 = arith.addf %21, %23 : vector<512x8xf32>
    %25 = arith.addf %16, %24 : vector<512x8xf32>
    %c0_16 = arith.constant 0 : index
    %c0_17 = arith.constant 0 : index
    %c0_18 = arith.constant 0 : index
    %26 = vector.load %arg8[%c0_16, %c0_17, %c0_18] : memref<1x512x8xf32, #tpu.memory_space<vmem>>, vector<1x512x8xf32>
    %27 = vector.shape_cast %26 : vector<1x512x8xf32> to vector<512x8xf32>
    %28 = vector.shape_cast %25 : vector<512x8xf32> to vector<1x512x8xf32>
    tpu.vector_store %arg8[%c0_16, %c0_17, %c0_18], %28 {strides = array<i32>} : memref<1x512x8xf32, #tpu.memory_space<vmem>>, vector<1x512x8xf32>,
    return
  }
  func.func @transform_0(%arg0: i32, %arg1: i32) -> (i32, i32, i32) {
    %c0_i32 = arith.constant 0 : i32
    %c0_i32_0 = arith.constant 0 : i32
    return %arg0, %arg1, %c0_i32 : i32, i32, i32
  }
  func.func @transform_1(%arg0: i32, %arg1: i32) -> (i32, i32, i32) {
    %c0_i32 = arith.constant 0 : i32
    %c0_i32_0 = arith.constant 0 : i32
    %c0_i32_1 = arith.constant 0 : i32
    return %arg0, %c0_i32, %c0_i32_0 : i32, i32, i32
  }
  func.func @transform_2(%arg0: i32, %arg1: i32) -> (i32, i32, i32) {
    %c0_i32 = arith.constant 0 : i32
    %c0_i32_0 = arith.constant 0 : i32
    %c0_i32_1 = arith.constant 0 : i32
    return %arg0, %c0_i32, %c0_i32_0 : i32, i32, i32
  }
  func.func @transform_3(%arg0: i32, %arg1: i32) -> (i32, i32, i32) {
    %c0_i32 = arith.constant 0 : i32
    %c0_i32_0 = arith.constant 0 : i32
    return %arg0, %arg1, %c0_i32 : i32, i32, i32
  }
  func.func @transform_4(%arg0: i32, %arg1: i32) -> (i32, i32) {
    %c0_i32 = arith.constant 0 : i32
    %c0_i32_0 = arith.constant 0 : i32
    %c0_i32_1 = arith.constant 0 : i32
    return %c0_i32, %c0_i32_0 : i32, i32
  }
  func.func @transform_5(%arg0: i32, %arg1: i32) -> (i32, i32) {
    %c0_i32 = arith.constant 0 : i32
    %c0_i32_0 = arith.constant 0 : i32
    %c0_i32_1 = arith.constant 0 : i32
    return %c0_i32, %c0_i32_0 : i32, i32
  }
  func.func @transform_6(%arg0: i32, %arg1: i32) -> (i32, i32, i32) {
    %c0_i32 = arith.constant 0 : i32
    %c0_i32_0 = arith.constant 0 : i32
    return %arg0, %arg1, %c0_i32 : i32, i32, i32
  }
}

</mosaic_0001>

<llo_original>
// kernel: resnet_block_forward.4
$region0: #{resnet_block_forward.4}
  #allocation0 [shape = 'u32[]', space=smem, size = 0x4, offset = 0x4, fixed_abs, tag = 'smem constant byte address 0x4 - core index']
  #allocation1 [shape = 'u32[144,128]{1,0:T(1,128)}', space=vmem, size = 0x12000, scoped, tag = 'internal scratch']
  %s0 = inlined_call_operand.vmem [shape: f32[20,10,10,4], index: 0, kind: input, shape index: {}, may-alias: {0,1,2}]
  %s1 = inlined_call_operand.vmem [shape: f32[20,10,10,4], index: 1, kind: input, shape index: {}, may-alias: {0,1,2}]
  %s2 = inlined_call_operand.vmem [shape: f32[20,10,10,4], index: 2, kind: input, shape index: {}, may-alias: {0,1,2}]
  %s3 = inlined_call_operand.vmem [shape: bf16[3,36,8], index: 3, kind: input, shape index: {}]
  %s4 = inlined_call_operand.vmem [shape: f32[1,8], index: 4, kind: input, shape index: {}]
  %s5 = inlined_call_operand.vmem [shape: bf16[16,64,8], index: 5, kind: output, shape index: {0}]
  %s6 = inlined_call_operand.vmem [shape: f32[16,1,8], index: 6, kind: output, shape index: {1}]
  %s7 = inlined_call_operand.vmem [shape: f32[16,1,8], index: 7, kind: output, shape index: {2}]
  %8 = xla_tuple %s5, %s6, %s7
  %s9 = sld [smem:[#allocation0]]
  $region69: #{resnet_block_forward.4} parent=0
    _
  %s11 = ssub.s32 1, %s9
  %s12 = scalar_select 0, %s11, %s9
  loop: start=0, step=1, limit=18
  $region2: #{resnet_block_forward.4} parent=0 // loop_pre_header
    _
  $region3: #{resnet_block_forward.4} parent=0 // loop_header
    %s14 = sphi 0, %s18
    %p15 = scmp.ge.s32.totalorder %s14, 18
    %s21 = sphi 0, %s33
    %s22 = sphi 0, %s29
    %s23 = sphi 0, %s21
    %s24 = sphi 0, %s22
    %s25 = sphi 0, %s23
    %s26 = sphi 0, %s24
    %s40 = sphi 0, %s42
    %s43 = sphi 0, %s40
    %s44 = sphi 0, %s43
    %s60 = sphi 0, %s44
    %s72 = sphi 0, %s74
    %s75 = sphi 0, %s72
    %s76 = sphi 0, %s75
    %s92 = sphi 0, %s76
    %s104 = sphi 0, %s106
    %s107 = sphi 0, %s104
    %s108 = sphi 0, %s107
    %s124 = sphi 0, %s108
    %s128 = sphi 0, %s128
    %s130 = sphi 0, %s128
    %s131 = sphi 0, %s130
    %s145 = sphi 0, %s131
    %s149 = sphi 0, %s149
    %s151 = sphi 0, %s149
    %s152 = sphi 0, %s151
    %s166 = sphi 0, %s152
    %s176 = sphi 0, %s178
    %s179 = sphi 0, %s176
    %s180 = sphi 0, %s179
    %s196 = sphi 0, %s180
    %s206 = sphi 0, %s208
    %s209 = sphi 0, %s206
    %s210 = sphi 0, %s209
    %s226 = sphi 0, %s210
    %s236 = sphi 0, %s238
    %s239 = sphi 0, %s236
    %s240 = sphi 0, %s239
    %s256 = sphi 0, %s240
  $region4: #{resnet_block_forward.4} parent=0 // loop_header_branch
    %17 = sbr.rel (%p15) target = $region8
  $region5: #{resnet_block_forward.4} parent=0 // loop_body
    %s19 = ssub.s32 %s14, 1
    %s20 = ssub.s32 %s14, 2
    %s27 = sadd.s32 1, %s22
    %p28 = scmp.ge.s32.totalorder %s27, 8
    %s29 = scalar_select %p28, 0, %s27
    %s30 = sadd.s32 1, %s21
    %s31 = scalar_select %p28, %s30, %s21
    %p32 = scmp.ge.s32.totalorder %s31, 2
    %s33 = scalar_select %p32, 0, %s31
    %s34 = smul.u32 %s21, 10
    %s35 = sadd.s32 %s34, %s22
    %s36 = smul.u32 %s33, 10
    %s37 = sadd.s32 %s36, %s29
    %s38 = ssub.s32 %s35, %s37
    %p39 = scmp.eq.s32.totalorder %s38, 0
    %s41 = sadd.s32 %s40, 1
    %s42 = scalar_select %p39, %s40, %s41
    %p45 = pneg %p39
    %p46 = scmp.eq.s32.totalorder %s14, 15
    %p47 = por %p45, %p46
    %p48 = scmp.ne.s32.totalorder %s40, %s43
    %p49 = scmp.eq.s32.totalorder %s14, 0
    %p50 = por %p48, %p49
    %p51 = scmp.ne.s32.totalorder %s40, %s43
    %p52 = scmp.eq.s32.totalorder %s19, 15
    %p53 = por %p51, %p52
    %p54 = scmp.ne.s32.totalorder %s43, %s44
    %p55 = scmp.eq.s32.totalorder %s19, 0
    %p56 = por %p54, %p55
    %p57 = scmp.ne.s32.totalorder %s43, %s44
    %p58 = scmp.eq.s32.totalorder %s20, 15
    %p59 = por %p57, %p58
    %p61 = scmp.ne.s32.totalorder %s44, %s60
    %p62 = scmp.eq.s32.totalorder %s20, 0
    %p63 = por %p61, %p62
    %s64 = smul.u32 %s21, 10
    %s65 = sadd.s32 %s64, %s22
    %s66 = sadd.s32 %s65, 1
    %s67 = smul.u32 %s33, 10
    %s68 = sadd.s32 %s67, %s29
    %s69 = sadd.s32 %s68, 1
    %s70 = ssub.s32 %s66, %s69
    %p71 = scmp.eq.s32.totalorder %s70, 0
    %s73 = sadd.s32 %s72, 1
    %s74 = scalar_select %p71, %s72, %s73
    %p77 = pneg %p71
    %p78 = scmp.eq.s32.totalorder %s14, 15
    %p79 = por %p77, %p78
    %p80 = scmp.ne.s32.totalorder %s72, %s75
    %p81 = scmp.eq.s32.totalorder %s14, 0
    %p82 = por %p80, %p81
    %p83 = scmp.ne.s32.totalorder %s72, %s75
    %p84 = scmp.eq.s32.totalorder %s19, 15
    %p85 = por %p83, %p84
    %p86 = scmp.ne.s32.totalorder %s75, %s76
    %p87 = scmp.eq.s32.totalorder %s19, 0
    %p88 = por %p86, %p87
    %p89 = scmp.ne.s32.totalorder %s75, %s76
    %p90 = scmp.eq.s32.totalorder %s20, 15
    %p91 = por %p89, %p90
    %p93 = scmp.ne.s32.totalorder %s76, %s92
    %p94 = scmp.eq.s32.totalorder %s20, 0
    %p95 = por %p93, %p94
    %s96 = smul.u32 %s21, 10
    %s97 = sadd.s32 %s96, %s22
    %s98 = sadd.s32 %s97, 2
    %s99 = smul.u32 %s33, 10
    %s100 = sadd.s32 %s99, %s29
    %s101 = sadd.s32 %s100, 2
    %s102 = ssub.s32 %s98, %s101
    %p103 = scmp.eq.s32.totalorder %s102, 0
    %s105 = sadd.s32 %s104, 1
    %s106 = scalar_select %p103, %s104, %s105
    %p109 = pneg %p103
    %p110 = scmp.eq.s32.totalorder %s14, 15
    %p111 = por %p109, %p110
    %p112 = scmp.ne.s32.totalorder %s104, %s107
    %p113 = scmp.eq.s32.totalorder %s14, 0
    %p114 = por %p112, %p113
    %p115 = scmp.ne.s32.totalorder %s104, %s107
    %p116 = scmp.eq.s32.totalorder %s19, 15
    %p117 = por %p115, %p116
    %p118 = scmp.ne.s32.totalorder %s107, %s108
    %p119 = scmp.eq.s32.totalorder %s19, 0
    %p120 = por %p118, %p119
    %p121 = scmp.ne.s32.totalorder %s107, %s108
    %p122 = scmp.eq.s32.totalorder %s20, 15
    %p123 = por %p121, %p122
    %p125 = scmp.ne.s32.totalorder %s108, %s124
    %p126 = scmp.eq.s32.totalorder %s20, 0
    %p127 = por %p125, %p126
    %s129 = sadd.s32 %s128, 1
    %p132 = scmp.eq.s32.totalorder %s14, 15
    %p133 = scmp.ne.s32.totalorder %s128, %s130
    %p134 = scmp.eq.s32.totalorder %s14, 0
    %p135 = por %p133, %p134
    %p136 = scmp.ne.s32.totalorder %s128, %s130
    %p137 = scmp.eq.s32.totalorder %s19, 15
    %p138 = por %p136, %p137
    %p139 = scmp.ne.s32.totalorder %s130, %s131
    %p140 = scmp.eq.s32.totalorder %s19, 0
    %p141 = por %p139, %p140
    %p142 = scmp.ne.s32.totalorder %s130, %s131
    %p143 = scmp.eq.s32.totalorder %s20, 15
    %p144 = por %p142, %p143
    %p146 = scmp.ne.s32.totalorder %s131, %s145
    %p147 = scmp.eq.s32.totalorder %s20, 0
    %p148 = por %p146, %p147
    %s150 = sadd.s32 %s149, 1
    %p153 = scmp.eq.s32.totalorder %s14, 15
    %p154 = scmp.ne.s32.totalorder %s149, %s151
    %p155 = scmp.eq.s32.totalorder %s14, 0
    %p156 = por %p154, %p155
    %p157 = scmp.ne.s32.totalorder %s149, %s151
    %p158 = scmp.eq.s32.totalorder %s19, 15
    %p159 = por %p157, %p158
    %p160 = scmp.ne.s32.totalorder %s151, %s152
    %p161 = scmp.eq.s32.totalorder %s19, 0
    %p162 = por %p160, %p161
    %p163 = scmp.ne.s32.totalorder %s151, %s152
    %p164 = scmp.eq.s32.totalorder %s20, 15
    %p165 = por %p163, %p164
    %p167 = scmp.ne.s32.totalorder %s152, %s166
    %p168 = scmp.eq.s32.totalorder %s20, 0
    %p169 = por %p167, %p168
    %s170 = smul.u32 %s21, 8
    %s171 = sadd.s32 %s170, %s22
    %s172 = smul.u32 %s33, 8
    %s173 = sadd.s32 %s172, %s29
    %s174 = ssub.s32 %s171, %s173
    %p175 = scmp.eq.s32.totalorder %s174, 0
    %s177 = sadd.s32 %s176, 1
    %s178 = scalar_select %p175, %s176, %s177
    %p181 = pneg %p175
    %p182 = scmp.eq.s32.totalorder %s14, 15
    %p183 = por %p181, %p182
    %p184 = scmp.ne.s32.totalorder %s176, %s179
    %p185 = scmp.eq.s32.totalorder %s14, 0
    %p186 = por %p184, %p185
    %p187 = scmp.ne.s32.totalorder %s176, %s179
    %p188 = scmp.eq.s32.totalorder %s19, 15
    %p189 = por %p187, %p188
    %p190 = scmp.ne.s32.totalorder %s179, %s180
    %p191 = scmp.eq.s32.totalorder %s19, 0
    %p192 = por %p190, %p191
    %p193 = scmp.ne.s32.totalorder %s179, %s180
    %p194 = scmp.eq.s32.totalorder %s20, 15
    %p195 = por %p193, %p194
    %p197 = scmp.ne.s32.totalorder %s180, %s196
    %p198 = scmp.eq.s32.totalorder %s20, 0
    %p199 = por %p197, %p198
    %s200 = smul.u32 %s21, 8
    %s201 = sadd.s32 %s200, %s22
    %s202 = smul.u32 %s33, 8
    %s203 = sadd.s32 %s202, %s29
    %s204 = ssub.s32 %s201, %s203
    %p205 = scmp.eq.s32.totalorder %s204, 0
    %s207 = sadd.s32 %s206, 1
    %s208 = scalar_select %p205, %s206, %s207
    %p211 = pneg %p205
    %p212 = scmp.eq.s32.totalorder %s14, 15
    %p213 = por %p211, %p212
    %p214 = scmp.ne.s32.totalorder %s206, %s209
    %p215 = scmp.eq.s32.totalorder %s14, 0
    %p216 = por %p214, %p215
    %p217 = scmp.ne.s32.totalorder %s206, %s209
    %p218 = scmp.eq.s32.totalorder %s19, 15
    %p219 = por %p217, %p218
    %p220 = scmp.ne.s32.totalorder %s209, %s210
    %p221 = scmp.eq.s32.totalorder %s19, 0
    %p222 = por %p220, %p221
    %p223 = scmp.ne.s32.totalorder %s209, %s210
    %p224 = scmp.eq.s32.totalorder %s20, 15
    %p225 = por %p223, %p224
    %p227 = scmp.ne.s32.totalorder %s210, %s226
    %p228 = scmp.eq.s32.totalorder %s20, 0
    %p229 = por %p227, %p228
    %s230 = smul.u32 %s21, 8
    %s231 = sadd.s32 %s230, %s22
    %s232 = smul.u32 %s33, 8
    %s233 = sadd.s32 %s232, %s29
    %s234 = ssub.s32 %s231, %s233
    %p235 = scmp.eq.s32.totalorder %s234, 0
    %s237 = sadd.s32 %s236, 1
    %s238 = scalar_select %p235, %s236, %s237
    %p241 = pneg %p235
    %p242 = scmp.eq.s32.totalorder %s14, 15
    %p243 = por %p241, %p242
    %p244 = scmp.ne.s32.totalorder %s236, %s239
    %p245 = scmp.eq.s32.totalorder %s14, 0
    %p246 = por %p244, %p245
    %p247 = scmp.ne.s32.totalorder %s236, %s239
    %p248 = scmp.eq.s32.totalorder %s19, 15
    %p249 = por %p247, %p248
    %p250 = scmp.ne.s32.totalorder %s239, %s240
    %p251 = scmp.eq.s32.totalorder %s19, 0
    %p252 = por %p250, %p251
    %p253 = scmp.ne.s32.totalorder %s239, %s240
    %p254 = scmp.eq.s32.totalorder %s20, 15
    %p255 = por %p253, %p254
    %p257 = scmp.ne.s32.totalorder %s240, %s256
    %p258 = scmp.eq.s32.totalorder %s20, 0
    %p259 = por %p257, %p258
    %p260 = scmp.le.s32.totalorder 1, %s14
    %p261 = scmp.lt.s32.totalorder %s14, 17
    %p262 = pnand %p260, %p261
    %p263 = pneg %p262
    // Predicated region
    $region9: #{resnet_block_forward.4} parent=5 // pred_check
      _
    $region10: #{resnet_block_forward.4} parent=5 // pred_check_branch
      %265 = sbr.rel (%p262) target = $region12
    $region11: #{resnet_block_forward.4} parent=5 // pred_region
      %s266 = ssub.s32 %s14, 1
      // Predicated region
      $region13: #{resnet_block_forward.4} parent=11 // pred_check
        %p267 = pneg %p141
      $region14: #{resnet_block_forward.4} parent=11 // pred_check_branch
        %269 = sbr.rel (%p267) target = $region16
      $region15: #{resnet_block_forward.4} parent=11 // pred_region
        _
      $region16: #{resnet_block_forward.4} parent=11 // pred_fallthru
        _
      // Predicated region
      $region17: #{resnet_block_forward.4} parent=11 // pred_check
        %p270 = pneg %p162
      $region18: #{resnet_block_forward.4} parent=11 // pred_check_branch
        %272 = sbr.rel (%p270) target = $region20
      $region19: #{resnet_block_forward.4} parent=11 // pred_region
        _
      $region20: #{resnet_block_forward.4} parent=11 // pred_fallthru
        _
    $region12: #{resnet_block_forward.4} parent=5 // pred_fallthru
      _
    %p273 = scmp.lt.s32.totalorder %s14, 16
    // Predicated region
    $region21: #{resnet_block_forward.4} parent=5 // pred_check
      %p274 = pneg %p273
    $region22: #{resnet_block_forward.4} parent=5 // pred_check_branch
      %276 = sbr.rel (%p274) target = $region24
    $region23: #{resnet_block_forward.4} parent=5 // pred_region
      // Predicated region
      $region25: #{resnet_block_forward.4} parent=23 // pred_check
        %p277 = pneg %p50
      $region26: #{resnet_block_forward.4} parent=23 // pred_check_branch
        %279 = sbr.rel (%p277) target = $region28
      $region27: #{resnet_block_forward.4} parent=23 // pred_region
        %s280 = smul.u32 %s21, 10
        %s281 = sadd.s32 %s280, %s22
        %p282 = scmp.lt.s32.totalorder %s281, 19
        %s283 = scalar_select %p282, %s281, 19
        %s284 = smul.addr %s283, 20
        %s285 = smul.addr %s284, 8
        %s286 = scalar_lea.vmem %s0, %s285
        %s287 = smul.u32 %s21, 10
        %s288 = sadd.s32 %s287, %s22
      $region28: #{resnet_block_forward.4} parent=23 // pred_fallthru
        _
      // Predicated region
      $region29: #{resnet_block_forward.4} parent=23 // pred_check
        %p289 = pneg %p82
      $region30: #{resnet_block_forward.4} parent=23 // pred_check_branch
        %291 = sbr.rel (%p289) target = $region32
      $region31: #{resnet_block_forward.4} parent=23 // pred_region
        %s292 = smul.u32 %s21, 10
        %s293 = sadd.s32 %s292, %s22
        %s294 = sadd.s32 %s293, 1
        %p295 = scmp.lt.s32.totalorder %s294, 19
        %s296 = scalar_select %p295, %s294, 19
        %s297 = smul.addr %s296, 20
        %s298 = smul.addr %s297, 8
        %s299 = scalar_lea.vmem %s1, %s298
        %s300 = smul.u32 %s21, 10
        %s301 = sadd.s32 %s300, %s22
        %s302 = sadd.s32 %s301, 1
      $region32: #{resnet_block_forward.4} parent=23 // pred_fallthru
        _
      // Predicated region
      $region33: #{resnet_block_forward.4} parent=23 // pred_check
        %p303 = pneg %p114
      $region34: #{resnet_block_forward.4} parent=23 // pred_check_branch
        %305 = sbr.rel (%p303) target = $region36
      $region35: #{resnet_block_forward.4} parent=23 // pred_region
        %s306 = smul.u32 %s21, 10
        %s307 = sadd.s32 %s306, %s22
        %s308 = sadd.s32 %s307, 2
        %p309 = scmp.lt.s32.totalorder %s308, 19
        %s310 = scalar_select %p309, %s308, 19
        %s311 = smul.addr %s310, 20
        %s312 = smul.addr %s311, 8
        %s313 = scalar_lea.vmem %s2, %s312
        %s314 = smul.u32 %s21, 10
        %s315 = sadd.s32 %s314, %s22
        %s316 = sadd.s32 %s315, 2
      $region36: #{resnet_block_forward.4} parent=23 // pred_fallthru
        _
    $region24: #{resnet_block_forward.4} parent=5 // pred_fallthru
      _
    %p317 = scmp.le.s32.totalorder 1, %s14
    %p318 = scmp.lt.s32.totalorder %s14, 17
    %p319 = pnand %p317, %p318
    %p320 = pneg %p319
    // Predicated region
    $region37: #{resnet_block_forward.4} parent=5 // pred_check
      _
    $region38: #{resnet_block_forward.4} parent=5 // pred_check_branch
      %322 = sbr.rel (%p319) target = $region40
    $region39: #{resnet_block_forward.4} parent=5 // pred_region
      %s323 = ssub.s32 %s14, 1
      %s324 = smul.u32 %s23, 10
      %s325 = sadd.s32 %s324, %s24
      %p326 = scmp.lt.s32.totalorder %s325, 19
      %s327 = scalar_select %p326, %s325, 19
      %s328 = smul.addr %s327, 20
      %s329 = smul.addr %s328, 8
      %s330 = scalar_lea.vmem %s0, %s329
      %p331 = pneg %p56
      %p332 = pneg %p53
      %s333 = smul.u32 %s23, 10
      %s334 = sadd.s32 %s333, %s24
      %s335 = sadd.s32 %s334, 1
      %p336 = scmp.lt.s32.totalorder %s335, 19
      %s337 = scalar_select %p336, %s335, 19
      %s338 = smul.addr %s337, 20
      %s339 = smul.addr %s338, 8
      %s340 = scalar_lea.vmem %s1, %s339
      %p341 = pneg %p88
      %p342 = pneg %p85
      %s343 = smul.u32 %s23, 10
      %s344 = sadd.s32 %s343, %s24
      %s345 = sadd.s32 %s344, 2
      %p346 = scmp.lt.s32.totalorder %s345, 19
      %s347 = scalar_select %p346, %s345, 19
      %s348 = smul.addr %s347, 20
      %s349 = smul.addr %s348, 8
      %s350 = scalar_lea.vmem %s2, %s349
      %p351 = pneg %p120
      %p352 = pneg %p117
      %p353 = pneg %p141
      %p354 = pneg %p138
      %p355 = pneg %p162
      %p356 = pneg %p159
      %p357 = pneg %p192
      %p358 = pneg %p189
      %s359 = smul.u32 %s23, 8
      %s360 = sadd.s32 %s359, %s24
      %p361 = scmp.lt.s32.totalorder %s360, 15
      %s362 = scalar_select %p361, %s360, 15
      %s363 = smul.addr %s362, 8
      %s364 = smul.addr %s363, 4
      %s365 = scalar_lea.vmem %s5, %s364
      %p366 = pneg %p222
      %p367 = pneg %p219
      %s368 = smul.u32 %s23, 8
      %s369 = sadd.s32 %s368, %s24
      %p370 = scmp.lt.s32.totalorder %s369, 15
      %s371 = scalar_select %p370, %s369, 15
      %s372 = scalar_lea.vmem %s6, %s371
      %p373 = pneg %p252
      %p374 = pneg %p249
      %s375 = smul.u32 %s23, 8
      %s376 = sadd.s32 %s375, %s24
      %p377 = scmp.lt.s32.totalorder %s376, 15
      %s378 = scalar_select %p377, %s376, 15
      %s379 = scalar_lea.vmem %s7, %s378
      %s380 = smul.u32 %s23, 10
      %s381 = sadd.s32 %s380, %s24
      %p382 = scmp.lt.s32.totalorder %s381, 19
      %s383 = scalar_select %p382, %s381, 19
      %s384 = smul.addr %s383, 20
      %s385 = smul.addr %s384, 8
      %s386 = scalar_lea.vmem %s0, %s385
      %s387 = smul.u32 %s23, 10
      %s388 = sadd.s32 %s387, %s24
      %s389 = smul.u32 %s23, 10
      %s390 = sadd.s32 %s389, %s24
      %s391 = sadd.s32 %s390, 1
      %p392 = scmp.lt.s32.totalorder %s391, 19
      %s393 = scalar_select %p392, %s391, 19
      %s394 = smul.addr %s393, 20
      %s395 = smul.addr %s394, 8
      %s396 = scalar_lea.vmem %s1, %s395
      %s397 = smul.u32 %s23, 10
      %s398 = sadd.s32 %s397, %s24
      %s399 = sadd.s32 %s398, 1
      %s400 = smul.u32 %s23, 10
      %s401 = sadd.s32 %s400, %s24
      %s402 = sadd.s32 %s401, 2
      %p403 = scmp.lt.s32.totalorder %s402, 19
      %s404 = scalar_select %p403, %s402, 19
      %s405 = smul.addr %s404, 20
      %s406 = smul.addr %s405, 8
      %s407 = scalar_lea.vmem %s2, %s406
      %s408 = smul.u32 %s23, 10
      %s409 = sadd.s32 %s408, %s24
      %s410 = sadd.s32 %s409, 2
      %s411 = smul.u32 %s23, 8
      %s412 = sadd.s32 %s411, %s24
      %p413 = scmp.lt.s32.totalorder %s412, 15
      %s414 = scalar_select %p413, %s412, 15
      %s415 = smul.addr %s414, 8
      %s416 = smul.addr %s415, 4
      %s417 = scalar_lea.vmem %s5, %s416
      %s418 = smul.u32 %s23, 8
      %s419 = sadd.s32 %s418, %s24
      %s420 = smul.u32 %s23, 8
      %s421 = sadd.s32 %s420, %s24
      %p422 = scmp.lt.s32.totalorder %s421, 15
      %s423 = scalar_select %p422, %s421, 15
      %s424 = scalar_lea.vmem %s6, %s423
      %s425 = smul.u32 %s23, 8
      %s426 = sadd.s32 %s425, %s24
      %s427 = smul.u32 %s23, 8
      %s428 = sadd.s32 %s427, %s24
      %p429 = scmp.lt.s32.totalorder %s428, 15
      %s430 = scalar_select %p429, %s428, 15
      %s431 = scalar_lea.vmem %s7, %s430
      %s432 = smul.u32 %s23, 8
      %s433 = sadd.s32 %s432, %s24
      %v435 = vld [vmem:[%s386] sm:$0xff]
      %v436 = vld [vmem:[%s386 + $0x8] sm:$0x3]
      %v437 = vld [vmem:[%s386 + $0x10] sm:$0xff]
      %v438 = vld [vmem:[%s386 + $0x18] sm:$0x3]
      %v439 = vld [vmem:[%s386 + $0x20] sm:$0xff]
      %v440 = vld [vmem:[%s386 + $0x28] sm:$0x3]
      %v441 = vld [vmem:[%s386 + $0x30] sm:$0xff]
      %v442 = vld [vmem:[%s386 + $0x38] sm:$0x3]
      %v443 = vld [vmem:[%s386 + $0x40] sm:$0xff]
      %v444 = vld [vmem:[%s386 + $0x48] sm:$0x3]
      %v445 = vld [vmem:[%s386 + $0x50] sm:$0xff]
      %v446 = vld [vmem:[%s386 + $0x58] sm:$0x3]
      %v447 = vld [vmem:[%s386 + $0x60] sm:$0xff]
      %v448 = vld [vmem:[%s386 + $0x68] sm:$0x3]
      %v449 = vld [vmem:[%s386 + $0x70] sm:$0xff]
      %v450 = vld [vmem:[%s386 + $0x78] sm:$0x3]
      %v451 = vld [vmem:[%s386 + $0x80] sm:$0xff]
      %v452 = vld [vmem:[%s386 + $0x88] sm:$0x3]
      %v453 = vld [vmem:[%s386 + $0x90] sm:$0xff]
      %v454 = vld [vmem:[%s386 + $0x98] sm:$0x3]
      %v455 = vpack.c.bf16 %v436, %v435
      %v456 = vpack.c.bf16 %v438, %v437
      %v457 = vpack.c.bf16 %v440, %v439
      %v458 = vpack.c.bf16 %v442, %v441
      %v459 = vpack.c.bf16 %v444, %v443
      %v460 = vpack.c.bf16 %v446, %v445
      %v461 = vpack.c.bf16 %v448, %v447
      %v462 = vpack.c.bf16 %v450, %v449
      %v463 = vpack.c.bf16 %v452, %v451
      %v464 = vpack.c.bf16 %v454, %v453
      %v473 = vunpack.c.l.b16 %v455
      %v474 = vunpack.c.h.b16 %v455
      %v475 = vunpack.c.l.b16 %v456
      %v476 = vunpack.c.h.b16 %v456
      %v477 = vunpack.c.l.b16 %v457
      %v478 = vunpack.c.h.b16 %v457
      %v479 = vunpack.c.l.b16 %v458
      %v480 = vunpack.c.h.b16 %v458
      %v481 = vunpack.c.l.b16 %v459
      %v482 = vunpack.c.h.b16 %v459
      %v483 = vunpack.c.l.b16 %v460
      %v484 = vunpack.c.h.b16 %v460
      %v485 = vunpack.c.l.b16 %v461
      %v486 = vunpack.c.h.b16 %v461
      %v487 = vunpack.c.l.b16 %v462
      %v488 = vunpack.c.h.b16 %v462
      %v489 = vpack.c.b16 %v473, %v473
      %v490 = vpack.c.b16 %v474, %v474
      %v491 = vpack.c.b16 %v475, %v475
      %v492 = vpack.c.b16 %v476, %v476
      %v493 = vpack.c.b16 %v477, %v477
      %v494 = vpack.c.b16 %v478, %v478
      %v495 = vpack.c.b16 %v479, %v479
      %v496 = vpack.c.b16 %v480, %v480
      %v497 = vpack.c.b16 %v481, %v481
      %v498 = vpack.c.b16 %v482, %v482
      %v499 = vpack.c.b16 %v483, %v483
      %v500 = vpack.c.b16 %v484, %v484
      %v501 = vpack.c.b16 %v485, %v485
      %v502 = vpack.c.b16 %v486, %v486
      %v503 = vpack.c.b16 %v487, %v487
      %v504 = vpack.c.b16 %v488, %v488
      %vm505 = vsmask.f32 3328
      %vm506 = vsmask.f32 7440
      %vm507 = vmor %vm505, %vm506
      %v509 = vshrl.u32 %v489, 16
      %v511 = vrot.slane %v509, 4
      %v512 = vshll.u32 %v489, 16
      %v514 = vrot.slane %v512, 5
      %v515 = vor.u32 %v511, %v514
      %v516 = vrot.slane %v515, 4
      %v518 = vshll.u32 %v490, 16
      %v520 = vrot.slane %v518, 5
      %v521 = vsel %vm507, %v516, %v520
      %v523 = vshrl.u32 %v491, 16
      %v525 = vrot.slane %v523, 4
      %v526 = vshll.u32 %v491, 16
      %v528 = vrot.slane %v526, 5
      %v529 = vor.u32 %v525, %v528
      %v530 = vrot.slane %v529, 4
      %v532 = vshll.u32 %v492, 16
      %v534 = vrot.slane %v532, 5
      %v535 = vsel %vm507, %v530, %v534
      %v537 = vshrl.u32 %v493, 16
      %v539 = vrot.slane %v537, 4
      %v540 = vshll.u32 %v493, 16
      %v542 = vrot.slane %v540, 5
      %v543 = vor.u32 %v539, %v542
      %v544 = vrot.slane %v543, 4
      %v546 = vshll.u32 %v494, 16
      %v548 = vrot.slane %v546, 5
      %v549 = vsel %vm507, %v544, %v548
      %v551 = vshrl.u32 %v495, 16
      %v553 = vrot.slane %v551, 4
      %v554 = vshll.u32 %v495, 16
      %v556 = vrot.slane %v554, 5
      %v557 = vor.u32 %v553, %v556
      %v558 = vrot.slane %v557, 4
      %v560 = vshll.u32 %v496, 16
      %v562 = vrot.slane %v560, 5
      %v563 = vsel %vm507, %v558, %v562
      %v565 = vshrl.u32 %v497, 16
      %v567 = vrot.slane %v565, 4
      %v568 = vshll.u32 %v497, 16
      %v570 = vrot.slane %v568, 5
      %v571 = vor.u32 %v567, %v570
      %v572 = vrot.slane %v571, 4
      %v574 = vshll.u32 %v498, 16
      %v576 = vrot.slane %v574, 5
      %v577 = vsel %vm507, %v572, %v576
      %v579 = vshrl.u32 %v499, 16
      %v581 = vrot.slane %v579, 4
      %v582 = vshll.u32 %v499, 16
      %v584 = vrot.slane %v582, 5
      %v585 = vor.u32 %v581, %v584
      %v586 = vrot.slane %v585, 4
      %v588 = vshll.u32 %v500, 16
      %v590 = vrot.slane %v588, 5
      %v591 = vsel %vm507, %v586, %v590
      %v593 = vshrl.u32 %v501, 16
      %v595 = vrot.slane %v593, 4
      %v596 = vshll.u32 %v501, 16
      %v598 = vrot.slane %v596, 5
      %v599 = vor.u32 %v595, %v598
      %v600 = vrot.slane %v599, 4
      %v602 = vshll.u32 %v502, 16
      %v604 = vrot.slane %v602, 5
      %v605 = vsel %vm507, %v600, %v604
      %v607 = vshrl.u32 %v503, 16
      %v609 = vrot.slane %v607, 4
      %v610 = vshll.u32 %v503, 16
      %v612 = vrot.slane %v610, 5
      %v613 = vor.u32 %v609, %v612
      %v614 = vrot.slane %v613, 4
      %v616 = vshll.u32 %v504, 16
      %v618 = vrot.slane %v616, 5
      %v619 = vsel %vm507, %v614, %v618
      %vm620 = vcmask 1042432
      %vm621 = vcmask 1046532
      %vm622 = vmor %vm620, %vm621
      %v623 = vrot.slane %v489, 5
      %v624 = vrot.slane %v623, 4
      %v625 = vrot.slane %v490, 5
      %v626 = vsel %vm622, %v624, %v625
      %v627 = vrot.slane %v491, 5
      %v628 = vrot.slane %v627, 4
      %v629 = vrot.slane %v492, 5
      %v630 = vsel %vm622, %v628, %v629
      %v631 = vrot.slane %v493, 5
      %v632 = vrot.slane %v631, 4
      %v633 = vrot.slane %v494, 5
      %v634 = vsel %vm622, %v632, %v633
      %v635 = vrot.slane %v495, 5
      %v636 = vrot.slane %v635, 4
      %v637 = vrot.slane %v496, 5
      %v638 = vsel %vm622, %v636, %v637
      %v639 = vrot.slane %v497, 5
      %v640 = vrot.slane %v639, 4
      %v641 = vrot.slane %v498, 5
      %v642 = vsel %vm622, %v640, %v641
      %v643 = vrot.slane %v499, 5
      %v644 = vrot.slane %v643, 4
      %v645 = vrot.slane %v500, 5
      %v646 = vsel %vm622, %v644, %v645
      %v647 = vrot.slane %v501, 5
      %v648 = vrot.slane %v647, 4
      %v649 = vrot.slane %v502, 5
      %v650 = vsel %vm622, %v648, %v649
      %v651 = vrot.slane %v503, 5
      %v652 = vrot.slane %v651, 4
      %v653 = vrot.slane %v504, 5
      %v654 = vsel %vm622, %v652, %v653
      %v656 = vunpack.c.l.b16 %v463
      %v657 = vunpack.c.h.b16 %v463
      %v658 = vpack.c.b16 %v656, %v656
      %v659 = vpack.c.b16 %v657, %v657
      %v661 = vshrl.u32 %v658, 16
      %v663 = vrot.slane %v661, 4
      %v664 = vshll.u32 %v658, 16
      %v666 = vrot.slane %v664, 5
      %v667 = vor.u32 %v663, %v666
      %v668 = vrot.slane %v667, 4
      %v670 = vshll.u32 %v659, 16
      %v672 = vrot.slane %v670, 5
      %v673 = vsel %vm507, %v668, %v672
      %v674 = vrot.slane %v658, 5
      %v675 = vrot.slane %v674, 4
      %v676 = vrot.slane %v659, 5
      %v677 = vsel %vm622, %v675, %v676
      %v679 = vunpack.c.l.b16 %v464
      %v680 = vunpack.c.h.b16 %v464
      %v681 = vpack.c.b16 %v679, %v679
      %v682 = vpack.c.b16 %v680, %v680
      %v684 = vshrl.u32 %v681, 16
      %v686 = vrot.slane %v684, 4
      %v687 = vshll.u32 %v681, 16
      %v689 = vrot.slane %v687, 5
      %v690 = vor.u32 %v686, %v689
      %v691 = vrot.slane %v690, 4
      %v693 = vshll.u32 %v682, 16
      %v695 = vrot.slane %v693, 5
      %v696 = vsel %vm507, %v691, %v695
      %v697 = vrot.slane %v681, 5
      %v698 = vrot.slane %v697, 4
      %v699 = vrot.slane %v682, 5
      %v700 = vsel %vm622, %v698, %v699
      %v701 = vpack.c.b16 %v475, %v473
      %v702 = vpack.c.b16 %v479, %v477
      %v703 = vpack.c.b16 %v483, %v481
      %v704 = vpack.c.b16 %v487, %v485
      %v705 = vunpack.c.l.b16 %v521
      %v706 = vunpack.c.l.b16 %v535
      %v707 = vunpack.c.l.b16 %v549
      %v708 = vunpack.c.l.b16 %v563
      %v709 = vunpack.c.l.b16 %v577
      %v710 = vunpack.c.l.b16 %v591
      %v711 = vunpack.c.l.b16 %v605
      %v712 = vunpack.c.l.b16 %v619
      %v713 = vpack.c.b16 %v706, %v705
      %v714 = vpack.c.b16 %v708, %v707
      %v715 = vpack.c.b16 %v710, %v709
      %v716 = vpack.c.b16 %v712, %v711
      %717 = vrot.lane.b32.xlu0 %v713, 4
      %v718 = vpop.permute.xlu0 %717
      %719 = vrot.lane.b32.xlu0 %v714, 4
      %v720 = vpop.permute.xlu0 %719
      %721 = vrot.lane.b32.xlu0 %v715, 4
      %v722 = vpop.permute.xlu0 %721
      %723 = vrot.lane.b32.xlu0 %v716, 4
      %v724 = vpop.permute.xlu0 %723
      %v725 = vunpack.c.l.b16 %v626
      %v726 = vunpack.c.l.b16 %v630
      %v727 = vunpack.c.l.b16 %v634
      %v728 = vunpack.c.l.b16 %v638
      %v729 = vunpack.c.l.b16 %v642
      %v730 = vunpack.c.l.b16 %v646
      %v731 = vunpack.c.l.b16 %v650
      %v732 = vunpack.c.l.b16 %v654
      %v733 = vpack.c.b16 %v726, %v725
      %v734 = vpack.c.b16 %v728, %v727
      %v735 = vpack.c.b16 %v730, %v729
      %v736 = vpack.c.b16 %v732, %v731
      %737 = vrot.lane.b32.xlu0 %v733, 8
      %v738 = vpop.permute.xlu0 %737
      %739 = vrot.lane.b32.xlu0 %v734, 8
      %v740 = vpop.permute.xlu0 %739
      %741 = vrot.lane.b32.xlu0 %v735, 8
      %v742 = vpop.permute.xlu0 %741
      %743 = vrot.lane.b32.xlu0 %v736, 8
      %v744 = vpop.permute.xlu0 %743
      %v745 = vpack.c.b16 %v477, %v475
      %v746 = vpack.c.b16 %v481, %v479
      %v747 = vpack.c.b16 %v485, %v483
      %v748 = vpack.c.b16 %v656, %v487
      %749 = vrot.lane.b32.xlu0 %v745, 12
      %v750 = vpop.permute.xlu0 %749
      %751 = vrot.lane.b32.xlu0 %v746, 12
      %v752 = vpop.permute.xlu0 %751
      %753 = vrot.lane.b32.xlu0 %v747, 12
      %v754 = vpop.permute.xlu0 %753
      %755 = vrot.lane.b32.xlu0 %v748, 12
      %v756 = vpop.permute.xlu0 %755
      %v757 = vunpack.c.l.b16 %v673
      %v758 = vpack.c.b16 %v707, %v706
      %v759 = vpack.c.b16 %v709, %v708
      %v760 = vpack.c.b16 %v711, %v710
      %v761 = vpack.c.b16 %v757, %v712
      %762 = vrot.lane.b32.xlu0 %v758, 16
      %v763 = vpop.permute.xlu0 %762
      %764 = vrot.lane.b32.xlu0 %v759, 16
      %v765 = vpop.permute.xlu0 %764
      %766 = vrot.lane.b32.xlu0 %v760, 16
      %v767 = vpop.permute.xlu0 %766
      %768 = vrot.lane.b32.xlu0 %v761, 16
      %v769 = vpop.permute.xlu0 %768
      %v770 = vunpack.c.l.b16 %v677
      %v771 = vpack.c.b16 %v727, %v726
      %v772 = vpack.c.b16 %v729, %v728
      %v773 = vpack.c.b16 %v731, %v730
      %v774 = vpack.c.b16 %v770, %v732
      %775 = vrot.lane.b32.xlu0 %v771, 20
      %v776 = vpop.permute.xlu0 %775
      %777 = vrot.lane.b32.xlu0 %v772, 20
      %v778 = vpop.permute.xlu0 %777
      %779 = vrot.lane.b32.xlu0 %v773, 20
      %v780 = vpop.permute.xlu0 %779
      %781 = vrot.lane.b32.xlu0 %v774, 20
      %v782 = vpop.permute.xlu0 %781
      %v783 = vpack.c.b16 %v679, %v656
      %784 = vrot.lane.b32.xlu0 %v702, 24
      %v785 = vpop.permute.xlu0 %784
      %786 = vrot.lane.b32.xlu0 %v703, 24
      %v787 = vpop.permute.xlu0 %786
      %788 = vrot.lane.b32.xlu0 %v704, 24
      %v789 = vpop.permute.xlu0 %788
      %790 = vrot.lane.b32.xlu0 %v783, 24
      %v791 = vpop.permute.xlu0 %790
      %v792 = vunpack.c.l.b16 %v696
      %v793 = vpack.c.b16 %v792, %v757
      %794 = vrot.lane.b32.xlu0 %v714, 28
      %v795 = vpop.permute.xlu0 %794
      %796 = vrot.lane.b32.xlu0 %v715, 28
      %v797 = vpop.permute.xlu0 %796
      %798 = vrot.lane.b32.xlu0 %v716, 28
      %v799 = vpop.permute.xlu0 %798
      %800 = vrot.lane.b32.xlu0 %v793, 28
      %v801 = vpop.permute.xlu0 %800
      %v802 = vunpack.c.l.b16 %v700
      %v803 = vpack.c.b16 %v802, %v770
      %804 = vrot.lane.b32.xlu0 %v734, 32
      %v805 = vpop.permute.xlu0 %804
      %806 = vrot.lane.b32.xlu0 %v735, 32
      %v807 = vpop.permute.xlu0 %806
      %808 = vrot.lane.b32.xlu0 %v736, 32
      %v809 = vpop.permute.xlu0 %808
      %810 = vrot.lane.b32.xlu0 %v803, 32
      %v811 = vpop.permute.xlu0 %810
      %vm812 = vcmask 31744
      %v815 = vsel %vm812, %v701, %v718
      %v818 = vsel %vm812, %v702, %v720
      %v821 = vsel %vm812, %v703, %v722
      %v824 = vsel %vm812, %v704, %v724
      %vm825 = vcmask 64512
      %v827 = vsel %vm825, %v815, %v738
      %v829 = vsel %vm825, %v818, %v740
      %v831 = vsel %vm825, %v821, %v742
      %v833 = vsel %vm825, %v824, %v744
      %vm834 = vcmask 97280
      %v836 = vsel %vm834, %v827, %v750
      %v838 = vsel %vm834, %v829, %v752
      %v840 = vsel %vm834, %v831, %v754
      %v842 = vsel %vm834, %v833, %v756
      %vm843 = vcmask 130048
      %v845 = vsel %vm843, %v836, %v763
      %v847 = vsel %vm843, %v838, %v765
      %v849 = vsel %vm843, %v840, %v767
      %v851 = vsel %vm843, %v842, %v769
      %vm852 = vcmask 162816
      %v854 = vsel %vm852, %v845, %v776
      %v856 = vsel %vm852, %v847, %v778
      %v858 = vsel %vm852, %v849, %v780
      %v860 = vsel %vm852, %v851, %v782
      %vm861 = vcmask 195584
      %v863 = vsel %vm861, %v854, %v785
      %v865 = vsel %vm861, %v856, %v787
      %v867 = vsel %vm861, %v858, %v789
      %v869 = vsel %vm861, %v860, %v791
      %vm870 = vcmask 228352
      %v872 = vsel %vm870, %v863, %v795
      %v874 = vsel %vm870, %v865, %v797
      %v876 = vsel %vm870, %v867, %v799
      %v878 = vsel %vm870, %v869, %v801
      %vm879 = vcmask 261120
      %v881 = vsel %vm879, %v872, %v805
      %v883 = vsel %vm879, %v874, %v807
      %v885 = vsel %vm879, %v876, %v809
      %v887 = vsel %vm879, %v878, %v811
      %v888 = vld [vmem:[%s3] sm:$0xf]
      %v889 = vld [vmem:[%s3 + $0x4] sm:$0xf]
      %v890 = vld [vmem:[%s3 + $0x8] sm:$0xf]
      %v891 = vld [vmem:[%s3 + $0xc] sm:$0xf]
      %v892 = vld [vmem:[%s3 + $0x10] sm:$0x3]
      %v893 = vld [vmem:[%s396] sm:$0xff]
      %v894 = vld [vmem:[%s396 + $0x8] sm:$0x3]
      %v895 = vld [vmem:[%s396 + $0x10] sm:$0xff]
      %v896 = vld [vmem:[%s396 + $0x18] sm:$0x3]
      %v897 = vld [vmem:[%s396 + $0x20] sm:$0xff]
      %v898 = vld [vmem:[%s396 + $0x28] sm:$0x3]
      %v899 = vld [vmem:[%s396 + $0x30] sm:$0xff]
      %v900 = vld [vmem:[%s396 + $0x38] sm:$0x3]
      %v901 = vld [vmem:[%s396 + $0x40] sm:$0xff]
      %v902 = vld [vmem:[%s396 + $0x48] sm:$0x3]
      %v903 = vld [vmem:[%s396 + $0x50] sm:$0xff]
      %v904 = vld [vmem:[%s396 + $0x58] sm:$0x3]
      %v905 = vld [vmem:[%s396 + $0x60] sm:$0xff]
      %v906 = vld [vmem:[%s396 + $0x68] sm:$0x3]
      %v907 = vld [vmem:[%s396 + $0x70] sm:$0xff]
      %v908 = vld [vmem:[%s396 + $0x78] sm:$0x3]
      %v909 = vld [vmem:[%s396 + $0x80] sm:$0xff]
      %v910 = vld [vmem:[%s396 + $0x88] sm:$0x3]
      %v911 = vld [vmem:[%s396 + $0x90] sm:$0xff]
      %v912 = vld [vmem:[%s396 + $0x98] sm:$0x3]
      %v913 = vpack.c.bf16 %v894, %v893
      %v914 = vpack.c.bf16 %v896, %v895
      %v915 = vpack.c.bf16 %v898, %v897
      %v916 = vpack.c.bf16 %v900, %v899
      %v917 = vpack.c.bf16 %v902, %v901
      %v918 = vpack.c.bf16 %v904, %v903
      %v919 = vpack.c.bf16 %v906, %v905
      %v920 = vpack.c.bf16 %v908, %v907
      %v921 = vpack.c.bf16 %v910, %v909
      %v922 = vpack.c.bf16 %v912, %v911
      %v931 = vunpack.c.l.b16 %v913
      %v932 = vunpack.c.h.b16 %v913
      %v933 = vunpack.c.l.b16 %v914
      %v934 = vunpack.c.h.b16 %v914
      %v935 = vunpack.c.l.b16 %v915
      %v936 = vunpack.c.h.b16 %v915
      %v937 = vunpack.c.l.b16 %v916
      %v938 = vunpack.c.h.b16 %v916
      %v939 = vunpack.c.l.b16 %v917
      %v940 = vunpack.c.h.b16 %v917
      %v941 = vunpack.c.l.b16 %v918
      %v942 = vunpack.c.h.b16 %v918
      %v943 = vunpack.c.l.b16 %v919
      %v944 = vunpack.c.h.b16 %v919
      %v945 = vunpack.c.l.b16 %v920
      %v946 = vunpack.c.h.b16 %v920
      %v947 = vpack.c.b16 %v931, %v931
      %v948 = vpack.c.b16 %v932, %v932
      %v949 = vpack.c.b16 %v933, %v933
      %v950 = vpack.c.b16 %v934, %v934
      %v951 = vpack.c.b16 %v935, %v935
      %v952 = vpack.c.b16 %v936, %v936
      %v953 = vpack.c.b16 %v937, %v937
      %v954 = vpack.c.b16 %v938, %v938
      %v955 = vpack.c.b16 %v939, %v939
      %v956 = vpack.c.b16 %v940, %v940
      %v957 = vpack.c.b16 %v941, %v941
      %v958 = vpack.c.b16 %v942, %v942
      %v959 = vpack.c.b16 %v943, %v943
      %v960 = vpack.c.b16 %v944, %v944
      %v961 = vpack.c.b16 %v945, %v945
      %v962 = vpack.c.b16 %v946, %v946
      %v964 = vshrl.u32 %v947, 16
      %v966 = vrot.slane %v964, 4
      %v967 = vshll.u32 %v947, 16
      %v969 = vrot.slane %v967, 5
      %v970 = vor.u32 %v966, %v969
      %v971 = vrot.slane %v970, 4
      %v973 = vshll.u32 %v948, 16
      %v975 = vrot.slane %v973, 5
      %v976 = vsel %vm507, %v971, %v975
      %v978 = vshrl.u32 %v949, 16
      %v980 = vrot.slane %v978, 4
      %v981 = vshll.u32 %v949, 16
      %v983 = vrot.slane %v981, 5
      %v984 = vor.u32 %v980, %v983
      %v985 = vrot.slane %v984, 4
      %v987 = vshll.u32 %v950, 16
      %v989 = vrot.slane %v987, 5
      %v990 = vsel %vm507, %v985, %v989
      %v992 = vshrl.u32 %v951, 16
      %v994 = vrot.slane %v992, 4
      %v995 = vshll.u32 %v951, 16
      %v997 = vrot.slane %v995, 5
      %v998 = vor.u32 %v994, %v997
      %v999 = vrot.slane %v998, 4
      %v1001 = vshll.u32 %v952, 16
      %v1003 = vrot.slane %v1001, 5
      %v1004 = vsel %vm507, %v999, %v1003
      %v1006 = vshrl.u32 %v953, 16
      %v1008 = vrot.slane %v1006, 4
      %v1009 = vshll.u32 %v953, 16
      %v1011 = vrot.slane %v1009, 5
      %v1012 = vor.u32 %v1008, %v1011
      %v1013 = vrot.slane %v1012, 4
      %v1015 = vshll.u32 %v954, 16
      %v1017 = vrot.slane %v1015, 5
      %v1018 = vsel %vm507, %v1013, %v1017
      %v1020 = vshrl.u32 %v955, 16
      %v1022 = vrot.slane %v1020, 4
      %v1023 = vshll.u32 %v955, 16
      %v1025 = vrot.slane %v1023, 5
      %v1026 = vor.u32 %v1022, %v1025
      %v1027 = vrot.slane %v1026, 4
      %v1029 = vshll.u32 %v956, 16
      %v1031 = vrot.slane %v1029, 5
      %v1032 = vsel %vm507, %v1027, %v1031
      %v1034 = vshrl.u32 %v957, 16
      %v1036 = vrot.slane %v1034, 4
      %v1037 = vshll.u32 %v957, 16
      %v1039 = vrot.slane %v1037, 5
      %v1040 = vor.u32 %v1036, %v1039
      %v1041 = vrot.slane %v1040, 4
      %v1043 = vshll.u32 %v958, 16
      %v1045 = vrot.slane %v1043, 5
      %v1046 = vsel %vm507, %v1041, %v1045
      %v1048 = vshrl.u32 %v959, 16
      %v1050 = vrot.slane %v1048, 4
      %v1051 = vshll.u32 %v959, 16
      %v1053 = vrot.slane %v1051, 5
      %v1054 = vor.u32 %v1050, %v1053
      %v1055 = vrot.slane %v1054, 4
      %v1057 = vshll.u32 %v960, 16
      %v1059 = vrot.slane %v1057, 5
      %v1060 = vsel %vm507, %v1055, %v1059
      %v1062 = vshrl.u32 %v961, 16
      %v1064 = vrot.slane %v1062, 4
      %v1065 = vshll.u32 %v961, 16
      %v1067 = vrot.slane %v1065, 5
      %v1068 = vor.u32 %v1064, %v1067
      %v1069 = vrot.slane %v1068, 4
      %v1071 = vshll.u32 %v962, 16
      %v1073 = vrot.slane %v1071, 5
      %v1074 = vsel %vm507, %v1069, %v1073
      %v1075 = vrot.slane %v947, 5
      %v1076 = vrot.slane %v1075, 4
      %v1077 = vrot.slane %v948, 5
      %v1078 = vsel %vm622, %v1076, %v1077
      %v1079 = vrot.slane %v949, 5
      %v1080 = vrot.slane %v1079, 4
      %v1081 = vrot.slane %v950, 5
      %v1082 = vsel %vm622, %v1080, %v1081
      %v1083 = vrot.slane %v951, 5
      %v1084 = vrot.slane %v1083, 4
      %v1085 = vrot.slane %v952, 5
      %v1086 = vsel %vm622, %v1084, %v1085
      %v1087 = vrot.slane %v953, 5
      %v1088 = vrot.slane %v1087, 4
      %v1089 = vrot.slane %v954, 5
      %v1090 = vsel %vm622, %v1088, %v1089
      %v1091 = vrot.slane %v955, 5
      %v1092 = vrot.slane %v1091, 4
      %v1093 = vrot.slane %v956, 5
      %v1094 = vsel %vm622, %v1092, %v1093
      %v1095 = vrot.slane %v957, 5
      %v1096 = vrot.slane %v1095, 4
      %v1097 = vrot.slane %v958, 5
      %v1098 = vsel %vm622, %v1096, %v1097
      %v1099 = vrot.slane %v959, 5
      %v1100 = vrot.slane %v1099, 4
      %v1101 = vrot.slane %v960, 5
      %v1102 = vsel %vm622, %v1100, %v1101
      %v1103 = vrot.slane %v961, 5
      %v1104 = vrot.slane %v1103, 4
      %v1105 = vrot.slane %v962, 5
      %v1106 = vsel %vm622, %v1104, %v1105
      %v1108 = vunpack.c.l.b16 %v921
      %v1109 = vunpack.c.h.b16 %v921
      %v1110 = vpack.c.b16 %v1108, %v1108
      %v1111 = vpack.c.b16 %v1109, %v1109
      %v1113 = vshrl.u32 %v1110, 16
      %v1115 = vrot.slane %v1113, 4
      %v1116 = vshll.u32 %v1110, 16
      %v1118 = vrot.slane %v1116, 5
      %v1119 = vor.u32 %v1115, %v1118
      %v1120 = vrot.slane %v1119, 4
      %v1122 = vshll.u32 %v1111, 16
      %v1124 = vrot.slane %v1122, 5
      %v1125 = vsel %vm507, %v1120, %v1124
      %v1126 = vrot.slane %v1110, 5
      %v1127 = vrot.slane %v1126, 4
      %v1128 = vrot.slane %v1111, 5
      %v1129 = vsel %vm622, %v1127, %v1128
      %v1131 = vunpack.c.l.b16 %v922
      %v1132 = vunpack.c.h.b16 %v922
      %v1133 = vpack.c.b16 %v1131, %v1131
      %v1134 = vpack.c.b16 %v1132, %v1132
      %v1136 = vshrl.u32 %v1133, 16
      %v1138 = vrot.slane %v1136, 4
      %v1139 = vshll.u32 %v1133, 16
      %v1141 = vrot.slane %v1139, 5
      %v1142 = vor.u32 %v1138, %v1141
      %v1143 = vrot.slane %v1142, 4
      %v1145 = vshll.u32 %v1134, 16
      %v1147 = vrot.slane %v1145, 5
      %v1148 = vsel %vm507, %v1143, %v1147
      %v1149 = vrot.slane %v1133, 5
      %v1150 = vrot.slane %v1149, 4
      %v1151 = vrot.slane %v1134, 5
      %v1152 = vsel %vm622, %v1150, %v1151
      %v1153 = vpack.c.b16 %v933, %v931
      %v1154 = vpack.c.b16 %v937, %v935
      %v1155 = vpack.c.b16 %v941, %v939
      %v1156 = vpack.c.b16 %v945, %v943
      %v1157 = vunpack.c.l.b16 %v976
      %v1158 = vunpack.c.l.b16 %v990
      %v1159 = vunpack.c.l.b16 %v1004
      %v1160 = vunpack.c.l.b16 %v1018
      %v1161 = vunpack.c.l.b16 %v1032
      %v1162 = vunpack.c.l.b16 %v1046
      %v1163 = vunpack.c.l.b16 %v1060
      %v1164 = vunpack.c.l.b16 %v1074
      %v1165 = vpack.c.b16 %v1158, %v1157
      %v1166 = vpack.c.b16 %v1160, %v1159
      %v1167 = vpack.c.b16 %v1162, %v1161
      %v1168 = vpack.c.b16 %v1164, %v1163
      %1169 = vrot.lane.b32.xlu0 %v1165, 4
      %v1170 = vpop.permute.xlu0 %1169
      %1171 = vrot.lane.b32.xlu0 %v1166, 4
      %v1172 = vpop.permute.xlu0 %1171
      %1173 = vrot.lane.b32.xlu0 %v1167, 4
      %v1174 = vpop.permute.xlu0 %1173
      %1175 = vrot.lane.b32.xlu0 %v1168, 4
      %v1176 = vpop.permute.xlu0 %1175
      %v1177 = vunpack.c.l.b16 %v1078
      %v1178 = vunpack.c.l.b16 %v1082
      %v1179 = vunpack.c.l.b16 %v1086
      %v1180 = vunpack.c.l.b16 %v1090
      %v1181 = vunpack.c.l.b16 %v1094
      %v1182 = vunpack.c.l.b16 %v1098
      %v1183 = vunpack.c.l.b16 %v1102
      %v1184 = vunpack.c.l.b16 %v1106
      %v1185 = vpack.c.b16 %v1178, %v1177
      %v1186 = vpack.c.b16 %v1180, %v1179
      %v1187 = vpack.c.b16 %v1182, %v1181
      %v1188 = vpack.c.b16 %v1184, %v1183
      %1189 = vrot.lane.b32.xlu0 %v1185, 8
      %v1190 = vpop.permute.xlu0 %1189
      %1191 = vrot.lane.b32.xlu0 %v1186, 8
      %v1192 = vpop.permute.xlu0 %1191
      %1193 = vrot.lane.b32.xlu0 %v1187, 8
      %v1194 = vpop.permute.xlu0 %1193
      %1195 = vrot.lane.b32.xlu0 %v1188, 8
      %v1196 = vpop.permute.xlu0 %1195
      %v1197 = vpack.c.b16 %v935, %v933
      %v1198 = vpack.c.b16 %v939, %v937
      %v1199 = vpack.c.b16 %v943, %v941
      %v1200 = vpack.c.b16 %v1108, %v945
      %1201 = vrot.lane.b32.xlu0 %v1197, 12
      %v1202 = vpop.permute.xlu0 %1201
      %1203 = vrot.lane.b32.xlu0 %v1198, 12
      %v1204 = vpop.permute.xlu0 %1203
      %1205 = vrot.lane.b32.xlu0 %v1199, 12
      %v1206 = vpop.permute.xlu0 %1205
      %1207 = vrot.lane.b32.xlu0 %v1200, 12
      %v1208 = vpop.permute.xlu0 %1207
      %v1209 = vunpack.c.l.b16 %v1125
      %v1210 = vpack.c.b16 %v1159, %v1158
      %v1211 = vpack.c.b16 %v1161, %v1160
      %v1212 = vpack.c.b16 %v1163, %v1162
      %v1213 = vpack.c.b16 %v1209, %v1164
      %1214 = vrot.lane.b32.xlu0 %v1210, 16
      %v1215 = vpop.permute.xlu0 %1214
      %1216 = vrot.lane.b32.xlu0 %v1211, 16
      %v1217 = vpop.permute.xlu0 %1216
      %1218 = vrot.lane.b32.xlu0 %v1212, 16
      %v1219 = vpop.permute.xlu0 %1218
      %1220 = vrot.lane.b32.xlu0 %v1213, 16
      %v1221 = vpop.permute.xlu0 %1220
      %v1222 = vunpack.c.l.b16 %v1129
      %v1223 = vpack.c.b16 %v1179, %v1178
      %v1224 = vpack.c.b16 %v1181, %v1180
      %v1225 = vpack.c.b16 %v1183, %v1182
      %v1226 = vpack.c.b16 %v1222, %v1184
      %1227 = vrot.lane.b32.xlu0 %v1223, 20
      %v1228 = vpop.permute.xlu0 %1227
      %1229 = vrot.lane.b32.xlu0 %v1224, 20
      %v1230 = vpop.permute.xlu0 %1229
      %1231 = vrot.lane.b32.xlu0 %v1225, 20
      %v1232 = vpop.permute.xlu0 %1231
      %1233 = vrot.lane.b32.xlu0 %v1226, 20
      %v1234 = vpop.permute.xlu0 %1233
      %v1235 = vpack.c.b16 %v1131, %v1108
      %1236 = vrot.lane.b32.xlu0 %v1154, 24
      %v1237 = vpop.permute.xlu0 %1236
      %1238 = vrot.lane.b32.xlu0 %v1155, 24
      %v1239 = vpop.permute.xlu0 %1238
      %1240 = vrot.lane.b32.xlu0 %v1156, 24
      %v1241 = vpop.permute.xlu0 %1240
      %1242 = vrot.lane.b32.xlu0 %v1235, 24
      %v1243 = vpop.permute.xlu0 %1242
      %v1244 = vunpack.c.l.b16 %v1148
      %v1245 = vpack.c.b16 %v1244, %v1209
      %1246 = vrot.lane.b32.xlu0 %v1166, 28
      %v1247 = vpop.permute.xlu0 %1246
      %1248 = vrot.lane.b32.xlu0 %v1167, 28
      %v1249 = vpop.permute.xlu0 %1248
      %1250 = vrot.lane.b32.xlu0 %v1168, 28
      %v1251 = vpop.permute.xlu0 %1250
      %1252 = vrot.lane.b32.xlu0 %v1245, 28
      %v1253 = vpop.permute.xlu0 %1252
      %v1254 = vunpack.c.l.b16 %v1152
      %v1255 = vpack.c.b16 %v1254, %v1222
      %1256 = vrot.lane.b32.xlu0 %v1186, 32
      %v1257 = vpop.permute.xlu0 %1256
      %1258 = vrot.lane.b32.xlu0 %v1187, 32
      %v1259 = vpop.permute.xlu0 %1258
      %1260 = vrot.lane.b32.xlu0 %v1188, 32
      %v1261 = vpop.permute.xlu0 %1260
      %1262 = vrot.lane.b32.xlu0 %v1255, 32
      %v1263 = vpop.permute.xlu0 %1262
      %v1266 = vsel %vm812, %v1153, %v1170
      %v1269 = vsel %vm812, %v1154, %v1172
      %v1272 = vsel %vm812, %v1155, %v1174
      %v1275 = vsel %vm812, %v1156, %v1176
      %v1277 = vsel %vm825, %v1266, %v1190
      %v1279 = vsel %vm825, %v1269, %v1192
      %v1281 = vsel %vm825, %v1272, %v1194
      %v1283 = vsel %vm825, %v1275, %v1196
      %v1285 = vsel %vm834, %v1277, %v1202
      %v1287 = vsel %vm834, %v1279, %v1204
      %v1289 = vsel %vm834, %v1281, %v1206
      %v1291 = vsel %vm834, %v1283, %v1208
      %v1293 = vsel %vm843, %v1285, %v1215
      %v1295 = vsel %vm843, %v1287, %v1217
      %v1297 = vsel %vm843, %v1289, %v1219
      %v1299 = vsel %vm843, %v1291, %v1221
      %v1301 = vsel %vm852, %v1293, %v1228
      %v1303 = vsel %vm852, %v1295, %v1230
      %v1305 = vsel %vm852, %v1297, %v1232
      %v1307 = vsel %vm852, %v1299, %v1234
      %v1309 = vsel %vm861, %v1301, %v1237
      %v1311 = vsel %vm861, %v1303, %v1239
      %v1313 = vsel %vm861, %v1305, %v1241
      %v1315 = vsel %vm861, %v1307, %v1243
      %v1317 = vsel %vm870, %v1309, %v1247
      %v1319 = vsel %vm870, %v1311, %v1249
      %v1321 = vsel %vm870, %v1313, %v1251
      %v1323 = vsel %vm870, %v1315, %v1253
      %v1325 = vsel %vm879, %v1317, %v1257
      %v1327 = vsel %vm879, %v1319, %v1259
      %v1329 = vsel %vm879, %v1321, %v1261
      %v1331 = vsel %vm879, %v1323, %v1263
      %s1332 = scalar_lea.vmem %s3, 20
      %v1333 = vld [vmem:[%s1332] sm:$0xf]
      %v1334 = vld [vmem:[%s1332 + $0x4] sm:$0xf]
      %v1335 = vld [vmem:[%s1332 + $0x8] sm:$0xf]
      %v1336 = vld [vmem:[%s1332 + $0xc] sm:$0xf]
      %v1337 = vld [vmem:[%s1332 + $0x10] sm:$0x3]
      %v1343 = vunpack.c.l.b16 %v1333
      %v1344 = vunpack.c.l.b16 %v1334
      %v1345 = vunpack.c.l.b16 %v1335
      %v1346 = vunpack.c.l.b16 %v1336
      %v1347 = vunpack.c.l.b16 %v1337
      %v1348 = vpack.c.b16 %v1344, %v1343
      %v1349 = vpack.c.b16 %v1346, %v1345
      %v1350 = vpack.c.b16 %v1347, %v1347
      %vm1353 = vcmask 293888
      %v1354 = vsel %vm1353, %v1325, 0
      %v1356 = vsel %vm1353, %v1327, 0
      %v1358 = vsel %vm1353, %v1329, 0
      %v1360 = vsel %vm1353, %v1331, 0
      %vm1362 = vcmask 1041408
      %v1364 = vsel %vm1362, %v1350, 0
      %1366 = vmatprep.subr.bf16.mxu0 0
      %1367 = vmatpush1.bf16.msra.mxu0 %v1348
      %1368 = vmatprep.subr.bf16.mxu0 0
      %1369 = vmatpush1.bf16.msra.mxu0 %v1349
      %1370 = vmatprep.subr.bf16.mxu0 0
      %1371 = vmatpush1.bf16.msra.mxu0 %v1364
      %1372 = vmatprep.subr.bf16.mxu0 0
      %1373 = vmatpush1.bf16.msra.mxu0 0
      %1374 = vmatprep.subr.bf16.mxu0 0
      %1375 = vmatpush1.bf16.msra.mxu0 0
      %1376 = vmatprep.subr.bf16.mxu0 0
      %1377 = vmatpush1.bf16.msra.mxu0 0
      %1378 = vmatprep.subr.bf16.mxu0 0
      %1379 = vmatpush1.bf16.msra.mxu0 0
      %1380 = vmatprep.subr.bf16.mxu0 0
      %1381 = vmatpush1.bf16.msra.mxu0 0
      %1382 = vmatprep.subr.bf16.mxu0 0
      %1383 = vmatpush1.bf16.msra.mxu0 0
      %1384 = vmatprep.subr.bf16.mxu0 0
      %1385 = vmatpush1.bf16.msra.mxu0 0
      %1386 = vmatprep.subr.bf16.mxu0 0
      %1387 = vmatpush1.bf16.msra.mxu0 0
      %1388 = vmatprep.subr.bf16.mxu0 0
      %1389 = vmatpush1.bf16.msra.mxu0 0
      %1390 = vmatprep.subr.bf16.mxu0 0
      %1391 = vmatpush1.bf16.msra.mxu0 0
      %1392 = vmatprep.subr.bf16.mxu0 0
      %1393 = vmatpush1.bf16.msra.mxu0 0
      %1394 = vmatprep.subr.bf16.mxu0 0
      %1395 = vmatpush1.bf16.msra.mxu0 0
      %1396 = vmatprep.subr.bf16.mxu0 0
      %1397 = vmatpush1.bf16.msra.mxu0 0
      %1398 = vmatprep.mubr.bf16.mxu0 0
      %1399 = vmatmul.mubr.bf16.gmra.mrb[0].mxu0 %v1354
      %v1400 = vpop.f32.mrb[0].mxu0
      %v1401 = vadd.f32 0.0, %v1400
      %v1402 = vpop.f32.mrb[0].mxu0
      %v1403 = vpop.f32.mrb[0].mxu0
      %v1404 = vadd.f32 0.0, %v1403
      %v1405 = vpop.f32.mrb[0].mxu0
      %1406 = vmatprep.mubr.bf16.mxu0 0
      %1407 = vmatmul.mubr.bf16.gmra.mrb[0].mxu0 %v1356
      %v1408 = vpop.f32.mrb[0].mxu0
      %v1409 = vadd.f32 0.0, %v1408
      %v1410 = vpop.f32.mrb[0].mxu0
      %v1411 = vpop.f32.mrb[0].mxu0
      %v1412 = vadd.f32 0.0, %v1411
      %v1413 = vpop.f32.mrb[0].mxu0
      %1414 = vmatprep.mubr.bf16.mxu0 0
      %1415 = vmatmul.mubr.bf16.gmra.mrb[0].mxu0 %v1358
      %v1416 = vpop.f32.mrb[0].mxu0
      %v1417 = vadd.f32 0.0, %v1416
      %v1418 = vpop.f32.mrb[0].mxu0
      %v1419 = vpop.f32.mrb[0].mxu0
      %v1420 = vadd.f32 0.0, %v1419
      %v1421 = vpop.f32.mrb[0].mxu0
      %1422 = vmatprep.mubr.bf16.mxu0 0
      %1423 = vmatmul.mubr.bf16.gmra.mrb[0].mxu0 %v1360
      %v1424 = vpop.f32.mrb[0].mxu0
      %v1425 = vadd.f32 0.0, %v1424
      %v1426 = vpop.f32.mrb[0].mxu0
      %v1427 = vpop.f32.mrb[0].mxu0
      %v1428 = vadd.f32 0.0, %v1427
      %v1429 = vpop.f32.mrb[0].mxu0
      %1430 = vdwg.mxu0
      %v1436 = vunpack.c.l.b16 %v888
      %v1437 = vunpack.c.l.b16 %v889
      %v1438 = vunpack.c.l.b16 %v890
      %v1439 = vunpack.c.l.b16 %v891
      %v1440 = vunpack.c.l.b16 %v892
      %v1441 = vpack.c.b16 %v1437, %v1436
      %v1442 = vpack.c.b16 %v1439, %v1438
      %v1443 = vpack.c.b16 %v1440, %v1440
      %v1446 = vsel %vm1353, %v881, 0
      %v1448 = vsel %vm1353, %v883, 0
      %v1450 = vsel %vm1353, %v885, 0
      %v1452 = vsel %vm1353, %v887, 0
      %v1455 = vsel %vm1362, %v1443, 0
      %1457 = vmatprep.subr.bf16.mxu0 0
      %1458 = vmatpush1.bf16.msra.mxu0 %v1441
      %1459 = vmatprep.subr.bf16.mxu0 0
      %1460 = vmatpush1.bf16.msra.mxu0 %v1442
      %1461 = vmatprep.subr.bf16.mxu0 0
      %1462 = vmatpush1.bf16.msra.mxu0 %v1455
      %1463 = vmatprep.subr.bf16.mxu0 0
      %1464 = vmatpush1.bf16.msra.mxu0 0
      %1465 = vmatprep.subr.bf16.mxu0 0
      %1466 = vmatpush1.bf16.msra.mxu0 0
      %1467 = vmatprep.subr.bf16.mxu0 0
      %1468 = vmatpush1.bf16.msra.mxu0 0
      %1469 = vmatprep.subr.bf16.mxu0 0
      %1470 = vmatpush1.bf16.msra.mxu0 0
      %1471 = vmatprep.subr.bf16.mxu0 0
      %1472 = vmatpush1.bf16.msra.mxu0 0
      %1473 = vmatprep.subr.bf16.mxu0 0
      %1474 = vmatpush1.bf16.msra.mxu0 0
      %1475 = vmatprep.subr.bf16.mxu0 0
      %1476 = vmatpush1.bf16.msra.mxu0 0
      %1477 = vmatprep.subr.bf16.mxu0 0
      %1478 = vmatpush1.bf16.msra.mxu0 0
      %1479 = vmatprep.subr.bf16.mxu0 0
      %1480 = vmatpush1.bf16.msra.mxu0 0
      %1481 = vmatprep.subr.bf16.mxu0 0
      %1482 = vmatpush1.bf16.msra.mxu0 0
      %1483 = vmatprep.subr.bf16.mxu0 0
      %1484 = vmatpush1.bf16.msra.mxu0 0
      %1485 = vmatprep.subr.bf16.mxu0 0
      %1486 = vmatpush1.bf16.msra.mxu0 0
      %1487 = vmatprep.subr.bf16.mxu0 0
      %1488 = vmatpush1.bf16.msra.mxu0 0
      %1489 = vmatprep.mubr.bf16.mxu0 0
      %1490 = vmatmul.mubr.bf16.gmra.mrb[0].mxu0 %v1446
      %v1491 = vpop.f32.mrb[0].mxu0
      %v1492 = vadd.f32 %v1401, %v1491
      %v1493 = vpop.f32.mrb[0].mxu0
      %v1494 = vpop.f32.mrb[0].mxu0
      %v1495 = vadd.f32 %v1404, %v1494
      %v1496 = vpop.f32.mrb[0].mxu0
      %1497 = vmatprep.mubr.bf16.mxu0 0
      %1498 = vmatmul.mubr.bf16.gmra.mrb[0].mxu0 %v1448
      %v1499 = vpop.f32.mrb[0].mxu0
      %v1500 = vadd.f32 %v1409, %v1499
      %v1501 = vpop.f32.mrb[0].mxu0
      %v1502 = vpop.f32.mrb[0].mxu0
      %v1503 = vadd.f32 %v1412, %v1502
      %v1504 = vpop.f32.mrb[0].mxu0
      %1505 = vmatprep.mubr.bf16.mxu0 0
      %1506 = vmatmul.mubr.bf16.gmra.mrb[0].mxu0 %v1450
      %v1507 = vpop.f32.mrb[0].mxu0
      %v1508 = vadd.f32 %v1417, %v1507
      %v1509 = vpop.f32.mrb[0].mxu0
      %v1510 = vpop.f32.mrb[0].mxu0
      %v1511 = vadd.f32 %v1420, %v1510
      %v1512 = vpop.f32.mrb[0].mxu0
      %1513 = vmatprep.mubr.bf16.mxu0 0
      %1514 = vmatmul.mubr.bf16.gmra.mrb[0].mxu0 %v1452
      %v1515 = vpop.f32.mrb[0].mxu0
      %v1516 = vadd.f32 %v1425, %v1515
      %v1517 = vpop.f32.mrb[0].mxu0
      %v1518 = vpop.f32.mrb[0].mxu0
      %v1519 = vadd.f32 %v1428, %v1518
      %v1520 = vpop.f32.mrb[0].mxu0
      %1521 = vdwg.mxu0
      %v1522 = vld [vmem:[%s407] sm:$0xff]
      %v1523 = vld [vmem:[%s407 + $0x8] sm:$0x3]
      %v1524 = vld [vmem:[%s407 + $0x10] sm:$0xff]
      %v1525 = vld [vmem:[%s407 + $0x18] sm:$0x3]
      %v1526 = vld [vmem:[%s407 + $0x20] sm:$0xff]
      %v1527 = vld [vmem:[%s407 + $0x28] sm:$0x3]
      %v1528 = vld [vmem:[%s407 + $0x30] sm:$0xff]
      %v1529 = vld [vmem:[%s407 + $0x38] sm:$0x3]
      %v1530 = vld [vmem:[%s407 + $0x40] sm:$0xff]
      %v1531 = vld [vmem:[%s407 + $0x48] sm:$0x3]
      %v1532 = vld [vmem:[%s407 + $0x50] sm:$0xff]
      %v1533 = vld [vmem:[%s407 + $0x58] sm:$0x3]
      %v1534 = vld [vmem:[%s407 + $0x60] sm:$0xff]
      %v1535 = vld [vmem:[%s407 + $0x68] sm:$0x3]
      %v1536 = vld [vmem:[%s407 + $0x70] sm:$0xff]
      %v1537 = vld [vmem:[%s407 + $0x78] sm:$0x3]
      %v1538 = vld [vmem:[%s407 + $0x80] sm:$0xff]
      %v1539 = vld [vmem:[%s407 + $0x88] sm:$0x3]
      %v1540 = vld [vmem:[%s407 + $0x90] sm:$0xff]
      %v1541 = vld [vmem:[%s407 + $0x98] sm:$0x3]
      %v1542 = vpack.c.bf16 %v1523, %v1522
      %v1543 = vpack.c.bf16 %v1525, %v1524
      %v1544 = vpack.c.bf16 %v1527, %v1526
      %v1545 = vpack.c.bf16 %v1529, %v1528
      %v1546 = vpack.c.bf16 %v1531, %v1530
      %v1547 = vpack.c.bf16 %v1533, %v1532
      %v1548 = vpack.c.bf16 %v1535, %v1534
      %v1549 = vpack.c.bf16 %v1537, %v1536
      %v1550 = vpack.c.bf16 %v1539, %v1538
      %v1551 = vpack.c.bf16 %v1541, %v1540
      %v1560 = vunpack.c.l.b16 %v1542
      %v1561 = vunpack.c.h.b16 %v1542
      %v1562 = vunpack.c.l.b16 %v1543
      %v1563 = vunpack.c.h.b16 %v1543
      %v1564 = vunpack.c.l.b16 %v1544
      %v1565 = vunpack.c.h.b16 %v1544
      %v1566 = vunpack.c.l.b16 %v1545
      %v1567 = vunpack.c.h.b16 %v1545
      %v1568 = vunpack.c.l.b16 %v1546
      %v1569 = vunpack.c.h.b16 %v1546
      %v1570 = vunpack.c.l.b16 %v1547
      %v1571 = vunpack.c.h.b16 %v1547
      %v1572 = vunpack.c.l.b16 %v1548
      %v1573 = vunpack.c.h.b16 %v1548
      %v1574 = vunpack.c.l.b16 %v1549
      %v1575 = vunpack.c.h.b16 %v1549
      %v1576 = vpack.c.b16 %v1560, %v1560
      %v1577 = vpack.c.b16 %v1561, %v1561
      %v1578 = vpack.c.b16 %v1562, %v1562
      %v1579 = vpack.c.b16 %v1563, %v1563
      %v1580 = vpack.c.b16 %v1564, %v1564
      %v1581 = vpack.c.b16 %v1565, %v1565
      %v1582 = vpack.c.b16 %v1566, %v1566
      %v1583 = vpack.c.b16 %v1567, %v1567
      %v1584 = vpack.c.b16 %v1568, %v1568
      %v1585 = vpack.c.b16 %v1569, %v1569
      %v1586 = vpack.c.b16 %v1570, %v1570
      %v1587 = vpack.c.b16 %v1571, %v1571
      %v1588 = vpack.c.b16 %v1572, %v1572
      %v1589 = vpack.c.b16 %v1573, %v1573
      %v1590 = vpack.c.b16 %v1574, %v1574
      %v1591 = vpack.c.b16 %v1575, %v1575
      %v1593 = vshrl.u32 %v1576, 16
      %v1595 = vrot.slane %v1593, 4
      %v1596 = vshll.u32 %v1576, 16
      %v1598 = vrot.slane %v1596, 5
      %v1599 = vor.u32 %v1595, %v1598
      %v1600 = vrot.slane %v1599, 4
      %v1602 = vshll.u32 %v1577, 16
      %v1604 = vrot.slane %v1602, 5
      %v1605 = vsel %vm507, %v1600, %v1604
      %v1607 = vshrl.u32 %v1578, 16
      %v1609 = vrot.slane %v1607, 4
      %v1610 = vshll.u32 %v1578, 16
      %v1612 = vrot.slane %v1610, 5
      %v1613 = vor.u32 %v1609, %v1612
      %v1614 = vrot.slane %v1613, 4
      %v1616 = vshll.u32 %v1579, 16
      %v1618 = vrot.slane %v1616, 5
      %v1619 = vsel %vm507, %v1614, %v1618
      %v1621 = vshrl.u32 %v1580, 16
      %v1623 = vrot.slane %v1621, 4
      %v1624 = vshll.u32 %v1580, 16
      %v1626 = vrot.slane %v1624, 5
      %v1627 = vor.u32 %v1623, %v1626
      %v1628 = vrot.slane %v1627, 4
      %v1630 = vshll.u32 %v1581, 16
      %v1632 = vrot.slane %v1630, 5
      %v1633 = vsel %vm507, %v1628, %v1632
      %v1635 = vshrl.u32 %v1582, 16
      %v1637 = vrot.slane %v1635, 4
      %v1638 = vshll.u32 %v1582, 16
      %v1640 = vrot.slane %v1638, 5
      %v1641 = vor.u32 %v1637, %v1640
      %v1642 = vrot.slane %v1641, 4
      %v1644 = vshll.u32 %v1583, 16
      %v1646 = vrot.slane %v1644, 5
      %v1647 = vsel %vm507, %v1642, %v1646
      %v1649 = vshrl.u32 %v1584, 16
      %v1651 = vrot.slane %v1649, 4
      %v1652 = vshll.u32 %v1584, 16
      %v1654 = vrot.slane %v1652, 5
      %v1655 = vor.u32 %v1651, %v1654
      %v1656 = vrot.slane %v1655, 4
      %v1658 = vshll.u32 %v1585, 16
      %v1660 = vrot.slane %v1658, 5
      %v1661 = vsel %vm507, %v1656, %v1660
      %v1663 = vshrl.u32 %v1586, 16
      %v1665 = vrot.slane %v1663, 4
      %v1666 = vshll.u32 %v1586, 16
      %v1668 = vrot.slane %v1666, 5
      %v1669 = vor.u32 %v1665, %v1668
      %v1670 = vrot.slane %v1669, 4
      %v1672 = vshll.u32 %v1587, 16
      %v1674 = vrot.slane %v1672, 5
      %v1675 = vsel %vm507, %v1670, %v1674
      %v1677 = vshrl.u32 %v1588, 16
      %v1679 = vrot.slane %v1677, 4
      %v1680 = vshll.u32 %v1588, 16
      %v1682 = vrot.slane %v1680, 5
      %v1683 = vor.u32 %v1679, %v1682
      %v1684 = vrot.slane %v1683, 4
      %v1686 = vshll.u32 %v1589, 16
      %v1688 = vrot.slane %v1686, 5
      %v1689 = vsel %vm507, %v1684, %v1688
      %v1691 = vshrl.u32 %v1590, 16
      %v1693 = vrot.slane %v1691, 4
      %v1694 = vshll.u32 %v1590, 16
      %v1696 = vrot.slane %v1694, 5
      %v1697 = vor.u32 %v1693, %v1696
      %v1698 = vrot.slane %v1697, 4
      %v1700 = vshll.u32 %v1591, 16
      %v1702 = vrot.slane %v1700, 5
      %v1703 = vsel %vm507, %v1698, %v1702
      %v1704 = vrot.slane %v1576, 5
      %v1705 = vrot.slane %v1704, 4
      %v1706 = vrot.slane %v1577, 5
      %v1707 = vsel %vm622, %v1705, %v1706
      %v1708 = vrot.slane %v1578, 5
      %v1709 = vrot.slane %v1708, 4
      %v1710 = vrot.slane %v1579, 5
      %v1711 = vsel %vm622, %v1709, %v1710
      %v1712 = vrot.slane %v1580, 5
      %v1713 = vrot.slane %v1712, 4
      %v1714 = vrot.slane %v1581, 5
      %v1715 = vsel %vm622, %v1713, %v1714
      %v1716 = vrot.slane %v1582, 5
      %v1717 = vrot.slane %v1716, 4
      %v1718 = vrot.slane %v1583, 5
      %v1719 = vsel %vm622, %v1717, %v1718
      %v1720 = vrot.slane %v1584, 5
      %v1721 = vrot.slane %v1720, 4
      %v1722 = vrot.slane %v1585, 5
      %v1723 = vsel %vm622, %v1721, %v1722
      %v1724 = vrot.slane %v1586, 5
      %v1725 = vrot.slane %v1724, 4
      %v1726 = vrot.slane %v1587, 5
      %v1727 = vsel %vm622, %v1725, %v1726
      %v1728 = vrot.slane %v1588, 5
      %v1729 = vrot.slane %v1728, 4
      %v1730 = vrot.slane %v1589, 5
      %v1731 = vsel %vm622, %v1729, %v1730
      %v1732 = vrot.slane %v1590, 5
      %v1733 = vrot.slane %v1732, 4
      %v1734 = vrot.slane %v1591, 5
      %v1735 = vsel %vm622, %v1733, %v1734
      %v1737 = vunpack.c.l.b16 %v1550
      %v1738 = vunpack.c.h.b16 %v1550
      %v1739 = vpack.c.b16 %v1737, %v1737
      %v1740 = vpack.c.b16 %v1738, %v1738
      %v1742 = vshrl.u32 %v1739, 16
      %v1744 = vrot.slane %v1742, 4
      %v1745 = vshll.u32 %v1739, 16
      %v1747 = vrot.slane %v1745, 5
      %v1748 = vor.u32 %v1744, %v1747
      %v1749 = vrot.slane %v1748, 4
      %v1751 = vshll.u32 %v1740, 16
      %v1753 = vrot.slane %v1751, 5
      %v1754 = vsel %vm507, %v1749, %v1753
      %v1755 = vrot.slane %v1739, 5
      %v1756 = vrot.slane %v1755, 4
      %v1757 = vrot.slane %v1740, 5
      %v1758 = vsel %vm622, %v1756, %v1757
      %v1760 = vunpack.c.l.b16 %v1551
      %v1761 = vunpack.c.h.b16 %v1551
      %v1762 = vpack.c.b16 %v1760, %v1760
      %v1763 = vpack.c.b16 %v1761, %v1761
      %v1765 = vshrl.u32 %v1762, 16
      %v1767 = vrot.slane %v1765, 4
      %v1768 = vshll.u32 %v1762, 16
      %v1770 = vrot.slane %v1768, 5
      %v1771 = vor.u32 %v1767, %v1770
      %v1772 = vrot.slane %v1771, 4
      %v1774 = vshll.u32 %v1763, 16
      %v1776 = vrot.slane %v1774, 5
      %v1777 = vsel %vm507, %v1772, %v1776
      %v1778 = vrot.slane %v1762, 5
      %v1779 = vrot.slane %v1778, 4
      %v1780 = vrot.slane %v1763, 5
      %v1781 = vsel %vm622, %v1779, %v1780
      %v1782 = vpack.c.b16 %v1562, %v1560
      %v1783 = vpack.c.b16 %v1566, %v1564
      %v1784 = vpack.c.b16 %v1570, %v1568
      %v1785 = vpack.c.b16 %v1574, %v1572
      %v1786 = vunpack.c.l.b16 %v1605
      %v1787 = vunpack.c.l.b16 %v1619
      %v1788 = vunpack.c.l.b16 %v1633
      %v1789 = vunpack.c.l.b16 %v1647
      %v1790 = vunpack.c.l.b16 %v1661
      %v1791 = vunpack.c.l.b16 %v1675
      %v1792 = vunpack.c.l.b16 %v1689
      %v1793 = vunpack.c.l.b16 %v1703
      %v1794 = vpack.c.b16 %v1787, %v1786
      %v1795 = vpack.c.b16 %v1789, %v1788
      %v1796 = vpack.c.b16 %v1791, %v1790
      %v1797 = vpack.c.b16 %v1793, %v1792
      %1798 = vrot.lane.b32.xlu0 %v1794, 4
      %v1799 = vpop.permute.xlu0 %1798
      %1800 = vrot.lane.b32.xlu0 %v1795, 4
      %v1801 = vpop.permute.xlu0 %1800
      %1802 = vrot.lane.b32.xlu0 %v1796, 4
      %v1803 = vpop.permute.xlu0 %1802
      %1804 = vrot.lane.b32.xlu0 %v1797, 4
      %v1805 = vpop.permute.xlu0 %1804
      %v1806 = vunpack.c.l.b16 %v1707
      %v1807 = vunpack.c.l.b16 %v1711
      %v1808 = vunpack.c.l.b16 %v1715
      %v1809 = vunpack.c.l.b16 %v1719
      %v1810 = vunpack.c.l.b16 %v1723
      %v1811 = vunpack.c.l.b16 %v1727
      %v1812 = vunpack.c.l.b16 %v1731
      %v1813 = vunpack.c.l.b16 %v1735
      %v1814 = vpack.c.b16 %v1807, %v1806
      %v1815 = vpack.c.b16 %v1809, %v1808
      %v1816 = vpack.c.b16 %v1811, %v1810
      %v1817 = vpack.c.b16 %v1813, %v1812
      %1818 = vrot.lane.b32.xlu0 %v1814, 8
      %v1819 = vpop.permute.xlu0 %1818
      %1820 = vrot.lane.b32.xlu0 %v1815, 8
      %v1821 = vpop.permute.xlu0 %1820
      %1822 = vrot.lane.b32.xlu0 %v1816, 8
      %v1823 = vpop.permute.xlu0 %1822
      %1824 = vrot.lane.b32.xlu0 %v1817, 8
      %v1825 = vpop.permute.xlu0 %1824
      %v1826 = vpack.c.b16 %v1564, %v1562
      %v1827 = vpack.c.b16 %v1568, %v1566
      %v1828 = vpack.c.b16 %v1572, %v1570
      %v1829 = vpack.c.b16 %v1737, %v1574
      %1830 = vrot.lane.b32.xlu0 %v1826, 12
      %v1831 = vpop.permute.xlu0 %1830
      %1832 = vrot.lane.b32.xlu0 %v1827, 12
      %v1833 = vpop.permute.xlu0 %1832
      %1834 = vrot.lane.b32.xlu0 %v1828, 12
      %v1835 = vpop.permute.xlu0 %1834
      %1836 = vrot.lane.b32.xlu0 %v1829, 12
      %v1837 = vpop.permute.xlu0 %1836
      %v1838 = vunpack.c.l.b16 %v1754
      %v1839 = vpack.c.b16 %v1788, %v1787
      %v1840 = vpack.c.b16 %v1790, %v1789
      %v1841 = vpack.c.b16 %v1792, %v1791
      %v1842 = vpack.c.b16 %v1838, %v1793
      %1843 = vrot.lane.b32.xlu0 %v1839, 16
      %v1844 = vpop.permute.xlu0 %1843
      %1845 = vrot.lane.b32.xlu0 %v1840, 16
      %v1846 = vpop.permute.xlu0 %1845
      %1847 = vrot.lane.b32.xlu0 %v1841, 16
      %v1848 = vpop.permute.xlu0 %1847
      %1849 = vrot.lane.b32.xlu0 %v1842, 16
      %v1850 = vpop.permute.xlu0 %1849
      %v1851 = vunpack.c.l.b16 %v1758
      %v1852 = vpack.c.b16 %v1808, %v1807
      %v1853 = vpack.c.b16 %v1810, %v1809
      %v1854 = vpack.c.b16 %v1812, %v1811
      %v1855 = vpack.c.b16 %v1851, %v1813
      %1856 = vrot.lane.b32.xlu0 %v1852, 20
      %v1857 = vpop.permute.xlu0 %1856
      %1858 = vrot.lane.b32.xlu0 %v1853, 20
      %v1859 = vpop.permute.xlu0 %1858
      %1860 = vrot.lane.b32.xlu0 %v1854, 20
      %v1861 = vpop.permute.xlu0 %1860
      %1862 = vrot.lane.b32.xlu0 %v1855, 20
      %v1863 = vpop.permute.xlu0 %1862
      %v1864 = vpack.c.b16 %v1760, %v1737
      %1865 = vrot.lane.b32.xlu0 %v1783, 24
      %v1866 = vpop.permute.xlu0 %1865
      %1867 = vrot.lane.b32.xlu0 %v1784, 24
      %v1868 = vpop.permute.xlu0 %1867
      %1869 = vrot.lane.b32.xlu0 %v1785, 24
      %v1870 = vpop.permute.xlu0 %1869
      %1871 = vrot.lane.b32.xlu0 %v1864, 24
      %v1872 = vpop.permute.xlu0 %1871
      %v1873 = vunpack.c.l.b16 %v1777
      %v1874 = vpack.c.b16 %v1873, %v1838
      %1875 = vrot.lane.b32.xlu0 %v1795, 28
      %v1876 = vpop.permute.xlu0 %1875
      %1877 = vrot.lane.b32.xlu0 %v1796, 28
      %v1878 = vpop.permute.xlu0 %1877
      %1879 = vrot.lane.b32.xlu0 %v1797, 28
      %v1880 = vpop.permute.xlu0 %1879
      %1881 = vrot.lane.b32.xlu0 %v1874, 28
      %v1882 = vpop.permute.xlu0 %1881
      %v1883 = vunpack.c.l.b16 %v1781
      %v1884 = vpack.c.b16 %v1883, %v1851
      %1885 = vrot.lane.b32.xlu0 %v1815, 32
      %v1886 = vpop.permute.xlu0 %1885
      %1887 = vrot.lane.b32.xlu0 %v1816, 32
      %v1888 = vpop.permute.xlu0 %1887
      %1889 = vrot.lane.b32.xlu0 %v1817, 32
      %v1890 = vpop.permute.xlu0 %1889
      %1891 = vrot.lane.b32.xlu0 %v1884, 32
      %v1892 = vpop.permute.xlu0 %1891
      %v1895 = vsel %vm812, %v1782, %v1799
      %v1898 = vsel %vm812, %v1783, %v1801
      %v1901 = vsel %vm812, %v1784, %v1803
      %v1904 = vsel %vm812, %v1785, %v1805
      %v1906 = vsel %vm825, %v1895, %v1819
      %v1908 = vsel %vm825, %v1898, %v1821
      %v1910 = vsel %vm825, %v1901, %v1823
      %v1912 = vsel %vm825, %v1904, %v1825
      %v1914 = vsel %vm834, %v1906, %v1831
      %v1916 = vsel %vm834, %v1908, %v1833
      %v1918 = vsel %vm834, %v1910, %v1835
      %v1920 = vsel %vm834, %v1912, %v1837
      %v1922 = vsel %vm843, %v1914, %v1844
      %v1924 = vsel %vm843, %v1916, %v1846
      %v1926 = vsel %vm843, %v1918, %v1848
      %v1928 = vsel %vm843, %v1920, %v1850
      %v1930 = vsel %vm852, %v1922, %v1857
      %v1932 = vsel %vm852, %v1924, %v1859
      %v1934 = vsel %vm852, %v1926, %v1861
      %v1936 = vsel %vm852, %v1928, %v1863
      %v1938 = vsel %vm861, %v1930, %v1866
      %v1940 = vsel %vm861, %v1932, %v1868
      %v1942 = vsel %vm861, %v1934, %v1870
      %v1944 = vsel %vm861, %v1936, %v1872
      %v1946 = vsel %vm870, %v1938, %v1876
      %v1948 = vsel %vm870, %v1940, %v1878
      %v1950 = vsel %vm870, %v1942, %v1880
      %v1952 = vsel %vm870, %v1944, %v1882
      %v1954 = vsel %vm879, %v1946, %v1886
      %v1956 = vsel %vm879, %v1948, %v1888
      %v1958 = vsel %vm879, %v1950, %v1890
      %v1960 = vsel %vm879, %v1952, %v1892
      %s1961 = scalar_lea.vmem %s3, 40
      %v1962 = vld [vmem:[%s1961] sm:$0xf]
      %v1963 = vld [vmem:[%s1961 + $0x4] sm:$0xf]
      %v1964 = vld [vmem:[%s1961 + $0x8] sm:$0xf]
      %v1965 = vld [vmem:[%s1961 + $0xc] sm:$0xf]
      %v1966 = vld [vmem:[%s1961 + $0x10] sm:$0x3]
      %v1972 = vunpack.c.l.b16 %v1962
      %v1973 = vunpack.c.l.b16 %v1963
      %v1974 = vunpack.c.l.b16 %v1964
      %v1975 = vunpack.c.l.b16 %v1965
      %v1976 = vunpack.c.l.b16 %v1966
      %v1977 = vpack.c.b16 %v1973, %v1972
      %v1978 = vpack.c.b16 %v1975, %v1974
      %v1979 = vpack.c.b16 %v1976, %v1976
      %v1982 = vsel %vm1353, %v1954, 0
      %v1984 = vsel %vm1353, %v1956, 0
      %v1986 = vsel %vm1353, %v1958, 0
      %v1988 = vsel %vm1353, %v1960, 0
      %v1991 = vsel %vm1362, %v1979, 0
      %1993 = vmatprep.subr.bf16.mxu0 0
      %1994 = vmatpush1.bf16.msra.mxu0 %v1977
      %1995 = vmatprep.subr.bf16.mxu0 0
      %1996 = vmatpush1.bf16.msra.mxu0 %v1978
      %1997 = vmatprep.subr.bf16.mxu0 0
      %1998 = vmatpush1.bf16.msra.mxu0 %v1991
      %1999 = vmatprep.subr.bf16.mxu0 0
      %2000 = vmatpush1.bf16.msra.mxu0 0
      %2001 = vmatprep.subr.bf16.mxu0 0
      %2002 = vmatpush1.bf16.msra.mxu0 0
      %2003 = vmatprep.subr.bf16.mxu0 0
      %2004 = vmatpush1.bf16.msra.mxu0 0
      %2005 = vmatprep.subr.bf16.mxu0 0
      %2006 = vmatpush1.bf16.msra.mxu0 0
      %2007 = vmatprep.subr.bf16.mxu0 0
      %2008 = vmatpush1.bf16.msra.mxu0 0
      %2009 = vmatprep.subr.bf16.mxu0 0
      %2010 = vmatpush1.bf16.msra.mxu0 0
      %2011 = vmatprep.subr.bf16.mxu0 0
      %2012 = vmatpush1.bf16.msra.mxu0 0
      %2013 = vmatprep.subr.bf16.mxu0 0
      %2014 = vmatpush1.bf16.msra.mxu0 0
      %2015 = vmatprep.subr.bf16.mxu0 0
      %2016 = vmatpush1.bf16.msra.mxu0 0
      %2017 = vmatprep.subr.bf16.mxu0 0
      %2018 = vmatpush1.bf16.msra.mxu0 0
      %2019 = vmatprep.subr.bf16.mxu0 0
      %2020 = vmatpush1.bf16.msra.mxu0 0
      %2021 = vmatprep.subr.bf16.mxu0 0
      %2022 = vmatpush1.bf16.msra.mxu0 0
      %2023 = vmatprep.subr.bf16.mxu0 0
      %2024 = vmatpush1.bf16.msra.mxu0 0
      %2025 = vmatprep.mubr.bf16.mxu0 0
      %2026 = vmatmul.mubr.bf16.gmra.mrb[0].mxu0 %v1982
      %v2027 = vpop.f32.mrb[0].mxu0
      %v2028 = vadd.f32 0.0, %v2027
      %v2029 = vpop.f32.mrb[0].mxu0
      %v2030 = vpop.f32.mrb[0].mxu0
      %v2031 = vadd.f32 0.0, %v2030
      %v2032 = vpop.f32.mrb[0].mxu0
      %2033 = vmatprep.mubr.bf16.mxu0 0
      %2034 = vmatmul.mubr.bf16.gmra.mrb[0].mxu0 %v1984
      %v2035 = vpop.f32.mrb[0].mxu0
      %v2036 = vadd.f32 0.0, %v2035
      %v2037 = vpop.f32.mrb[0].mxu0
      %v2038 = vpop.f32.mrb[0].mxu0
      %v2039 = vadd.f32 0.0, %v2038
      %v2040 = vpop.f32.mrb[0].mxu0
      %2041 = vmatprep.mubr.bf16.mxu0 0
      %2042 = vmatmul.mubr.bf16.gmra.mrb[0].mxu0 %v1986
      %v2043 = vpop.f32.mrb[0].mxu0
      %v2044 = vadd.f32 0.0, %v2043
      %v2045 = vpop.f32.mrb[0].mxu0
      %v2046 = vpop.f32.mrb[0].mxu0
      %v2047 = vadd.f32 0.0, %v2046
      %v2048 = vpop.f32.mrb[0].mxu0
      %2049 = vmatprep.mubr.bf16.mxu0 0
      %2050 = vmatmul.mubr.bf16.gmra.mrb[0].mxu0 %v1988
      %v2051 = vpop.f32.mrb[0].mxu0
      %v2052 = vadd.f32 0.0, %v2051
      %v2053 = vpop.f32.mrb[0].mxu0
      %v2054 = vpop.f32.mrb[0].mxu0
      %v2055 = vadd.f32 0.0, %v2054
      %v2056 = vpop.f32.mrb[0].mxu0
      %2057 = vdwg.mxu0
      %v2058 = vadd.f32 %v1492, %v2028
      %v2059 = vadd.f32 %v1495, %v2031
      %v2060 = vadd.f32 %v1500, %v2036
      %v2061 = vadd.f32 %v1503, %v2039
      %v2062 = vadd.f32 %v1508, %v2044
      %v2063 = vadd.f32 %v1511, %v2047
      %v2064 = vadd.f32 %v1516, %v2052
      %v2065 = vadd.f32 %v1519, %v2055
      %v2066 = vld [vmem:[%s4] sm:$0x1]
      %v2068 = vlaneseq
      %v2069 = vshrl.u32 %v2068, 7
      %v2070 = vsub.s32 0, %v2069
      %v2071 = vrot.slane %v2066, %v2070
      %v2073 = vadd.f32 %v2058, %v2071
      %v2074 = vadd.f32 %v2059, %v2071
      %v2075 = vadd.f32 %v2060, %v2071
      %v2076 = vadd.f32 %v2061, %v2071
      %v2077 = vadd.f32 %v2062, %v2071
      %v2078 = vadd.f32 %v2063, %v2071
      %v2079 = vadd.f32 %v2064, %v2071
      %v2080 = vadd.f32 %v2065, %v2071
      %v2081 = vpack.c.bf16 %v2074, %v2073
      %v2082 = vpack.c.bf16 %v2076, %v2075
      %v2083 = vpack.c.bf16 %v2078, %v2077
      %v2084 = vpack.c.bf16 %v2080, %v2079
      %v2089 = vunpack.c.l.b16 %v2081
      %v2090 = vunpack.c.h.b16 %v2081
      %v2091 = vunpack.c.l.b16 %v2082
      %v2092 = vunpack.c.h.b16 %v2082
      %v2093 = vunpack.c.l.b16 %v2083
      %v2094 = vunpack.c.h.b16 %v2083
      %v2095 = vunpack.c.l.b16 %v2084
      %v2096 = vunpack.c.h.b16 %v2084
      %v2097 = vpack.c.b16 %v2089, %v2089
      %v2098 = vpack.c.b16 %v2090, %v2090
      %v2099 = vpack.c.b16 %v2091, %v2091
      %v2100 = vpack.c.b16 %v2092, %v2092
      %v2101 = vpack.c.b16 %v2093, %v2093
      %v2102 = vpack.c.b16 %v2094, %v2094
      %v2103 = vpack.c.b16 %v2095, %v2095
      %v2104 = vpack.c.b16 %v2096, %v2096
      %vm2113 = vcmask 60416
      %2114 = vst.msk [vmem:[%s417] sm:$0xf] %vm2113, %v2097
      %2115 = vst.msk [vmem:[%s417 + $0x4] sm:$0xf] %vm2113, %v2098
      %2116 = vst.msk [vmem:[%s417 + $0x8] sm:$0xf] %vm2113, %v2099
      %2117 = vst.msk [vmem:[%s417 + $0xc] sm:$0xf] %vm2113, %v2100
      %2118 = vst.msk [vmem:[%s417 + $0x10] sm:$0xf] %vm2113, %v2101
      %2119 = vst.msk [vmem:[%s417 + $0x14] sm:$0xf] %vm2113, %v2102
      %2120 = vst.msk [vmem:[%s417 + $0x18] sm:$0xf] %vm2113, %v2103
      %2121 = vst.msk [vmem:[%s417 + $0x1c] sm:$0xf] %vm2113, %v2104
      %v2122 = vsel %vm825, %v2073, 0.0
      %v2123 = vsel %vm825, %v2074, 0.0
      %v2124 = vadd.f32 %v2122, %v2123
      %v2125 = vsel %vm825, %v2075, 0.0
      %v2126 = vadd.f32 %v2124, %v2125
      %v2127 = vsel %vm825, %v2076, 0.0
      %v2128 = vadd.f32 %v2126, %v2127
      %v2129 = vsel %vm825, %v2077, 0.0
      %v2130 = vadd.f32 %v2128, %v2129
      %v2131 = vsel %vm825, %v2078, 0.0
      %v2132 = vadd.f32 %v2130, %v2131
      %v2133 = vsel %vm825, %v2079, 0.0
      %v2134 = vadd.f32 %v2132, %v2133
      %v2135 = vsel %vm825, %v2080, 0.0
      %v2136 = vadd.f32 %v2134, %v2135
      %v2137 = vrot.slane %v2136, 4
      %v2138 = vadd.f32 %v2136, %v2137
      %v2139 = vrot.slane %v2138, 2
      %v2140 = vadd.f32 %v2138, %v2139
      %v2141 = vrot.slane %v2140, 1
      %v2142 = vadd.f32 %v2140, %v2141
      %vm2143 = vcmask 57344
      %2144 = vst.msk [vmem:[%s424] sm:$0x1] %vm2143, %v2142
      %v2145 = vmul.f32 %v2073, %v2073
      %v2146 = vmul.f32 %v2074, %v2074
      %v2147 = vmul.f32 %v2075, %v2075
      %v2148 = vmul.f32 %v2076, %v2076
      %v2149 = vmul.f32 %v2077, %v2077
      %v2150 = vmul.f32 %v2078, %v2078
      %v2151 = vmul.f32 %v2079, %v2079
      %v2152 = vmul.f32 %v2080, %v2080
      %v2153 = vsel %vm825, %v2145, 0.0
      %v2154 = vsel %vm825, %v2146, 0.0
      %v2155 = vadd.f32 %v2153, %v2154
      %v2156 = vsel %vm825, %v2147, 0.0
      %v2157 = vadd.f32 %v2155, %v2156
      %v2158 = vsel %vm825, %v2148, 0.0
      %v2159 = vadd.f32 %v2157, %v2158
      %v2160 = vsel %vm825, %v2149, 0.0
      %v2161 = vadd.f32 %v2159, %v2160
      %v2162 = vsel %vm825, %v2150, 0.0
      %v2163 = vadd.f32 %v2161, %v2162
      %v2164 = vsel %vm825, %v2151, 0.0
      %v2165 = vadd.f32 %v2163, %v2164
      %v2166 = vsel %vm825, %v2152, 0.0
      %v2167 = vadd.f32 %v2165, %v2166
      %v2168 = vrot.slane %v2167, 4
      %v2169 = vadd.f32 %v2167, %v2168
      %v2170 = vrot.slane %v2169, 2
      %v2171 = vadd.f32 %v2169, %v2170
      %v2172 = vrot.slane %v2171, 1
      %v2173 = vadd.f32 %v2171, %v2172
      %2174 = vst.msk [vmem:[%s431] sm:$0x1] %vm2143, %v2173
      %s2175 = smul.u32 %s23, 8
      %s2176 = sadd.s32 %s2175, %s24
      %p2177 = scmp.lt.s32.totalorder %s2176, 15
      %s2178 = scalar_select %p2177, %s2176, 15
      %s2179 = smul.addr %s2178, 8
      %s2180 = smul.addr %s2179, 4
      %s2181 = scalar_lea.vmem %s5, %s2180
      %s2182 = smul.u32 %s23, 8
      %s2183 = sadd.s32 %s2182, %s24
      %p2184 = scmp.lt.s32.totalorder %s2183, 15
      %s2185 = scalar_select %p2184, %s2183, 15
      %s2186 = scalar_lea.vmem %s6, %s2185
      %s2187 = smul.u32 %s23, 8
      %s2188 = sadd.s32 %s2187, %s24
      %p2189 = scmp.lt.s32.totalorder %s2188, 15
      %s2190 = scalar_select %p2189, %s2188, 15
      %s2191 = scalar_lea.vmem %s7, %s2190
      // Predicated region
      $region41: #{resnet_block_forward.4} parent=39 // pred_check
        %p2192 = pneg %p189
      $region42: #{resnet_block_forward.4} parent=39 // pred_check_branch
        %2194 = sbr.rel (%p2192) target = $region44
      $region43: #{resnet_block_forward.4} parent=39 // pred_region
        %s2195 = smul.u32 %s23, 8
        %s2196 = sadd.s32 %s2195, %s24
      $region44: #{resnet_block_forward.4} parent=39 // pred_fallthru
        _
      // Predicated region
      $region45: #{resnet_block_forward.4} parent=39 // pred_check
        %p2197 = pneg %p219
      $region46: #{resnet_block_forward.4} parent=39 // pred_check_branch
        %2199 = sbr.rel (%p2197) target = $region48
      $region47: #{resnet_block_forward.4} parent=39 // pred_region
        %s2200 = smul.u32 %s23, 8
        %s2201 = sadd.s32 %s2200, %s24
      $region48: #{resnet_block_forward.4} parent=39 // pred_fallthru
        _
      // Predicated region
      $region49: #{resnet_block_forward.4} parent=39 // pred_check
        %p2202 = pneg %p249
      $region50: #{resnet_block_forward.4} parent=39 // pred_check_branch
        %2204 = sbr.rel (%p2202) target = $region52
      $region51: #{resnet_block_forward.4} parent=39 // pred_region
        %s2205 = smul.u32 %s23, 8
        %s2206 = sadd.s32 %s2205, %s24
      $region52: #{resnet_block_forward.4} parent=39 // pred_fallthru
        _
    $region40: #{resnet_block_forward.4} parent=5 // pred_fallthru
      _
    %p2207 = scmp.le.s32.totalorder 2, %s14
    // Predicated region
    $region53: #{resnet_block_forward.4} parent=5 // pred_check
      %p2208 = pneg %p2207
    $region54: #{resnet_block_forward.4} parent=5 // pred_check_branch
      %2210 = sbr.rel (%p2208) target = $region56
    $region55: #{resnet_block_forward.4} parent=5 // pred_region
      %s2211 = ssub.s32 %s14, 2
      // Predicated region
      $region57: #{resnet_block_forward.4} parent=55 // pred_check
        %p2212 = pneg %p195
      $region58: #{resnet_block_forward.4} parent=55 // pred_check_branch
        %2214 = sbr.rel (%p2212) target = $region60
      $region59: #{resnet_block_forward.4} parent=55 // pred_region
        %s2215 = smul.u32 %s25, 8
        %s2216 = sadd.s32 %s2215, %s26
        %p2217 = scmp.lt.s32.totalorder %s2216, 15
        %s2218 = scalar_select %p2217, %s2216, 15
        %s2219 = smul.addr %s2218, 8
        %s2220 = smul.addr %s2219, 4
        %s2221 = scalar_lea.vmem %s5, %s2220
      $region60: #{resnet_block_forward.4} parent=55 // pred_fallthru
        _
      // Predicated region
      $region61: #{resnet_block_forward.4} parent=55 // pred_check
        %p2222 = pneg %p225
      $region62: #{resnet_block_forward.4} parent=55 // pred_check_branch
        %2224 = sbr.rel (%p2222) target = $region64
      $region63: #{resnet_block_forward.4} parent=55 // pred_region
        %s2225 = smul.u32 %s25, 8
        %s2226 = sadd.s32 %s2225, %s26
        %p2227 = scmp.lt.s32.totalorder %s2226, 15
        %s2228 = scalar_select %p2227, %s2226, 15
        %s2229 = scalar_lea.vmem %s6, %s2228
      $region64: #{resnet_block_forward.4} parent=55 // pred_fallthru
        _
      // Predicated region
      $region65: #{resnet_block_forward.4} parent=55 // pred_check
        %p2230 = pneg %p255
      $region66: #{resnet_block_forward.4} parent=55 // pred_check_branch
        %2232 = sbr.rel (%p2230) target = $region68
      $region67: #{resnet_block_forward.4} parent=55 // pred_region
        %s2233 = smul.u32 %s25, 8
        %s2234 = sadd.s32 %s2233, %s26
        %p2235 = scmp.lt.s32.totalorder %s2234, 15
        %s2236 = scalar_select %p2235, %s2234, 15
        %s2237 = scalar_lea.vmem %s7, %s2236
      $region68: #{resnet_block_forward.4} parent=55 // pred_fallthru
        _
    $region56: #{resnet_block_forward.4} parent=5 // pred_fallthru
      _
  $region6: #{resnet_block_forward.4} parent=0 // loop_footer
    %s18 = sadd.s32 1, %s14
  $region7: #{resnet_block_forward.4} parent=0 // loop_footer_branch
    %13 = sbr.rel target = $region3
  $region8: #{resnet_block_forward.4} parent=0 // loop_exit
    _

// kernel: resnet_block_forward.5
$region0: #{resnet_block_forward.5}
  #allocation0 [shape = 'u32[]', space=smem, size = 0x4, offset = 0x4, fixed_abs, tag = 'smem constant byte address 0x4 - core index']
  #allocation1 [shape = 'u32[144,128]{1,0:T(1,128)}', space=vmem, size = 0x12000, scoped, tag = 'internal scratch']
  %s0 = inlined_call_operand.vmem [shape: bf16[2,512,8], index: 0, kind: input, shape index: {}]
  %s1 = inlined_call_operand.vmem [shape: f32[2,1,8], index: 1, kind: input, shape index: {}]
  %s2 = inlined_call_operand.vmem [shape: f32[2,1,8], index: 2, kind: input, shape index: {}]
  %s3 = inlined_call_operand.vmem [shape: f32[2,1,8], index: 3, kind: input, shape index: {}]
  %s4 = inlined_call_operand.vmem [shape: bf16[2,512,8], index: 4, kind: output, shape index: {}]
  %s5 = sld [smem:[#allocation0]]
  $region49: #{resnet_block_forward.5} parent=0
    _
  %s7 = ssub.s32 1, %s5
  %s8 = scalar_select 0, %s7, %s5
  loop: start=0, step=1, limit=4
  $region2: #{resnet_block_forward.5} parent=0 // loop_pre_header
    _
  $region3: #{resnet_block_forward.5} parent=0 // loop_header
    %s10 = sphi 0, %s14
    %p11 = scmp.ge.s32.totalorder %s10, 4
    %s17 = sphi 0, %s29
    %s18 = sphi 0, %s25
    %s19 = sphi 0, %s17
    %s20 = sphi 0, %s18
    %s21 = sphi 0, %s19
    %s22 = sphi 0, %s20
    %s34 = sphi 0, %s36
    %s37 = sphi 0, %s34
    %s38 = sphi 0, %s37
    %s54 = sphi 0, %s38
    %s60 = sphi 0, %s62
    %s63 = sphi 0, %s60
    %s64 = sphi 0, %s63
    %s80 = sphi 0, %s64
    %s86 = sphi 0, %s88
    %s89 = sphi 0, %s86
    %s90 = sphi 0, %s89
    %s106 = sphi 0, %s90
    %s112 = sphi 0, %s114
    %s115 = sphi 0, %s112
    %s116 = sphi 0, %s115
    %s132 = sphi 0, %s116
    %s140 = sphi 0, %s142
    %s143 = sphi 0, %s140
    %s144 = sphi 0, %s143
    %s160 = sphi 0, %s144
  $region4: #{resnet_block_forward.5} parent=0 // loop_header_branch
    %13 = sbr.rel (%p11) target = $region8
  $region5: #{resnet_block_forward.5} parent=0 // loop_body
    %s15 = ssub.s32 %s10, 1
    %s16 = ssub.s32 %s10, 2
    %s23 = sadd.s32 1, %s18
    %p24 = scmp.ge.s32.totalorder %s23, 1
    %s25 = scalar_select %p24, 0, %s23
    %s26 = sadd.s32 1, %s17
    %s27 = scalar_select %p24, %s26, %s17
    %p28 = scmp.ge.s32.totalorder %s27, 2
    %s29 = scalar_select %p28, 0, %s27
    %s30 = ssub.s32 %s17, %s29
    %s31 = ssub.s32 %s18, %s25
    %s32 = sor.u32 %s30, %s31
    %p33 = scmp.eq.s32.totalorder %s32, 0
    %s35 = sadd.s32 %s34, 1
    %s36 = scalar_select %p33, %s34, %s35
    %p39 = pneg %p33
    %p40 = scmp.eq.s32.totalorder %s10, 1
    %p41 = por %p39, %p40
    %p42 = scmp.ne.s32.totalorder %s34, %s37
    %p43 = scmp.eq.s32.totalorder %s10, 0
    %p44 = por %p42, %p43
    %p45 = scmp.ne.s32.totalorder %s34, %s37
    %p46 = scmp.eq.s32.totalorder %s15, 1
    %p47 = por %p45, %p46
    %p48 = scmp.ne.s32.totalorder %s37, %s38
    %p49 = scmp.eq.s32.totalorder %s15, 0
    %p50 = por %p48, %p49
    %p51 = scmp.ne.s32.totalorder %s37, %s38
    %p52 = scmp.eq.s32.totalorder %s16, 1
    %p53 = por %p51, %p52
    %p55 = scmp.ne.s32.totalorder %s38, %s54
    %p56 = scmp.eq.s32.totalorder %s16, 0
    %p57 = por %p55, %p56
    %s58 = ssub.s32 %s17, %s29
    %p59 = scmp.eq.s32.totalorder %s58, 0
    %s61 = sadd.s32 %s60, 1
    %s62 = scalar_select %p59, %s60, %s61
    %p65 = pneg %p59
    %p66 = scmp.eq.s32.totalorder %s10, 1
    %p67 = por %p65, %p66
    %p68 = scmp.ne.s32.totalorder %s60, %s63
    %p69 = scmp.eq.s32.totalorder %s10, 0
    %p70 = por %p68, %p69
    %p71 = scmp.ne.s32.totalorder %s60, %s63
    %p72 = scmp.eq.s32.totalorder %s15, 1
    %p73 = por %p71, %p72
    %p74 = scmp.ne.s32.totalorder %s63, %s64
    %p75 = scmp.eq.s32.totalorder %s15, 0
    %p76 = por %p74, %p75
    %p77 = scmp.ne.s32.totalorder %s63, %s64
    %p78 = scmp.eq.s32.totalorder %s16, 1
    %p79 = por %p77, %p78
    %p81 = scmp.ne.s32.totalorder %s64, %s80
    %p82 = scmp.eq.s32.totalorder %s16, 0
    %p83 = por %p81, %p82
    %s84 = ssub.s32 %s17, %s29
    %p85 = scmp.eq.s32.totalorder %s84, 0
    %s87 = sadd.s32 %s86, 1
    %s88 = scalar_select %p85, %s86, %s87
    %p91 = pneg %p85
    %p92 = scmp.eq.s32.totalorder %s10, 1
    %p93 = por %p91, %p92
    %p94 = scmp.ne.s32.totalorder %s86, %s89
    %p95 = scmp.eq.s32.totalorder %s10, 0
    %p96 = por %p94, %p95
    %p97 = scmp.ne.s32.totalorder %s86, %s89
    %p98 = scmp.eq.s32.totalorder %s15, 1
    %p99 = por %p97, %p98
    %p100 = scmp.ne.s32.totalorder %s89, %s90
    %p101 = scmp.eq.s32.totalorder %s15, 0
    %p102 = por %p100, %p101
    %p103 = scmp.ne.s32.totalorder %s89, %s90
    %p104 = scmp.eq.s32.totalorder %s16, 1
    %p105 = por %p103, %p104
    %p107 = scmp.ne.s32.totalorder %s90, %s106
    %p108 = scmp.eq.s32.totalorder %s16, 0
    %p109 = por %p107, %p108
    %s110 = ssub.s32 %s17, %s29
    %p111 = scmp.eq.s32.totalorder %s110, 0
    %s113 = sadd.s32 %s112, 1
    %s114 = scalar_select %p111, %s112, %s113
    %p117 = pneg %p111
    %p118 = scmp.eq.s32.totalorder %s10, 1
    %p119 = por %p117, %p118
    %p120 = scmp.ne.s32.totalorder %s112, %s115
    %p121 = scmp.eq.s32.totalorder %s10, 0
    %p122 = por %p120, %p121
    %p123 = scmp.ne.s32.totalorder %s112, %s115
    %p124 = scmp.eq.s32.totalorder %s15, 1
    %p125 = por %p123, %p124
    %p126 = scmp.ne.s32.totalorder %s115, %s116
    %p127 = scmp.eq.s32.totalorder %s15, 0
    %p128 = por %p126, %p127
    %p129 = scmp.ne.s32.totalorder %s115, %s116
    %p130 = scmp.eq.s32.totalorder %s16, 1
    %p131 = por %p129, %p130
    %p133 = scmp.ne.s32.totalorder %s116, %s132
    %p134 = scmp.eq.s32.totalorder %s16, 0
    %p135 = por %p133, %p134
    %s136 = ssub.s32 %s17, %s29
    %s137 = ssub.s32 %s18, %s25
    %s138 = sor.u32 %s136, %s137
    %p139 = scmp.eq.s32.totalorder %s138, 0
    %s141 = sadd.s32 %s140, 1
    %s142 = scalar_select %p139, %s140, %s141
    %p145 = pneg %p139
    %p146 = scmp.eq.s32.totalorder %s10, 1
    %p147 = por %p145, %p146
    %p148 = scmp.ne.s32.totalorder %s140, %s143
    %p149 = scmp.eq.s32.totalorder %s10, 0
    %p150 = por %p148, %p149
    %p151 = scmp.ne.s32.totalorder %s140, %s143
    %p152 = scmp.eq.s32.totalorder %s15, 1
    %p153 = por %p151, %p152
    %p154 = scmp.ne.s32.totalorder %s143, %s144
    %p155 = scmp.eq.s32.totalorder %s15, 0
    %p156 = por %p154, %p155
    %p157 = scmp.ne.s32.totalorder %s143, %s144
    %p158 = scmp.eq.s32.totalorder %s16, 1
    %p159 = por %p157, %p158
    %p161 = scmp.ne.s32.totalorder %s144, %s160
    %p162 = scmp.eq.s32.totalorder %s16, 0
    %p163 = por %p161, %p162
    %p164 = scmp.le.s32.totalorder 1, %s10
    %p165 = scmp.lt.s32.totalorder %s10, 3
    %p166 = pnand %p164, %p165
    %p167 = pneg %p166
    // Predicated region
    $region9: #{resnet_block_forward.5} parent=5 // pred_check
      _
    $region10: #{resnet_block_forward.5} parent=5 // pred_check_branch
      %169 = sbr.rel (%p166) target = $region12
    $region11: #{resnet_block_forward.5} parent=5 // pred_region
      %s170 = ssub.s32 %s10, 1
    $region12: #{resnet_block_forward.5} parent=5 // pred_fallthru
      _
    %p171 = scmp.lt.s32.totalorder %s10, 2
    // Predicated region
    $region13: #{resnet_block_forward.5} parent=5 // pred_check
      %p172 = pneg %p171
    $region14: #{resnet_block_forward.5} parent=5 // pred_check_branch
      %174 = sbr.rel (%p172) target = $region16
    $region15: #{resnet_block_forward.5} parent=5 // pred_region
      // Predicated region
      $region17: #{resnet_block_forward.5} parent=15 // pred_check
        %p175 = pneg %p44
      $region18: #{resnet_block_forward.5} parent=15 // pred_check_branch
        %177 = sbr.rel (%p175) target = $region20
      $region19: #{resnet_block_forward.5} parent=15 // pred_region
        %s178 = smul.u32 64, %s18
        %p179 = scmp.lt.s32.totalorder %s17, 1
        %s180 = scalar_select %p179, %s17, 1
        %p181 = scmp.lt.s32.totalorder %s178, 63
        %s182 = scalar_select %p181, %s178, 63
        %s183 = smul.addr %s180, 64
        %s184 = sadd.s32 %s182, %s183
        %s185 = smul.addr %s184, 4
        %s186 = scalar_lea.vmem %s0, %s185
        %s187 = smul.u32 64, %s18
      $region20: #{resnet_block_forward.5} parent=15 // pred_fallthru
        _
      // Predicated region
      $region21: #{resnet_block_forward.5} parent=15 // pred_check
        %p188 = pneg %p70
      $region22: #{resnet_block_forward.5} parent=15 // pred_check_branch
        %190 = sbr.rel (%p188) target = $region24
      $region23: #{resnet_block_forward.5} parent=15 // pred_region
        %p191 = scmp.lt.s32.totalorder %s17, 1
        %s192 = scalar_select %p191, %s17, 1
        %s193 = scalar_lea.vmem %s1, %s192
      $region24: #{resnet_block_forward.5} parent=15 // pred_fallthru
        _
      // Predicated region
      $region25: #{resnet_block_forward.5} parent=15 // pred_check
        %p194 = pneg %p96
      $region26: #{resnet_block_forward.5} parent=15 // pred_check_branch
        %196 = sbr.rel (%p194) target = $region28
      $region27: #{resnet_block_forward.5} parent=15 // pred_region
        %p197 = scmp.lt.s32.totalorder %s17, 1
        %s198 = scalar_select %p197, %s17, 1
        %s199 = scalar_lea.vmem %s2, %s198
      $region28: #{resnet_block_forward.5} parent=15 // pred_fallthru
        _
      // Predicated region
      $region29: #{resnet_block_forward.5} parent=15 // pred_check
        %p200 = pneg %p122
      $region30: #{resnet_block_forward.5} parent=15 // pred_check_branch
        %202 = sbr.rel (%p200) target = $region32
      $region31: #{resnet_block_forward.5} parent=15 // pred_region
        %p203 = scmp.lt.s32.totalorder %s17, 1
        %s204 = scalar_select %p203, %s17, 1
        %s205 = scalar_lea.vmem %s3, %s204
      $region32: #{resnet_block_forward.5} parent=15 // pred_fallthru
        _
    $region16: #{resnet_block_forward.5} parent=5 // pred_fallthru
      _
    %p206 = scmp.le.s32.totalorder 1, %s10
    %p207 = scmp.lt.s32.totalorder %s10, 3
    %p208 = pnand %p206, %p207
    %p209 = pneg %p208
    // Predicated region
    $region33: #{resnet_block_forward.5} parent=5 // pred_check
      _
    $region34: #{resnet_block_forward.5} parent=5 // pred_check_branch
      %211 = sbr.rel (%p208) target = $region36
    $region35: #{resnet_block_forward.5} parent=5 // pred_region
      %s212 = ssub.s32 %s10, 1
      %s213 = smul.u32 64, %s20
      %p214 = scmp.lt.s32.totalorder %s19, 1
      %s215 = scalar_select %p214, %s19, 1
      %p216 = scmp.lt.s32.totalorder %s213, 63
      %s217 = scalar_select %p216, %s213, 63
      %s218 = smul.addr %s215, 64
      %s219 = sadd.s32 %s217, %s218
      %s220 = smul.addr %s219, 4
      %s221 = scalar_lea.vmem %s0, %s220
      %p222 = pneg %p50
      %p223 = pneg %p47
      %p224 = scmp.lt.s32.totalorder %s19, 1
      %s225 = scalar_select %p224, %s19, 1
      %s226 = scalar_lea.vmem %s1, %s225
      %p227 = pneg %p76
      %p228 = pneg %p73
      %p229 = scmp.lt.s32.totalorder %s19, 1
      %s230 = scalar_select %p229, %s19, 1
      %s231 = scalar_lea.vmem %s2, %s230
      %p232 = pneg %p102
      %p233 = pneg %p99
      %p234 = scmp.lt.s32.totalorder %s19, 1
      %s235 = scalar_select %p234, %s19, 1
      %s236 = scalar_lea.vmem %s3, %s235
      %p237 = pneg %p128
      %p238 = pneg %p125
      %p239 = pneg %p156
      %p240 = pneg %p153
      %s241 = smul.u32 64, %s20
      %p242 = scmp.lt.s32.totalorder %s19, 1
      %s243 = scalar_select %p242, %s19, 1
      %p244 = scmp.lt.s32.totalorder %s241, 63
      %s245 = scalar_select %p244, %s241, 63
      %s246 = smul.addr %s243, 64
      %s247 = sadd.s32 %s245, %s246
      %s248 = smul.addr %s247, 4
      %s249 = scalar_lea.vmem %s4, %s248
      %s250 = smul.u32 64, %s20
      %p251 = scmp.lt.s32.totalorder %s19, 1
      %s252 = scalar_select %p251, %s19, 1
      %p253 = scmp.lt.s32.totalorder %s250, 63
      %s254 = scalar_select %p253, %s250, 63
      %s255 = smul.addr %s252, 64
      %s256 = sadd.s32 %s254, %s255
      %s257 = smul.addr %s256, 4
      %s258 = scalar_lea.vmem %s0, %s257
      %s259 = smul.u32 64, %s20
      %p260 = scmp.lt.s32.totalorder %s19, 1
      %s261 = scalar_select %p260, %s19, 1
      %s262 = scalar_lea.vmem %s1, %s261
      %p263 = scmp.lt.s32.totalorder %s19, 1
      %s264 = scalar_select %p263, %s19, 1
      %s265 = scalar_lea.vmem %s2, %s264
      %p266 = scmp.lt.s32.totalorder %s19, 1
      %s267 = scalar_select %p266, %s19, 1
      %s268 = scalar_lea.vmem %s3, %s267
      %s269 = smul.u32 64, %s20
      %p270 = scmp.lt.s32.totalorder %s19, 1
      %s271 = scalar_select %p270, %s19, 1
      %p272 = scmp.lt.s32.totalorder %s269, 63
      %s273 = scalar_select %p272, %s269, 63
      %s274 = smul.addr %s271, 64
      %s275 = sadd.s32 %s273, %s274
      %s276 = smul.addr %s275, 4
      %s277 = scalar_lea.vmem %s4, %s276
      %s278 = smul.u32 64, %s20
      %v279 = vld [vmem:[%s258] sm:$0xf]
      %v280 = vld [vmem:[%s258 + $0x4] sm:$0xf]
      %v281 = vld [vmem:[%s258 + $0x8] sm:$0xf]
      %v282 = vld [vmem:[%s258 + $0xc] sm:$0xf]
      %v283 = vld [vmem:[%s258 + $0x10] sm:$0xf]
      %v284 = vld [vmem:[%s258 + $0x14] sm:$0xf]
      %v285 = vld [vmem:[%s258 + $0x18] sm:$0xf]
      %v286 = vld [vmem:[%s258 + $0x1c] sm:$0xf]
      %v287 = vld [vmem:[%s258 + $0x20] sm:$0xf]
      %v288 = vld [vmem:[%s258 + $0x24] sm:$0xf]
      %v289 = vld [vmem:[%s258 + $0x28] sm:$0xf]
      %v290 = vld [vmem:[%s258 + $0x2c] sm:$0xf]
      %v291 = vld [vmem:[%s258 + $0x30] sm:$0xf]
      %v292 = vld [vmem:[%s258 + $0x34] sm:$0xf]
      %v293 = vld [vmem:[%s258 + $0x38] sm:$0xf]
      %v294 = vld [vmem:[%s258 + $0x3c] sm:$0xf]
      %v295 = vld [vmem:[%s258 + $0x40] sm:$0xf]
      %v296 = vld [vmem:[%s258 + $0x44] sm:$0xf]
      %v297 = vld [vmem:[%s258 + $0x48] sm:$0xf]
      %v298 = vld [vmem:[%s258 + $0x4c] sm:$0xf]
      %v299 = vld [vmem:[%s258 + $0x50] sm:$0xf]
      %v300 = vld [vmem:[%s258 + $0x54] sm:$0xf]
      %v301 = vld [vmem:[%s258 + $0x58] sm:$0xf]
      %v302 = vld [vmem:[%s258 + $0x5c] sm:$0xf]
      %v303 = vld [vmem:[%s258 + $0x60] sm:$0xf]
      %v304 = vld [vmem:[%s258 + $0x64] sm:$0xf]
      %v305 = vld [vmem:[%s258 + $0x68] sm:$0xf]
      %v306 = vld [vmem:[%s258 + $0x6c] sm:$0xf]
      %v307 = vld [vmem:[%s258 + $0x70] sm:$0xf]
      %v308 = vld [vmem:[%s258 + $0x74] sm:$0xf]
      %v309 = vld [vmem:[%s258 + $0x78] sm:$0xf]
      %v310 = vld [vmem:[%s258 + $0x7c] sm:$0xf]
      %v311 = vld [vmem:[%s258 + $0x80] sm:$0xf]
      %v312 = vld [vmem:[%s258 + $0x84] sm:$0xf]
      %v313 = vld [vmem:[%s258 + $0x88] sm:$0xf]
      %v314 = vld [vmem:[%s258 + $0x8c] sm:$0xf]
      %v315 = vld [vmem:[%s258 + $0x90] sm:$0xf]
      %v316 = vld [vmem:[%s258 + $0x94] sm:$0xf]
      %v317 = vld [vmem:[%s258 + $0x98] sm:$0xf]
      %v318 = vld [vmem:[%s258 + $0x9c] sm:$0xf]
      %v319 = vld [vmem:[%s258 + $0xa0] sm:$0xf]
      %v320 = vld [vmem:[%s258 + $0xa4] sm:$0xf]
      %v321 = vld [vmem:[%s258 + $0xa8] sm:$0xf]
      %v322 = vld [vmem:[%s258 + $0xac] sm:$0xf]
      %v323 = vld [vmem:[%s258 + $0xb0] sm:$0xf]
      %v324 = vld [vmem:[%s258 + $0xb4] sm:$0xf]
      %v325 = vld [vmem:[%s258 + $0xb8] sm:$0xf]
      %v326 = vld [vmem:[%s258 + $0xbc] sm:$0xf]
      %v327 = vld [vmem:[%s258 + $0xc0] sm:$0xf]
      %v328 = vld [vmem:[%s258 + $0xc4] sm:$0xf]
      %v329 = vld [vmem:[%s258 + $0xc8] sm:$0xf]
      %v330 = vld [vmem:[%s258 + $0xcc] sm:$0xf]
      %v331 = vld [vmem:[%s258 + $0xd0] sm:$0xf]
      %v332 = vld [vmem:[%s258 + $0xd4] sm:$0xf]
      %v333 = vld [vmem:[%s258 + $0xd8] sm:$0xf]
      %v334 = vld [vmem:[%s258 + $0xdc] sm:$0xf]
      %v335 = vld [vmem:[%s258 + $0xe0] sm:$0xf]
      %v336 = vld [vmem:[%s258 + $0xe4] sm:$0xf]
      %v337 = vld [vmem:[%s258 + $0xe8] sm:$0xf]
      %v338 = vld [vmem:[%s258 + $0xec] sm:$0xf]
      %v339 = vld [vmem:[%s258 + $0xf0] sm:$0xf]
      %v340 = vld [vmem:[%s258 + $0xf4] sm:$0xf]
      %v341 = vld [vmem:[%s258 + $0xf8] sm:$0xf]
      %v342 = vld [vmem:[%s258 + $0xfc] sm:$0xf]
      %v343 = vunpack.c.l.bf16 %v279
      %v344 = vunpack.c.l.bf16 %v280
      %v345 = vunpack.c.l.bf16 %v281
      %v346 = vunpack.c.l.bf16 %v282
      %v347 = vunpack.c.l.bf16 %v283
      %v348 = vunpack.c.l.bf16 %v284
      %v349 = vunpack.c.l.bf16 %v285
      %v350 = vunpack.c.l.bf16 %v286
      %v351 = vunpack.c.l.bf16 %v287
      %v352 = vunpack.c.l.bf16 %v288
      %v353 = vunpack.c.l.bf16 %v289
      %v354 = vunpack.c.l.bf16 %v290
      %v355 = vunpack.c.l.bf16 %v291
      %v356 = vunpack.c.l.bf16 %v292
      %v357 = vunpack.c.l.bf16 %v293
      %v358 = vunpack.c.l.bf16 %v294
      %v359 = vunpack.c.l.bf16 %v295
      %v360 = vunpack.c.l.bf16 %v296
      %v361 = vunpack.c.l.bf16 %v297
      %v362 = vunpack.c.l.bf16 %v298
      %v363 = vunpack.c.l.bf16 %v299
      %v364 = vunpack.c.l.bf16 %v300
      %v365 = vunpack.c.l.bf16 %v301
      %v366 = vunpack.c.l.bf16 %v302
      %v367 = vunpack.c.l.bf16 %v303
      %v368 = vunpack.c.l.bf16 %v304
      %v369 = vunpack.c.l.bf16 %v305
      %v370 = vunpack.c.l.bf16 %v306
      %v371 = vunpack.c.l.bf16 %v307
      %v372 = vunpack.c.l.bf16 %v308
      %v373 = vunpack.c.l.bf16 %v309
      %v374 = vunpack.c.l.bf16 %v310
      %v375 = vunpack.c.l.bf16 %v311
      %v376 = vunpack.c.l.bf16 %v312
      %v377 = vunpack.c.l.bf16 %v313
      %v378 = vunpack.c.l.bf16 %v314
      %v379 = vunpack.c.l.bf16 %v315
      %v380 = vunpack.c.l.bf16 %v316
      %v381 = vunpack.c.l.bf16 %v317
      %v382 = vunpack.c.l.bf16 %v318
      %v383 = vunpack.c.l.bf16 %v319
      %v384 = vunpack.c.l.bf16 %v320
      %v385 = vunpack.c.l.bf16 %v321
      %v386 = vunpack.c.l.bf16 %v322
      %v387 = vunpack.c.l.bf16 %v323
      %v388 = vunpack.c.l.bf16 %v324
      %v389 = vunpack.c.l.bf16 %v325
      %v390 = vunpack.c.l.bf16 %v326
      %v391 = vunpack.c.l.bf16 %v327
      %v392 = vunpack.c.l.bf16 %v328
      %v393 = vunpack.c.l.bf16 %v329
      %v394 = vunpack.c.l.bf16 %v330
      %v395 = vunpack.c.l.bf16 %v331
      %v396 = vunpack.c.l.bf16 %v332
      %v397 = vunpack.c.l.bf16 %v333
      %v398 = vunpack.c.l.bf16 %v334
      %v399 = vunpack.c.l.bf16 %v335
      %v400 = vunpack.c.l.bf16 %v336
      %v401 = vunpack.c.l.bf16 %v337
      %v402 = vunpack.c.l.bf16 %v338
      %v403 = vunpack.c.l.bf16 %v339
      %v404 = vunpack.c.l.bf16 %v340
      %v405 = vunpack.c.l.bf16 %v341
      %v406 = vunpack.c.l.bf16 %v342
      %v407 = vld [vmem:[%s262] sm:$0x1]
      %v409 = vlaneseq
      %v410 = vshrl.u32 %v409, 7
      %v411 = vsub.s32 0, %v410
      %v412 = vrot.slane %v407, %v411
      %v414 = vmul.f32 %v343, %v412
      %v415 = vmul.f32 %v344, %v412
      %v416 = vmul.f32 %v345, %v412
      %v417 = vmul.f32 %v346, %v412
      %v418 = vmul.f32 %v347, %v412
      %v419 = vmul.f32 %v348, %v412
      %v420 = vmul.f32 %v349, %v412
      %v421 = vmul.f32 %v350, %v412
      %v422 = vmul.f32 %v351, %v412
      %v423 = vmul.f32 %v352, %v412
      %v424 = vmul.f32 %v353, %v412
      %v425 = vmul.f32 %v354, %v412
      %v426 = vmul.f32 %v355, %v412
      %v427 = vmul.f32 %v356, %v412
      %v428 = vmul.f32 %v357, %v412
      %v429 = vmul.f32 %v358, %v412
      %v430 = vmul.f32 %v359, %v412
      %v431 = vmul.f32 %v360, %v412
      %v432 = vmul.f32 %v361, %v412
      %v433 = vmul.f32 %v362, %v412
      %v434 = vmul.f32 %v363, %v412
      %v435 = vmul.f32 %v364, %v412
      %v436 = vmul.f32 %v365, %v412
      %v437 = vmul.f32 %v366, %v412
      %v438 = vmul.f32 %v367, %v412
      %v439 = vmul.f32 %v368, %v412
      %v440 = vmul.f32 %v369, %v412
      %v441 = vmul.f32 %v370, %v412
      %v442 = vmul.f32 %v371, %v412
      %v443 = vmul.f32 %v372, %v412
      %v444 = vmul.f32 %v373, %v412
      %v445 = vmul.f32 %v374, %v412
      %v446 = vmul.f32 %v375, %v412
      %v447 = vmul.f32 %v376, %v412
      %v448 = vmul.f32 %v377, %v412
      %v449 = vmul.f32 %v378, %v412
      %v450 = vmul.f32 %v379, %v412
      %v451 = vmul.f32 %v380, %v412
      %v452 = vmul.f32 %v381, %v412
      %v453 = vmul.f32 %v382, %v412
      %v454 = vmul.f32 %v383, %v412
      %v455 = vmul.f32 %v384, %v412
      %v456 = vmul.f32 %v385, %v412
      %v457 = vmul.f32 %v386, %v412
      %v458 = vmul.f32 %v387, %v412
      %v459 = vmul.f32 %v388, %v412
      %v460 = vmul.f32 %v389, %v412
      %v461 = vmul.f32 %v390, %v412
      %v462 = vmul.f32 %v391, %v412
      %v463 = vmul.f32 %v392, %v412
      %v464 = vmul.f32 %v393, %v412
      %v465 = vmul.f32 %v394, %v412
      %v466 = vmul.f32 %v395, %v412
      %v467 = vmul.f32 %v396, %v412
      %v468 = vmul.f32 %v397, %v412
      %v469 = vmul.f32 %v398, %v412
      %v470 = vmul.f32 %v399, %v412
      %v471 = vmul.f32 %v400, %v412
      %v472 = vmul.f32 %v401, %v412
      %v473 = vmul.f32 %v402, %v412
      %v474 = vmul.f32 %v403, %v412
      %v475 = vmul.f32 %v404, %v412
      %v476 = vmul.f32 %v405, %v412
      %v477 = vmul.f32 %v406, %v412
      %v478 = vld [vmem:[%s265] sm:$0x1]
      %v480 = vlaneseq
      %v481 = vshrl.u32 %v480, 7
      %v482 = vsub.s32 0, %v481
      %v483 = vrot.slane %v478, %v482
      %v485 = vadd.f32 %v414, %v483
      %v486 = vadd.f32 %v415, %v483
      %v487 = vadd.f32 %v416, %v483
      %v488 = vadd.f32 %v417, %v483
      %v489 = vadd.f32 %v418, %v483
      %v490 = vadd.f32 %v419, %v483
      %v491 = vadd.f32 %v420, %v483
      %v492 = vadd.f32 %v421, %v483
      %v493 = vadd.f32 %v422, %v483
      %v494 = vadd.f32 %v423, %v483
      %v495 = vadd.f32 %v424, %v483
      %v496 = vadd.f32 %v425, %v483
      %v497 = vadd.f32 %v426, %v483
      %v498 = vadd.f32 %v427, %v483
      %v499 = vadd.f32 %v428, %v483
      %v500 = vadd.f32 %v429, %v483
      %v501 = vadd.f32 %v430, %v483
      %v502 = vadd.f32 %v431, %v483
      %v503 = vadd.f32 %v432, %v483
      %v504 = vadd.f32 %v433, %v483
      %v505 = vadd.f32 %v434, %v483
      %v506 = vadd.f32 %v435, %v483
      %v507 = vadd.f32 %v436, %v483
      %v508 = vadd.f32 %v437, %v483
      %v509 = vadd.f32 %v438, %v483
      %v510 = vadd.f32 %v439, %v483
      %v511 = vadd.f32 %v440, %v483
      %v512 = vadd.f32 %v441, %v483
      %v513 = vadd.f32 %v442, %v483
      %v514 = vadd.f32 %v443, %v483
      %v515 = vadd.f32 %v444, %v483
      %v516 = vadd.f32 %v445, %v483
      %v517 = vadd.f32 %v446, %v483
      %v518 = vadd.f32 %v447, %v483
      %v519 = vadd.f32 %v448, %v483
      %v520 = vadd.f32 %v449, %v483
      %v521 = vadd.f32 %v450, %v483
      %v522 = vadd.f32 %v451, %v483
      %v523 = vadd.f32 %v452, %v483
      %v524 = vadd.f32 %v453, %v483
      %v525 = vadd.f32 %v454, %v483
      %v526 = vadd.f32 %v455, %v483
      %v527 = vadd.f32 %v456, %v483
      %v528 = vadd.f32 %v457, %v483
      %v529 = vadd.f32 %v458, %v483
      %v530 = vadd.f32 %v459, %v483
      %v531 = vadd.f32 %v460, %v483
      %v532 = vadd.f32 %v461, %v483
      %v533 = vadd.f32 %v462, %v483
      %v534 = vadd.f32 %v463, %v483
      %v535 = vadd.f32 %v464, %v483
      %v536 = vadd.f32 %v465, %v483
      %v537 = vadd.f32 %v466, %v483
      %v538 = vadd.f32 %v467, %v483
      %v539 = vadd.f32 %v468, %v483
      %v540 = vadd.f32 %v469, %v483
      %v541 = vadd.f32 %v470, %v483
      %v542 = vadd.f32 %v471, %v483
      %v543 = vadd.f32 %v472, %v483
      %v544 = vadd.f32 %v473, %v483
      %v545 = vadd.f32 %v474, %v483
      %v546 = vadd.f32 %v475, %v483
      %v547 = vadd.f32 %v476, %v483
      %v548 = vadd.f32 %v477, %v483
      %v549 = vxor.u32 %v485, 2147483648
      %v550 = vxor.u32 %v486, 2147483648
      %v551 = vxor.u32 %v487, 2147483648
      %v552 = vxor.u32 %v488, 2147483648
      %v553 = vxor.u32 %v489, 2147483648
      %v554 = vxor.u32 %v490, 2147483648
      %v555 = vxor.u32 %v491, 2147483648
      %v556 = vxor.u32 %v492, 2147483648
      %v557 = vxor.u32 %v493, 2147483648
      %v558 = vxor.u32 %v494, 2147483648
      %v559 = vxor.u32 %v495, 2147483648
      %v560 = vxor.u32 %v496, 2147483648
      %v561 = vxor.u32 %v497, 2147483648
      %v562 = vxor.u32 %v498, 2147483648
      %v563 = vxor.u32 %v499, 2147483648
      %v564 = vxor.u32 %v500, 2147483648
      %v565 = vxor.u32 %v501, 2147483648
      %v566 = vxor.u32 %v502, 2147483648
      %v567 = vxor.u32 %v503, 2147483648
      %v568 = vxor.u32 %v504, 2147483648
      %v569 = vxor.u32 %v505, 2147483648
      %v570 = vxor.u32 %v506, 2147483648
      %v571 = vxor.u32 %v507, 2147483648
      %v572 = vxor.u32 %v508, 2147483648
      %v573 = vxor.u32 %v509, 2147483648
      %v574 = vxor.u32 %v510, 2147483648
      %v575 = vxor.u32 %v511, 2147483648
      %v576 = vxor.u32 %v512, 2147483648
      %v577 = vxor.u32 %v513, 2147483648
      %v578 = vxor.u32 %v514, 2147483648
      %v579 = vxor.u32 %v515, 2147483648
      %v580 = vxor.u32 %v516, 2147483648
      %v581 = vxor.u32 %v517, 2147483648
      %v582 = vxor.u32 %v518, 2147483648
      %v583 = vxor.u32 %v519, 2147483648
      %v584 = vxor.u32 %v520, 2147483648
      %v585 = vxor.u32 %v521, 2147483648
      %v586 = vxor.u32 %v522, 2147483648
      %v587 = vxor.u32 %v523, 2147483648
      %v588 = vxor.u32 %v524, 2147483648
      %v589 = vxor.u32 %v525, 2147483648
      %v590 = vxor.u32 %v526, 2147483648
      %v591 = vxor.u32 %v527, 2147483648
      %v592 = vxor.u32 %v528, 2147483648
      %v593 = vxor.u32 %v529, 2147483648
      %v594 = vxor.u32 %v530, 2147483648
      %v595 = vxor.u32 %v531, 2147483648
      %v596 = vxor.u32 %v532, 2147483648
      %v597 = vxor.u32 %v533, 2147483648
      %v598 = vxor.u32 %v534, 2147483648
      %v599 = vxor.u32 %v535, 2147483648
      %v600 = vxor.u32 %v536, 2147483648
      %v601 = vxor.u32 %v537, 2147483648
      %v602 = vxor.u32 %v538, 2147483648
      %v603 = vxor.u32 %v539, 2147483648
      %v604 = vxor.u32 %v540, 2147483648
      %v605 = vxor.u32 %v541, 2147483648
      %v606 = vxor.u32 %v542, 2147483648
      %v607 = vxor.u32 %v543, 2147483648
      %v608 = vxor.u32 %v544, 2147483648
      %v609 = vxor.u32 %v545, 2147483648
      %v610 = vxor.u32 %v546, 2147483648
      %v611 = vxor.u32 %v547, 2147483648
      %v612 = vxor.u32 %v548, 2147483648
      %v613 = vmul.f32 %v549, 1.442695
      %v614 = vpow.pop %v613
      %v615 = vmul.f32 %v550, 1.442695
      %v616 = vpow.pop %v615
      %v617 = vmul.f32 %v551, 1.442695
      %v618 = vpow.pop %v617
      %v619 = vmul.f32 %v552, 1.442695
      %v620 = vpow.pop %v619
      %v621 = vmul.f32 %v553, 1.442695
      %v622 = vpow.pop %v621
      %v623 = vmul.f32 %v554, 1.442695
      %v624 = vpow.pop %v623
      %v625 = vmul.f32 %v555, 1.442695
      %v626 = vpow.pop %v625
      %v627 = vmul.f32 %v556, 1.442695
      %v628 = vpow.pop %v627
      %v629 = vmul.f32 %v557, 1.442695
      %v630 = vpow.pop %v629
      %v631 = vmul.f32 %v558, 1.442695
      %v632 = vpow.pop %v631
      %v633 = vmul.f32 %v559, 1.442695
      %v634 = vpow.pop %v633
      %v635 = vmul.f32 %v560, 1.442695
      %v636 = vpow.pop %v635
      %v637 = vmul.f32 %v561, 1.442695
      %v638 = vpow.pop %v637
      %v639 = vmul.f32 %v562, 1.442695
      %v640 = vpow.pop %v639
      %v641 = vmul.f32 %v563, 1.442695
      %v642 = vpow.pop %v641
      %v643 = vmul.f32 %v564, 1.442695
      %v644 = vpow.pop %v643
      %v645 = vmul.f32 %v565, 1.442695
      %v646 = vpow.pop %v645
      %v647 = vmul.f32 %v566, 1.442695
      %v648 = vpow.pop %v647
      %v649 = vmul.f32 %v567, 1.442695
      %v650 = vpow.pop %v649
      %v651 = vmul.f32 %v568, 1.442695
      %v652 = vpow.pop %v651
      %v653 = vmul.f32 %v569, 1.442695
      %v654 = vpow.pop %v653
      %v655 = vmul.f32 %v570, 1.442695
      %v656 = vpow.pop %v655
      %v657 = vmul.f32 %v571, 1.442695
      %v658 = vpow.pop %v657
      %v659 = vmul.f32 %v572, 1.442695
      %v660 = vpow.pop %v659
      %v661 = vmul.f32 %v573, 1.442695
      %v662 = vpow.pop %v661
      %v663 = vmul.f32 %v574, 1.442695
      %v664 = vpow.pop %v663
      %v665 = vmul.f32 %v575, 1.442695
      %v666 = vpow.pop %v665
      %v667 = vmul.f32 %v576, 1.442695
      %v668 = vpow.pop %v667
      %v669 = vmul.f32 %v577, 1.442695
      %v670 = vpow.pop %v669
      %v671 = vmul.f32 %v578, 1.442695
      %v672 = vpow.pop %v671
      %v673 = vmul.f32 %v579, 1.442695
      %v674 = vpow.pop %v673
      %v675 = vmul.f32 %v580, 1.442695
      %v676 = vpow.pop %v675
      %v677 = vmul.f32 %v581, 1.442695
      %v678 = vpow.pop %v677
      %v679 = vmul.f32 %v582, 1.442695
      %v680 = vpow.pop %v679
      %v681 = vmul.f32 %v583, 1.442695
      %v682 = vpow.pop %v681
      %v683 = vmul.f32 %v584, 1.442695
      %v684 = vpow.pop %v683
      %v685 = vmul.f32 %v585, 1.442695
      %v686 = vpow.pop %v685
      %v687 = vmul.f32 %v586, 1.442695
      %v688 = vpow.pop %v687
      %v689 = vmul.f32 %v587, 1.442695
      %v690 = vpow.pop %v689
      %v691 = vmul.f32 %v588, 1.442695
      %v692 = vpow.pop %v691
      %v693 = vmul.f32 %v589, 1.442695
      %v694 = vpow.pop %v693
      %v695 = vmul.f32 %v590, 1.442695
      %v696 = vpow.pop %v695
      %v697 = vmul.f32 %v591, 1.442695
      %v698 = vpow.pop %v697
      %v699 = vmul.f32 %v592, 1.442695
      %v700 = vpow.pop %v699
      %v701 = vmul.f32 %v593, 1.442695
      %v702 = vpow.pop %v701
      %v703 = vmul.f32 %v594, 1.442695
      %v704 = vpow.pop %v703
      %v705 = vmul.f32 %v595, 1.442695
      %v706 = vpow.pop %v705
      %v707 = vmul.f32 %v596, 1.442695
      %v708 = vpow.pop %v707
      %v709 = vmul.f32 %v597, 1.442695
      %v710 = vpow.pop %v709
      %v711 = vmul.f32 %v598, 1.442695
      %v712 = vpow.pop %v711
      %v713 = vmul.f32 %v599, 1.442695
      %v714 = vpow.pop %v713
      %v715 = vmul.f32 %v600, 1.442695
      %v716 = vpow.pop %v715
      %v717 = vmul.f32 %v601, 1.442695
      %v718 = vpow.pop %v717
      %v719 = vmul.f32 %v602, 1.442695
      %v720 = vpow.pop %v719
      %v721 = vmul.f32 %v603, 1.442695
      %v722 = vpow.pop %v721
      %v723 = vmul.f32 %v604, 1.442695
      %v724 = vpow.pop %v723
      %v725 = vmul.f32 %v605, 1.442695
      %v726 = vpow.pop %v725
      %v727 = vmul.f32 %v606, 1.442695
      %v728 = vpow.pop %v727
      %v729 = vmul.f32 %v607, 1.442695
      %v730 = vpow.pop %v729
      %v731 = vmul.f32 %v608, 1.442695
      %v732 = vpow.pop %v731
      %v733 = vmul.f32 %v609, 1.442695
      %v734 = vpow.pop %v733
      %v735 = vmul.f32 %v610, 1.442695
      %v736 = vpow.pop %v735
      %v737 = vmul.f32 %v611, 1.442695
      %v738 = vpow.pop %v737
      %v739 = vmul.f32 %v612, 1.442695
      %v740 = vpow.pop %v739
      %v741 = vadd.f32 %v614, 1.0
      %v742 = vadd.f32 %v616, 1.0
      %v743 = vadd.f32 %v618, 1.0
      %v744 = vadd.f32 %v620, 1.0
      %v745 = vadd.f32 %v622, 1.0
      %v746 = vadd.f32 %v624, 1.0
      %v747 = vadd.f32 %v626, 1.0
      %v748 = vadd.f32 %v628, 1.0
      %v749 = vadd.f32 %v630, 1.0
      %v750 = vadd.f32 %v632, 1.0
      %v751 = vadd.f32 %v634, 1.0
      %v752 = vadd.f32 %v636, 1.0
      %v753 = vadd.f32 %v638, 1.0
      %v754 = vadd.f32 %v640, 1.0
      %v755 = vadd.f32 %v642, 1.0
      %v756 = vadd.f32 %v644, 1.0
      %v757 = vadd.f32 %v646, 1.0
      %v758 = vadd.f32 %v648, 1.0
      %v759 = vadd.f32 %v650, 1.0
      %v760 = vadd.f32 %v652, 1.0
      %v761 = vadd.f32 %v654, 1.0
      %v762 = vadd.f32 %v656, 1.0
      %v763 = vadd.f32 %v658, 1.0
      %v764 = vadd.f32 %v660, 1.0
      %v765 = vadd.f32 %v662, 1.0
      %v766 = vadd.f32 %v664, 1.0
      %v767 = vadd.f32 %v666, 1.0
      %v768 = vadd.f32 %v668, 1.0
      %v769 = vadd.f32 %v670, 1.0
      %v770 = vadd.f32 %v672, 1.0
      %v771 = vadd.f32 %v674, 1.0
      %v772 = vadd.f32 %v676, 1.0
      %v773 = vadd.f32 %v678, 1.0
      %v774 = vadd.f32 %v680, 1.0
      %v775 = vadd.f32 %v682, 1.0
      %v776 = vadd.f32 %v684, 1.0
      %v777 = vadd.f32 %v686, 1.0
      %v778 = vadd.f32 %v688, 1.0
      %v779 = vadd.f32 %v690, 1.0
      %v780 = vadd.f32 %v692, 1.0
      %v781 = vadd.f32 %v694, 1.0
      %v782 = vadd.f32 %v696, 1.0
      %v783 = vadd.f32 %v698, 1.0
      %v784 = vadd.f32 %v700, 1.0
      %v785 = vadd.f32 %v702, 1.0
      %v786 = vadd.f32 %v704, 1.0
      %v787 = vadd.f32 %v706, 1.0
      %v788 = vadd.f32 %v708, 1.0
      %v789 = vadd.f32 %v710, 1.0
      %v790 = vadd.f32 %v712, 1.0
      %v791 = vadd.f32 %v714, 1.0
      %v792 = vadd.f32 %v716, 1.0
      %v793 = vadd.f32 %v718, 1.0
      %v794 = vadd.f32 %v720, 1.0
      %v795 = vadd.f32 %v722, 1.0
      %v796 = vadd.f32 %v724, 1.0
      %v797 = vadd.f32 %v726, 1.0
      %v798 = vadd.f32 %v728, 1.0
      %v799 = vadd.f32 %v730, 1.0
      %v800 = vadd.f32 %v732, 1.0
      %v801 = vadd.f32 %v734, 1.0
      %v802 = vadd.f32 %v736, 1.0
      %v803 = vadd.f32 %v738, 1.0
      %v804 = vadd.f32 %v740, 1.0
      %v805 = vrcp.pop %v741
      %v806 = vmul.f32 1.0, %v805
      %v807 = vrcp.pop %v742
      %v808 = vmul.f32 1.0, %v807
      %v809 = vrcp.pop %v743
      %v810 = vmul.f32 1.0, %v809
      %v811 = vrcp.pop %v744
      %v812 = vmul.f32 1.0, %v811
      %v813 = vrcp.pop %v745
      %v814 = vmul.f32 1.0, %v813
      %v815 = vrcp.pop %v746
      %v816 = vmul.f32 1.0, %v815
      %v817 = vrcp.pop %v747
      %v818 = vmul.f32 1.0, %v817
      %v819 = vrcp.pop %v748
      %v820 = vmul.f32 1.0, %v819
      %v821 = vrcp.pop %v749
      %v822 = vmul.f32 1.0, %v821
      %v823 = vrcp.pop %v750
      %v824 = vmul.f32 1.0, %v823
      %v825 = vrcp.pop %v751
      %v826 = vmul.f32 1.0, %v825
      %v827 = vrcp.pop %v752
      %v828 = vmul.f32 1.0, %v827
      %v829 = vrcp.pop %v753
      %v830 = vmul.f32 1.0, %v829
      %v831 = vrcp.pop %v754
      %v832 = vmul.f32 1.0, %v831
      %v833 = vrcp.pop %v755
      %v834 = vmul.f32 1.0, %v833
      %v835 = vrcp.pop %v756
      %v836 = vmul.f32 1.0, %v835
      %v837 = vrcp.pop %v757
      %v838 = vmul.f32 1.0, %v837
      %v839 = vrcp.pop %v758
      %v840 = vmul.f32 1.0, %v839
      %v841 = vrcp.pop %v759
      %v842 = vmul.f32 1.0, %v841
      %v843 = vrcp.pop %v760
      %v844 = vmul.f32 1.0, %v843
      %v845 = vrcp.pop %v761
      %v846 = vmul.f32 1.0, %v845
      %v847 = vrcp.pop %v762
      %v848 = vmul.f32 1.0, %v847
      %v849 = vrcp.pop %v763
      %v850 = vmul.f32 1.0, %v849
      %v851 = vrcp.pop %v764
      %v852 = vmul.f32 1.0, %v851
      %v853 = vrcp.pop %v765
      %v854 = vmul.f32 1.0, %v853
      %v855 = vrcp.pop %v766
      %v856 = vmul.f32 1.0, %v855
      %v857 = vrcp.pop %v767
      %v858 = vmul.f32 1.0, %v857
      %v859 = vrcp.pop %v768
      %v860 = vmul.f32 1.0, %v859
      %v861 = vrcp.pop %v769
      %v862 = vmul.f32 1.0, %v861
      %v863 = vrcp.pop %v770
      %v864 = vmul.f32 1.0, %v863
      %v865 = vrcp.pop %v771
      %v866 = vmul.f32 1.0, %v865
      %v867 = vrcp.pop %v772
      %v868 = vmul.f32 1.0, %v867
      %v869 = vrcp.pop %v773
      %v870 = vmul.f32 1.0, %v869
      %v871 = vrcp.pop %v774
      %v872 = vmul.f32 1.0, %v871
      %v873 = vrcp.pop %v775
      %v874 = vmul.f32 1.0, %v873
      %v875 = vrcp.pop %v776
      %v876 = vmul.f32 1.0, %v875
      %v877 = vrcp.pop %v777
      %v878 = vmul.f32 1.0, %v877
      %v879 = vrcp.pop %v778
      %v880 = vmul.f32 1.0, %v879
      %v881 = vrcp.pop %v779
      %v882 = vmul.f32 1.0, %v881
      %v883 = vrcp.pop %v780
      %v884 = vmul.f32 1.0, %v883
      %v885 = vrcp.pop %v781
      %v886 = vmul.f32 1.0, %v885
      %v887 = vrcp.pop %v782
      %v888 = vmul.f32 1.0, %v887
      %v889 = vrcp.pop %v783
      %v890 = vmul.f32 1.0, %v889
      %v891 = vrcp.pop %v784
      %v892 = vmul.f32 1.0, %v891
      %v893 = vrcp.pop %v785
      %v894 = vmul.f32 1.0, %v893
      %v895 = vrcp.pop %v786
      %v896 = vmul.f32 1.0, %v895
      %v897 = vrcp.pop %v787
      %v898 = vmul.f32 1.0, %v897
      %v899 = vrcp.pop %v788
      %v900 = vmul.f32 1.0, %v899
      %v901 = vrcp.pop %v789
      %v902 = vmul.f32 1.0, %v901
      %v903 = vrcp.pop %v790
      %v904 = vmul.f32 1.0, %v903
      %v905 = vrcp.pop %v791
      %v906 = vmul.f32 1.0, %v905
      %v907 = vrcp.pop %v792
      %v908 = vmul.f32 1.0, %v907
      %v909 = vrcp.pop %v793
      %v910 = vmul.f32 1.0, %v909
      %v911 = vrcp.pop %v794
      %v912 = vmul.f32 1.0, %v911
      %v913 = vrcp.pop %v795
      %v914 = vmul.f32 1.0, %v913
      %v915 = vrcp.pop %v796
      %v916 = vmul.f32 1.0, %v915
      %v917 = vrcp.pop %v797
      %v918 = vmul.f32 1.0, %v917
      %v919 = vrcp.pop %v798
      %v920 = vmul.f32 1.0, %v919
      %v921 = vrcp.pop %v799
      %v922 = vmul.f32 1.0, %v921
      %v923 = vrcp.pop %v800
      %v924 = vmul.f32 1.0, %v923
      %v925 = vrcp.pop %v801
      %v926 = vmul.f32 1.0, %v925
      %v927 = vrcp.pop %v802
      %v928 = vmul.f32 1.0, %v927
      %v929 = vrcp.pop %v803
      %v930 = vmul.f32 1.0, %v929
      %v931 = vrcp.pop %v804
      %v932 = vmul.f32 1.0, %v931
      %v933 = vmul.f32 %v485, %v806
      %v934 = vmul.f32 %v486, %v808
      %v935 = vmul.f32 %v487, %v810
      %v936 = vmul.f32 %v488, %v812
      %v937 = vmul.f32 %v489, %v814
      %v938 = vmul.f32 %v490, %v816
      %v939 = vmul.f32 %v491, %v818
      %v940 = vmul.f32 %v492, %v820
      %v941 = vmul.f32 %v493, %v822
      %v942 = vmul.f32 %v494, %v824
      %v943 = vmul.f32 %v495, %v826
      %v944 = vmul.f32 %v496, %v828
      %v945 = vmul.f32 %v497, %v830
      %v946 = vmul.f32 %v498, %v832
      %v947 = vmul.f32 %v499, %v834
      %v948 = vmul.f32 %v500, %v836
      %v949 = vmul.f32 %v501, %v838
      %v950 = vmul.f32 %v502, %v840
      %v951 = vmul.f32 %v503, %v842
      %v952 = vmul.f32 %v504, %v844
      %v953 = vmul.f32 %v505, %v846
      %v954 = vmul.f32 %v506, %v848
      %v955 = vmul.f32 %v507, %v850
      %v956 = vmul.f32 %v508, %v852
      %v957 = vmul.f32 %v509, %v854
      %v958 = vmul.f32 %v510, %v856
      %v959 = vmul.f32 %v511, %v858
      %v960 = vmul.f32 %v512, %v860
      %v961 = vmul.f32 %v513, %v862
      %v962 = vmul.f32 %v514, %v864
      %v963 = vmul.f32 %v515, %v866
      %v964 = vmul.f32 %v516, %v868
      %v965 = vmul.f32 %v517, %v870
      %v966 = vmul.f32 %v518, %v872
      %v967 = vmul.f32 %v519, %v874
      %v968 = vmul.f32 %v520, %v876
      %v969 = vmul.f32 %v521, %v878
      %v970 = vmul.f32 %v522, %v880
      %v971 = vmul.f32 %v523, %v882
      %v972 = vmul.f32 %v524, %v884
      %v973 = vmul.f32 %v525, %v886
      %v974 = vmul.f32 %v526, %v888
      %v975 = vmul.f32 %v527, %v890
      %v976 = vmul.f32 %v528, %v892
      %v977 = vmul.f32 %v529, %v894
      %v978 = vmul.f32 %v530, %v896
      %v979 = vmul.f32 %v531, %v898
      %v980 = vmul.f32 %v532, %v900
      %v981 = vmul.f32 %v533, %v902
      %v982 = vmul.f32 %v534, %v904
      %v983 = vmul.f32 %v535, %v906
      %v984 = vmul.f32 %v536, %v908
      %v985 = vmul.f32 %v537, %v910
      %v986 = vmul.f32 %v538, %v912
      %v987 = vmul.f32 %v539, %v914
      %v988 = vmul.f32 %v540, %v916
      %v989 = vmul.f32 %v541, %v918
      %v990 = vmul.f32 %v542, %v920
      %v991 = vmul.f32 %v543, %v922
      %v992 = vmul.f32 %v544, %v924
      %v993 = vmul.f32 %v545, %v926
      %v994 = vmul.f32 %v546, %v928
      %v995 = vmul.f32 %v547, %v930
      %v996 = vmul.f32 %v548, %v932
      %v997 = vld [vmem:[%s268] sm:$0x1]
      %v999 = vlaneseq
      %v1000 = vshrl.u32 %v999, 7
      %v1001 = vsub.s32 0, %v1000
      %v1002 = vrot.slane %v997, %v1001
      %v1004 = vadd.f32 %v933, %v1002
      %v1005 = vadd.f32 %v934, %v1002
      %v1006 = vadd.f32 %v935, %v1002
      %v1007 = vadd.f32 %v936, %v1002
      %v1008 = vadd.f32 %v937, %v1002
      %v1009 = vadd.f32 %v938, %v1002
      %v1010 = vadd.f32 %v939, %v1002
      %v1011 = vadd.f32 %v940, %v1002
      %v1012 = vadd.f32 %v941, %v1002
      %v1013 = vadd.f32 %v942, %v1002
      %v1014 = vadd.f32 %v943, %v1002
      %v1015 = vadd.f32 %v944, %v1002
      %v1016 = vadd.f32 %v945, %v1002
      %v1017 = vadd.f32 %v946, %v1002
      %v1018 = vadd.f32 %v947, %v1002
      %v1019 = vadd.f32 %v948, %v1002
      %v1020 = vadd.f32 %v949, %v1002
      %v1021 = vadd.f32 %v950, %v1002
      %v1022 = vadd.f32 %v951, %v1002
      %v1023 = vadd.f32 %v952, %v1002
      %v1024 = vadd.f32 %v953, %v1002
      %v1025 = vadd.f32 %v954, %v1002
      %v1026 = vadd.f32 %v955, %v1002
      %v1027 = vadd.f32 %v956, %v1002
      %v1028 = vadd.f32 %v957, %v1002
      %v1029 = vadd.f32 %v958, %v1002
      %v1030 = vadd.f32 %v959, %v1002
      %v1031 = vadd.f32 %v960, %v1002
      %v1032 = vadd.f32 %v961, %v1002
      %v1033 = vadd.f32 %v962, %v1002
      %v1034 = vadd.f32 %v963, %v1002
      %v1035 = vadd.f32 %v964, %v1002
      %v1036 = vadd.f32 %v965, %v1002
      %v1037 = vadd.f32 %v966, %v1002
      %v1038 = vadd.f32 %v967, %v1002
      %v1039 = vadd.f32 %v968, %v1002
      %v1040 = vadd.f32 %v969, %v1002
      %v1041 = vadd.f32 %v970, %v1002
      %v1042 = vadd.f32 %v971, %v1002
      %v1043 = vadd.f32 %v972, %v1002
      %v1044 = vadd.f32 %v973, %v1002
      %v1045 = vadd.f32 %v974, %v1002
      %v1046 = vadd.f32 %v975, %v1002
      %v1047 = vadd.f32 %v976, %v1002
      %v1048 = vadd.f32 %v977, %v1002
      %v1049 = vadd.f32 %v978, %v1002
      %v1050 = vadd.f32 %v979, %v1002
      %v1051 = vadd.f32 %v980, %v1002
      %v1052 = vadd.f32 %v981, %v1002
      %v1053 = vadd.f32 %v982, %v1002
      %v1054 = vadd.f32 %v983, %v1002
      %v1055 = vadd.f32 %v984, %v1002
      %v1056 = vadd.f32 %v985, %v1002
      %v1057 = vadd.f32 %v986, %v1002
      %v1058 = vadd.f32 %v987, %v1002
      %v1059 = vadd.f32 %v988, %v1002
      %v1060 = vadd.f32 %v989, %v1002
      %v1061 = vadd.f32 %v990, %v1002
      %v1062 = vadd.f32 %v991, %v1002
      %v1063 = vadd.f32 %v992, %v1002
      %v1064 = vadd.f32 %v993, %v1002
      %v1065 = vadd.f32 %v994, %v1002
      %v1066 = vadd.f32 %v995, %v1002
      %v1067 = vadd.f32 %v996, %v1002
      %v1068 = vpack.c.bf16 %v1005, %v1004
      %v1069 = vpack.c.bf16 %v1007, %v1006
      %v1070 = vpack.c.bf16 %v1009, %v1008
      %v1071 = vpack.c.bf16 %v1011, %v1010
      %v1072 = vpack.c.bf16 %v1013, %v1012
      %v1073 = vpack.c.bf16 %v1015, %v1014
      %v1074 = vpack.c.bf16 %v1017, %v1016
      %v1075 = vpack.c.bf16 %v1019, %v1018
      %v1076 = vpack.c.bf16 %v1021, %v1020
      %v1077 = vpack.c.bf16 %v1023, %v1022
      %v1078 = vpack.c.bf16 %v1025, %v1024
      %v1079 = vpack.c.bf16 %v1027, %v1026
      %v1080 = vpack.c.bf16 %v1029, %v1028
      %v1081 = vpack.c.bf16 %v1031, %v1030
      %v1082 = vpack.c.bf16 %v1033, %v1032
      %v1083 = vpack.c.bf16 %v1035, %v1034
      %v1084 = vpack.c.bf16 %v1037, %v1036
      %v1085 = vpack.c.bf16 %v1039, %v1038
      %v1086 = vpack.c.bf16 %v1041, %v1040
      %v1087 = vpack.c.bf16 %v1043, %v1042
      %v1088 = vpack.c.bf16 %v1045, %v1044
      %v1089 = vpack.c.bf16 %v1047, %v1046
      %v1090 = vpack.c.bf16 %v1049, %v1048
      %v1091 = vpack.c.bf16 %v1051, %v1050
      %v1092 = vpack.c.bf16 %v1053, %v1052
      %v1093 = vpack.c.bf16 %v1055, %v1054
      %v1094 = vpack.c.bf16 %v1057, %v1056
      %v1095 = vpack.c.bf16 %v1059, %v1058
      %v1096 = vpack.c.bf16 %v1061, %v1060
      %v1097 = vpack.c.bf16 %v1063, %v1062
      %v1098 = vpack.c.bf16 %v1065, %v1064
      %v1099 = vpack.c.bf16 %v1067, %v1066
      %v1132 = vunpack.c.l.b16 %v1068
      %v1133 = vunpack.c.h.b16 %v1068
      %v1134 = vunpack.c.l.b16 %v1069
      %v1135 = vunpack.c.h.b16 %v1069
      %v1136 = vunpack.c.l.b16 %v1070
      %v1137 = vunpack.c.h.b16 %v1070
      %v1138 = vunpack.c.l.b16 %v1071
      %v1139 = vunpack.c.h.b16 %v1071
      %v1140 = vunpack.c.l.b16 %v1072
      %v1141 = vunpack.c.h.b16 %v1072
      %v1142 = vunpack.c.l.b16 %v1073
      %v1143 = vunpack.c.h.b16 %v1073
      %v1144 = vunpack.c.l.b16 %v1074
      %v1145 = vunpack.c.h.b16 %v1074
      %v1146 = vunpack.c.l.b16 %v1075
      %v1147 = vunpack.c.h.b16 %v1075
      %v1148 = vunpack.c.l.b16 %v1076
      %v1149 = vunpack.c.h.b16 %v1076
      %v1150 = vunpack.c.l.b16 %v1077
      %v1151 = vunpack.c.h.b16 %v1077
      %v1152 = vunpack.c.l.b16 %v1078
      %v1153 = vunpack.c.h.b16 %v1078
      %v1154 = vunpack.c.l.b16 %v1079
      %v1155 = vunpack.c.h.b16 %v1079
      %v1156 = vunpack.c.l.b16 %v1080
      %v1157 = vunpack.c.h.b16 %v1080
      %v1158 = vunpack.c.l.b16 %v1081
      %v1159 = vunpack.c.h.b16 %v1081
      %v1160 = vunpack.c.l.b16 %v1082
      %v1161 = vunpack.c.h.b16 %v1082
      %v1162 = vunpack.c.l.b16 %v1083
      %v1163 = vunpack.c.h.b16 %v1083
      %v1164 = vunpack.c.l.b16 %v1084
      %v1165 = vunpack.c.h.b16 %v1084
      %v1166 = vunpack.c.l.b16 %v1085
      %v1167 = vunpack.c.h.b16 %v1085
      %v1168 = vunpack.c.l.b16 %v1086
      %v1169 = vunpack.c.h.b16 %v1086
      %v1170 = vunpack.c.l.b16 %v1087
      %v1171 = vunpack.c.h.b16 %v1087
      %v1172 = vunpack.c.l.b16 %v1088
      %v1173 = vunpack.c.h.b16 %v1088
      %v1174 = vunpack.c.l.b16 %v1089
      %v1175 = vunpack.c.h.b16 %v1089
      %v1176 = vunpack.c.l.b16 %v1090
      %v1177 = vunpack.c.h.b16 %v1090
      %v1178 = vunpack.c.l.b16 %v1091
      %v1179 = vunpack.c.h.b16 %v1091
      %v1180 = vunpack.c.l.b16 %v1092
      %v1181 = vunpack.c.h.b16 %v1092
      %v1182 = vunpack.c.l.b16 %v1093
      %v1183 = vunpack.c.h.b16 %v1093
      %v1184 = vunpack.c.l.b16 %v1094
      %v1185 = vunpack.c.h.b16 %v1094
      %v1186 = vunpack.c.l.b16 %v1095
      %v1187 = vunpack.c.h.b16 %v1095
      %v1188 = vunpack.c.l.b16 %v1096
      %v1189 = vunpack.c.h.b16 %v1096
      %v1190 = vunpack.c.l.b16 %v1097
      %v1191 = vunpack.c.h.b16 %v1097
      %v1192 = vunpack.c.l.b16 %v1098
      %v1193 = vunpack.c.h.b16 %v1098
      %v1194 = vunpack.c.l.b16 %v1099
      %v1195 = vunpack.c.h.b16 %v1099
      %v1196 = vpack.c.b16 %v1132, %v1132
      %v1197 = vpack.c.b16 %v1133, %v1133
      %v1198 = vpack.c.b16 %v1134, %v1134
      %v1199 = vpack.c.b16 %v1135, %v1135
      %v1200 = vpack.c.b16 %v1136, %v1136
      %v1201 = vpack.c.b16 %v1137, %v1137
      %v1202 = vpack.c.b16 %v1138, %v1138
      %v1203 = vpack.c.b16 %v1139, %v1139
      %v1204 = vpack.c.b16 %v1140, %v1140
      %v1205 = vpack.c.b16 %v1141, %v1141
      %v1206 = vpack.c.b16 %v1142, %v1142
      %v1207 = vpack.c.b16 %v1143, %v1143
      %v1208 = vpack.c.b16 %v1144, %v1144
      %v1209 = vpack.c.b16 %v1145, %v1145
      %v1210 = vpack.c.b16 %v1146, %v1146
      %v1211 = vpack.c.b16 %v1147, %v1147
      %v1212 = vpack.c.b16 %v1148, %v1148
      %v1213 = vpack.c.b16 %v1149, %v1149
      %v1214 = vpack.c.b16 %v1150, %v1150
      %v1215 = vpack.c.b16 %v1151, %v1151
      %v1216 = vpack.c.b16 %v1152, %v1152
      %v1217 = vpack.c.b16 %v1153, %v1153
      %v1218 = vpack.c.b16 %v1154, %v1154
      %v1219 = vpack.c.b16 %v1155, %v1155
      %v1220 = vpack.c.b16 %v1156, %v1156
      %v1221 = vpack.c.b16 %v1157, %v1157
      %v1222 = vpack.c.b16 %v1158, %v1158
      %v1223 = vpack.c.b16 %v1159, %v1159
      %v1224 = vpack.c.b16 %v1160, %v1160
      %v1225 = vpack.c.b16 %v1161, %v1161
      %v1226 = vpack.c.b16 %v1162, %v1162
      %v1227 = vpack.c.b16 %v1163, %v1163
      %v1228 = vpack.c.b16 %v1164, %v1164
      %v1229 = vpack.c.b16 %v1165, %v1165
      %v1230 = vpack.c.b16 %v1166, %v1166
      %v1231 = vpack.c.b16 %v1167, %v1167
      %v1232 = vpack.c.b16 %v1168, %v1168
      %v1233 = vpack.c.b16 %v1169, %v1169
      %v1234 = vpack.c.b16 %v1170, %v1170
      %v1235 = vpack.c.b16 %v1171, %v1171
      %v1236 = vpack.c.b16 %v1172, %v1172
      %v1237 = vpack.c.b16 %v1173, %v1173
      %v1238 = vpack.c.b16 %v1174, %v1174
      %v1239 = vpack.c.b16 %v1175, %v1175
      %v1240 = vpack.c.b16 %v1176, %v1176
      %v1241 = vpack.c.b16 %v1177, %v1177
      %v1242 = vpack.c.b16 %v1178, %v1178
      %v1243 = vpack.c.b16 %v1179, %v1179
      %v1244 = vpack.c.b16 %v1180, %v1180
      %v1245 = vpack.c.b16 %v1181, %v1181
      %v1246 = vpack.c.b16 %v1182, %v1182
      %v1247 = vpack.c.b16 %v1183, %v1183
      %v1248 = vpack.c.b16 %v1184, %v1184
      %v1249 = vpack.c.b16 %v1185, %v1185
      %v1250 = vpack.c.b16 %v1186, %v1186
      %v1251 = vpack.c.b16 %v1187, %v1187
      %v1252 = vpack.c.b16 %v1188, %v1188
      %v1253 = vpack.c.b16 %v1189, %v1189
      %v1254 = vpack.c.b16 %v1190, %v1190
      %v1255 = vpack.c.b16 %v1191, %v1191
      %v1256 = vpack.c.b16 %v1192, %v1192
      %v1257 = vpack.c.b16 %v1193, %v1193
      %v1258 = vpack.c.b16 %v1194, %v1194
      %v1259 = vpack.c.b16 %v1195, %v1195
      %vm1324 = vcmask 60416
      %1325 = vst.msk [vmem:[%s277] sm:$0xf] %vm1324, %v1196
      %1326 = vst.msk [vmem:[%s277 + $0x4] sm:$0xf] %vm1324, %v1197
      %1327 = vst.msk [vmem:[%s277 + $0x8] sm:$0xf] %vm1324, %v1198
      %1328 = vst.msk [vmem:[%s277 + $0xc] sm:$0xf] %vm1324, %v1199
      %1329 = vst.msk [vmem:[%s277 + $0x10] sm:$0xf] %vm1324, %v1200
      %1330 = vst.msk [vmem:[%s277 + $0x14] sm:$0xf] %vm1324, %v1201
      %1331 = vst.msk [vmem:[%s277 + $0x18] sm:$0xf] %vm1324, %v1202
      %1332 = vst.msk [vmem:[%s277 + $0x1c] sm:$0xf] %vm1324, %v1203
      %1333 = vst.msk [vmem:[%s277 + $0x20] sm:$0xf] %vm1324, %v1204
      %1334 = vst.msk [vmem:[%s277 + $0x24] sm:$0xf] %vm1324, %v1205
      %1335 = vst.msk [vmem:[%s277 + $0x28] sm:$0xf] %vm1324, %v1206
      %1336 = vst.msk [vmem:[%s277 + $0x2c] sm:$0xf] %vm1324, %v1207
      %1337 = vst.msk [vmem:[%s277 + $0x30] sm:$0xf] %vm1324, %v1208
      %1338 = vst.msk [vmem:[%s277 + $0x34] sm:$0xf] %vm1324, %v1209
      %1339 = vst.msk [vmem:[%s277 + $0x38] sm:$0xf] %vm1324, %v1210
      %1340 = vst.msk [vmem:[%s277 + $0x3c] sm:$0xf] %vm1324, %v1211
      %1341 = vst.msk [vmem:[%s277 + $0x40] sm:$0xf] %vm1324, %v1212
      %1342 = vst.msk [vmem:[%s277 + $0x44] sm:$0xf] %vm1324, %v1213
      %1343 = vst.msk [vmem:[%s277 + $0x48] sm:$0xf] %vm1324, %v1214
      %1344 = vst.msk [vmem:[%s277 + $0x4c] sm:$0xf] %vm1324, %v1215
      %1345 = vst.msk [vmem:[%s277 + $0x50] sm:$0xf] %vm1324, %v1216
      %1346 = vst.msk [vmem:[%s277 + $0x54] sm:$0xf] %vm1324, %v1217
      %1347 = vst.msk [vmem:[%s277 + $0x58] sm:$0xf] %vm1324, %v1218
      %1348 = vst.msk [vmem:[%s277 + $0x5c] sm:$0xf] %vm1324, %v1219
      %1349 = vst.msk [vmem:[%s277 + $0x60] sm:$0xf] %vm1324, %v1220
      %1350 = vst.msk [vmem:[%s277 + $0x64] sm:$0xf] %vm1324, %v1221
      %1351 = vst.msk [vmem:[%s277 + $0x68] sm:$0xf] %vm1324, %v1222
      %1352 = vst.msk [vmem:[%s277 + $0x6c] sm:$0xf] %vm1324, %v1223
      %1353 = vst.msk [vmem:[%s277 + $0x70] sm:$0xf] %vm1324, %v1224
      %1354 = vst.msk [vmem:[%s277 + $0x74] sm:$0xf] %vm1324, %v1225
      %1355 = vst.msk [vmem:[%s277 + $0x78] sm:$0xf] %vm1324, %v1226
      %1356 = vst.msk [vmem:[%s277 + $0x7c] sm:$0xf] %vm1324, %v1227
      %1357 = vst.msk [vmem:[%s277 + $0x80] sm:$0xf] %vm1324, %v1228
      %1358 = vst.msk [vmem:[%s277 + $0x84] sm:$0xf] %vm1324, %v1229
      %1359 = vst.msk [vmem:[%s277 + $0x88] sm:$0xf] %vm1324, %v1230
      %1360 = vst.msk [vmem:[%s277 + $0x8c] sm:$0xf] %vm1324, %v1231
      %1361 = vst.msk [vmem:[%s277 + $0x90] sm:$0xf] %vm1324, %v1232
      %1362 = vst.msk [vmem:[%s277 + $0x94] sm:$0xf] %vm1324, %v1233
      %1363 = vst.msk [vmem:[%s277 + $0x98] sm:$0xf] %vm1324, %v1234
      %1364 = vst.msk [vmem:[%s277 + $0x9c] sm:$0xf] %vm1324, %v1235
      %1365 = vst.msk [vmem:[%s277 + $0xa0] sm:$0xf] %vm1324, %v1236
      %1366 = vst.msk [vmem:[%s277 + $0xa4] sm:$0xf] %vm1324, %v1237
      %1367 = vst.msk [vmem:[%s277 + $0xa8] sm:$0xf] %vm1324, %v1238
      %1368 = vst.msk [vmem:[%s277 + $0xac] sm:$0xf] %vm1324, %v1239
      %1369 = vst.msk [vmem:[%s277 + $0xb0] sm:$0xf] %vm1324, %v1240
      %1370 = vst.msk [vmem:[%s277 + $0xb4] sm:$0xf] %vm1324, %v1241
      %1371 = vst.msk [vmem:[%s277 + $0xb8] sm:$0xf] %vm1324, %v1242
      %1372 = vst.msk [vmem:[%s277 + $0xbc] sm:$0xf] %vm1324, %v1243
      %1373 = vst.msk [vmem:[%s277 + $0xc0] sm:$0xf] %vm1324, %v1244
      %1374 = vst.msk [vmem:[%s277 + $0xc4] sm:$0xf] %vm1324, %v1245
      %1375 = vst.msk [vmem:[%s277 + $0xc8] sm:$0xf] %vm1324, %v1246
      %1376 = vst.msk [vmem:[%s277 + $0xcc] sm:$0xf] %vm1324, %v1247
      %1377 = vst.msk [vmem:[%s277 + $0xd0] sm:$0xf] %vm1324, %v1248
      %1378 = vst.msk [vmem:[%s277 + $0xd4] sm:$0xf] %vm1324, %v1249
      %1379 = vst.msk [vmem:[%s277 + $0xd8] sm:$0xf] %vm1324, %v1250
      %1380 = vst.msk [vmem:[%s277 + $0xdc] sm:$0xf] %vm1324, %v1251
      %1381 = vst.msk [vmem:[%s277 + $0xe0] sm:$0xf] %vm1324, %v1252
      %1382 = vst.msk [vmem:[%s277 + $0xe4] sm:$0xf] %vm1324, %v1253
      %1383 = vst.msk [vmem:[%s277 + $0xe8] sm:$0xf] %vm1324, %v1254
      %1384 = vst.msk [vmem:[%s277 + $0xec] sm:$0xf] %vm1324, %v1255
      %1385 = vst.msk [vmem:[%s277 + $0xf0] sm:$0xf] %vm1324, %v1256
      %1386 = vst.msk [vmem:[%s277 + $0xf4] sm:$0xf] %vm1324, %v1257
      %1387 = vst.msk [vmem:[%s277 + $0xf8] sm:$0xf] %vm1324, %v1258
      %1388 = vst.msk [vmem:[%s277 + $0xfc] sm:$0xf] %vm1324, %v1259
      %s1389 = smul.u32 64, %s20
      %p1390 = scmp.lt.s32.totalorder %s19, 1
      %s1391 = scalar_select %p1390, %s19, 1
      %p1392 = scmp.lt.s32.totalorder %s1389, 63
      %s1393 = scalar_select %p1392, %s1389, 63
      %s1394 = smul.addr %s1391, 64
      %s1395 = sadd.s32 %s1393, %s1394
      %s1396 = smul.addr %s1395, 4
      %s1397 = scalar_lea.vmem %s4, %s1396
      // Predicated region
      $region37: #{resnet_block_forward.5} parent=35 // pred_check
        %p1398 = pneg %p153
      $region38: #{resnet_block_forward.5} parent=35 // pred_check_branch
        %1400 = sbr.rel (%p1398) target = $region40
      $region39: #{resnet_block_forward.5} parent=35 // pred_region
        %s1401 = smul.u32 64, %s20
      $region40: #{resnet_block_forward.5} parent=35 // pred_fallthru
        _
    $region36: #{resnet_block_forward.5} parent=5 // pred_fallthru
      _
    %p1402 = scmp.le.s32.totalorder 2, %s10
    // Predicated region
    $region41: #{resnet_block_forward.5} parent=5 // pred_check
      %p1403 = pneg %p1402
    $region42: #{resnet_block_forward.5} parent=5 // pred_check_branch
      %1405 = sbr.rel (%p1403) target = $region44
    $region43: #{resnet_block_forward.5} parent=5 // pred_region
      %s1406 = ssub.s32 %s10, 2
      // Predicated region
      $region45: #{resnet_block_forward.5} parent=43 // pred_check
        %p1407 = pneg %p159
      $region46: #{resnet_block_forward.5} parent=43 // pred_check_branch
        %1409 = sbr.rel (%p1407) target = $region48
      $region47: #{resnet_block_forward.5} parent=43 // pred_region
        %s1410 = smul.u32 64, %s22
        %p1411 = scmp.lt.s32.totalorder %s21, 1
        %s1412 = scalar_select %p1411, %s21, 1
        %p1413 = scmp.lt.s32.totalorder %s1410, 63
        %s1414 = scalar_select %p1413, %s1410, 63
        %s1415 = smul.addr %s1412, 64
        %s1416 = sadd.s32 %s1414, %s1415
        %s1417 = smul.addr %s1416, 4
        %s1418 = scalar_lea.vmem %s4, %s1417
      $region48: #{resnet_block_forward.5} parent=43 // pred_fallthru
        _
    $region44: #{resnet_block_forward.5} parent=5 // pred_fallthru
      _
  $region6: #{resnet_block_forward.5} parent=0 // loop_footer
    %s14 = sadd.s32 1, %s10
  $region7: #{resnet_block_forward.5} parent=0 // loop_footer_branch
    %9 = sbr.rel target = $region3
  $region8: #{resnet_block_forward.5} parent=0 // loop_exit
    _

// kernel: resnet_block_forward.7
$region0: #{resnet_block_forward.7}
  #allocation0 [shape = 'u32[]', space=smem, size = 0x4, offset = 0x4, fixed_abs, tag = 'smem constant byte address 0x4 - core index']
  #allocation1 [shape = 'u32[144,128]{1,0:T(1,128)}', space=vmem, size = 0x12000, scoped, tag = 'internal scratch']
  %s0 = inlined_call_operand.vmem [shape: bf16[2,512,8], index: 0, kind: input, shape index: {}]
  %s1 = inlined_call_operand.vmem [shape: f32[2,1,8], index: 1, kind: input, shape index: {}]
  %s2 = inlined_call_operand.vmem [shape: f32[2,1,8], index: 2, kind: input, shape index: {}]
  %s3 = inlined_call_operand.vmem [shape: f32[2,512,4], index: 3, kind: input, shape index: {}]
  %s4 = inlined_call_operand.vmem [shape: bf16[4,8], index: 4, kind: input, shape index: {}]
  %s5 = inlined_call_operand.vmem [shape: f32[1,8], index: 5, kind: input, shape index: {}]
  %s6 = inlined_call_operand.vmem [shape: f32[2,512,8], index: 6, kind: output, shape index: {}]
  %s7 = sld [smem:[#allocation0]]
  $region57: #{resnet_block_forward.7} parent=0
    _
  %s9 = ssub.s32 1, %s7
  %s10 = scalar_select 0, %s9, %s7
  loop: start=0, step=1, limit=4
  $region2: #{resnet_block_forward.7} parent=0 // loop_pre_header
    _
  $region3: #{resnet_block_forward.7} parent=0 // loop_header
    %s12 = sphi 0, %s16
    %p13 = scmp.ge.s32.totalorder %s12, 4
    %s19 = sphi 0, %s31
    %s20 = sphi 0, %s27
    %s21 = sphi 0, %s19
    %s22 = sphi 0, %s20
    %s23 = sphi 0, %s21
    %s24 = sphi 0, %s22
    %s36 = sphi 0, %s38
    %s39 = sphi 0, %s36
    %s40 = sphi 0, %s39
    %s56 = sphi 0, %s40
    %s62 = sphi 0, %s64
    %s65 = sphi 0, %s62
    %s66 = sphi 0, %s65
    %s82 = sphi 0, %s66
    %s88 = sphi 0, %s90
    %s91 = sphi 0, %s88
    %s92 = sphi 0, %s91
    %s108 = sphi 0, %s92
    %s116 = sphi 0, %s118
    %s119 = sphi 0, %s116
    %s120 = sphi 0, %s119
    %s136 = sphi 0, %s120
    %s140 = sphi 0, %s140
    %s142 = sphi 0, %s140
    %s143 = sphi 0, %s142
    %s157 = sphi 0, %s143
    %s161 = sphi 0, %s161
    %s163 = sphi 0, %s161
    %s164 = sphi 0, %s163
    %s178 = sphi 0, %s164
    %s186 = sphi 0, %s188
    %s189 = sphi 0, %s186
    %s190 = sphi 0, %s189
    %s206 = sphi 0, %s190
  $region4: #{resnet_block_forward.7} parent=0 // loop_header_branch
    %15 = sbr.rel (%p13) target = $region8
  $region5: #{resnet_block_forward.7} parent=0 // loop_body
    %s17 = ssub.s32 %s12, 1
    %s18 = ssub.s32 %s12, 2
    %s25 = sadd.s32 1, %s20
    %p26 = scmp.ge.s32.totalorder %s25, 1
    %s27 = scalar_select %p26, 0, %s25
    %s28 = sadd.s32 1, %s19
    %s29 = scalar_select %p26, %s28, %s19
    %p30 = scmp.ge.s32.totalorder %s29, 2
    %s31 = scalar_select %p30, 0, %s29
    %s32 = ssub.s32 %s19, %s31
    %s33 = ssub.s32 %s20, %s27
    %s34 = sor.u32 %s32, %s33
    %p35 = scmp.eq.s32.totalorder %s34, 0
    %s37 = sadd.s32 %s36, 1
    %s38 = scalar_select %p35, %s36, %s37
    %p41 = pneg %p35
    %p42 = scmp.eq.s32.totalorder %s12, 1
    %p43 = por %p41, %p42
    %p44 = scmp.ne.s32.totalorder %s36, %s39
    %p45 = scmp.eq.s32.totalorder %s12, 0
    %p46 = por %p44, %p45
    %p47 = scmp.ne.s32.totalorder %s36, %s39
    %p48 = scmp.eq.s32.totalorder %s17, 1
    %p49 = por %p47, %p48
    %p50 = scmp.ne.s32.totalorder %s39, %s40
    %p51 = scmp.eq.s32.totalorder %s17, 0
    %p52 = por %p50, %p51
    %p53 = scmp.ne.s32.totalorder %s39, %s40
    %p54 = scmp.eq.s32.totalorder %s18, 1
    %p55 = por %p53, %p54
    %p57 = scmp.ne.s32.totalorder %s40, %s56
    %p58 = scmp.eq.s32.totalorder %s18, 0
    %p59 = por %p57, %p58
    %s60 = ssub.s32 %s19, %s31
    %p61 = scmp.eq.s32.totalorder %s60, 0
    %s63 = sadd.s32 %s62, 1
    %s64 = scalar_select %p61, %s62, %s63
    %p67 = pneg %p61
    %p68 = scmp.eq.s32.totalorder %s12, 1
    %p69 = por %p67, %p68
    %p70 = scmp.ne.s32.totalorder %s62, %s65
    %p71 = scmp.eq.s32.totalorder %s12, 0
    %p72 = por %p70, %p71
    %p73 = scmp.ne.s32.totalorder %s62, %s65
    %p74 = scmp.eq.s32.totalorder %s17, 1
    %p75 = por %p73, %p74
    %p76 = scmp.ne.s32.totalorder %s65, %s66
    %p77 = scmp.eq.s32.totalorder %s17, 0
    %p78 = por %p76, %p77
    %p79 = scmp.ne.s32.totalorder %s65, %s66
    %p80 = scmp.eq.s32.totalorder %s18, 1
    %p81 = por %p79, %p80
    %p83 = scmp.ne.s32.totalorder %s66, %s82
    %p84 = scmp.eq.s32.totalorder %s18, 0
    %p85 = por %p83, %p84
    %s86 = ssub.s32 %s19, %s31
    %p87 = scmp.eq.s32.totalorder %s86, 0
    %s89 = sadd.s32 %s88, 1
    %s90 = scalar_select %p87, %s88, %s89
    %p93 = pneg %p87
    %p94 = scmp.eq.s32.totalorder %s12, 1
    %p95 = por %p93, %p94
    %p96 = scmp.ne.s32.totalorder %s88, %s91
    %p97 = scmp.eq.s32.totalorder %s12, 0
    %p98 = por %p96, %p97
    %p99 = scmp.ne.s32.totalorder %s88, %s91
    %p100 = scmp.eq.s32.totalorder %s17, 1
    %p101 = por %p99, %p100
    %p102 = scmp.ne.s32.totalorder %s91, %s92
    %p103 = scmp.eq.s32.totalorder %s17, 0
    %p104 = por %p102, %p103
    %p105 = scmp.ne.s32.totalorder %s91, %s92
    %p106 = scmp.eq.s32.totalorder %s18, 1
    %p107 = por %p105, %p106
    %p109 = scmp.ne.s32.totalorder %s92, %s108
    %p110 = scmp.eq.s32.totalorder %s18, 0
    %p111 = por %p109, %p110
    %s112 = ssub.s32 %s19, %s31
    %s113 = ssub.s32 %s20, %s27
    %s114 = sor.u32 %s112, %s113
    %p115 = scmp.eq.s32.totalorder %s114, 0
    %s117 = sadd.s32 %s116, 1
    %s118 = scalar_select %p115, %s116, %s117
    %p121 = pneg %p115
    %p122 = scmp.eq.s32.totalorder %s12, 1
    %p123 = por %p121, %p122
    %p124 = scmp.ne.s32.totalorder %s116, %s119
    %p125 = scmp.eq.s32.totalorder %s12, 0
    %p126 = por %p124, %p125
    %p127 = scmp.ne.s32.totalorder %s116, %s119
    %p128 = scmp.eq.s32.totalorder %s17, 1
    %p129 = por %p127, %p128
    %p130 = scmp.ne.s32.totalorder %s119, %s120
    %p131 = scmp.eq.s32.totalorder %s17, 0
    %p132 = por %p130, %p131
    %p133 = scmp.ne.s32.totalorder %s119, %s120
    %p134 = scmp.eq.s32.totalorder %s18, 1
    %p135 = por %p133, %p134
    %p137 = scmp.ne.s32.totalorder %s120, %s136
    %p138 = scmp.eq.s32.totalorder %s18, 0
    %p139 = por %p137, %p138
    %s141 = sadd.s32 %s140, 1
    %p144 = scmp.eq.s32.totalorder %s12, 1
    %p145 = scmp.ne.s32.totalorder %s140, %s142
    %p146 = scmp.eq.s32.totalorder %s12, 0
    %p147 = por %p145, %p146
    %p148 = scmp.ne.s32.totalorder %s140, %s142
    %p149 = scmp.eq.s32.totalorder %s17, 1
    %p150 = por %p148, %p149
    %p151 = scmp.ne.s32.totalorder %s142, %s143
    %p152 = scmp.eq.s32.totalorder %s17, 0
    %p153 = por %p151, %p152
    %p154 = scmp.ne.s32.totalorder %s142, %s143
    %p155 = scmp.eq.s32.totalorder %s18, 1
    %p156 = por %p154, %p155
    %p158 = scmp.ne.s32.totalorder %s143, %s157
    %p159 = scmp.eq.s32.totalorder %s18, 0
    %p160 = por %p158, %p159
    %s162 = sadd.s32 %s161, 1
    %p165 = scmp.eq.s32.totalorder %s12, 1
    %p166 = scmp.ne.s32.totalorder %s161, %s163
    %p167 = scmp.eq.s32.totalorder %s12, 0
    %p168 = por %p166, %p167
    %p169 = scmp.ne.s32.totalorder %s161, %s163
    %p170 = scmp.eq.s32.totalorder %s17, 1
    %p171 = por %p169, %p170
    %p172 = scmp.ne.s32.totalorder %s163, %s164
    %p173 = scmp.eq.s32.totalorder %s17, 0
    %p174 = por %p172, %p173
    %p175 = scmp.ne.s32.totalorder %s163, %s164
    %p176 = scmp.eq.s32.totalorder %s18, 1
    %p177 = por %p175, %p176
    %p179 = scmp.ne.s32.totalorder %s164, %s178
    %p180 = scmp.eq.s32.totalorder %s18, 0
    %p181 = por %p179, %p180
    %s182 = ssub.s32 %s19, %s31
    %s183 = ssub.s32 %s20, %s27
    %s184 = sor.u32 %s182, %s183
    %p185 = scmp.eq.s32.totalorder %s184, 0
    %s187 = sadd.s32 %s186, 1
    %s188 = scalar_select %p185, %s186, %s187
    %p191 = pneg %p185
    %p192 = scmp.eq.s32.totalorder %s12, 1
    %p193 = por %p191, %p192
    %p194 = scmp.ne.s32.totalorder %s186, %s189
    %p195 = scmp.eq.s32.totalorder %s12, 0
    %p196 = por %p194, %p195
    %p197 = scmp.ne.s32.totalorder %s186, %s189
    %p198 = scmp.eq.s32.totalorder %s17, 1
    %p199 = por %p197, %p198
    %p200 = scmp.ne.s32.totalorder %s189, %s190
    %p201 = scmp.eq.s32.totalorder %s17, 0
    %p202 = por %p200, %p201
    %p203 = scmp.ne.s32.totalorder %s189, %s190
    %p204 = scmp.eq.s32.totalorder %s18, 1
    %p205 = por %p203, %p204
    %p207 = scmp.ne.s32.totalorder %s190, %s206
    %p208 = scmp.eq.s32.totalorder %s18, 0
    %p209 = por %p207, %p208
    %p210 = scmp.le.s32.totalorder 1, %s12
    %p211 = scmp.lt.s32.totalorder %s12, 3
    %p212 = pnand %p210, %p211
    %p213 = pneg %p212
    // Predicated region
    $region9: #{resnet_block_forward.7} parent=5 // pred_check
      _
    $region10: #{resnet_block_forward.7} parent=5 // pred_check_branch
      %215 = sbr.rel (%p212) target = $region12
    $region11: #{resnet_block_forward.7} parent=5 // pred_region
      %s216 = ssub.s32 %s12, 1
      // Predicated region
      $region13: #{resnet_block_forward.7} parent=11 // pred_check
        %p217 = pneg %p153
      $region14: #{resnet_block_forward.7} parent=11 // pred_check_branch
        %219 = sbr.rel (%p217) target = $region16
      $region15: #{resnet_block_forward.7} parent=11 // pred_region
        _
      $region16: #{resnet_block_forward.7} parent=11 // pred_fallthru
        _
      // Predicated region
      $region17: #{resnet_block_forward.7} parent=11 // pred_check
        %p220 = pneg %p174
      $region18: #{resnet_block_forward.7} parent=11 // pred_check_branch
        %222 = sbr.rel (%p220) target = $region20
      $region19: #{resnet_block_forward.7} parent=11 // pred_region
        _
      $region20: #{resnet_block_forward.7} parent=11 // pred_fallthru
        _
    $region12: #{resnet_block_forward.7} parent=5 // pred_fallthru
      _
    %p223 = scmp.lt.s32.totalorder %s12, 2
    // Predicated region
    $region21: #{resnet_block_forward.7} parent=5 // pred_check
      %p224 = pneg %p223
    $region22: #{resnet_block_forward.7} parent=5 // pred_check_branch
      %226 = sbr.rel (%p224) target = $region24
    $region23: #{resnet_block_forward.7} parent=5 // pred_region
      // Predicated region
      $region25: #{resnet_block_forward.7} parent=23 // pred_check
        %p227 = pneg %p46
      $region26: #{resnet_block_forward.7} parent=23 // pred_check_branch
        %229 = sbr.rel (%p227) target = $region28
      $region27: #{resnet_block_forward.7} parent=23 // pred_region
        %s230 = smul.u32 64, %s20
        %p231 = scmp.lt.s32.totalorder %s19, 1
        %s232 = scalar_select %p231, %s19, 1
        %p233 = scmp.lt.s32.totalorder %s230, 63
        %s234 = scalar_select %p233, %s230, 63
        %s235 = smul.addr %s232, 64
        %s236 = sadd.s32 %s234, %s235
        %s237 = smul.addr %s236, 4
        %s238 = scalar_lea.vmem %s0, %s237
        %s239 = smul.u32 64, %s20
      $region28: #{resnet_block_forward.7} parent=23 // pred_fallthru
        _
      // Predicated region
      $region29: #{resnet_block_forward.7} parent=23 // pred_check
        %p240 = pneg %p72
      $region30: #{resnet_block_forward.7} parent=23 // pred_check_branch
        %242 = sbr.rel (%p240) target = $region32
      $region31: #{resnet_block_forward.7} parent=23 // pred_region
        %p243 = scmp.lt.s32.totalorder %s19, 1
        %s244 = scalar_select %p243, %s19, 1
        %s245 = scalar_lea.vmem %s1, %s244
      $region32: #{resnet_block_forward.7} parent=23 // pred_fallthru
        _
      // Predicated region
      $region33: #{resnet_block_forward.7} parent=23 // pred_check
        %p246 = pneg %p98
      $region34: #{resnet_block_forward.7} parent=23 // pred_check_branch
        %248 = sbr.rel (%p246) target = $region36
      $region35: #{resnet_block_forward.7} parent=23 // pred_region
        %p249 = scmp.lt.s32.totalorder %s19, 1
        %s250 = scalar_select %p249, %s19, 1
        %s251 = scalar_lea.vmem %s2, %s250
      $region36: #{resnet_block_forward.7} parent=23 // pred_fallthru
        _
      // Predicated region
      $region37: #{resnet_block_forward.7} parent=23 // pred_check
        %p252 = pneg %p126
      $region38: #{resnet_block_forward.7} parent=23 // pred_check_branch
        %254 = sbr.rel (%p252) target = $region40
      $region39: #{resnet_block_forward.7} parent=23 // pred_region
        %s255 = smul.u32 64, %s20
        %p256 = scmp.lt.s32.totalorder %s19, 1
        %s257 = scalar_select %p256, %s19, 1
        %p258 = scmp.lt.s32.totalorder %s255, 63
        %s259 = scalar_select %p258, %s255, 63
        %s260 = smul.addr %s257, 64
        %s261 = sadd.s32 %s259, %s260
        %s262 = smul.addr %s261, 8
        %s263 = scalar_lea.vmem %s3, %s262
        %s264 = smul.u32 64, %s20
      $region40: #{resnet_block_forward.7} parent=23 // pred_fallthru
        _
    $region24: #{resnet_block_forward.7} parent=5 // pred_fallthru
      _
    %p265 = scmp.le.s32.totalorder 1, %s12
    %p266 = scmp.lt.s32.totalorder %s12, 3
    %p267 = pnand %p265, %p266
    %p268 = pneg %p267
    // Predicated region
    $region41: #{resnet_block_forward.7} parent=5 // pred_check
      _
    $region42: #{resnet_block_forward.7} parent=5 // pred_check_branch
      %270 = sbr.rel (%p267) target = $region44
    $region43: #{resnet_block_forward.7} parent=5 // pred_region
      %s271 = ssub.s32 %s12, 1
      %s272 = smul.u32 64, %s22
      %p273 = scmp.lt.s32.totalorder %s21, 1
      %s274 = scalar_select %p273, %s21, 1
      %p275 = scmp.lt.s32.totalorder %s272, 63
      %s276 = scalar_select %p275, %s272, 63
      %s277 = smul.addr %s274, 64
      %s278 = sadd.s32 %s276, %s277
      %s279 = smul.addr %s278, 4
      %s280 = scalar_lea.vmem %s0, %s279
      %p281 = pneg %p52
      %p282 = pneg %p49
      %p283 = scmp.lt.s32.totalorder %s21, 1
      %s284 = scalar_select %p283, %s21, 1
      %s285 = scalar_lea.vmem %s1, %s284
      %p286 = pneg %p78
      %p287 = pneg %p75
      %p288 = scmp.lt.s32.totalorder %s21, 1
      %s289 = scalar_select %p288, %s21, 1
      %s290 = scalar_lea.vmem %s2, %s289
      %p291 = pneg %p104
      %p292 = pneg %p101
      %s293 = smul.u32 64, %s22
      %p294 = scmp.lt.s32.totalorder %s21, 1
      %s295 = scalar_select %p294, %s21, 1
      %p296 = scmp.lt.s32.totalorder %s293, 63
      %s297 = scalar_select %p296, %s293, 63
      %s298 = smul.addr %s295, 64
      %s299 = sadd.s32 %s297, %s298
      %s300 = smul.addr %s299, 8
      %s301 = scalar_lea.vmem %s3, %s300
      %p302 = pneg %p132
      %p303 = pneg %p129
      %p304 = pneg %p153
      %p305 = pneg %p150
      %p306 = pneg %p174
      %p307 = pneg %p171
      %p308 = pneg %p202
      %p309 = pneg %p199
      %s310 = smul.u32 64, %s22
      %p311 = scmp.lt.s32.totalorder %s21, 1
      %s312 = scalar_select %p311, %s21, 1
      %p313 = scmp.lt.s32.totalorder %s310, 63
      %s314 = scalar_select %p313, %s310, 63
      %s315 = smul.addr %s312, 64
      %s316 = sadd.s32 %s314, %s315
      %s317 = smul.addr %s316, 8
      %s318 = scalar_lea.vmem %s6, %s317
      %s319 = smul.u32 64, %s22
      %p320 = scmp.lt.s32.totalorder %s21, 1
      %s321 = scalar_select %p320, %s21, 1
      %p322 = scmp.lt.s32.totalorder %s319, 63
      %s323 = scalar_select %p322, %s319, 63
      %s324 = smul.addr %s321, 64
      %s325 = sadd.s32 %s323, %s324
      %s326 = smul.addr %s325, 4
      %s327 = scalar_lea.vmem %s0, %s326
      %s328 = smul.u32 64, %s22
      %p329 = scmp.lt.s32.totalorder %s21, 1
      %s330 = scalar_select %p329, %s21, 1
      %s331 = scalar_lea.vmem %s1, %s330
      %p332 = scmp.lt.s32.totalorder %s21, 1
      %s333 = scalar_select %p332, %s21, 1
      %s334 = scalar_lea.vmem %s2, %s333
      %s335 = smul.u32 64, %s22
      %p336 = scmp.lt.s32.totalorder %s21, 1
      %s337 = scalar_select %p336, %s21, 1
      %p338 = scmp.lt.s32.totalorder %s335, 63
      %s339 = scalar_select %p338, %s335, 63
      %s340 = smul.addr %s337, 64
      %s341 = sadd.s32 %s339, %s340
      %s342 = smul.addr %s341, 8
      %s343 = scalar_lea.vmem %s3, %s342
      %s344 = smul.u32 64, %s22
      %s345 = smul.u32 64, %s22
      %p346 = scmp.lt.s32.totalorder %s21, 1
      %s347 = scalar_select %p346, %s21, 1
      %p348 = scmp.lt.s32.totalorder %s345, 63
      %s349 = scalar_select %p348, %s345, 63
      %s350 = smul.addr %s347, 64
      %s351 = sadd.s32 %s349, %s350
      %s352 = smul.addr %s351, 8
      %s353 = scalar_lea.vmem %s6, %s352
      %s354 = smul.u32 64, %s22
      %v356 = vld [vmem:[%s327] sm:$0xf]
      %v357 = vld [vmem:[%s327 + $0x4] sm:$0xf]
      %v358 = vld [vmem:[%s327 + $0x8] sm:$0xf]
      %v359 = vld [vmem:[%s327 + $0xc] sm:$0xf]
      %v360 = vld [vmem:[%s327 + $0x10] sm:$0xf]
      %v361 = vld [vmem:[%s327 + $0x14] sm:$0xf]
      %v362 = vld [vmem:[%s327 + $0x18] sm:$0xf]
      %v363 = vld [vmem:[%s327 + $0x1c] sm:$0xf]
      %v364 = vld [vmem:[%s327 + $0x20] sm:$0xf]
      %v365 = vld [vmem:[%s327 + $0x24] sm:$0xf]
      %v366 = vld [vmem:[%s327 + $0x28] sm:$0xf]
      %v367 = vld [vmem:[%s327 + $0x2c] sm:$0xf]
      %v368 = vld [vmem:[%s327 + $0x30] sm:$0xf]
      %v369 = vld [vmem:[%s327 + $0x34] sm:$0xf]
      %v370 = vld [vmem:[%s327 + $0x38] sm:$0xf]
      %v371 = vld [vmem:[%s327 + $0x3c] sm:$0xf]
      %v372 = vld [vmem:[%s327 + $0x40] sm:$0xf]
      %v373 = vld [vmem:[%s327 + $0x44] sm:$0xf]
      %v374 = vld [vmem:[%s327 + $0x48] sm:$0xf]
      %v375 = vld [vmem:[%s327 + $0x4c] sm:$0xf]
      %v376 = vld [vmem:[%s327 + $0x50] sm:$0xf]
      %v377 = vld [vmem:[%s327 + $0x54] sm:$0xf]
      %v378 = vld [vmem:[%s327 + $0x58] sm:$0xf]
      %v379 = vld [vmem:[%s327 + $0x5c] sm:$0xf]
      %v380 = vld [vmem:[%s327 + $0x60] sm:$0xf]
      %v381 = vld [vmem:[%s327 + $0x64] sm:$0xf]
      %v382 = vld [vmem:[%s327 + $0x68] sm:$0xf]
      %v383 = vld [vmem:[%s327 + $0x6c] sm:$0xf]
      %v384 = vld [vmem:[%s327 + $0x70] sm:$0xf]
      %v385 = vld [vmem:[%s327 + $0x74] sm:$0xf]
      %v386 = vld [vmem:[%s327 + $0x78] sm:$0xf]
      %v387 = vld [vmem:[%s327 + $0x7c] sm:$0xf]
      %v388 = vld [vmem:[%s327 + $0x80] sm:$0xf]
      %v389 = vld [vmem:[%s327 + $0x84] sm:$0xf]
      %v390 = vld [vmem:[%s327 + $0x88] sm:$0xf]
      %v391 = vld [vmem:[%s327 + $0x8c] sm:$0xf]
      %v392 = vld [vmem:[%s327 + $0x90] sm:$0xf]
      %v393 = vld [vmem:[%s327 + $0x94] sm:$0xf]
      %v394 = vld [vmem:[%s327 + $0x98] sm:$0xf]
      %v395 = vld [vmem:[%s327 + $0x9c] sm:$0xf]
      %v396 = vld [vmem:[%s327 + $0xa0] sm:$0xf]
      %v397 = vld [vmem:[%s327 + $0xa4] sm:$0xf]
      %v398 = vld [vmem:[%s327 + $0xa8] sm:$0xf]
      %v399 = vld [vmem:[%s327 + $0xac] sm:$0xf]
      %v400 = vld [vmem:[%s327 + $0xb0] sm:$0xf]
      %v401 = vld [vmem:[%s327 + $0xb4] sm:$0xf]
      %v402 = vld [vmem:[%s327 + $0xb8] sm:$0xf]
      %v403 = vld [vmem:[%s327 + $0xbc] sm:$0xf]
      %v404 = vld [vmem:[%s327 + $0xc0] sm:$0xf]
      %v405 = vld [vmem:[%s327 + $0xc4] sm:$0xf]
      %v406 = vld [vmem:[%s327 + $0xc8] sm:$0xf]
      %v407 = vld [vmem:[%s327 + $0xcc] sm:$0xf]
      %v408 = vld [vmem:[%s327 + $0xd0] sm:$0xf]
      %v409 = vld [vmem:[%s327 + $0xd4] sm:$0xf]
      %v410 = vld [vmem:[%s327 + $0xd8] sm:$0xf]
      %v411 = vld [vmem:[%s327 + $0xdc] sm:$0xf]
      %v412 = vld [vmem:[%s327 + $0xe0] sm:$0xf]
      %v413 = vld [vmem:[%s327 + $0xe4] sm:$0xf]
      %v414 = vld [vmem:[%s327 + $0xe8] sm:$0xf]
      %v415 = vld [vmem:[%s327 + $0xec] sm:$0xf]
      %v416 = vld [vmem:[%s327 + $0xf0] sm:$0xf]
      %v417 = vld [vmem:[%s327 + $0xf4] sm:$0xf]
      %v418 = vld [vmem:[%s327 + $0xf8] sm:$0xf]
      %v419 = vld [vmem:[%s327 + $0xfc] sm:$0xf]
      %v420 = vunpack.c.l.bf16 %v356
      %v421 = vunpack.c.l.bf16 %v357
      %v422 = vunpack.c.l.bf16 %v358
      %v423 = vunpack.c.l.bf16 %v359
      %v424 = vunpack.c.l.bf16 %v360
      %v425 = vunpack.c.l.bf16 %v361
      %v426 = vunpack.c.l.bf16 %v362
      %v427 = vunpack.c.l.bf16 %v363
      %v428 = vunpack.c.l.bf16 %v364
      %v429 = vunpack.c.l.bf16 %v365
      %v430 = vunpack.c.l.bf16 %v366
      %v431 = vunpack.c.l.bf16 %v367
      %v432 = vunpack.c.l.bf16 %v368
      %v433 = vunpack.c.l.bf16 %v369
      %v434 = vunpack.c.l.bf16 %v370
      %v435 = vunpack.c.l.bf16 %v371
      %v436 = vunpack.c.l.bf16 %v372
      %v437 = vunpack.c.l.bf16 %v373
      %v438 = vunpack.c.l.bf16 %v374
      %v439 = vunpack.c.l.bf16 %v375
      %v440 = vunpack.c.l.bf16 %v376
      %v441 = vunpack.c.l.bf16 %v377
      %v442 = vunpack.c.l.bf16 %v378
      %v443 = vunpack.c.l.bf16 %v379
      %v444 = vunpack.c.l.bf16 %v380
      %v445 = vunpack.c.l.bf16 %v381
      %v446 = vunpack.c.l.bf16 %v382
      %v447 = vunpack.c.l.bf16 %v383
      %v448 = vunpack.c.l.bf16 %v384
      %v449 = vunpack.c.l.bf16 %v385
      %v450 = vunpack.c.l.bf16 %v386
      %v451 = vunpack.c.l.bf16 %v387
      %v452 = vunpack.c.l.bf16 %v388
      %v453 = vunpack.c.l.bf16 %v389
      %v454 = vunpack.c.l.bf16 %v390
      %v455 = vunpack.c.l.bf16 %v391
      %v456 = vunpack.c.l.bf16 %v392
      %v457 = vunpack.c.l.bf16 %v393
      %v458 = vunpack.c.l.bf16 %v394
      %v459 = vunpack.c.l.bf16 %v395
      %v460 = vunpack.c.l.bf16 %v396
      %v461 = vunpack.c.l.bf16 %v397
      %v462 = vunpack.c.l.bf16 %v398
      %v463 = vunpack.c.l.bf16 %v399
      %v464 = vunpack.c.l.bf16 %v400
      %v465 = vunpack.c.l.bf16 %v401
      %v466 = vunpack.c.l.bf16 %v402
      %v467 = vunpack.c.l.bf16 %v403
      %v468 = vunpack.c.l.bf16 %v404
      %v469 = vunpack.c.l.bf16 %v405
      %v470 = vunpack.c.l.bf16 %v406
      %v471 = vunpack.c.l.bf16 %v407
      %v472 = vunpack.c.l.bf16 %v408
      %v473 = vunpack.c.l.bf16 %v409
      %v474 = vunpack.c.l.bf16 %v410
      %v475 = vunpack.c.l.bf16 %v411
      %v476 = vunpack.c.l.bf16 %v412
      %v477 = vunpack.c.l.bf16 %v413
      %v478 = vunpack.c.l.bf16 %v414
      %v479 = vunpack.c.l.bf16 %v415
      %v480 = vunpack.c.l.bf16 %v416
      %v481 = vunpack.c.l.bf16 %v417
      %v482 = vunpack.c.l.bf16 %v418
      %v483 = vunpack.c.l.bf16 %v419
      %v484 = vld [vmem:[%s331] sm:$0x1]
      %v486 = vlaneseq
      %v487 = vshrl.u32 %v486, 7
      %v488 = vsub.s32 0, %v487
      %v489 = vrot.slane %v484, %v488
      %v491 = vmul.f32 %v420, %v489
      %v492 = vmul.f32 %v421, %v489
      %v493 = vmul.f32 %v422, %v489
      %v494 = vmul.f32 %v423, %v489
      %v495 = vmul.f32 %v424, %v489
      %v496 = vmul.f32 %v425, %v489
      %v497 = vmul.f32 %v426, %v489
      %v498 = vmul.f32 %v427, %v489
      %v499 = vmul.f32 %v428, %v489
      %v500 = vmul.f32 %v429, %v489
      %v501 = vmul.f32 %v430, %v489
      %v502 = vmul.f32 %v431, %v489
      %v503 = vmul.f32 %v432, %v489
      %v504 = vmul.f32 %v433, %v489
      %v505 = vmul.f32 %v434, %v489
      %v506 = vmul.f32 %v435, %v489
      %v507 = vmul.f32 %v436, %v489
      %v508 = vmul.f32 %v437, %v489
      %v509 = vmul.f32 %v438, %v489
      %v510 = vmul.f32 %v439, %v489
      %v511 = vmul.f32 %v440, %v489
      %v512 = vmul.f32 %v441, %v489
      %v513 = vmul.f32 %v442, %v489
      %v514 = vmul.f32 %v443, %v489
      %v515 = vmul.f32 %v444, %v489
      %v516 = vmul.f32 %v445, %v489
      %v517 = vmul.f32 %v446, %v489
      %v518 = vmul.f32 %v447, %v489
      %v519 = vmul.f32 %v448, %v489
      %v520 = vmul.f32 %v449, %v489
      %v521 = vmul.f32 %v450, %v489
      %v522 = vmul.f32 %v451, %v489
      %v523 = vmul.f32 %v452, %v489
      %v524 = vmul.f32 %v453, %v489
      %v525 = vmul.f32 %v454, %v489
      %v526 = vmul.f32 %v455, %v489
      %v527 = vmul.f32 %v456, %v489
      %v528 = vmul.f32 %v457, %v489
      %v529 = vmul.f32 %v458, %v489
      %v530 = vmul.f32 %v459, %v489
      %v531 = vmul.f32 %v460, %v489
      %v532 = vmul.f32 %v461, %v489
      %v533 = vmul.f32 %v462, %v489
      %v534 = vmul.f32 %v463, %v489
      %v535 = vmul.f32 %v464, %v489
      %v536 = vmul.f32 %v465, %v489
      %v537 = vmul.f32 %v466, %v489
      %v538 = vmul.f32 %v467, %v489
      %v539 = vmul.f32 %v468, %v489
      %v540 = vmul.f32 %v469, %v489
      %v541 = vmul.f32 %v470, %v489
      %v542 = vmul.f32 %v471, %v489
      %v543 = vmul.f32 %v472, %v489
      %v544 = vmul.f32 %v473, %v489
      %v545 = vmul.f32 %v474, %v489
      %v546 = vmul.f32 %v475, %v489
      %v547 = vmul.f32 %v476, %v489
      %v548 = vmul.f32 %v477, %v489
      %v549 = vmul.f32 %v478, %v489
      %v550 = vmul.f32 %v479, %v489
      %v551 = vmul.f32 %v480, %v489
      %v552 = vmul.f32 %v481, %v489
      %v553 = vmul.f32 %v482, %v489
      %v554 = vmul.f32 %v483, %v489
      %v555 = vld [vmem:[%s334] sm:$0x1]
      %v557 = vlaneseq
      %v558 = vshrl.u32 %v557, 7
      %v559 = vsub.s32 0, %v558
      %v560 = vrot.slane %v555, %v559
      %v562 = vadd.f32 %v491, %v560
      %v563 = vadd.f32 %v492, %v560
      %v564 = vadd.f32 %v493, %v560
      %v565 = vadd.f32 %v494, %v560
      %v566 = vadd.f32 %v495, %v560
      %v567 = vadd.f32 %v496, %v560
      %v568 = vadd.f32 %v497, %v560
      %v569 = vadd.f32 %v498, %v560
      %v570 = vadd.f32 %v499, %v560
      %v571 = vadd.f32 %v500, %v560
      %v572 = vadd.f32 %v501, %v560
      %v573 = vadd.f32 %v502, %v560
      %v574 = vadd.f32 %v503, %v560
      %v575 = vadd.f32 %v504, %v560
      %v576 = vadd.f32 %v505, %v560
      %v577 = vadd.f32 %v506, %v560
      %v578 = vadd.f32 %v507, %v560
      %v579 = vadd.f32 %v508, %v560
      %v580 = vadd.f32 %v509, %v560
      %v581 = vadd.f32 %v510, %v560
      %v582 = vadd.f32 %v511, %v560
      %v583 = vadd.f32 %v512, %v560
      %v584 = vadd.f32 %v513, %v560
      %v585 = vadd.f32 %v514, %v560
      %v586 = vadd.f32 %v515, %v560
      %v587 = vadd.f32 %v516, %v560
      %v588 = vadd.f32 %v517, %v560
      %v589 = vadd.f32 %v518, %v560
      %v590 = vadd.f32 %v519, %v560
      %v591 = vadd.f32 %v520, %v560
      %v592 = vadd.f32 %v521, %v560
      %v593 = vadd.f32 %v522, %v560
      %v594 = vadd.f32 %v523, %v560
      %v595 = vadd.f32 %v524, %v560
      %v596 = vadd.f32 %v525, %v560
      %v597 = vadd.f32 %v526, %v560
      %v598 = vadd.f32 %v527, %v560
      %v599 = vadd.f32 %v528, %v560
      %v600 = vadd.f32 %v529, %v560
      %v601 = vadd.f32 %v530, %v560
      %v602 = vadd.f32 %v531, %v560
      %v603 = vadd.f32 %v532, %v560
      %v604 = vadd.f32 %v533, %v560
      %v605 = vadd.f32 %v534, %v560
      %v606 = vadd.f32 %v535, %v560
      %v607 = vadd.f32 %v536, %v560
      %v608 = vadd.f32 %v537, %v560
      %v609 = vadd.f32 %v538, %v560
      %v610 = vadd.f32 %v539, %v560
      %v611 = vadd.f32 %v540, %v560
      %v612 = vadd.f32 %v541, %v560
      %v613 = vadd.f32 %v542, %v560
      %v614 = vadd.f32 %v543, %v560
      %v615 = vadd.f32 %v544, %v560
      %v616 = vadd.f32 %v545, %v560
      %v617 = vadd.f32 %v546, %v560
      %v618 = vadd.f32 %v547, %v560
      %v619 = vadd.f32 %v548, %v560
      %v620 = vadd.f32 %v549, %v560
      %v621 = vadd.f32 %v550, %v560
      %v622 = vadd.f32 %v551, %v560
      %v623 = vadd.f32 %v552, %v560
      %v624 = vadd.f32 %v553, %v560
      %v625 = vadd.f32 %v554, %v560
      %v626 = vxor.u32 %v562, 2147483648
      %v627 = vxor.u32 %v563, 2147483648
      %v628 = vxor.u32 %v564, 2147483648
      %v629 = vxor.u32 %v565, 2147483648
      %v630 = vxor.u32 %v566, 2147483648
      %v631 = vxor.u32 %v567, 2147483648
      %v632 = vxor.u32 %v568, 2147483648
      %v633 = vxor.u32 %v569, 2147483648
      %v634 = vxor.u32 %v570, 2147483648
      %v635 = vxor.u32 %v571, 2147483648
      %v636 = vxor.u32 %v572, 2147483648
      %v637 = vxor.u32 %v573, 2147483648
      %v638 = vxor.u32 %v574, 2147483648
      %v639 = vxor.u32 %v575, 2147483648
      %v640 = vxor.u32 %v576, 2147483648
      %v641 = vxor.u32 %v577, 2147483648
      %v642 = vxor.u32 %v578, 2147483648
      %v643 = vxor.u32 %v579, 2147483648
      %v644 = vxor.u32 %v580, 2147483648
      %v645 = vxor.u32 %v581, 2147483648
      %v646 = vxor.u32 %v582, 2147483648
      %v647 = vxor.u32 %v583, 2147483648
      %v648 = vxor.u32 %v584, 2147483648
      %v649 = vxor.u32 %v585, 2147483648
      %v650 = vxor.u32 %v586, 2147483648
      %v651 = vxor.u32 %v587, 2147483648
      %v652 = vxor.u32 %v588, 2147483648
      %v653 = vxor.u32 %v589, 2147483648
      %v654 = vxor.u32 %v590, 2147483648
      %v655 = vxor.u32 %v591, 2147483648
      %v656 = vxor.u32 %v592, 2147483648
      %v657 = vxor.u32 %v593, 2147483648
      %v658 = vxor.u32 %v594, 2147483648
      %v659 = vxor.u32 %v595, 2147483648
      %v660 = vxor.u32 %v596, 2147483648
      %v661 = vxor.u32 %v597, 2147483648
      %v662 = vxor.u32 %v598, 2147483648
      %v663 = vxor.u32 %v599, 2147483648
      %v664 = vxor.u32 %v600, 2147483648
      %v665 = vxor.u32 %v601, 2147483648
      %v666 = vxor.u32 %v602, 2147483648
      %v667 = vxor.u32 %v603, 2147483648
      %v668 = vxor.u32 %v604, 2147483648
      %v669 = vxor.u32 %v605, 2147483648
      %v670 = vxor.u32 %v606, 2147483648
      %v671 = vxor.u32 %v607, 2147483648
      %v672 = vxor.u32 %v608, 2147483648
      %v673 = vxor.u32 %v609, 2147483648
      %v674 = vxor.u32 %v610, 2147483648
      %v675 = vxor.u32 %v611, 2147483648
      %v676 = vxor.u32 %v612, 2147483648
      %v677 = vxor.u32 %v613, 2147483648
      %v678 = vxor.u32 %v614, 2147483648
      %v679 = vxor.u32 %v615, 2147483648
      %v680 = vxor.u32 %v616, 2147483648
      %v681 = vxor.u32 %v617, 2147483648
      %v682 = vxor.u32 %v618, 2147483648
      %v683 = vxor.u32 %v619, 2147483648
      %v684 = vxor.u32 %v620, 2147483648
      %v685 = vxor.u32 %v621, 2147483648
      %v686 = vxor.u32 %v622, 2147483648
      %v687 = vxor.u32 %v623, 2147483648
      %v688 = vxor.u32 %v624, 2147483648
      %v689 = vxor.u32 %v625, 2147483648
      %v690 = vmul.f32 %v626, 1.442695
      %v691 = vpow.pop %v690
      %v692 = vmul.f32 %v627, 1.442695
      %v693 = vpow.pop %v692
      %v694 = vmul.f32 %v628, 1.442695
      %v695 = vpow.pop %v694
      %v696 = vmul.f32 %v629, 1.442695
      %v697 = vpow.pop %v696
      %v698 = vmul.f32 %v630, 1.442695
      %v699 = vpow.pop %v698
      %v700 = vmul.f32 %v631, 1.442695
      %v701 = vpow.pop %v700
      %v702 = vmul.f32 %v632, 1.442695
      %v703 = vpow.pop %v702
      %v704 = vmul.f32 %v633, 1.442695
      %v705 = vpow.pop %v704
      %v706 = vmul.f32 %v634, 1.442695
      %v707 = vpow.pop %v706
      %v708 = vmul.f32 %v635, 1.442695
      %v709 = vpow.pop %v708
      %v710 = vmul.f32 %v636, 1.442695
      %v711 = vpow.pop %v710
      %v712 = vmul.f32 %v637, 1.442695
      %v713 = vpow.pop %v712
      %v714 = vmul.f32 %v638, 1.442695
      %v715 = vpow.pop %v714
      %v716 = vmul.f32 %v639, 1.442695
      %v717 = vpow.pop %v716
      %v718 = vmul.f32 %v640, 1.442695
      %v719 = vpow.pop %v718
      %v720 = vmul.f32 %v641, 1.442695
      %v721 = vpow.pop %v720
      %v722 = vmul.f32 %v642, 1.442695
      %v723 = vpow.pop %v722
      %v724 = vmul.f32 %v643, 1.442695
      %v725 = vpow.pop %v724
      %v726 = vmul.f32 %v644, 1.442695
      %v727 = vpow.pop %v726
      %v728 = vmul.f32 %v645, 1.442695
      %v729 = vpow.pop %v728
      %v730 = vmul.f32 %v646, 1.442695
      %v731 = vpow.pop %v730
      %v732 = vmul.f32 %v647, 1.442695
      %v733 = vpow.pop %v732
      %v734 = vmul.f32 %v648, 1.442695
      %v735 = vpow.pop %v734
      %v736 = vmul.f32 %v649, 1.442695
      %v737 = vpow.pop %v736
      %v738 = vmul.f32 %v650, 1.442695
      %v739 = vpow.pop %v738
      %v740 = vmul.f32 %v651, 1.442695
      %v741 = vpow.pop %v740
      %v742 = vmul.f32 %v652, 1.442695
      %v743 = vpow.pop %v742
      %v744 = vmul.f32 %v653, 1.442695
      %v745 = vpow.pop %v744
      %v746 = vmul.f32 %v654, 1.442695
      %v747 = vpow.pop %v746
      %v748 = vmul.f32 %v655, 1.442695
      %v749 = vpow.pop %v748
      %v750 = vmul.f32 %v656, 1.442695
      %v751 = vpow.pop %v750
      %v752 = vmul.f32 %v657, 1.442695
      %v753 = vpow.pop %v752
      %v754 = vmul.f32 %v658, 1.442695
      %v755 = vpow.pop %v754
      %v756 = vmul.f32 %v659, 1.442695
      %v757 = vpow.pop %v756
      %v758 = vmul.f32 %v660, 1.442695
      %v759 = vpow.pop %v758
      %v760 = vmul.f32 %v661, 1.442695
      %v761 = vpow.pop %v760
      %v762 = vmul.f32 %v662, 1.442695
      %v763 = vpow.pop %v762
      %v764 = vmul.f32 %v663, 1.442695
      %v765 = vpow.pop %v764
      %v766 = vmul.f32 %v664, 1.442695
      %v767 = vpow.pop %v766
      %v768 = vmul.f32 %v665, 1.442695
      %v769 = vpow.pop %v768
      %v770 = vmul.f32 %v666, 1.442695
      %v771 = vpow.pop %v770
      %v772 = vmul.f32 %v667, 1.442695
      %v773 = vpow.pop %v772
      %v774 = vmul.f32 %v668, 1.442695
      %v775 = vpow.pop %v774
      %v776 = vmul.f32 %v669, 1.442695
      %v777 = vpow.pop %v776
      %v778 = vmul.f32 %v670, 1.442695
      %v779 = vpow.pop %v778
      %v780 = vmul.f32 %v671, 1.442695
      %v781 = vpow.pop %v780
      %v782 = vmul.f32 %v672, 1.442695
      %v783 = vpow.pop %v782
      %v784 = vmul.f32 %v673, 1.442695
      %v785 = vpow.pop %v784
      %v786 = vmul.f32 %v674, 1.442695
      %v787 = vpow.pop %v786
      %v788 = vmul.f32 %v675, 1.442695
      %v789 = vpow.pop %v788
      %v790 = vmul.f32 %v676, 1.442695
      %v791 = vpow.pop %v790
      %v792 = vmul.f32 %v677, 1.442695
      %v793 = vpow.pop %v792
      %v794 = vmul.f32 %v678, 1.442695
      %v795 = vpow.pop %v794
      %v796 = vmul.f32 %v679, 1.442695
      %v797 = vpow.pop %v796
      %v798 = vmul.f32 %v680, 1.442695
      %v799 = vpow.pop %v798
      %v800 = vmul.f32 %v681, 1.442695
      %v801 = vpow.pop %v800
      %v802 = vmul.f32 %v682, 1.442695
      %v803 = vpow.pop %v802
      %v804 = vmul.f32 %v683, 1.442695
      %v805 = vpow.pop %v804
      %v806 = vmul.f32 %v684, 1.442695
      %v807 = vpow.pop %v806
      %v808 = vmul.f32 %v685, 1.442695
      %v809 = vpow.pop %v808
      %v810 = vmul.f32 %v686, 1.442695
      %v811 = vpow.pop %v810
      %v812 = vmul.f32 %v687, 1.442695
      %v813 = vpow.pop %v812
      %v814 = vmul.f32 %v688, 1.442695
      %v815 = vpow.pop %v814
      %v816 = vmul.f32 %v689, 1.442695
      %v817 = vpow.pop %v816
      %v818 = vadd.f32 %v691, 1.0
      %v819 = vadd.f32 %v693, 1.0
      %v820 = vadd.f32 %v695, 1.0
      %v821 = vadd.f32 %v697, 1.0
      %v822 = vadd.f32 %v699, 1.0
      %v823 = vadd.f32 %v701, 1.0
      %v824 = vadd.f32 %v703, 1.0
      %v825 = vadd.f32 %v705, 1.0
      %v826 = vadd.f32 %v707, 1.0
      %v827 = vadd.f32 %v709, 1.0
      %v828 = vadd.f32 %v711, 1.0
      %v829 = vadd.f32 %v713, 1.0
      %v830 = vadd.f32 %v715, 1.0
      %v831 = vadd.f32 %v717, 1.0
      %v832 = vadd.f32 %v719, 1.0
      %v833 = vadd.f32 %v721, 1.0
      %v834 = vadd.f32 %v723, 1.0
      %v835 = vadd.f32 %v725, 1.0
      %v836 = vadd.f32 %v727, 1.0
      %v837 = vadd.f32 %v729, 1.0
      %v838 = vadd.f32 %v731, 1.0
      %v839 = vadd.f32 %v733, 1.0
      %v840 = vadd.f32 %v735, 1.0
      %v841 = vadd.f32 %v737, 1.0
      %v842 = vadd.f32 %v739, 1.0
      %v843 = vadd.f32 %v741, 1.0
      %v844 = vadd.f32 %v743, 1.0
      %v845 = vadd.f32 %v745, 1.0
      %v846 = vadd.f32 %v747, 1.0
      %v847 = vadd.f32 %v749, 1.0
      %v848 = vadd.f32 %v751, 1.0
      %v849 = vadd.f32 %v753, 1.0
      %v850 = vadd.f32 %v755, 1.0
      %v851 = vadd.f32 %v757, 1.0
      %v852 = vadd.f32 %v759, 1.0
      %v853 = vadd.f32 %v761, 1.0
      %v854 = vadd.f32 %v763, 1.0
      %v855 = vadd.f32 %v765, 1.0
      %v856 = vadd.f32 %v767, 1.0
      %v857 = vadd.f32 %v769, 1.0
      %v858 = vadd.f32 %v771, 1.0
      %v859 = vadd.f32 %v773, 1.0
      %v860 = vadd.f32 %v775, 1.0
      %v861 = vadd.f32 %v777, 1.0
      %v862 = vadd.f32 %v779, 1.0
      %v863 = vadd.f32 %v781, 1.0
      %v864 = vadd.f32 %v783, 1.0
      %v865 = vadd.f32 %v785, 1.0
      %v866 = vadd.f32 %v787, 1.0
      %v867 = vadd.f32 %v789, 1.0
      %v868 = vadd.f32 %v791, 1.0
      %v869 = vadd.f32 %v793, 1.0
      %v870 = vadd.f32 %v795, 1.0
      %v871 = vadd.f32 %v797, 1.0
      %v872 = vadd.f32 %v799, 1.0
      %v873 = vadd.f32 %v801, 1.0
      %v874 = vadd.f32 %v803, 1.0
      %v875 = vadd.f32 %v805, 1.0
      %v876 = vadd.f32 %v807, 1.0
      %v877 = vadd.f32 %v809, 1.0
      %v878 = vadd.f32 %v811, 1.0
      %v879 = vadd.f32 %v813, 1.0
      %v880 = vadd.f32 %v815, 1.0
      %v881 = vadd.f32 %v817, 1.0
      %v882 = vrcp.pop %v818
      %v883 = vmul.f32 1.0, %v882
      %v884 = vrcp.pop %v819
      %v885 = vmul.f32 1.0, %v884
      %v886 = vrcp.pop %v820
      %v887 = vmul.f32 1.0, %v886
      %v888 = vrcp.pop %v821
      %v889 = vmul.f32 1.0, %v888
      %v890 = vrcp.pop %v822
      %v891 = vmul.f32 1.0, %v890
      %v892 = vrcp.pop %v823
      %v893 = vmul.f32 1.0, %v892
      %v894 = vrcp.pop %v824
      %v895 = vmul.f32 1.0, %v894
      %v896 = vrcp.pop %v825
      %v897 = vmul.f32 1.0, %v896
      %v898 = vrcp.pop %v826
      %v899 = vmul.f32 1.0, %v898
      %v900 = vrcp.pop %v827
      %v901 = vmul.f32 1.0, %v900
      %v902 = vrcp.pop %v828
      %v903 = vmul.f32 1.0, %v902
      %v904 = vrcp.pop %v829
      %v905 = vmul.f32 1.0, %v904
      %v906 = vrcp.pop %v830
      %v907 = vmul.f32 1.0, %v906
      %v908 = vrcp.pop %v831
      %v909 = vmul.f32 1.0, %v908
      %v910 = vrcp.pop %v832
      %v911 = vmul.f32 1.0, %v910
      %v912 = vrcp.pop %v833
      %v913 = vmul.f32 1.0, %v912
      %v914 = vrcp.pop %v834
      %v915 = vmul.f32 1.0, %v914
      %v916 = vrcp.pop %v835
      %v917 = vmul.f32 1.0, %v916
      %v918 = vrcp.pop %v836
      %v919 = vmul.f32 1.0, %v918
      %v920 = vrcp.pop %v837
      %v921 = vmul.f32 1.0, %v920
      %v922 = vrcp.pop %v838
      %v923 = vmul.f32 1.0, %v922
      %v924 = vrcp.pop %v839
      %v925 = vmul.f32 1.0, %v924
      %v926 = vrcp.pop %v840
      %v927 = vmul.f32 1.0, %v926
      %v928 = vrcp.pop %v841
      %v929 = vmul.f32 1.0, %v928
      %v930 = vrcp.pop %v842
      %v931 = vmul.f32 1.0, %v930
      %v932 = vrcp.pop %v843
      %v933 = vmul.f32 1.0, %v932
      %v934 = vrcp.pop %v844
      %v935 = vmul.f32 1.0, %v934
      %v936 = vrcp.pop %v845
      %v937 = vmul.f32 1.0, %v936
      %v938 = vrcp.pop %v846
      %v939 = vmul.f32 1.0, %v938
      %v940 = vrcp.pop %v847
      %v941 = vmul.f32 1.0, %v940
      %v942 = vrcp.pop %v848
      %v943 = vmul.f32 1.0, %v942
      %v944 = vrcp.pop %v849
      %v945 = vmul.f32 1.0, %v944
      %v946 = vrcp.pop %v850
      %v947 = vmul.f32 1.0, %v946
      %v948 = vrcp.pop %v851
      %v949 = vmul.f32 1.0, %v948
      %v950 = vrcp.pop %v852
      %v951 = vmul.f32 1.0, %v950
      %v952 = vrcp.pop %v853
      %v953 = vmul.f32 1.0, %v952
      %v954 = vrcp.pop %v854
      %v955 = vmul.f32 1.0, %v954
      %v956 = vrcp.pop %v855
      %v957 = vmul.f32 1.0, %v956
      %v958 = vrcp.pop %v856
      %v959 = vmul.f32 1.0, %v958
      %v960 = vrcp.pop %v857
      %v961 = vmul.f32 1.0, %v960
      %v962 = vrcp.pop %v858
      %v963 = vmul.f32 1.0, %v962
      %v964 = vrcp.pop %v859
      %v965 = vmul.f32 1.0, %v964
      %v966 = vrcp.pop %v860
      %v967 = vmul.f32 1.0, %v966
      %v968 = vrcp.pop %v861
      %v969 = vmul.f32 1.0, %v968
      %v970 = vrcp.pop %v862
      %v971 = vmul.f32 1.0, %v970
      %v972 = vrcp.pop %v863
      %v973 = vmul.f32 1.0, %v972
      %v974 = vrcp.pop %v864
      %v975 = vmul.f32 1.0, %v974
      %v976 = vrcp.pop %v865
      %v977 = vmul.f32 1.0, %v976
      %v978 = vrcp.pop %v866
      %v979 = vmul.f32 1.0, %v978
      %v980 = vrcp.pop %v867
      %v981 = vmul.f32 1.0, %v980
      %v982 = vrcp.pop %v868
      %v983 = vmul.f32 1.0, %v982
      %v984 = vrcp.pop %v869
      %v985 = vmul.f32 1.0, %v984
      %v986 = vrcp.pop %v870
      %v987 = vmul.f32 1.0, %v986
      %v988 = vrcp.pop %v871
      %v989 = vmul.f32 1.0, %v988
      %v990 = vrcp.pop %v872
      %v991 = vmul.f32 1.0, %v990
      %v992 = vrcp.pop %v873
      %v993 = vmul.f32 1.0, %v992
      %v994 = vrcp.pop %v874
      %v995 = vmul.f32 1.0, %v994
      %v996 = vrcp.pop %v875
      %v997 = vmul.f32 1.0, %v996
      %v998 = vrcp.pop %v876
      %v999 = vmul.f32 1.0, %v998
      %v1000 = vrcp.pop %v877
      %v1001 = vmul.f32 1.0, %v1000
      %v1002 = vrcp.pop %v878
      %v1003 = vmul.f32 1.0, %v1002
      %v1004 = vrcp.pop %v879
      %v1005 = vmul.f32 1.0, %v1004
      %v1006 = vrcp.pop %v880
      %v1007 = vmul.f32 1.0, %v1006
      %v1008 = vrcp.pop %v881
      %v1009 = vmul.f32 1.0, %v1008
      %v1010 = vmul.f32 %v562, %v883
      %v1011 = vmul.f32 %v563, %v885
      %v1012 = vmul.f32 %v564, %v887
      %v1013 = vmul.f32 %v565, %v889
      %v1014 = vmul.f32 %v566, %v891
      %v1015 = vmul.f32 %v567, %v893
      %v1016 = vmul.f32 %v568, %v895
      %v1017 = vmul.f32 %v569, %v897
      %v1018 = vmul.f32 %v570, %v899
      %v1019 = vmul.f32 %v571, %v901
      %v1020 = vmul.f32 %v572, %v903
      %v1021 = vmul.f32 %v573, %v905
      %v1022 = vmul.f32 %v574, %v907
      %v1023 = vmul.f32 %v575, %v909
      %v1024 = vmul.f32 %v576, %v911
      %v1025 = vmul.f32 %v577, %v913
      %v1026 = vmul.f32 %v578, %v915
      %v1027 = vmul.f32 %v579, %v917
      %v1028 = vmul.f32 %v580, %v919
      %v1029 = vmul.f32 %v581, %v921
      %v1030 = vmul.f32 %v582, %v923
      %v1031 = vmul.f32 %v583, %v925
      %v1032 = vmul.f32 %v584, %v927
      %v1033 = vmul.f32 %v585, %v929
      %v1034 = vmul.f32 %v586, %v931
      %v1035 = vmul.f32 %v587, %v933
      %v1036 = vmul.f32 %v588, %v935
      %v1037 = vmul.f32 %v589, %v937
      %v1038 = vmul.f32 %v590, %v939
      %v1039 = vmul.f32 %v591, %v941
      %v1040 = vmul.f32 %v592, %v943
      %v1041 = vmul.f32 %v593, %v945
      %v1042 = vmul.f32 %v594, %v947
      %v1043 = vmul.f32 %v595, %v949
      %v1044 = vmul.f32 %v596, %v951
      %v1045 = vmul.f32 %v597, %v953
      %v1046 = vmul.f32 %v598, %v955
      %v1047 = vmul.f32 %v599, %v957
      %v1048 = vmul.f32 %v600, %v959
      %v1049 = vmul.f32 %v601, %v961
      %v1050 = vmul.f32 %v602, %v963
      %v1051 = vmul.f32 %v603, %v965
      %v1052 = vmul.f32 %v604, %v967
      %v1053 = vmul.f32 %v605, %v969
      %v1054 = vmul.f32 %v606, %v971
      %v1055 = vmul.f32 %v607, %v973
      %v1056 = vmul.f32 %v608, %v975
      %v1057 = vmul.f32 %v609, %v977
      %v1058 = vmul.f32 %v610, %v979
      %v1059 = vmul.f32 %v611, %v981
      %v1060 = vmul.f32 %v612, %v983
      %v1061 = vmul.f32 %v613, %v985
      %v1062 = vmul.f32 %v614, %v987
      %v1063 = vmul.f32 %v615, %v989
      %v1064 = vmul.f32 %v616, %v991
      %v1065 = vmul.f32 %v617, %v993
      %v1066 = vmul.f32 %v618, %v995
      %v1067 = vmul.f32 %v619, %v997
      %v1068 = vmul.f32 %v620, %v999
      %v1069 = vmul.f32 %v621, %v1001
      %v1070 = vmul.f32 %v622, %v1003
      %v1071 = vmul.f32 %v623, %v1005
      %v1072 = vmul.f32 %v624, %v1007
      %v1073 = vmul.f32 %v625, %v1009
      %v1074 = vld [vmem:[%s343] sm:$0xff]
      %v1075 = vld [vmem:[%s343 + $0x8] sm:$0xff]
      %v1076 = vld [vmem:[%s343 + $0x10] sm:$0xff]
      %v1077 = vld [vmem:[%s343 + $0x18] sm:$0xff]
      %v1078 = vld [vmem:[%s343 + $0x20] sm:$0xff]
      %v1079 = vld [vmem:[%s343 + $0x28] sm:$0xff]
      %v1080 = vld [vmem:[%s343 + $0x30] sm:$0xff]
      %v1081 = vld [vmem:[%s343 + $0x38] sm:$0xff]
      %v1082 = vld [vmem:[%s343 + $0x40] sm:$0xff]
      %v1083 = vld [vmem:[%s343 + $0x48] sm:$0xff]
      %v1084 = vld [vmem:[%s343 + $0x50] sm:$0xff]
      %v1085 = vld [vmem:[%s343 + $0x58] sm:$0xff]
      %v1086 = vld [vmem:[%s343 + $0x60] sm:$0xff]
      %v1087 = vld [vmem:[%s343 + $0x68] sm:$0xff]
      %v1088 = vld [vmem:[%s343 + $0x70] sm:$0xff]
      %v1089 = vld [vmem:[%s343 + $0x78] sm:$0xff]
      %v1090 = vld [vmem:[%s343 + $0x80] sm:$0xff]
      %v1091 = vld [vmem:[%s343 + $0x88] sm:$0xff]
      %v1092 = vld [vmem:[%s343 + $0x90] sm:$0xff]
      %v1093 = vld [vmem:[%s343 + $0x98] sm:$0xff]
      %v1094 = vld [vmem:[%s343 + $0xa0] sm:$0xff]
      %v1095 = vld [vmem:[%s343 + $0xa8] sm:$0xff]
      %v1096 = vld [vmem:[%s343 + $0xb0] sm:$0xff]
      %v1097 = vld [vmem:[%s343 + $0xb8] sm:$0xff]
      %v1098 = vld [vmem:[%s343 + $0xc0] sm:$0xff]
      %v1099 = vld [vmem:[%s343 + $0xc8] sm:$0xff]
      %v1100 = vld [vmem:[%s343 + $0xd0] sm:$0xff]
      %v1101 = vld [vmem:[%s343 + $0xd8] sm:$0xff]
      %v1102 = vld [vmem:[%s343 + $0xe0] sm:$0xff]
      %v1103 = vld [vmem:[%s343 + $0xe8] sm:$0xff]
      %v1104 = vld [vmem:[%s343 + $0xf0] sm:$0xff]
      %v1105 = vld [vmem:[%s343 + $0xf8] sm:$0xff]
      %v1106 = vld [vmem:[%s343 + $0x100] sm:$0xff]
      %v1107 = vld [vmem:[%s343 + $0x108] sm:$0xff]
      %v1108 = vld [vmem:[%s343 + $0x110] sm:$0xff]
      %v1109 = vld [vmem:[%s343 + $0x118] sm:$0xff]
      %v1110 = vld [vmem:[%s343 + $0x120] sm:$0xff]
      %v1111 = vld [vmem:[%s343 + $0x128] sm:$0xff]
      %v1112 = vld [vmem:[%s343 + $0x130] sm:$0xff]
      %v1113 = vld [vmem:[%s343 + $0x138] sm:$0xff]
      %v1114 = vld [vmem:[%s343 + $0x140] sm:$0xff]
      %v1115 = vld [vmem:[%s343 + $0x148] sm:$0xff]
      %v1116 = vld [vmem:[%s343 + $0x150] sm:$0xff]
      %v1117 = vld [vmem:[%s343 + $0x158] sm:$0xff]
      %v1118 = vld [vmem:[%s343 + $0x160] sm:$0xff]
      %v1119 = vld [vmem:[%s343 + $0x168] sm:$0xff]
      %v1120 = vld [vmem:[%s343 + $0x170] sm:$0xff]
      %v1121 = vld [vmem:[%s343 + $0x178] sm:$0xff]
      %v1122 = vld [vmem:[%s343 + $0x180] sm:$0xff]
      %v1123 = vld [vmem:[%s343 + $0x188] sm:$0xff]
      %v1124 = vld [vmem:[%s343 + $0x190] sm:$0xff]
      %v1125 = vld [vmem:[%s343 + $0x198] sm:$0xff]
      %v1126 = vld [vmem:[%s343 + $0x1a0] sm:$0xff]
      %v1127 = vld [vmem:[%s343 + $0x1a8] sm:$0xff]
      %v1128 = vld [vmem:[%s343 + $0x1b0] sm:$0xff]
      %v1129 = vld [vmem:[%s343 + $0x1b8] sm:$0xff]
      %v1130 = vld [vmem:[%s343 + $0x1c0] sm:$0xff]
      %v1131 = vld [vmem:[%s343 + $0x1c8] sm:$0xff]
      %v1132 = vld [vmem:[%s343 + $0x1d0] sm:$0xff]
      %v1133 = vld [vmem:[%s343 + $0x1d8] sm:$0xff]
      %v1134 = vld [vmem:[%s343 + $0x1e0] sm:$0xff]
      %v1135 = vld [vmem:[%s343 + $0x1e8] sm:$0xff]
      %v1136 = vld [vmem:[%s343 + $0x1f0] sm:$0xff]
      %v1137 = vld [vmem:[%s343 + $0x1f8] sm:$0xff]
      %v1138 = vpack.c.bf16 %v1075, %v1074
      %v1139 = vpack.c.bf16 %v1077, %v1076
      %v1140 = vpack.c.bf16 %v1079, %v1078
      %v1141 = vpack.c.bf16 %v1081, %v1080
      %v1142 = vpack.c.bf16 %v1083, %v1082
      %v1143 = vpack.c.bf16 %v1085, %v1084
      %v1144 = vpack.c.bf16 %v1087, %v1086
      %v1145 = vpack.c.bf16 %v1089, %v1088
      %v1146 = vpack.c.bf16 %v1091, %v1090
      %v1147 = vpack.c.bf16 %v1093, %v1092
      %v1148 = vpack.c.bf16 %v1095, %v1094
      %v1149 = vpack.c.bf16 %v1097, %v1096
      %v1150 = vpack.c.bf16 %v1099, %v1098
      %v1151 = vpack.c.bf16 %v1101, %v1100
      %v1152 = vpack.c.bf16 %v1103, %v1102
      %v1153 = vpack.c.bf16 %v1105, %v1104
      %v1154 = vpack.c.bf16 %v1107, %v1106
      %v1155 = vpack.c.bf16 %v1109, %v1108
      %v1156 = vpack.c.bf16 %v1111, %v1110
      %v1157 = vpack.c.bf16 %v1113, %v1112
      %v1158 = vpack.c.bf16 %v1115, %v1114
      %v1159 = vpack.c.bf16 %v1117, %v1116
      %v1160 = vpack.c.bf16 %v1119, %v1118
      %v1161 = vpack.c.bf16 %v1121, %v1120
      %v1162 = vpack.c.bf16 %v1123, %v1122
      %v1163 = vpack.c.bf16 %v1125, %v1124
      %v1164 = vpack.c.bf16 %v1127, %v1126
      %v1165 = vpack.c.bf16 %v1129, %v1128
      %v1166 = vpack.c.bf16 %v1131, %v1130
      %v1167 = vpack.c.bf16 %v1133, %v1132
      %v1168 = vpack.c.bf16 %v1135, %v1134
      %v1169 = vpack.c.bf16 %v1137, %v1136
      %v1170 = vld [vmem:[%s4] sm:$0x3]
      %v1171 = vld [vmem:[%s5] sm:$0x1]
      %v1173 = vlaneseq
      %v1174 = vshrl.u32 %v1173, 7
      %v1175 = vsub.s32 0, %v1174
      %v1176 = vrot.slane %v1171, %v1175
      %vm1178 = vcmask 31744
      %v1180 = vsel %vm1178, %v1138, 0
      %v1183 = vsel %vm1178, %v1139, 0
      %v1186 = vsel %vm1178, %v1140, 0
      %v1189 = vsel %vm1178, %v1141, 0
      %v1192 = vsel %vm1178, %v1142, 0
      %v1195 = vsel %vm1178, %v1143, 0
      %v1198 = vsel %vm1178, %v1144, 0
      %v1201 = vsel %vm1178, %v1145, 0
      %v1204 = vsel %vm1178, %v1146, 0
      %v1207 = vsel %vm1178, %v1147, 0
      %v1210 = vsel %vm1178, %v1148, 0
      %v1213 = vsel %vm1178, %v1149, 0
      %v1216 = vsel %vm1178, %v1150, 0
      %v1219 = vsel %vm1178, %v1151, 0
      %v1222 = vsel %vm1178, %v1152, 0
      %v1225 = vsel %vm1178, %v1153, 0
      %v1228 = vsel %vm1178, %v1154, 0
      %v1231 = vsel %vm1178, %v1155, 0
      %v1234 = vsel %vm1178, %v1156, 0
      %v1237 = vsel %vm1178, %v1157, 0
      %v1240 = vsel %vm1178, %v1158, 0
      %v1243 = vsel %vm1178, %v1159, 0
      %v1246 = vsel %vm1178, %v1160, 0
      %v1249 = vsel %vm1178, %v1161, 0
      %v1252 = vsel %vm1178, %v1162, 0
      %v1255 = vsel %vm1178, %v1163, 0
      %v1258 = vsel %vm1178, %v1164, 0
      %v1261 = vsel %vm1178, %v1165, 0
      %v1264 = vsel %vm1178, %v1166, 0
      %v1267 = vsel %vm1178, %v1167, 0
      %v1270 = vsel %vm1178, %v1168, 0
      %v1273 = vsel %vm1178, %v1169, 0
      %vm1275 = vcmask 1041408
      %v1277 = vsel %vm1275, %v1170, 0
      %1279 = vmatprep.subr.bf16.mxu0 0
      %1280 = vmatpush1.bf16.msra.mxu0 %v1277
      %1281 = vmatprep.subr.bf16.mxu0 0
      %1282 = vmatpush1.bf16.msra.mxu0 0
      %1283 = vmatprep.subr.bf16.mxu0 0
      %1284 = vmatpush1.bf16.msra.mxu0 0
      %1285 = vmatprep.subr.bf16.mxu0 0
      %1286 = vmatpush1.bf16.msra.mxu0 0
      %1287 = vmatprep.subr.bf16.mxu0 0
      %1288 = vmatpush1.bf16.msra.mxu0 0
      %1289 = vmatprep.subr.bf16.mxu0 0
      %1290 = vmatpush1.bf16.msra.mxu0 0
      %1291 = vmatprep.subr.bf16.mxu0 0
      %1292 = vmatpush1.bf16.msra.mxu0 0
      %1293 = vmatprep.subr.bf16.mxu0 0
      %1294 = vmatpush1.bf16.msra.mxu0 0
      %1295 = vmatprep.subr.bf16.mxu0 0
      %1296 = vmatpush1.bf16.msra.mxu0 0
      %1297 = vmatprep.subr.bf16.mxu0 0
      %1298 = vmatpush1.bf16.msra.mxu0 0
      %1299 = vmatprep.subr.bf16.mxu0 0
      %1300 = vmatpush1.bf16.msra.mxu0 0
      %1301 = vmatprep.subr.bf16.mxu0 0
      %1302 = vmatpush1.bf16.msra.mxu0 0
      %1303 = vmatprep.subr.bf16.mxu0 0
      %1304 = vmatpush1.bf16.msra.mxu0 0
      %1305 = vmatprep.subr.bf16.mxu0 0
      %1306 = vmatpush1.bf16.msra.mxu0 0
      %1307 = vmatprep.subr.bf16.mxu0 0
      %1308 = vmatpush1.bf16.msra.mxu0 0
      %1309 = vmatprep.subr.bf16.mxu0 0
      %1310 = vmatpush1.bf16.msra.mxu0 0
      %1311 = vmatprep.mubr.bf16.mxu0 0
      %1312 = vmatmul.mubr.bf16.gmra.mrb[0].mxu0 %v1180
      %v1313 = vpop.f32.mrb[0].mxu0
      %v1314 = vadd.f32 %v1176, %v1313
      %v1315 = vpop.f32.mrb[0].mxu0
      %v1316 = vpop.f32.mrb[0].mxu0
      %v1317 = vadd.f32 %v1176, %v1316
      %v1318 = vpop.f32.mrb[0].mxu0
      %1319 = vmatprep.mubr.bf16.mxu0 0
      %1320 = vmatmul.mubr.bf16.gmra.mrb[0].mxu0 %v1183
      %v1321 = vpop.f32.mrb[0].mxu0
      %v1322 = vadd.f32 %v1176, %v1321
      %v1323 = vpop.f32.mrb[0].mxu0
      %v1324 = vpop.f32.mrb[0].mxu0
      %v1325 = vadd.f32 %v1176, %v1324
      %v1326 = vpop.f32.mrb[0].mxu0
      %1327 = vmatprep.mubr.bf16.mxu0 0
      %1328 = vmatmul.mubr.bf16.gmra.mrb[0].mxu0 %v1186
      %v1329 = vpop.f32.mrb[0].mxu0
      %v1330 = vadd.f32 %v1176, %v1329
      %v1331 = vpop.f32.mrb[0].mxu0
      %v1332 = vpop.f32.mrb[0].mxu0
      %v1333 = vadd.f32 %v1176, %v1332
      %v1334 = vpop.f32.mrb[0].mxu0
      %1335 = vmatprep.mubr.bf16.mxu0 0
      %1336 = vmatmul.mubr.bf16.gmra.mrb[0].mxu0 %v1189
      %v1337 = vpop.f32.mrb[0].mxu0
      %v1338 = vadd.f32 %v1176, %v1337
      %v1339 = vpop.f32.mrb[0].mxu0
      %v1340 = vpop.f32.mrb[0].mxu0
      %v1341 = vadd.f32 %v1176, %v1340
      %v1342 = vpop.f32.mrb[0].mxu0
      %1343 = vmatprep.mubr.bf16.mxu0 0
      %1344 = vmatmul.mubr.bf16.gmra.mrb[0].mxu0 %v1192
      %v1345 = vpop.f32.mrb[0].mxu0
      %v1346 = vadd.f32 %v1176, %v1345
      %v1347 = vpop.f32.mrb[0].mxu0
      %v1348 = vpop.f32.mrb[0].mxu0
      %v1349 = vadd.f32 %v1176, %v1348
      %v1350 = vpop.f32.mrb[0].mxu0
      %1351 = vmatprep.mubr.bf16.mxu0 0
      %1352 = vmatmul.mubr.bf16.gmra.mrb[0].mxu0 %v1195
      %v1353 = vpop.f32.mrb[0].mxu0
      %v1354 = vadd.f32 %v1176, %v1353
      %v1355 = vpop.f32.mrb[0].mxu0
      %v1356 = vpop.f32.mrb[0].mxu0
      %v1357 = vadd.f32 %v1176, %v1356
      %v1358 = vpop.f32.mrb[0].mxu0
      %1359 = vmatprep.mubr.bf16.mxu0 0
      %1360 = vmatmul.mubr.bf16.gmra.mrb[0].mxu0 %v1198
      %v1361 = vpop.f32.mrb[0].mxu0
      %v1362 = vadd.f32 %v1176, %v1361
      %v1363 = vpop.f32.mrb[0].mxu0
      %v1364 = vpop.f32.mrb[0].mxu0
      %v1365 = vadd.f32 %v1176, %v1364
      %v1366 = vpop.f32.mrb[0].mxu0
      %1367 = vmatprep.mubr.bf16.mxu0 0
      %1368 = vmatmul.mubr.bf16.gmra.mrb[0].mxu0 %v1201
      %v1369 = vpop.f32.mrb[0].mxu0
      %v1370 = vadd.f32 %v1176, %v1369
      %v1371 = vpop.f32.mrb[0].mxu0
      %v1372 = vpop.f32.mrb[0].mxu0
      %v1373 = vadd.f32 %v1176, %v1372
      %v1374 = vpop.f32.mrb[0].mxu0
      %1375 = vmatprep.mubr.bf16.mxu0 0
      %1376 = vmatmul.mubr.bf16.gmra.mrb[0].mxu0 %v1204
      %v1377 = vpop.f32.mrb[0].mxu0
      %v1378 = vadd.f32 %v1176, %v1377
      %v1379 = vpop.f32.mrb[0].mxu0
      %v1380 = vpop.f32.mrb[0].mxu0
      %v1381 = vadd.f32 %v1176, %v1380
      %v1382 = vpop.f32.mrb[0].mxu0
      %1383 = vmatprep.mubr.bf16.mxu0 0
      %1384 = vmatmul.mubr.bf16.gmra.mrb[0].mxu0 %v1207
      %v1385 = vpop.f32.mrb[0].mxu0
      %v1386 = vadd.f32 %v1176, %v1385
      %v1387 = vpop.f32.mrb[0].mxu0
      %v1388 = vpop.f32.mrb[0].mxu0
      %v1389 = vadd.f32 %v1176, %v1388
      %v1390 = vpop.f32.mrb[0].mxu0
      %1391 = vmatprep.mubr.bf16.mxu0 0
      %1392 = vmatmul.mubr.bf16.gmra.mrb[0].mxu0 %v1210
      %v1393 = vpop.f32.mrb[0].mxu0
      %v1394 = vadd.f32 %v1176, %v1393
      %v1395 = vpop.f32.mrb[0].mxu0
      %v1396 = vpop.f32.mrb[0].mxu0
      %v1397 = vadd.f32 %v1176, %v1396
      %v1398 = vpop.f32.mrb[0].mxu0
      %1399 = vmatprep.mubr.bf16.mxu0 0
      %1400 = vmatmul.mubr.bf16.gmra.mrb[0].mxu0 %v1213
      %v1401 = vpop.f32.mrb[0].mxu0
      %v1402 = vadd.f32 %v1176, %v1401
      %v1403 = vpop.f32.mrb[0].mxu0
      %v1404 = vpop.f32.mrb[0].mxu0
      %v1405 = vadd.f32 %v1176, %v1404
      %v1406 = vpop.f32.mrb[0].mxu0
      %1407 = vmatprep.mubr.bf16.mxu0 0
      %1408 = vmatmul.mubr.bf16.gmra.mrb[0].mxu0 %v1216
      %v1409 = vpop.f32.mrb[0].mxu0
      %v1410 = vadd.f32 %v1176, %v1409
      %v1411 = vpop.f32.mrb[0].mxu0
      %v1412 = vpop.f32.mrb[0].mxu0
      %v1413 = vadd.f32 %v1176, %v1412
      %v1414 = vpop.f32.mrb[0].mxu0
      %1415 = vmatprep.mubr.bf16.mxu0 0
      %1416 = vmatmul.mubr.bf16.gmra.mrb[0].mxu0 %v1219
      %v1417 = vpop.f32.mrb[0].mxu0
      %v1418 = vadd.f32 %v1176, %v1417
      %v1419 = vpop.f32.mrb[0].mxu0
      %v1420 = vpop.f32.mrb[0].mxu0
      %v1421 = vadd.f32 %v1176, %v1420
      %v1422 = vpop.f32.mrb[0].mxu0
      %1423 = vmatprep.mubr.bf16.mxu0 0
      %1424 = vmatmul.mubr.bf16.gmra.mrb[0].mxu0 %v1222
      %v1425 = vpop.f32.mrb[0].mxu0
      %v1426 = vadd.f32 %v1176, %v1425
      %v1427 = vpop.f32.mrb[0].mxu0
      %v1428 = vpop.f32.mrb[0].mxu0
      %v1429 = vadd.f32 %v1176, %v1428
      %v1430 = vpop.f32.mrb[0].mxu0
      %1431 = vmatprep.mubr.bf16.mxu0 0
      %1432 = vmatmul.mubr.bf16.gmra.mrb[0].mxu0 %v1225
      %v1433 = vpop.f32.mrb[0].mxu0
      %v1434 = vadd.f32 %v1176, %v1433
      %v1435 = vpop.f32.mrb[0].mxu0
      %v1436 = vpop.f32.mrb[0].mxu0
      %v1437 = vadd.f32 %v1176, %v1436
      %v1438 = vpop.f32.mrb[0].mxu0
      %1439 = vmatprep.mubr.bf16.mxu0 0
      %1440 = vmatmul.mubr.bf16.gmra.mrb[0].mxu0 %v1228
      %v1441 = vpop.f32.mrb[0].mxu0
      %v1442 = vadd.f32 %v1176, %v1441
      %v1443 = vpop.f32.mrb[0].mxu0
      %v1444 = vpop.f32.mrb[0].mxu0
      %v1445 = vadd.f32 %v1176, %v1444
      %v1446 = vpop.f32.mrb[0].mxu0
      %1447 = vmatprep.mubr.bf16.mxu0 0
      %1448 = vmatmul.mubr.bf16.gmra.mrb[0].mxu0 %v1231
      %v1449 = vpop.f32.mrb[0].mxu0
      %v1450 = vadd.f32 %v1176, %v1449
      %v1451 = vpop.f32.mrb[0].mxu0
      %v1452 = vpop.f32.mrb[0].mxu0
      %v1453 = vadd.f32 %v1176, %v1452
      %v1454 = vpop.f32.mrb[0].mxu0
      %1455 = vmatprep.mubr.bf16.mxu0 0
      %1456 = vmatmul.mubr.bf16.gmra.mrb[0].mxu0 %v1234
      %v1457 = vpop.f32.mrb[0].mxu0
      %v1458 = vadd.f32 %v1176, %v1457
      %v1459 = vpop.f32.mrb[0].mxu0
      %v1460 = vpop.f32.mrb[0].mxu0
      %v1461 = vadd.f32 %v1176, %v1460
      %v1462 = vpop.f32.mrb[0].mxu0
      %1463 = vmatprep.mubr.bf16.mxu0 0
      %1464 = vmatmul.mubr.bf16.gmra.mrb[0].mxu0 %v1237
      %v1465 = vpop.f32.mrb[0].mxu0
      %v1466 = vadd.f32 %v1176, %v1465
      %v1467 = vpop.f32.mrb[0].mxu0
      %v1468 = vpop.f32.mrb[0].mxu0
      %v1469 = vadd.f32 %v1176, %v1468
      %v1470 = vpop.f32.mrb[0].mxu0
      %1471 = vmatprep.mubr.bf16.mxu0 0
      %1472 = vmatmul.mubr.bf16.gmra.mrb[0].mxu0 %v1240
      %v1473 = vpop.f32.mrb[0].mxu0
      %v1474 = vadd.f32 %v1176, %v1473
      %v1475 = vpop.f32.mrb[0].mxu0
      %v1476 = vpop.f32.mrb[0].mxu0
      %v1477 = vadd.f32 %v1176, %v1476
      %v1478 = vpop.f32.mrb[0].mxu0
      %1479 = vmatprep.mubr.bf16.mxu0 0
      %1480 = vmatmul.mubr.bf16.gmra.mrb[0].mxu0 %v1243
      %v1481 = vpop.f32.mrb[0].mxu0
      %v1482 = vadd.f32 %v1176, %v1481
      %v1483 = vpop.f32.mrb[0].mxu0
      %v1484 = vpop.f32.mrb[0].mxu0
      %v1485 = vadd.f32 %v1176, %v1484
      %v1486 = vpop.f32.mrb[0].mxu0
      %1487 = vmatprep.mubr.bf16.mxu0 0
      %1488 = vmatmul.mubr.bf16.gmra.mrb[0].mxu0 %v1246
      %v1489 = vpop.f32.mrb[0].mxu0
      %v1490 = vadd.f32 %v1176, %v1489
      %v1491 = vpop.f32.mrb[0].mxu0
      %v1492 = vpop.f32.mrb[0].mxu0
      %v1493 = vadd.f32 %v1176, %v1492
      %v1494 = vpop.f32.mrb[0].mxu0
      %1495 = vmatprep.mubr.bf16.mxu0 0
      %1496 = vmatmul.mubr.bf16.gmra.mrb[0].mxu0 %v1249
      %v1497 = vpop.f32.mrb[0].mxu0
      %v1498 = vadd.f32 %v1176, %v1497
      %v1499 = vpop.f32.mrb[0].mxu0
      %v1500 = vpop.f32.mrb[0].mxu0
      %v1501 = vadd.f32 %v1176, %v1500
      %v1502 = vpop.f32.mrb[0].mxu0
      %1503 = vmatprep.mubr.bf16.mxu0 0
      %1504 = vmatmul.mubr.bf16.gmra.mrb[0].mxu0 %v1252
      %v1505 = vpop.f32.mrb[0].mxu0
      %v1506 = vadd.f32 %v1176, %v1505
      %v1507 = vpop.f32.mrb[0].mxu0
      %v1508 = vpop.f32.mrb[0].mxu0
      %v1509 = vadd.f32 %v1176, %v1508
      %v1510 = vpop.f32.mrb[0].mxu0
      %1511 = vmatprep.mubr.bf16.mxu0 0
      %1512 = vmatmul.mubr.bf16.gmra.mrb[0].mxu0 %v1255
      %v1513 = vpop.f32.mrb[0].mxu0
      %v1514 = vadd.f32 %v1176, %v1513
      %v1515 = vpop.f32.mrb[0].mxu0
      %v1516 = vpop.f32.mrb[0].mxu0
      %v1517 = vadd.f32 %v1176, %v1516
      %v1518 = vpop.f32.mrb[0].mxu0
      %1519 = vmatprep.mubr.bf16.mxu0 0
      %1520 = vmatmul.mubr.bf16.gmra.mrb[0].mxu0 %v1258
      %v1521 = vpop.f32.mrb[0].mxu0
      %v1522 = vadd.f32 %v1176, %v1521
      %v1523 = vpop.f32.mrb[0].mxu0
      %v1524 = vpop.f32.mrb[0].mxu0
      %v1525 = vadd.f32 %v1176, %v1524
      %v1526 = vpop.f32.mrb[0].mxu0
      %1527 = vmatprep.mubr.bf16.mxu0 0
      %1528 = vmatmul.mubr.bf16.gmra.mrb[0].mxu0 %v1261
      %v1529 = vpop.f32.mrb[0].mxu0
      %v1530 = vadd.f32 %v1176, %v1529
      %v1531 = vpop.f32.mrb[0].mxu0
      %v1532 = vpop.f32.mrb[0].mxu0
      %v1533 = vadd.f32 %v1176, %v1532
      %v1534 = vpop.f32.mrb[0].mxu0
      %1535 = vmatprep.mubr.bf16.mxu0 0
      %1536 = vmatmul.mubr.bf16.gmra.mrb[0].mxu0 %v1264
      %v1537 = vpop.f32.mrb[0].mxu0
      %v1538 = vadd.f32 %v1176, %v1537
      %v1539 = vpop.f32.mrb[0].mxu0
      %v1540 = vpop.f32.mrb[0].mxu0
      %v1541 = vadd.f32 %v1176, %v1540
      %v1542 = vpop.f32.mrb[0].mxu0
      %1543 = vmatprep.mubr.bf16.mxu0 0
      %1544 = vmatmul.mubr.bf16.gmra.mrb[0].mxu0 %v1267
      %v1545 = vpop.f32.mrb[0].mxu0
      %v1546 = vadd.f32 %v1176, %v1545
      %v1547 = vpop.f32.mrb[0].mxu0
      %v1548 = vpop.f32.mrb[0].mxu0
      %v1549 = vadd.f32 %v1176, %v1548
      %v1550 = vpop.f32.mrb[0].mxu0
      %1551 = vmatprep.mubr.bf16.mxu0 0
      %1552 = vmatmul.mubr.bf16.gmra.mrb[0].mxu0 %v1270
      %v1553 = vpop.f32.mrb[0].mxu0
      %v1554 = vadd.f32 %v1176, %v1553
      %v1555 = vpop.f32.mrb[0].mxu0
      %v1556 = vpop.f32.mrb[0].mxu0
      %v1557 = vadd.f32 %v1176, %v1556
      %v1558 = vpop.f32.mrb[0].mxu0
      %1559 = vmatprep.mubr.bf16.mxu0 0
      %1560 = vmatmul.mubr.bf16.gmra.mrb[0].mxu0 %v1273
      %v1561 = vpop.f32.mrb[0].mxu0
      %v1562 = vadd.f32 %v1176, %v1561
      %v1563 = vpop.f32.mrb[0].mxu0
      %v1564 = vpop.f32.mrb[0].mxu0
      %v1565 = vadd.f32 %v1176, %v1564
      %v1566 = vpop.f32.mrb[0].mxu0
      %1567 = vdwg.mxu0
      %v1568 = vadd.f32 %v1010, %v1314
      %v1569 = vadd.f32 %v1011, %v1317
      %v1570 = vadd.f32 %v1012, %v1322
      %v1571 = vadd.f32 %v1013, %v1325
      %v1572 = vadd.f32 %v1014, %v1330
      %v1573 = vadd.f32 %v1015, %v1333
      %v1574 = vadd.f32 %v1016, %v1338
      %v1575 = vadd.f32 %v1017, %v1341
      %v1576 = vadd.f32 %v1018, %v1346
      %v1577 = vadd.f32 %v1019, %v1349
      %v1578 = vadd.f32 %v1020, %v1354
      %v1579 = vadd.f32 %v1021, %v1357
      %v1580 = vadd.f32 %v1022, %v1362
      %v1581 = vadd.f32 %v1023, %v1365
      %v1582 = vadd.f32 %v1024, %v1370
      %v1583 = vadd.f32 %v1025, %v1373
      %v1584 = vadd.f32 %v1026, %v1378
      %v1585 = vadd.f32 %v1027, %v1381
      %v1586 = vadd.f32 %v1028, %v1386
      %v1587 = vadd.f32 %v1029, %v1389
      %v1588 = vadd.f32 %v1030, %v1394
      %v1589 = vadd.f32 %v1031, %v1397
      %v1590 = vadd.f32 %v1032, %v1402
      %v1591 = vadd.f32 %v1033, %v1405
      %v1592 = vadd.f32 %v1034, %v1410
      %v1593 = vadd.f32 %v1035, %v1413
      %v1594 = vadd.f32 %v1036, %v1418
      %v1595 = vadd.f32 %v1037, %v1421
      %v1596 = vadd.f32 %v1038, %v1426
      %v1597 = vadd.f32 %v1039, %v1429
      %v1598 = vadd.f32 %v1040, %v1434
      %v1599 = vadd.f32 %v1041, %v1437
      %v1600 = vadd.f32 %v1042, %v1442
      %v1601 = vadd.f32 %v1043, %v1445
      %v1602 = vadd.f32 %v1044, %v1450
      %v1603 = vadd.f32 %v1045, %v1453
      %v1604 = vadd.f32 %v1046, %v1458
      %v1605 = vadd.f32 %v1047, %v1461
      %v1606 = vadd.f32 %v1048, %v1466
      %v1607 = vadd.f32 %v1049, %v1469
      %v1608 = vadd.f32 %v1050, %v1474
      %v1609 = vadd.f32 %v1051, %v1477
      %v1610 = vadd.f32 %v1052, %v1482
      %v1611 = vadd.f32 %v1053, %v1485
      %v1612 = vadd.f32 %v1054, %v1490
      %v1613 = vadd.f32 %v1055, %v1493
      %v1614 = vadd.f32 %v1056, %v1498
      %v1615 = vadd.f32 %v1057, %v1501
      %v1616 = vadd.f32 %v1058, %v1506
      %v1617 = vadd.f32 %v1059, %v1509
      %v1618 = vadd.f32 %v1060, %v1514
      %v1619 = vadd.f32 %v1061, %v1517
      %v1620 = vadd.f32 %v1062, %v1522
      %v1621 = vadd.f32 %v1063, %v1525
      %v1622 = vadd.f32 %v1064, %v1530
      %v1623 = vadd.f32 %v1065, %v1533
      %v1624 = vadd.f32 %v1066, %v1538
      %v1625 = vadd.f32 %v1067, %v1541
      %v1626 = vadd.f32 %v1068, %v1546
      %v1627 = vadd.f32 %v1069, %v1549
      %v1628 = vadd.f32 %v1070, %v1554
      %v1629 = vadd.f32 %v1071, %v1557
      %v1630 = vadd.f32 %v1072, %v1562
      %v1631 = vadd.f32 %v1073, %v1565
      %vm1632 = vcmask 64512
      %1633 = vst.msk [vmem:[%s353] sm:$0xff] %vm1632, %v1568
      %1634 = vst.msk [vmem:[%s353 + $0x8] sm:$0xff] %vm1632, %v1569
      %1635 = vst.msk [vmem:[%s353 + $0x10] sm:$0xff] %vm1632, %v1570
      %1636 = vst.msk [vmem:[%s353 + $0x18] sm:$0xff] %vm1632, %v1571
      %1637 = vst.msk [vmem:[%s353 + $0x20] sm:$0xff] %vm1632, %v1572
      %1638 = vst.msk [vmem:[%s353 + $0x28] sm:$0xff] %vm1632, %v1573
      %1639 = vst.msk [vmem:[%s353 + $0x30] sm:$0xff] %vm1632, %v1574
      %1640 = vst.msk [vmem:[%s353 + $0x38] sm:$0xff] %vm1632, %v1575
      %1641 = vst.msk [vmem:[%s353 + $0x40] sm:$0xff] %vm1632, %v1576
      %1642 = vst.msk [vmem:[%s353 + $0x48] sm:$0xff] %vm1632, %v1577
      %1643 = vst.msk [vmem:[%s353 + $0x50] sm:$0xff] %vm1632, %v1578
      %1644 = vst.msk [vmem:[%s353 + $0x58] sm:$0xff] %vm1632, %v1579
      %1645 = vst.msk [vmem:[%s353 + $0x60] sm:$0xff] %vm1632, %v1580
      %1646 = vst.msk [vmem:[%s353 + $0x68] sm:$0xff] %vm1632, %v1581
      %1647 = vst.msk [vmem:[%s353 + $0x70] sm:$0xff] %vm1632, %v1582
      %1648 = vst.msk [vmem:[%s353 + $0x78] sm:$0xff] %vm1632, %v1583
      %1649 = vst.msk [vmem:[%s353 + $0x80] sm:$0xff] %vm1632, %v1584
      %1650 = vst.msk [vmem:[%s353 + $0x88] sm:$0xff] %vm1632, %v1585
      %1651 = vst.msk [vmem:[%s353 + $0x90] sm:$0xff] %vm1632, %v1586
      %1652 = vst.msk [vmem:[%s353 + $0x98] sm:$0xff] %vm1632, %v1587
      %1653 = vst.msk [vmem:[%s353 + $0xa0] sm:$0xff] %vm1632, %v1588
      %1654 = vst.msk [vmem:[%s353 + $0xa8] sm:$0xff] %vm1632, %v1589
      %1655 = vst.msk [vmem:[%s353 + $0xb0] sm:$0xff] %vm1632, %v1590
      %1656 = vst.msk [vmem:[%s353 + $0xb8] sm:$0xff] %vm1632, %v1591
      %1657 = vst.msk [vmem:[%s353 + $0xc0] sm:$0xff] %vm1632, %v1592
      %1658 = vst.msk [vmem:[%s353 + $0xc8] sm:$0xff] %vm1632, %v1593
      %1659 = vst.msk [vmem:[%s353 + $0xd0] sm:$0xff] %vm1632, %v1594
      %1660 = vst.msk [vmem:[%s353 + $0xd8] sm:$0xff] %vm1632, %v1595
      %1661 = vst.msk [vmem:[%s353 + $0xe0] sm:$0xff] %vm1632, %v1596
      %1662 = vst.msk [vmem:[%s353 + $0xe8] sm:$0xff] %vm1632, %v1597
      %1663 = vst.msk [vmem:[%s353 + $0xf0] sm:$0xff] %vm1632, %v1598
      %1664 = vst.msk [vmem:[%s353 + $0xf8] sm:$0xff] %vm1632, %v1599
      %1665 = vst.msk [vmem:[%s353 + $0x100] sm:$0xff] %vm1632, %v1600
      %1666 = vst.msk [vmem:[%s353 + $0x108] sm:$0xff] %vm1632, %v1601
      %1667 = vst.msk [vmem:[%s353 + $0x110] sm:$0xff] %vm1632, %v1602
      %1668 = vst.msk [vmem:[%s353 + $0x118] sm:$0xff] %vm1632, %v1603
      %1669 = vst.msk [vmem:[%s353 + $0x120] sm:$0xff] %vm1632, %v1604
      %1670 = vst.msk [vmem:[%s353 + $0x128] sm:$0xff] %vm1632, %v1605
      %1671 = vst.msk [vmem:[%s353 + $0x130] sm:$0xff] %vm1632, %v1606
      %1672 = vst.msk [vmem:[%s353 + $0x138] sm:$0xff] %vm1632, %v1607
      %1673 = vst.msk [vmem:[%s353 + $0x140] sm:$0xff] %vm1632, %v1608
      %1674 = vst.msk [vmem:[%s353 + $0x148] sm:$0xff] %vm1632, %v1609
      %1675 = vst.msk [vmem:[%s353 + $0x150] sm:$0xff] %vm1632, %v1610
      %1676 = vst.msk [vmem:[%s353 + $0x158] sm:$0xff] %vm1632, %v1611
      %1677 = vst.msk [vmem:[%s353 + $0x160] sm:$0xff] %vm1632, %v1612
      %1678 = vst.msk [vmem:[%s353 + $0x168] sm:$0xff] %vm1632, %v1613
      %1679 = vst.msk [vmem:[%s353 + $0x170] sm:$0xff] %vm1632, %v1614
      %1680 = vst.msk [vmem:[%s353 + $0x178] sm:$0xff] %vm1632, %v1615
      %1681 = vst.msk [vmem:[%s353 + $0x180] sm:$0xff] %vm1632, %v1616
      %1682 = vst.msk [vmem:[%s353 + $0x188] sm:$0xff] %vm1632, %v1617
      %1683 = vst.msk [vmem:[%s353 + $0x190] sm:$0xff] %vm1632, %v1618
      %1684 = vst.msk [vmem:[%s353 + $0x198] sm:$0xff] %vm1632, %v1619
      %1685 = vst.msk [vmem:[%s353 + $0x1a0] sm:$0xff] %vm1632, %v1620
      %1686 = vst.msk [vmem:[%s353 + $0x1a8] sm:$0xff] %vm1632, %v1621
      %1687 = vst.msk [vmem:[%s353 + $0x1b0] sm:$0xff] %vm1632, %v1622
      %1688 = vst.msk [vmem:[%s353 + $0x1b8] sm:$0xff] %vm1632, %v1623
      %1689 = vst.msk [vmem:[%s353 + $0x1c0] sm:$0xff] %vm1632, %v1624
      %1690 = vst.msk [vmem:[%s353 + $0x1c8] sm:$0xff] %vm1632, %v1625
      %1691 = vst.msk [vmem:[%s353 + $0x1d0] sm:$0xff] %vm1632, %v1626
      %1692 = vst.msk [vmem:[%s353 + $0x1d8] sm:$0xff] %vm1632, %v1627
      %1693 = vst.msk [vmem:[%s353 + $0x1e0] sm:$0xff] %vm1632, %v1628
      %1694 = vst.msk [vmem:[%s353 + $0x1e8] sm:$0xff] %vm1632, %v1629
      %1695 = vst.msk [vmem:[%s353 + $0x1f0] sm:$0xff] %vm1632, %v1630
      %1696 = vst.msk [vmem:[%s353 + $0x1f8] sm:$0xff] %vm1632, %v1631
      %s1697 = smul.u32 64, %s22
      %p1698 = scmp.lt.s32.totalorder %s21, 1
      %s1699 = scalar_select %p1698, %s21, 1
      %p1700 = scmp.lt.s32.totalorder %s1697, 63
      %s1701 = scalar_select %p1700, %s1697, 63
      %s1702 = smul.addr %s1699, 64
      %s1703 = sadd.s32 %s1701, %s1702
      %s1704 = smul.addr %s1703, 8
      %s1705 = scalar_lea.vmem %s6, %s1704
      // Predicated region
      $region45: #{resnet_block_forward.7} parent=43 // pred_check
        %p1706 = pneg %p199
      $region46: #{resnet_block_forward.7} parent=43 // pred_check_branch
        %1708 = sbr.rel (%p1706) target = $region48
      $region47: #{resnet_block_forward.7} parent=43 // pred_region
        %s1709 = smul.u32 64, %s22
      $region48: #{resnet_block_forward.7} parent=43 // pred_fallthru
        _
    $region44: #{resnet_block_forward.7} parent=5 // pred_fallthru
      _
    %p1710 = scmp.le.s32.totalorder 2, %s12
    // Predicated region
    $region49: #{resnet_block_forward.7} parent=5 // pred_check
      %p1711 = pneg %p1710
    $region50: #{resnet_block_forward.7} parent=5 // pred_check_branch
      %1713 = sbr.rel (%p1711) target = $region52
    $region51: #{resnet_block_forward.7} parent=5 // pred_region
      %s1714 = ssub.s32 %s12, 2
      // Predicated region
      $region53: #{resnet_block_forward.7} parent=51 // pred_check
        %p1715 = pneg %p205
      $region54: #{resnet_block_forward.7} parent=51 // pred_check_branch
        %1717 = sbr.rel (%p1715) target = $region56
      $region55: #{resnet_block_forward.7} parent=51 // pred_region
        %s1718 = smul.u32 64, %s24
        %p1719 = scmp.lt.s32.totalorder %s23, 1
        %s1720 = scalar_select %p1719, %s23, 1
        %p1721 = scmp.lt.s32.totalorder %s1718, 63
        %s1722 = scalar_select %p1721, %s1718, 63
        %s1723 = smul.addr %s1720, 64
        %s1724 = sadd.s32 %s1722, %s1723
        %s1725 = smul.addr %s1724, 8
        %s1726 = scalar_lea.vmem %s6, %s1725
      $region56: #{resnet_block_forward.7} parent=51 // pred_fallthru
        _
    $region52: #{resnet_block_forward.7} parent=5 // pred_fallthru
      _
  $region6: #{resnet_block_forward.7} parent=0 // loop_footer
    %s16 = sadd.s32 1, %s12
  $region7: #{resnet_block_forward.7} parent=0 // loop_footer_branch
    %11 = sbr.rel target = $region3
  $region8: #{resnet_block_forward.7} parent=0 // loop_exit
    _

// kernel: resnet_block_forward.6
$region0: #{resnet_block_forward.6}
  #allocation0 [shape = 'u32[]', space=smem, size = 0x4, offset = 0x4, fixed_abs, tag = 'smem constant byte address 0x4 - core index']
  #allocation1 [shape = 'u32[144,128]{1,0:T(1,128)}', space=vmem, size = 0x12000, scoped, tag = 'internal scratch']
  %s0 = inlined_call_operand.vmem [shape: bf16[20,10,10,8], index: 0, kind: input, shape index: {}, may-alias: {0,1,2}]
  %s1 = inlined_call_operand.vmem [shape: bf16[20,10,10,8], index: 1, kind: input, shape index: {}, may-alias: {0,1,2}]
  %s2 = inlined_call_operand.vmem [shape: bf16[20,10,10,8], index: 2, kind: input, shape index: {}, may-alias: {0,1,2}]
  %s3 = inlined_call_operand.vmem [shape: bf16[3,72,8], index: 3, kind: input, shape index: {}]
  %s4 = inlined_call_operand.vmem [shape: f32[1,8], index: 4, kind: input, shape index: {}]
  %s5 = inlined_call_operand.vmem [shape: bf16[16,64,8], index: 5, kind: output, shape index: {0}]
  %s6 = inlined_call_operand.vmem [shape: f32[16,1,8], index: 6, kind: output, shape index: {1}]
  %s7 = inlined_call_operand.vmem [shape: f32[16,1,8], index: 7, kind: output, shape index: {2}]
  %8 = xla_tuple %s5, %s6, %s7
  %s9 = sld [smem:[#allocation0]]
  $region69: #{resnet_block_forward.6} parent=0
    _
  %s11 = ssub.s32 1, %s9
  %s12 = scalar_select 0, %s11, %s9
  loop: start=0, step=1, limit=18
  $region2: #{resnet_block_forward.6} parent=0 // loop_pre_header
    _
  $region3: #{resnet_block_forward.6} parent=0 // loop_header
    %s14 = sphi 0, %s18
    %p15 = scmp.ge.s32.totalorder %s14, 18
    %s21 = sphi 0, %s33
    %s22 = sphi 0, %s29
    %s23 = sphi 0, %s21
    %s24 = sphi 0, %s22
    %s25 = sphi 0, %s23
    %s26 = sphi 0, %s24
    %s40 = sphi 0, %s42
    %s43 = sphi 0, %s40
    %s44 = sphi 0, %s43
    %s60 = sphi 0, %s44
    %s72 = sphi 0, %s74
    %s75 = sphi 0, %s72
    %s76 = sphi 0, %s75
    %s92 = sphi 0, %s76
    %s104 = sphi 0, %s106
    %s107 = sphi 0, %s104
    %s108 = sphi 0, %s107
    %s124 = sphi 0, %s108
    %s128 = sphi 0, %s128
    %s130 = sphi 0, %s128
    %s131 = sphi 0, %s130
    %s145 = sphi 0, %s131
    %s149 = sphi 0, %s149
    %s151 = sphi 0, %s149
    %s152 = sphi 0, %s151
    %s166 = sphi 0, %s152
    %s176 = sphi 0, %s178
    %s179 = sphi 0, %s176
    %s180 = sphi 0, %s179
    %s196 = sphi 0, %s180
    %s206 = sphi 0, %s208
    %s209 = sphi 0, %s206
    %s210 = sphi 0, %s209
    %s226 = sphi 0, %s210
    %s236 = sphi 0, %s238
    %s239 = sphi 0, %s236
    %s240 = sphi 0, %s239
    %s256 = sphi 0, %s240
  $region4: #{resnet_block_forward.6} parent=0 // loop_header_branch
    %17 = sbr.rel (%p15) target = $region8
  $region5: #{resnet_block_forward.6} parent=0 // loop_body
    %s19 = ssub.s32 %s14, 1
    %s20 = ssub.s32 %s14, 2
    %s27 = sadd.s32 1, %s22
    %p28 = scmp.ge.s32.totalorder %s27, 8
    %s29 = scalar_select %p28, 0, %s27
    %s30 = sadd.s32 1, %s21
    %s31 = scalar_select %p28, %s30, %s21
    %p32 = scmp.ge.s32.totalorder %s31, 2
    %s33 = scalar_select %p32, 0, %s31
    %s34 = smul.u32 %s21, 10
    %s35 = sadd.s32 %s34, %s22
    %s36 = smul.u32 %s33, 10
    %s37 = sadd.s32 %s36, %s29
    %s38 = ssub.s32 %s35, %s37
    %p39 = scmp.eq.s32.totalorder %s38, 0
    %s41 = sadd.s32 %s40, 1
    %s42 = scalar_select %p39, %s40, %s41
    %p45 = pneg %p39
    %p46 = scmp.eq.s32.totalorder %s14, 15
    %p47 = por %p45, %p46
    %p48 = scmp.ne.s32.totalorder %s40, %s43
    %p49 = scmp.eq.s32.totalorder %s14, 0
    %p50 = por %p48, %p49
    %p51 = scmp.ne.s32.totalorder %s40, %s43
    %p52 = scmp.eq.s32.totalorder %s19, 15
    %p53 = por %p51, %p52
    %p54 = scmp.ne.s32.totalorder %s43, %s44
    %p55 = scmp.eq.s32.totalorder %s19, 0
    %p56 = por %p54, %p55
    %p57 = scmp.ne.s32.totalorder %s43, %s44
    %p58 = scmp.eq.s32.totalorder %s20, 15
    %p59 = por %p57, %p58
    %p61 = scmp.ne.s32.totalorder %s44, %s60
    %p62 = scmp.eq.s32.totalorder %s20, 0
    %p63 = por %p61, %p62
    %s64 = smul.u32 %s21, 10
    %s65 = sadd.s32 %s64, %s22
    %s66 = sadd.s32 %s65, 1
    %s67 = smul.u32 %s33, 10
    %s68 = sadd.s32 %s67, %s29
    %s69 = sadd.s32 %s68, 1
    %s70 = ssub.s32 %s66, %s69
    %p71 = scmp.eq.s32.totalorder %s70, 0
    %s73 = sadd.s32 %s72, 1
    %s74 = scalar_select %p71, %s72, %s73
    %p77 = pneg %p71
    %p78 = scmp.eq.s32.totalorder %s14, 15
    %p79 = por %p77, %p78
    %p80 = scmp.ne.s32.totalorder %s72, %s75
    %p81 = scmp.eq.s32.totalorder %s14, 0
    %p82 = por %p80, %p81
    %p83 = scmp.ne.s32.totalorder %s72, %s75
    %p84 = scmp.eq.s32.totalorder %s19, 15
    %p85 = por %p83, %p84
    %p86 = scmp.ne.s32.totalorder %s75, %s76
    %p87 = scmp.eq.s32.totalorder %s19, 0
    %p88 = por %p86, %p87
    %p89 = scmp.ne.s32.totalorder %s75, %s76
    %p90 = scmp.eq.s32.totalorder %s20, 15
    %p91 = por %p89, %p90
    %p93 = scmp.ne.s32.totalorder %s76, %s92
    %p94 = scmp.eq.s32.totalorder %s20, 0
    %p95 = por %p93, %p94
    %s96 = smul.u32 %s21, 10
    %s97 = sadd.s32 %s96, %s22
    %s98 = sadd.s32 %s97, 2
    %s99 = smul.u32 %s33, 10
    %s100 = sadd.s32 %s99, %s29
    %s101 = sadd.s32 %s100, 2
    %s102 = ssub.s32 %s98, %s101
    %p103 = scmp.eq.s32.totalorder %s102, 0
    %s105 = sadd.s32 %s104, 1
    %s106 = scalar_select %p103, %s104, %s105
    %p109 = pneg %p103
    %p110 = scmp.eq.s32.totalorder %s14, 15
    %p111 = por %p109, %p110
    %p112 = scmp.ne.s32.totalorder %s104, %s107
    %p113 = scmp.eq.s32.totalorder %s14, 0
    %p114 = por %p112, %p113
    %p115 = scmp.ne.s32.totalorder %s104, %s107
    %p116 = scmp.eq.s32.totalorder %s19, 15
    %p117 = por %p115, %p116
    %p118 = scmp.ne.s32.totalorder %s107, %s108
    %p119 = scmp.eq.s32.totalorder %s19, 0
    %p120 = por %p118, %p119
    %p121 = scmp.ne.s32.totalorder %s107, %s108
    %p122 = scmp.eq.s32.totalorder %s20, 15
    %p123 = por %p121, %p122
    %p125 = scmp.ne.s32.totalorder %s108, %s124
    %p126 = scmp.eq.s32.totalorder %s20, 0
    %p127 = por %p125, %p126
    %s129 = sadd.s32 %s128, 1
    %p132 = scmp.eq.s32.totalorder %s14, 15
    %p133 = scmp.ne.s32.totalorder %s128, %s130
    %p134 = scmp.eq.s32.totalorder %s14, 0
    %p135 = por %p133, %p134
    %p136 = scmp.ne.s32.totalorder %s128, %s130
    %p137 = scmp.eq.s32.totalorder %s19, 15
    %p138 = por %p136, %p137
    %p139 = scmp.ne.s32.totalorder %s130, %s131
    %p140 = scmp.eq.s32.totalorder %s19, 0
    %p141 = por %p139, %p140
    %p142 = scmp.ne.s32.totalorder %s130, %s131
    %p143 = scmp.eq.s32.totalorder %s20, 15
    %p144 = por %p142, %p143
    %p146 = scmp.ne.s32.totalorder %s131, %s145
    %p147 = scmp.eq.s32.totalorder %s20, 0
    %p148 = por %p146, %p147
    %s150 = sadd.s32 %s149, 1
    %p153 = scmp.eq.s32.totalorder %s14, 15
    %p154 = scmp.ne.s32.totalorder %s149, %s151
    %p155 = scmp.eq.s32.totalorder %s14, 0
    %p156 = por %p154, %p155
    %p157 = scmp.ne.s32.totalorder %s149, %s151
    %p158 = scmp.eq.s32.totalorder %s19, 15
    %p159 = por %p157, %p158
    %p160 = scmp.ne.s32.totalorder %s151, %s152
    %p161 = scmp.eq.s32.totalorder %s19, 0
    %p162 = por %p160, %p161
    %p163 = scmp.ne.s32.totalorder %s151, %s152
    %p164 = scmp.eq.s32.totalorder %s20, 15
    %p165 = por %p163, %p164
    %p167 = scmp.ne.s32.totalorder %s152, %s166
    %p168 = scmp.eq.s32.totalorder %s20, 0
    %p169 = por %p167, %p168
    %s170 = smul.u32 %s21, 8
    %s171 = sadd.s32 %s170, %s22
    %s172 = smul.u32 %s33, 8
    %s173 = sadd.s32 %s172, %s29
    %s174 = ssub.s32 %s171, %s173
    %p175 = scmp.eq.s32.totalorder %s174, 0
    %s177 = sadd.s32 %s176, 1
    %s178 = scalar_select %p175, %s176, %s177
    %p181 = pneg %p175
    %p182 = scmp.eq.s32.totalorder %s14, 15
    %p183 = por %p181, %p182
    %p184 = scmp.ne.s32.totalorder %s176, %s179
    %p185 = scmp.eq.s32.totalorder %s14, 0
    %p186 = por %p184, %p185
    %p187 = scmp.ne.s32.totalorder %s176, %s179
    %p188 = scmp.eq.s32.totalorder %s19, 15
    %p189 = por %p187, %p188
    %p190 = scmp.ne.s32.totalorder %s179, %s180
    %p191 = scmp.eq.s32.totalorder %s19, 0
    %p192 = por %p190, %p191
    %p193 = scmp.ne.s32.totalorder %s179, %s180
    %p194 = scmp.eq.s32.totalorder %s20, 15
    %p195 = por %p193, %p194
    %p197 = scmp.ne.s32.totalorder %s180, %s196
    %p198 = scmp.eq.s32.totalorder %s20, 0
    %p199 = por %p197, %p198
    %s200 = smul.u32 %s21, 8
    %s201 = sadd.s32 %s200, %s22
    %s202 = smul.u32 %s33, 8
    %s203 = sadd.s32 %s202, %s29
    %s204 = ssub.s32 %s201, %s203
    %p205 = scmp.eq.s32.totalorder %s204, 0
    %s207 = sadd.s32 %s206, 1
    %s208 = scalar_select %p205, %s206, %s207
    %p211 = pneg %p205
    %p212 = scmp.eq.s32.totalorder %s14, 15
    %p213 = por %p211, %p212
    %p214 = scmp.ne.s32.totalorder %s206, %s209
    %p215 = scmp.eq.s32.totalorder %s14, 0
    %p216 = por %p214, %p215
    %p217 = scmp.ne.s32.totalorder %s206, %s209
    %p218 = scmp.eq.s32.totalorder %s19, 15
    %p219 = por %p217, %p218
    %p220 = scmp.ne.s32.totalorder %s209, %s210
    %p221 = scmp.eq.s32.totalorder %s19, 0
    %p222 = por %p220, %p221
    %p223 = scmp.ne.s32.totalorder %s209, %s210
    %p224 = scmp.eq.s32.totalorder %s20, 15
    %p225 = por %p223, %p224
    %p227 = scmp.ne.s32.totalorder %s210, %s226
    %p228 = scmp.eq.s32.totalorder %s20, 0
    %p229 = por %p227, %p228
    %s230 = smul.u32 %s21, 8
    %s231 = sadd.s32 %s230, %s22
    %s232 = smul.u32 %s33, 8
    %s233 = sadd.s32 %s232, %s29
    %s234 = ssub.s32 %s231, %s233
    %p235 = scmp.eq.s32.totalorder %s234, 0
    %s237 = sadd.s32 %s236, 1
    %s238 = scalar_select %p235, %s236, %s237
    %p241 = pneg %p235
    %p242 = scmp.eq.s32.totalorder %s14, 15
    %p243 = por %p241, %p242
    %p244 = scmp.ne.s32.totalorder %s236, %s239
    %p245 = scmp.eq.s32.totalorder %s14, 0
    %p246 = por %p244, %p245
    %p247 = scmp.ne.s32.totalorder %s236, %s239
    %p248 = scmp.eq.s32.totalorder %s19, 15
    %p249 = por %p247, %p248
    %p250 = scmp.ne.s32.totalorder %s239, %s240
    %p251 = scmp.eq.s32.totalorder %s19, 0
    %p252 = por %p250, %p251
    %p253 = scmp.ne.s32.totalorder %s239, %s240
    %p254 = scmp.eq.s32.totalorder %s20, 15
    %p255 = por %p253, %p254
    %p257 = scmp.ne.s32.totalorder %s240, %s256
    %p258 = scmp.eq.s32.totalorder %s20, 0
    %p259 = por %p257, %p258
    %p260 = scmp.le.s32.totalorder 1, %s14
    %p261 = scmp.lt.s32.totalorder %s14, 17
    %p262 = pnand %p260, %p261
    %p263 = pneg %p262
    // Predicated region
    $region9: #{resnet_block_forward.6} parent=5 // pred_check
      _
    $region10: #{resnet_block_forward.6} parent=5 // pred_check_branch
      %265 = sbr.rel (%p262) target = $region12
    $region11: #{resnet_block_forward.6} parent=5 // pred_region
      %s266 = ssub.s32 %s14, 1
      // Predicated region
      $region13: #{resnet_block_forward.6} parent=11 // pred_check
        %p267 = pneg %p141
      $region14: #{resnet_block_forward.6} parent=11 // pred_check_branch
        %269 = sbr.rel (%p267) target = $region16
      $region15: #{resnet_block_forward.6} parent=11 // pred_region
        _
      $region16: #{resnet_block_forward.6} parent=11 // pred_fallthru
        _
      // Predicated region
      $region17: #{resnet_block_forward.6} parent=11 // pred_check
        %p270 = pneg %p162
      $region18: #{resnet_block_forward.6} parent=11 // pred_check_branch
        %272 = sbr.rel (%p270) target = $region20
      $region19: #{resnet_block_forward.6} parent=11 // pred_region
        _
      $region20: #{resnet_block_forward.6} parent=11 // pred_fallthru
        _
    $region12: #{resnet_block_forward.6} parent=5 // pred_fallthru
      _
    %p273 = scmp.lt.s32.totalorder %s14, 16
    // Predicated region
    $region21: #{resnet_block_forward.6} parent=5 // pred_check
      %p274 = pneg %p273
    $region22: #{resnet_block_forward.6} parent=5 // pred_check_branch
      %276 = sbr.rel (%p274) target = $region24
    $region23: #{resnet_block_forward.6} parent=5 // pred_region
      // Predicated region
      $region25: #{resnet_block_forward.6} parent=23 // pred_check
        %p277 = pneg %p50
      $region26: #{resnet_block_forward.6} parent=23 // pred_check_branch
        %279 = sbr.rel (%p277) target = $region28
      $region27: #{resnet_block_forward.6} parent=23 // pred_region
        %s280 = smul.u32 %s21, 10
        %s281 = sadd.s32 %s280, %s22
        %p282 = scmp.lt.s32.totalorder %s281, 19
        %s283 = scalar_select %p282, %s281, 19
        %s284 = smul.addr %s283, 20
        %s285 = smul.addr %s284, 4
        %s286 = scalar_lea.vmem %s0, %s285
        %s287 = smul.u32 %s21, 10
        %s288 = sadd.s32 %s287, %s22
      $region28: #{resnet_block_forward.6} parent=23 // pred_fallthru
        _
      // Predicated region
      $region29: #{resnet_block_forward.6} parent=23 // pred_check
        %p289 = pneg %p82
      $region30: #{resnet_block_forward.6} parent=23 // pred_check_branch
        %291 = sbr.rel (%p289) target = $region32
      $region31: #{resnet_block_forward.6} parent=23 // pred_region
        %s292 = smul.u32 %s21, 10
        %s293 = sadd.s32 %s292, %s22
        %s294 = sadd.s32 %s293, 1
        %p295 = scmp.lt.s32.totalorder %s294, 19
        %s296 = scalar_select %p295, %s294, 19
        %s297 = smul.addr %s296, 20
        %s298 = smul.addr %s297, 4
        %s299 = scalar_lea.vmem %s1, %s298
        %s300 = smul.u32 %s21, 10
        %s301 = sadd.s32 %s300, %s22
        %s302 = sadd.s32 %s301, 1
      $region32: #{resnet_block_forward.6} parent=23 // pred_fallthru
        _
      // Predicated region
      $region33: #{resnet_block_forward.6} parent=23 // pred_check
        %p303 = pneg %p114
      $region34: #{resnet_block_forward.6} parent=23 // pred_check_branch
        %305 = sbr.rel (%p303) target = $region36
      $region35: #{resnet_block_forward.6} parent=23 // pred_region
        %s306 = smul.u32 %s21, 10
        %s307 = sadd.s32 %s306, %s22
        %s308 = sadd.s32 %s307, 2
        %p309 = scmp.lt.s32.totalorder %s308, 19
        %s310 = scalar_select %p309, %s308, 19
        %s311 = smul.addr %s310, 20
        %s312 = smul.addr %s311, 4
        %s313 = scalar_lea.vmem %s2, %s312
        %s314 = smul.u32 %s21, 10
        %s315 = sadd.s32 %s314, %s22
        %s316 = sadd.s32 %s315, 2
      $region36: #{resnet_block_forward.6} parent=23 // pred_fallthru
        _
    $region24: #{resnet_block_forward.6} parent=5 // pred_fallthru
      _
    %p317 = scmp.le.s32.totalorder 1, %s14
    %p318 = scmp.lt.s32.totalorder %s14, 17
    %p319 = pnand %p317, %p318
    %p320 = pneg %p319
    // Predicated region
    $region37: #{resnet_block_forward.6} parent=5 // pred_check
      _
    $region38: #{resnet_block_forward.6} parent=5 // pred_check_branch
      %322 = sbr.rel (%p319) target = $region40
    $region39: #{resnet_block_forward.6} parent=5 // pred_region
      %s323 = ssub.s32 %s14, 1
      %s324 = smul.u32 %s23, 10
      %s325 = sadd.s32 %s324, %s24
      %p326 = scmp.lt.s32.totalorder %s325, 19
      %s327 = scalar_select %p326, %s325, 19
      %s328 = smul.addr %s327, 20
      %s329 = smul.addr %s328, 4
      %s330 = scalar_lea.vmem %s0, %s329
      %p331 = pneg %p56
      %p332 = pneg %p53
      %s333 = smul.u32 %s23, 10
      %s334 = sadd.s32 %s333, %s24
      %s335 = sadd.s32 %s334, 1
      %p336 = scmp.lt.s32.totalorder %s335, 19
      %s337 = scalar_select %p336, %s335, 19
      %s338 = smul.addr %s337, 20
      %s339 = smul.addr %s338, 4
      %s340 = scalar_lea.vmem %s1, %s339
      %p341 = pneg %p88
      %p342 = pneg %p85
      %s343 = smul.u32 %s23, 10
      %s344 = sadd.s32 %s343, %s24
      %s345 = sadd.s32 %s344, 2
      %p346 = scmp.lt.s32.totalorder %s345, 19
      %s347 = scalar_select %p346, %s345, 19
      %s348 = smul.addr %s347, 20
      %s349 = smul.addr %s348, 4
      %s350 = scalar_lea.vmem %s2, %s349
      %p351 = pneg %p120
      %p352 = pneg %p117
      %p353 = pneg %p141
      %p354 = pneg %p138
      %p355 = pneg %p162
      %p356 = pneg %p159
      %p357 = pneg %p192
      %p358 = pneg %p189
      %s359 = smul.u32 %s23, 8
      %s360 = sadd.s32 %s359, %s24
      %p361 = scmp.lt.s32.totalorder %s360, 15
      %s362 = scalar_select %p361, %s360, 15
      %s363 = smul.addr %s362, 8
      %s364 = smul.addr %s363, 4
      %s365 = scalar_lea.vmem %s5, %s364
      %p366 = pneg %p222
      %p367 = pneg %p219
      %s368 = smul.u32 %s23, 8
      %s369 = sadd.s32 %s368, %s24
      %p370 = scmp.lt.s32.totalorder %s369, 15
      %s371 = scalar_select %p370, %s369, 15
      %s372 = scalar_lea.vmem %s6, %s371
      %p373 = pneg %p252
      %p374 = pneg %p249
      %s375 = smul.u32 %s23, 8
      %s376 = sadd.s32 %s375, %s24
      %p377 = scmp.lt.s32.totalorder %s376, 15
      %s378 = scalar_select %p377, %s376, 15
      %s379 = scalar_lea.vmem %s7, %s378
      %s380 = smul.u32 %s23, 10
      %s381 = sadd.s32 %s380, %s24
      %p382 = scmp.lt.s32.totalorder %s381, 19
      %s383 = scalar_select %p382, %s381, 19
      %s384 = smul.addr %s383, 20
      %s385 = smul.addr %s384, 4
      %s386 = scalar_lea.vmem %s0, %s385
      %s387 = smul.u32 %s23, 10
      %s388 = sadd.s32 %s387, %s24
      %s389 = smul.u32 %s23, 10
      %s390 = sadd.s32 %s389, %s24
      %s391 = sadd.s32 %s390, 1
      %p392 = scmp.lt.s32.totalorder %s391, 19
      %s393 = scalar_select %p392, %s391, 19
      %s394 = smul.addr %s393, 20
      %s395 = smul.addr %s394, 4
      %s396 = scalar_lea.vmem %s1, %s395
      %s397 = smul.u32 %s23, 10
      %s398 = sadd.s32 %s397, %s24
      %s399 = sadd.s32 %s398, 1
      %s400 = smul.u32 %s23, 10
      %s401 = sadd.s32 %s400, %s24
      %s402 = sadd.s32 %s401, 2
      %p403 = scmp.lt.s32.totalorder %s402, 19
      %s404 = scalar_select %p403, %s402, 19
      %s405 = smul.addr %s404, 20
      %s406 = smul.addr %s405, 4
      %s407 = scalar_lea.vmem %s2, %s406
      %s408 = smul.u32 %s23, 10
      %s409 = sadd.s32 %s408, %s24
      %s410 = sadd.s32 %s409, 2
      %s411 = smul.u32 %s23, 8
      %s412 = sadd.s32 %s411, %s24
      %p413 = scmp.lt.s32.totalorder %s412, 15
      %s414 = scalar_select %p413, %s412, 15
      %s415 = smul.addr %s414, 8
      %s416 = smul.addr %s415, 4
      %s417 = scalar_lea.vmem %s5, %s416
      %s418 = smul.u32 %s23, 8
      %s419 = sadd.s32 %s418, %s24
      %s420 = smul.u32 %s23, 8
      %s421 = sadd.s32 %s420, %s24
      %p422 = scmp.lt.s32.totalorder %s421, 15
      %s423 = scalar_select %p422, %s421, 15
      %s424 = scalar_lea.vmem %s6, %s423
      %s425 = smul.u32 %s23, 8
      %s426 = sadd.s32 %s425, %s24
      %s427 = smul.u32 %s23, 8
      %s428 = sadd.s32 %s427, %s24
      %p429 = scmp.lt.s32.totalorder %s428, 15
      %s430 = scalar_select %p429, %s428, 15
      %s431 = scalar_lea.vmem %s7, %s430
      %s432 = smul.u32 %s23, 8
      %s433 = sadd.s32 %s432, %s24
      %v435 = vld [vmem:[%s386] sm:$0xf]
      %v436 = vld [vmem:[%s386 + $0x4] sm:$0x1]
      %v437 = vld [vmem:[%s386 + $0x8] sm:$0xf]
      %v438 = vld [vmem:[%s386 + $0xc] sm:$0x1]
      %v439 = vld [vmem:[%s386 + $0x10] sm:$0xf]
      %v440 = vld [vmem:[%s386 + $0x14] sm:$0x1]
      %v441 = vld [vmem:[%s386 + $0x18] sm:$0xf]
      %v442 = vld [vmem:[%s386 + $0x1c] sm:$0x1]
      %v443 = vld [vmem:[%s386 + $0x20] sm:$0xf]
      %v444 = vld [vmem:[%s386 + $0x24] sm:$0x1]
      %v445 = vld [vmem:[%s386 + $0x28] sm:$0xf]
      %v446 = vld [vmem:[%s386 + $0x2c] sm:$0x1]
      %v447 = vld [vmem:[%s386 + $0x30] sm:$0xf]
      %v448 = vld [vmem:[%s386 + $0x34] sm:$0x1]
      %v449 = vld [vmem:[%s386 + $0x38] sm:$0xf]
      %v450 = vld [vmem:[%s386 + $0x3c] sm:$0x1]
      %v451 = vld [vmem:[%s386 + $0x40] sm:$0xf]
      %v452 = vld [vmem:[%s386 + $0x44] sm:$0x1]
      %v453 = vld [vmem:[%s386 + $0x48] sm:$0xf]
      %v454 = vld [vmem:[%s386 + $0x4c] sm:$0x1]
      %vm455 = vsmask.f32 3328
      %vm456 = vsmask.f32 7440
      %vm457 = vmor %vm455, %vm456
      %v459 = vshrl.u32 %v435, 16
      %v461 = vrot.slane %v459, 4
      %v462 = vshll.u32 %v435, 16
      %v464 = vrot.slane %v462, 5
      %v465 = vor.u32 %v461, %v464
      %v466 = vrot.slane %v465, 4
      %v468 = vshll.u32 %v436, 16
      %v470 = vrot.slane %v468, 5
      %v471 = vsel %vm457, %v466, %v470
      %v473 = vshrl.u32 %v437, 16
      %v475 = vrot.slane %v473, 4
      %v476 = vshll.u32 %v437, 16
      %v478 = vrot.slane %v476, 5
      %v479 = vor.u32 %v475, %v478
      %v480 = vrot.slane %v479, 4
      %v482 = vshll.u32 %v438, 16
      %v484 = vrot.slane %v482, 5
      %v485 = vsel %vm457, %v480, %v484
      %v487 = vshrl.u32 %v439, 16
      %v489 = vrot.slane %v487, 4
      %v490 = vshll.u32 %v439, 16
      %v492 = vrot.slane %v490, 5
      %v493 = vor.u32 %v489, %v492
      %v494 = vrot.slane %v493, 4
      %v496 = vshll.u32 %v440, 16
      %v498 = vrot.slane %v496, 5
      %v499 = vsel %vm457, %v494, %v498
      %v501 = vshrl.u32 %v441, 16
      %v503 = vrot.slane %v501, 4
      %v504 = vshll.u32 %v441, 16
      %v506 = vrot.slane %v504, 5
      %v507 = vor.u32 %v503, %v506
      %v508 = vrot.slane %v507, 4
      %v510 = vshll.u32 %v442, 16
      %v512 = vrot.slane %v510, 5
      %v513 = vsel %vm457, %v508, %v512
      %v515 = vshrl.u32 %v443, 16
      %v517 = vrot.slane %v515, 4
      %v518 = vshll.u32 %v443, 16
      %v520 = vrot.slane %v518, 5
      %v521 = vor.u32 %v517, %v520
      %v522 = vrot.slane %v521, 4
      %v524 = vshll.u32 %v444, 16
      %v526 = vrot.slane %v524, 5
      %v527 = vsel %vm457, %v522, %v526
      %v529 = vshrl.u32 %v445, 16
      %v531 = vrot.slane %v529, 4
      %v532 = vshll.u32 %v445, 16
      %v534 = vrot.slane %v532, 5
      %v535 = vor.u32 %v531, %v534
      %v536 = vrot.slane %v535, 4
      %v538 = vshll.u32 %v446, 16
      %v540 = vrot.slane %v538, 5
      %v541 = vsel %vm457, %v536, %v540
      %v543 = vshrl.u32 %v447, 16
      %v545 = vrot.slane %v543, 4
      %v546 = vshll.u32 %v447, 16
      %v548 = vrot.slane %v546, 5
      %v549 = vor.u32 %v545, %v548
      %v550 = vrot.slane %v549, 4
      %v552 = vshll.u32 %v448, 16
      %v554 = vrot.slane %v552, 5
      %v555 = vsel %vm457, %v550, %v554
      %v557 = vshrl.u32 %v449, 16
      %v559 = vrot.slane %v557, 4
      %v560 = vshll.u32 %v449, 16
      %v562 = vrot.slane %v560, 5
      %v563 = vor.u32 %v559, %v562
      %v564 = vrot.slane %v563, 4
      %v566 = vshll.u32 %v450, 16
      %v568 = vrot.slane %v566, 5
      %v569 = vsel %vm457, %v564, %v568
      %vm586 = vcmask 1042432
      %vm587 = vcmask 1046532
      %vm588 = vmor %vm586, %vm587
      %v589 = vrot.slane %v435, 5
      %v590 = vrot.slane %v589, 4
      %v591 = vrot.slane %v436, 5
      %v592 = vsel %vm588, %v590, %v591
      %v593 = vrot.slane %v437, 5
      %v594 = vrot.slane %v593, 4
      %v595 = vrot.slane %v438, 5
      %v596 = vsel %vm588, %v594, %v595
      %v597 = vrot.slane %v439, 5
      %v598 = vrot.slane %v597, 4
      %v599 = vrot.slane %v440, 5
      %v600 = vsel %vm588, %v598, %v599
      %v601 = vrot.slane %v441, 5
      %v602 = vrot.slane %v601, 4
      %v603 = vrot.slane %v442, 5
      %v604 = vsel %vm588, %v602, %v603
      %v605 = vrot.slane %v443, 5
      %v606 = vrot.slane %v605, 4
      %v607 = vrot.slane %v444, 5
      %v608 = vsel %vm588, %v606, %v607
      %v609 = vrot.slane %v445, 5
      %v610 = vrot.slane %v609, 4
      %v611 = vrot.slane %v446, 5
      %v612 = vsel %vm588, %v610, %v611
      %v613 = vrot.slane %v447, 5
      %v614 = vrot.slane %v613, 4
      %v615 = vrot.slane %v448, 5
      %v616 = vsel %vm588, %v614, %v615
      %v617 = vrot.slane %v449, 5
      %v618 = vrot.slane %v617, 4
      %v619 = vrot.slane %v450, 5
      %v620 = vsel %vm588, %v618, %v619
      %v622 = vshrl.u32 %v451, 16
      %v624 = vrot.slane %v622, 4
      %v625 = vshll.u32 %v451, 16
      %v627 = vrot.slane %v625, 5
      %v628 = vor.u32 %v624, %v627
      %v629 = vrot.slane %v628, 4
      %v631 = vshll.u32 %v452, 16
      %v633 = vrot.slane %v631, 5
      %v634 = vsel %vm457, %v629, %v633
      %v637 = vrot.slane %v451, 5
      %v638 = vrot.slane %v637, 4
      %v639 = vrot.slane %v452, 5
      %v640 = vsel %vm588, %v638, %v639
      %v642 = vshrl.u32 %v453, 16
      %v644 = vrot.slane %v642, 4
      %v645 = vshll.u32 %v453, 16
      %v647 = vrot.slane %v645, 5
      %v648 = vor.u32 %v644, %v647
      %v649 = vrot.slane %v648, 4
      %v651 = vshll.u32 %v454, 16
      %v653 = vrot.slane %v651, 5
      %v654 = vsel %vm457, %v649, %v653
      %v657 = vrot.slane %v453, 5
      %v658 = vrot.slane %v657, 4
      %v659 = vrot.slane %v454, 5
      %v660 = vsel %vm588, %v658, %v659
      %v661 = vunpack.c.l.b16 %v435
      %v662 = vunpack.c.l.b16 %v437
      %v663 = vunpack.c.l.b16 %v439
      %v664 = vunpack.c.l.b16 %v441
      %v665 = vunpack.c.l.b16 %v443
      %v666 = vunpack.c.l.b16 %v445
      %v667 = vunpack.c.l.b16 %v447
      %v668 = vunpack.c.l.b16 %v449
      %v669 = vpack.c.b16 %v662, %v661
      %v670 = vpack.c.b16 %v664, %v663
      %v671 = vpack.c.b16 %v666, %v665
      %v672 = vpack.c.b16 %v668, %v667
      %v673 = vunpack.c.l.b16 %v471
      %v674 = vunpack.c.l.b16 %v485
      %v675 = vunpack.c.l.b16 %v499
      %v676 = vunpack.c.l.b16 %v513
      %v677 = vunpack.c.l.b16 %v527
      %v678 = vunpack.c.l.b16 %v541
      %v679 = vunpack.c.l.b16 %v555
      %v680 = vunpack.c.l.b16 %v569
      %v681 = vpack.c.b16 %v674, %v673
      %v682 = vpack.c.b16 %v676, %v675
      %v683 = vpack.c.b16 %v678, %v677
      %v684 = vpack.c.b16 %v680, %v679
      %685 = vrot.lane.b32.xlu0 %v681, 8
      %v686 = vpop.permute.xlu0 %685
      %687 = vrot.lane.b32.xlu0 %v682, 8
      %v688 = vpop.permute.xlu0 %687
      %689 = vrot.lane.b32.xlu0 %v683, 8
      %v690 = vpop.permute.xlu0 %689
      %691 = vrot.lane.b32.xlu0 %v684, 8
      %v692 = vpop.permute.xlu0 %691
      %v693 = vunpack.c.l.b16 %v592
      %v694 = vunpack.c.l.b16 %v596
      %v695 = vunpack.c.l.b16 %v600
      %v696 = vunpack.c.l.b16 %v604
      %v697 = vunpack.c.l.b16 %v608
      %v698 = vunpack.c.l.b16 %v612
      %v699 = vunpack.c.l.b16 %v616
      %v700 = vunpack.c.l.b16 %v620
      %v701 = vpack.c.b16 %v694, %v693
      %v702 = vpack.c.b16 %v696, %v695
      %v703 = vpack.c.b16 %v698, %v697
      %v704 = vpack.c.b16 %v700, %v699
      %705 = vrot.lane.b32.xlu0 %v701, 16
      %v706 = vpop.permute.xlu0 %705
      %707 = vrot.lane.b32.xlu0 %v702, 16
      %v708 = vpop.permute.xlu0 %707
      %709 = vrot.lane.b32.xlu0 %v703, 16
      %v710 = vpop.permute.xlu0 %709
      %711 = vrot.lane.b32.xlu0 %v704, 16
      %v712 = vpop.permute.xlu0 %711
      %v713 = vunpack.c.l.b16 %v451
      %v714 = vpack.c.b16 %v663, %v662
      %v715 = vpack.c.b16 %v665, %v664
      %v716 = vpack.c.b16 %v667, %v666
      %v717 = vpack.c.b16 %v713, %v668
      %718 = vrot.lane.b32.xlu0 %v714, 24
      %v719 = vpop.permute.xlu0 %718
      %720 = vrot.lane.b32.xlu0 %v715, 24
      %v721 = vpop.permute.xlu0 %720
      %722 = vrot.lane.b32.xlu0 %v716, 24
      %v723 = vpop.permute.xlu0 %722
      %724 = vrot.lane.b32.xlu0 %v717, 24
      %v725 = vpop.permute.xlu0 %724
      %v726 = vunpack.c.l.b16 %v634
      %v727 = vpack.c.b16 %v675, %v674
      %v728 = vpack.c.b16 %v677, %v676
      %v729 = vpack.c.b16 %v679, %v678
      %v730 = vpack.c.b16 %v726, %v680
      %731 = vrot.lane.b32.xlu0 %v727, 32
      %v732 = vpop.permute.xlu0 %731
      %733 = vrot.lane.b32.xlu0 %v728, 32
      %v734 = vpop.permute.xlu0 %733
      %735 = vrot.lane.b32.xlu0 %v729, 32
      %v736 = vpop.permute.xlu0 %735
      %737 = vrot.lane.b32.xlu0 %v730, 32
      %v738 = vpop.permute.xlu0 %737
      %v739 = vunpack.c.l.b16 %v640
      %v740 = vpack.c.b16 %v695, %v694
      %v741 = vpack.c.b16 %v697, %v696
      %v742 = vpack.c.b16 %v699, %v698
      %v743 = vpack.c.b16 %v739, %v700
      %744 = vrot.lane.b32.xlu0 %v740, 40
      %v745 = vpop.permute.xlu0 %744
      %746 = vrot.lane.b32.xlu0 %v741, 40
      %v747 = vpop.permute.xlu0 %746
      %748 = vrot.lane.b32.xlu0 %v742, 40
      %v749 = vpop.permute.xlu0 %748
      %750 = vrot.lane.b32.xlu0 %v743, 40
      %v751 = vpop.permute.xlu0 %750
      %v752 = vunpack.c.l.b16 %v453
      %v753 = vpack.c.b16 %v752, %v713
      %754 = vrot.lane.b32.xlu0 %v670, 48
      %v755 = vpop.permute.xlu0 %754
      %756 = vrot.lane.b32.xlu0 %v671, 48
      %v757 = vpop.permute.xlu0 %756
      %758 = vrot.lane.b32.xlu0 %v672, 48
      %v759 = vpop.permute.xlu0 %758
      %760 = vrot.lane.b32.xlu0 %v753, 48
      %v761 = vpop.permute.xlu0 %760
      %v762 = vunpack.c.l.b16 %v654
      %v763 = vpack.c.b16 %v762, %v726
      %764 = vrot.lane.b32.xlu0 %v682, 56
      %v765 = vpop.permute.xlu0 %764
      %766 = vrot.lane.b32.xlu0 %v683, 56
      %v767 = vpop.permute.xlu0 %766
      %768 = vrot.lane.b32.xlu0 %v684, 56
      %v769 = vpop.permute.xlu0 %768
      %770 = vrot.lane.b32.xlu0 %v763, 56
      %v771 = vpop.permute.xlu0 %770
      %v772 = vunpack.c.l.b16 %v660
      %v773 = vpack.c.b16 %v772, %v739
      %774 = vrot.lane.b32.xlu0 %v702, 64
      %v775 = vpop.permute.xlu0 %774
      %776 = vrot.lane.b32.xlu0 %v703, 64
      %v777 = vpop.permute.xlu0 %776
      %778 = vrot.lane.b32.xlu0 %v704, 64
      %v779 = vpop.permute.xlu0 %778
      %780 = vrot.lane.b32.xlu0 %v773, 64
      %v781 = vpop.permute.xlu0 %780
      %vm782 = vcmask 64512
      %v785 = vsel %vm782, %v669, %v686
      %v788 = vsel %vm782, %v670, %v688
      %v791 = vsel %vm782, %v671, %v690
      %v794 = vsel %vm782, %v672, %v692
      %vm795 = vcmask 130048
      %v797 = vsel %vm795, %v785, %v706
      %v799 = vsel %vm795, %v788, %v708
      %v801 = vsel %vm795, %v791, %v710
      %v803 = vsel %vm795, %v794, %v712
      %vm804 = vcmask 195584
      %v806 = vsel %vm804, %v797, %v719
      %v808 = vsel %vm804, %v799, %v721
      %v810 = vsel %vm804, %v801, %v723
      %v812 = vsel %vm804, %v803, %v725
      %vm813 = vcmask 261120
      %v815 = vsel %vm813, %v806, %v732
      %v817 = vsel %vm813, %v808, %v734
      %v819 = vsel %vm813, %v810, %v736
      %v821 = vsel %vm813, %v812, %v738
      %vm822 = vcmask 326656
      %v824 = vsel %vm822, %v815, %v745
      %v826 = vsel %vm822, %v817, %v747
      %v828 = vsel %vm822, %v819, %v749
      %v830 = vsel %vm822, %v821, %v751
      %vm831 = vcmask 392192
      %v833 = vsel %vm831, %v824, %v755
      %v835 = vsel %vm831, %v826, %v757
      %v837 = vsel %vm831, %v828, %v759
      %v839 = vsel %vm831, %v830, %v761
      %vm840 = vcmask 457728
      %v842 = vsel %vm840, %v833, %v765
      %v844 = vsel %vm840, %v835, %v767
      %v846 = vsel %vm840, %v837, %v769
      %v848 = vsel %vm840, %v839, %v771
      %vm849 = vcmask 523264
      %v851 = vsel %vm849, %v842, %v775
      %v853 = vsel %vm849, %v844, %v777
      %v855 = vsel %vm849, %v846, %v779
      %v857 = vsel %vm849, %v848, %v781
      %v858 = vld [vmem:[%s3] sm:$0xf]
      %v859 = vld [vmem:[%s3 + $0x4] sm:$0xf]
      %v860 = vld [vmem:[%s3 + $0x8] sm:$0xf]
      %v861 = vld [vmem:[%s3 + $0xc] sm:$0xf]
      %v862 = vld [vmem:[%s3 + $0x10] sm:$0xf]
      %v863 = vld [vmem:[%s3 + $0x14] sm:$0xf]
      %v864 = vld [vmem:[%s3 + $0x18] sm:$0xf]
      %v865 = vld [vmem:[%s3 + $0x1c] sm:$0xf]
      %v866 = vld [vmem:[%s3 + $0x20] sm:$0xf]
      %v867 = vld [vmem:[%s396] sm:$0xf]
      %v868 = vld [vmem:[%s396 + $0x4] sm:$0x1]
      %v869 = vld [vmem:[%s396 + $0x8] sm:$0xf]
      %v870 = vld [vmem:[%s396 + $0xc] sm:$0x1]
      %v871 = vld [vmem:[%s396 + $0x10] sm:$0xf]
      %v872 = vld [vmem:[%s396 + $0x14] sm:$0x1]
      %v873 = vld [vmem:[%s396 + $0x18] sm:$0xf]
      %v874 = vld [vmem:[%s396 + $0x1c] sm:$0x1]
      %v875 = vld [vmem:[%s396 + $0x20] sm:$0xf]
      %v876 = vld [vmem:[%s396 + $0x24] sm:$0x1]
      %v877 = vld [vmem:[%s396 + $0x28] sm:$0xf]
      %v878 = vld [vmem:[%s396 + $0x2c] sm:$0x1]
      %v879 = vld [vmem:[%s396 + $0x30] sm:$0xf]
      %v880 = vld [vmem:[%s396 + $0x34] sm:$0x1]
      %v881 = vld [vmem:[%s396 + $0x38] sm:$0xf]
      %v882 = vld [vmem:[%s396 + $0x3c] sm:$0x1]
      %v883 = vld [vmem:[%s396 + $0x40] sm:$0xf]
      %v884 = vld [vmem:[%s396 + $0x44] sm:$0x1]
      %v885 = vld [vmem:[%s396 + $0x48] sm:$0xf]
      %v886 = vld [vmem:[%s396 + $0x4c] sm:$0x1]
      %v888 = vshrl.u32 %v867, 16
      %v890 = vrot.slane %v888, 4
      %v891 = vshll.u32 %v867, 16
      %v893 = vrot.slane %v891, 5
      %v894 = vor.u32 %v890, %v893
      %v895 = vrot.slane %v894, 4
      %v897 = vshll.u32 %v868, 16
      %v899 = vrot.slane %v897, 5
      %v900 = vsel %vm457, %v895, %v899
      %v902 = vshrl.u32 %v869, 16
      %v904 = vrot.slane %v902, 4
      %v905 = vshll.u32 %v869, 16
      %v907 = vrot.slane %v905, 5
      %v908 = vor.u32 %v904, %v907
      %v909 = vrot.slane %v908, 4
      %v911 = vshll.u32 %v870, 16
      %v913 = vrot.slane %v911, 5
      %v914 = vsel %vm457, %v909, %v913
      %v916 = vshrl.u32 %v871, 16
      %v918 = vrot.slane %v916, 4
      %v919 = vshll.u32 %v871, 16
      %v921 = vrot.slane %v919, 5
      %v922 = vor.u32 %v918, %v921
      %v923 = vrot.slane %v922, 4
      %v925 = vshll.u32 %v872, 16
      %v927 = vrot.slane %v925, 5
      %v928 = vsel %vm457, %v923, %v927
      %v930 = vshrl.u32 %v873, 16
      %v932 = vrot.slane %v930, 4
      %v933 = vshll.u32 %v873, 16
      %v935 = vrot.slane %v933, 5
      %v936 = vor.u32 %v932, %v935
      %v937 = vrot.slane %v936, 4
      %v939 = vshll.u32 %v874, 16
      %v941 = vrot.slane %v939, 5
      %v942 = vsel %vm457, %v937, %v941
      %v944 = vshrl.u32 %v875, 16
      %v946 = vrot.slane %v944, 4
      %v947 = vshll.u32 %v875, 16
      %v949 = vrot.slane %v947, 5
      %v950 = vor.u32 %v946, %v949
      %v951 = vrot.slane %v950, 4
      %v953 = vshll.u32 %v876, 16
      %v955 = vrot.slane %v953, 5
      %v956 = vsel %vm457, %v951, %v955
      %v958 = vshrl.u32 %v877, 16
      %v960 = vrot.slane %v958, 4
      %v961 = vshll.u32 %v877, 16
      %v963 = vrot.slane %v961, 5
      %v964 = vor.u32 %v960, %v963
      %v965 = vrot.slane %v964, 4
      %v967 = vshll.u32 %v878, 16
      %v969 = vrot.slane %v967, 5
      %v970 = vsel %vm457, %v965, %v969
      %v972 = vshrl.u32 %v879, 16
      %v974 = vrot.slane %v972, 4
      %v975 = vshll.u32 %v879, 16
      %v977 = vrot.slane %v975, 5
      %v978 = vor.u32 %v974, %v977
      %v979 = vrot.slane %v978, 4
      %v981 = vshll.u32 %v880, 16
      %v983 = vrot.slane %v981, 5
      %v984 = vsel %vm457, %v979, %v983
      %v986 = vshrl.u32 %v881, 16
      %v988 = vrot.slane %v986, 4
      %v989 = vshll.u32 %v881, 16
      %v991 = vrot.slane %v989, 5
      %v992 = vor.u32 %v988, %v991
      %v993 = vrot.slane %v992, 4
      %v995 = vshll.u32 %v882, 16
      %v997 = vrot.slane %v995, 5
      %v998 = vsel %vm457, %v993, %v997
      %v1015 = vrot.slane %v867, 5
      %v1016 = vrot.slane %v1015, 4
      %v1017 = vrot.slane %v868, 5
      %v1018 = vsel %vm588, %v1016, %v1017
      %v1019 = vrot.slane %v869, 5
      %v1020 = vrot.slane %v1019, 4
      %v1021 = vrot.slane %v870, 5
      %v1022 = vsel %vm588, %v1020, %v1021
      %v1023 = vrot.slane %v871, 5
      %v1024 = vrot.slane %v1023, 4
      %v1025 = vrot.slane %v872, 5
      %v1026 = vsel %vm588, %v1024, %v1025
      %v1027 = vrot.slane %v873, 5
      %v1028 = vrot.slane %v1027, 4
      %v1029 = vrot.slane %v874, 5
      %v1030 = vsel %vm588, %v1028, %v1029
      %v1031 = vrot.slane %v875, 5
      %v1032 = vrot.slane %v1031, 4
      %v1033 = vrot.slane %v876, 5
      %v1034 = vsel %vm588, %v1032, %v1033
      %v1035 = vrot.slane %v877, 5
      %v1036 = vrot.slane %v1035, 4
      %v1037 = vrot.slane %v878, 5
      %v1038 = vsel %vm588, %v1036, %v1037
      %v1039 = vrot.slane %v879, 5
      %v1040 = vrot.slane %v1039, 4
      %v1041 = vrot.slane %v880, 5
      %v1042 = vsel %vm588, %v1040, %v1041
      %v1043 = vrot.slane %v881, 5
      %v1044 = vrot.slane %v1043, 4
      %v1045 = vrot.slane %v882, 5
      %v1046 = vsel %vm588, %v1044, %v1045
      %v1048 = vshrl.u32 %v883, 16
      %v1050 = vrot.slane %v1048, 4
      %v1051 = vshll.u32 %v883, 16
      %v1053 = vrot.slane %v1051, 5
      %v1054 = vor.u32 %v1050, %v1053
      %v1055 = vrot.slane %v1054, 4
      %v1057 = vshll.u32 %v884, 16
      %v1059 = vrot.slane %v1057, 5
      %v1060 = vsel %vm457, %v1055, %v1059
      %v1063 = vrot.slane %v883, 5
      %v1064 = vrot.slane %v1063, 4
      %v1065 = vrot.slane %v884, 5
      %v1066 = vsel %vm588, %v1064, %v1065
      %v1068 = vshrl.u32 %v885, 16
      %v1070 = vrot.slane %v1068, 4
      %v1071 = vshll.u32 %v885, 16
      %v1073 = vrot.slane %v1071, 5
      %v1074 = vor.u32 %v1070, %v1073
      %v1075 = vrot.slane %v1074, 4
      %v1077 = vshll.u32 %v886, 16
      %v1079 = vrot.slane %v1077, 5
      %v1080 = vsel %vm457, %v1075, %v1079
      %v1083 = vrot.slane %v885, 5
      %v1084 = vrot.slane %v1083, 4
      %v1085 = vrot.slane %v886, 5
      %v1086 = vsel %vm588, %v1084, %v1085
      %v1087 = vunpack.c.l.b16 %v867
      %v1088 = vunpack.c.l.b16 %v869
      %v1089 = vunpack.c.l.b16 %v871
      %v1090 = vunpack.c.l.b16 %v873
      %v1091 = vunpack.c.l.b16 %v875
      %v1092 = vunpack.c.l.b16 %v877
      %v1093 = vunpack.c.l.b16 %v879
      %v1094 = vunpack.c.l.b16 %v881
      %v1095 = vpack.c.b16 %v1088, %v1087
      %v1096 = vpack.c.b16 %v1090, %v1089
      %v1097 = vpack.c.b16 %v1092, %v1091
      %v1098 = vpack.c.b16 %v1094, %v1093
      %v1099 = vunpack.c.l.b16 %v900
      %v1100 = vunpack.c.l.b16 %v914
      %v1101 = vunpack.c.l.b16 %v928
      %v1102 = vunpack.c.l.b16 %v942
      %v1103 = vunpack.c.l.b16 %v956
      %v1104 = vunpack.c.l.b16 %v970
      %v1105 = vunpack.c.l.b16 %v984
      %v1106 = vunpack.c.l.b16 %v998
      %v1107 = vpack.c.b16 %v1100, %v1099
      %v1108 = vpack.c.b16 %v1102, %v1101
      %v1109 = vpack.c.b16 %v1104, %v1103
      %v1110 = vpack.c.b16 %v1106, %v1105
      %1111 = vrot.lane.b32.xlu0 %v1107, 8
      %v1112 = vpop.permute.xlu0 %1111
      %1113 = vrot.lane.b32.xlu0 %v1108, 8
      %v1114 = vpop.permute.xlu0 %1113
      %1115 = vrot.lane.b32.xlu0 %v1109, 8
      %v1116 = vpop.permute.xlu0 %1115
      %1117 = vrot.lane.b32.xlu0 %v1110, 8
      %v1118 = vpop.permute.xlu0 %1117
      %v1119 = vunpack.c.l.b16 %v1018
      %v1120 = vunpack.c.l.b16 %v1022
      %v1121 = vunpack.c.l.b16 %v1026
      %v1122 = vunpack.c.l.b16 %v1030
      %v1123 = vunpack.c.l.b16 %v1034
      %v1124 = vunpack.c.l.b16 %v1038
      %v1125 = vunpack.c.l.b16 %v1042
      %v1126 = vunpack.c.l.b16 %v1046
      %v1127 = vpack.c.b16 %v1120, %v1119
      %v1128 = vpack.c.b16 %v1122, %v1121
      %v1129 = vpack.c.b16 %v1124, %v1123
      %v1130 = vpack.c.b16 %v1126, %v1125
      %1131 = vrot.lane.b32.xlu0 %v1127, 16
      %v1132 = vpop.permute.xlu0 %1131
      %1133 = vrot.lane.b32.xlu0 %v1128, 16
      %v1134 = vpop.permute.xlu0 %1133
      %1135 = vrot.lane.b32.xlu0 %v1129, 16
      %v1136 = vpop.permute.xlu0 %1135
      %1137 = vrot.lane.b32.xlu0 %v1130, 16
      %v1138 = vpop.permute.xlu0 %1137
      %v1139 = vunpack.c.l.b16 %v883
      %v1140 = vpack.c.b16 %v1089, %v1088
      %v1141 = vpack.c.b16 %v1091, %v1090
      %v1142 = vpack.c.b16 %v1093, %v1092
      %v1143 = vpack.c.b16 %v1139, %v1094
      %1144 = vrot.lane.b32.xlu0 %v1140, 24
      %v1145 = vpop.permute.xlu0 %1144
      %1146 = vrot.lane.b32.xlu0 %v1141, 24
      %v1147 = vpop.permute.xlu0 %1146
      %1148 = vrot.lane.b32.xlu0 %v1142, 24
      %v1149 = vpop.permute.xlu0 %1148
      %1150 = vrot.lane.b32.xlu0 %v1143, 24
      %v1151 = vpop.permute.xlu0 %1150
      %v1152 = vunpack.c.l.b16 %v1060
      %v1153 = vpack.c.b16 %v1101, %v1100
      %v1154 = vpack.c.b16 %v1103, %v1102
      %v1155 = vpack.c.b16 %v1105, %v1104
      %v1156 = vpack.c.b16 %v1152, %v1106
      %1157 = vrot.lane.b32.xlu0 %v1153, 32
      %v1158 = vpop.permute.xlu0 %1157
      %1159 = vrot.lane.b32.xlu0 %v1154, 32
      %v1160 = vpop.permute.xlu0 %1159
      %1161 = vrot.lane.b32.xlu0 %v1155, 32
      %v1162 = vpop.permute.xlu0 %1161
      %1163 = vrot.lane.b32.xlu0 %v1156, 32
      %v1164 = vpop.permute.xlu0 %1163
      %v1165 = vunpack.c.l.b16 %v1066
      %v1166 = vpack.c.b16 %v1121, %v1120
      %v1167 = vpack.c.b16 %v1123, %v1122
      %v1168 = vpack.c.b16 %v1125, %v1124
      %v1169 = vpack.c.b16 %v1165, %v1126
      %1170 = vrot.lane.b32.xlu0 %v1166, 40
      %v1171 = vpop.permute.xlu0 %1170
      %1172 = vrot.lane.b32.xlu0 %v1167, 40
      %v1173 = vpop.permute.xlu0 %1172
      %1174 = vrot.lane.b32.xlu0 %v1168, 40
      %v1175 = vpop.permute.xlu0 %1174
      %1176 = vrot.lane.b32.xlu0 %v1169, 40
      %v1177 = vpop.permute.xlu0 %1176
      %v1178 = vunpack.c.l.b16 %v885
      %v1179 = vpack.c.b16 %v1178, %v1139
      %1180 = vrot.lane.b32.xlu0 %v1096, 48
      %v1181 = vpop.permute.xlu0 %1180
      %1182 = vrot.lane.b32.xlu0 %v1097, 48
      %v1183 = vpop.permute.xlu0 %1182
      %1184 = vrot.lane.b32.xlu0 %v1098, 48
      %v1185 = vpop.permute.xlu0 %1184
      %1186 = vrot.lane.b32.xlu0 %v1179, 48
      %v1187 = vpop.permute.xlu0 %1186
      %v1188 = vunpack.c.l.b16 %v1080
      %v1189 = vpack.c.b16 %v1188, %v1152
      %1190 = vrot.lane.b32.xlu0 %v1108, 56
      %v1191 = vpop.permute.xlu0 %1190
      %1192 = vrot.lane.b32.xlu0 %v1109, 56
      %v1193 = vpop.permute.xlu0 %1192
      %1194 = vrot.lane.b32.xlu0 %v1110, 56
      %v1195 = vpop.permute.xlu0 %1194
      %1196 = vrot.lane.b32.xlu0 %v1189, 56
      %v1197 = vpop.permute.xlu0 %1196
      %v1198 = vunpack.c.l.b16 %v1086
      %v1199 = vpack.c.b16 %v1198, %v1165
      %1200 = vrot.lane.b32.xlu0 %v1128, 64
      %v1201 = vpop.permute.xlu0 %1200
      %1202 = vrot.lane.b32.xlu0 %v1129, 64
      %v1203 = vpop.permute.xlu0 %1202
      %1204 = vrot.lane.b32.xlu0 %v1130, 64
      %v1205 = vpop.permute.xlu0 %1204
      %1206 = vrot.lane.b32.xlu0 %v1199, 64
      %v1207 = vpop.permute.xlu0 %1206
      %v1210 = vsel %vm782, %v1095, %v1112
      %v1213 = vsel %vm782, %v1096, %v1114
      %v1216 = vsel %vm782, %v1097, %v1116
      %v1219 = vsel %vm782, %v1098, %v1118
      %v1221 = vsel %vm795, %v1210, %v1132
      %v1223 = vsel %vm795, %v1213, %v1134
      %v1225 = vsel %vm795, %v1216, %v1136
      %v1227 = vsel %vm795, %v1219, %v1138
      %v1229 = vsel %vm804, %v1221, %v1145
      %v1231 = vsel %vm804, %v1223, %v1147
      %v1233 = vsel %vm804, %v1225, %v1149
      %v1235 = vsel %vm804, %v1227, %v1151
      %v1237 = vsel %vm813, %v1229, %v1158
      %v1239 = vsel %vm813, %v1231, %v1160
      %v1241 = vsel %vm813, %v1233, %v1162
      %v1243 = vsel %vm813, %v1235, %v1164
      %v1245 = vsel %vm822, %v1237, %v1171
      %v1247 = vsel %vm822, %v1239, %v1173
      %v1249 = vsel %vm822, %v1241, %v1175
      %v1251 = vsel %vm822, %v1243, %v1177
      %v1253 = vsel %vm831, %v1245, %v1181
      %v1255 = vsel %vm831, %v1247, %v1183
      %v1257 = vsel %vm831, %v1249, %v1185
      %v1259 = vsel %vm831, %v1251, %v1187
      %v1261 = vsel %vm840, %v1253, %v1191
      %v1263 = vsel %vm840, %v1255, %v1193
      %v1265 = vsel %vm840, %v1257, %v1195
      %v1267 = vsel %vm840, %v1259, %v1197
      %v1269 = vsel %vm849, %v1261, %v1201
      %v1271 = vsel %vm849, %v1263, %v1203
      %v1273 = vsel %vm849, %v1265, %v1205
      %v1275 = vsel %vm849, %v1267, %v1207
      %s1276 = scalar_lea.vmem %s3, 36
      %v1277 = vld [vmem:[%s1276] sm:$0xf]
      %v1278 = vld [vmem:[%s1276 + $0x4] sm:$0xf]
      %v1279 = vld [vmem:[%s1276 + $0x8] sm:$0xf]
      %v1280 = vld [vmem:[%s1276 + $0xc] sm:$0xf]
      %v1281 = vld [vmem:[%s1276 + $0x10] sm:$0xf]
      %v1282 = vld [vmem:[%s1276 + $0x14] sm:$0xf]
      %v1283 = vld [vmem:[%s1276 + $0x18] sm:$0xf]
      %v1284 = vld [vmem:[%s1276 + $0x1c] sm:$0xf]
      %v1285 = vld [vmem:[%s1276 + $0x20] sm:$0xf]
      %v1295 = vunpack.c.l.b16 %v1277
      %v1296 = vunpack.c.l.b16 %v1278
      %v1297 = vunpack.c.l.b16 %v1279
      %v1298 = vunpack.c.l.b16 %v1280
      %v1299 = vunpack.c.l.b16 %v1281
      %v1300 = vunpack.c.l.b16 %v1282
      %v1301 = vunpack.c.l.b16 %v1283
      %v1302 = vunpack.c.l.b16 %v1284
      %v1303 = vunpack.c.l.b16 %v1285
      %v1304 = vpack.c.b16 %v1296, %v1295
      %v1305 = vpack.c.b16 %v1298, %v1297
      %v1306 = vpack.c.b16 %v1300, %v1299
      %v1307 = vpack.c.b16 %v1302, %v1301
      %v1308 = vpack.c.b16 %v1303, %v1303
      %vm1313 = vcmask 588800
      %v1314 = vsel %vm1313, %v1269, 0
      %v1316 = vsel %vm1313, %v1271, 0
      %v1318 = vsel %vm1313, %v1273, 0
      %v1320 = vsel %vm1313, %v1275, 0
      %vm1322 = vcmask 1043456
      %v1324 = vsel %vm1322, %v1308, 0
      %1326 = vmatprep.subr.bf16.mxu0 0
      %1327 = vmatpush1.bf16.msra.mxu0 %v1304
      %1328 = vmatprep.subr.bf16.mxu0 0
      %1329 = vmatpush1.bf16.msra.mxu0 %v1305
      %1330 = vmatprep.subr.bf16.mxu0 0
      %1331 = vmatpush1.bf16.msra.mxu0 %v1306
      %1332 = vmatprep.subr.bf16.mxu0 0
      %1333 = vmatpush1.bf16.msra.mxu0 %v1307
      %1334 = vmatprep.subr.bf16.mxu0 0
      %1335 = vmatpush1.bf16.msra.mxu0 %v1324
      %1336 = vmatprep.subr.bf16.mxu0 0
      %1337 = vmatpush1.bf16.msra.mxu0 0
      %1338 = vmatprep.subr.bf16.mxu0 0
      %1339 = vmatpush1.bf16.msra.mxu0 0
      %1340 = vmatprep.subr.bf16.mxu0 0
      %1341 = vmatpush1.bf16.msra.mxu0 0
      %1342 = vmatprep.subr.bf16.mxu0 0
      %1343 = vmatpush1.bf16.msra.mxu0 0
      %1344 = vmatprep.subr.bf16.mxu0 0
      %1345 = vmatpush1.bf16.msra.mxu0 0
      %1346 = vmatprep.subr.bf16.mxu0 0
      %1347 = vmatpush1.bf16.msra.mxu0 0
      %1348 = vmatprep.subr.bf16.mxu0 0
      %1349 = vmatpush1.bf16.msra.mxu0 0
      %1350 = vmatprep.subr.bf16.mxu0 0
      %1351 = vmatpush1.bf16.msra.mxu0 0
      %1352 = vmatprep.subr.bf16.mxu0 0
      %1353 = vmatpush1.bf16.msra.mxu0 0
      %1354 = vmatprep.subr.bf16.mxu0 0
      %1355 = vmatpush1.bf16.msra.mxu0 0
      %1356 = vmatprep.subr.bf16.mxu0 0
      %1357 = vmatpush1.bf16.msra.mxu0 0
      %1358 = vmatprep.mubr.bf16.mxu0 0
      %1359 = vmatmul.mubr.bf16.gmra.mrb[0].mxu0 %v1314
      %v1360 = vpop.f32.mrb[0].mxu0
      %v1361 = vadd.f32 0.0, %v1360
      %v1362 = vpop.f32.mrb[0].mxu0
      %v1363 = vpop.f32.mrb[0].mxu0
      %v1364 = vadd.f32 0.0, %v1363
      %v1365 = vpop.f32.mrb[0].mxu0
      %1366 = vmatprep.mubr.bf16.mxu0 0
      %1367 = vmatmul.mubr.bf16.gmra.mrb[0].mxu0 %v1316
      %v1368 = vpop.f32.mrb[0].mxu0
      %v1369 = vadd.f32 0.0, %v1368
      %v1370 = vpop.f32.mrb[0].mxu0
      %v1371 = vpop.f32.mrb[0].mxu0
      %v1372 = vadd.f32 0.0, %v1371
      %v1373 = vpop.f32.mrb[0].mxu0
      %1374 = vmatprep.mubr.bf16.mxu0 0
      %1375 = vmatmul.mubr.bf16.gmra.mrb[0].mxu0 %v1318
      %v1376 = vpop.f32.mrb[0].mxu0
      %v1377 = vadd.f32 0.0, %v1376
      %v1378 = vpop.f32.mrb[0].mxu0
      %v1379 = vpop.f32.mrb[0].mxu0
      %v1380 = vadd.f32 0.0, %v1379
      %v1381 = vpop.f32.mrb[0].mxu0
      %1382 = vmatprep.mubr.bf16.mxu0 0
      %1383 = vmatmul.mubr.bf16.gmra.mrb[0].mxu0 %v1320
      %v1384 = vpop.f32.mrb[0].mxu0
      %v1385 = vadd.f32 0.0, %v1384
      %v1386 = vpop.f32.mrb[0].mxu0
      %v1387 = vpop.f32.mrb[0].mxu0
      %v1388 = vadd.f32 0.0, %v1387
      %v1389 = vpop.f32.mrb[0].mxu0
      %1390 = vdwg.mxu0
      %v1400 = vunpack.c.l.b16 %v858
      %v1401 = vunpack.c.l.b16 %v859
      %v1402 = vunpack.c.l.b16 %v860
      %v1403 = vunpack.c.l.b16 %v861
      %v1404 = vunpack.c.l.b16 %v862
      %v1405 = vunpack.c.l.b16 %v863
      %v1406 = vunpack.c.l.b16 %v864
      %v1407 = vunpack.c.l.b16 %v865
      %v1408 = vunpack.c.l.b16 %v866
      %v1409 = vpack.c.b16 %v1401, %v1400
      %v1410 = vpack.c.b16 %v1403, %v1402
      %v1411 = vpack.c.b16 %v1405, %v1404
      %v1412 = vpack.c.b16 %v1407, %v1406
      %v1413 = vpack.c.b16 %v1408, %v1408
      %v1418 = vsel %vm1313, %v851, 0
      %v1420 = vsel %vm1313, %v853, 0
      %v1422 = vsel %vm1313, %v855, 0
      %v1424 = vsel %vm1313, %v857, 0
      %v1427 = vsel %vm1322, %v1413, 0
      %1429 = vmatprep.subr.bf16.mxu0 0
      %1430 = vmatpush1.bf16.msra.mxu0 %v1409
      %1431 = vmatprep.subr.bf16.mxu0 0
      %1432 = vmatpush1.bf16.msra.mxu0 %v1410
      %1433 = vmatprep.subr.bf16.mxu0 0
      %1434 = vmatpush1.bf16.msra.mxu0 %v1411
      %1435 = vmatprep.subr.bf16.mxu0 0
      %1436 = vmatpush1.bf16.msra.mxu0 %v1412
      %1437 = vmatprep.subr.bf16.mxu0 0
      %1438 = vmatpush1.bf16.msra.mxu0 %v1427
      %1439 = vmatprep.subr.bf16.mxu0 0
      %1440 = vmatpush1.bf16.msra.mxu0 0
      %1441 = vmatprep.subr.bf16.mxu0 0
      %1442 = vmatpush1.bf16.msra.mxu0 0
      %1443 = vmatprep.subr.bf16.mxu0 0
      %1444 = vmatpush1.bf16.msra.mxu0 0
      %1445 = vmatprep.subr.bf16.mxu0 0
      %1446 = vmatpush1.bf16.msra.mxu0 0
      %1447 = vmatprep.subr.bf16.mxu0 0
      %1448 = vmatpush1.bf16.msra.mxu0 0
      %1449 = vmatprep.subr.bf16.mxu0 0
      %1450 = vmatpush1.bf16.msra.mxu0 0
      %1451 = vmatprep.subr.bf16.mxu0 0
      %1452 = vmatpush1.bf16.msra.mxu0 0
      %1453 = vmatprep.subr.bf16.mxu0 0
      %1454 = vmatpush1.bf16.msra.mxu0 0
      %1455 = vmatprep.subr.bf16.mxu0 0
      %1456 = vmatpush1.bf16.msra.mxu0 0
      %1457 = vmatprep.subr.bf16.mxu0 0
      %1458 = vmatpush1.bf16.msra.mxu0 0
      %1459 = vmatprep.subr.bf16.mxu0 0
      %1460 = vmatpush1.bf16.msra.mxu0 0
      %1461 = vmatprep.mubr.bf16.mxu0 0
      %1462 = vmatmul.mubr.bf16.gmra.mrb[0].mxu0 %v1418
      %v1463 = vpop.f32.mrb[0].mxu0
      %v1464 = vadd.f32 %v1361, %v1463
      %v1465 = vpop.f32.mrb[0].mxu0
      %v1466 = vpop.f32.mrb[0].mxu0
      %v1467 = vadd.f32 %v1364, %v1466
      %v1468 = vpop.f32.mrb[0].mxu0
      %1469 = vmatprep.mubr.bf16.mxu0 0
      %1470 = vmatmul.mubr.bf16.gmra.mrb[0].mxu0 %v1420
      %v1471 = vpop.f32.mrb[0].mxu0
      %v1472 = vadd.f32 %v1369, %v1471
      %v1473 = vpop.f32.mrb[0].mxu0
      %v1474 = vpop.f32.mrb[0].mxu0
      %v1475 = vadd.f32 %v1372, %v1474
      %v1476 = vpop.f32.mrb[0].mxu0
      %1477 = vmatprep.mubr.bf16.mxu0 0
      %1478 = vmatmul.mubr.bf16.gmra.mrb[0].mxu0 %v1422
      %v1479 = vpop.f32.mrb[0].mxu0
      %v1480 = vadd.f32 %v1377, %v1479
      %v1481 = vpop.f32.mrb[0].mxu0
      %v1482 = vpop.f32.mrb[0].mxu0
      %v1483 = vadd.f32 %v1380, %v1482
      %v1484 = vpop.f32.mrb[0].mxu0
      %1485 = vmatprep.mubr.bf16.mxu0 0
      %1486 = vmatmul.mubr.bf16.gmra.mrb[0].mxu0 %v1424
      %v1487 = vpop.f32.mrb[0].mxu0
      %v1488 = vadd.f32 %v1385, %v1487
      %v1489 = vpop.f32.mrb[0].mxu0
      %v1490 = vpop.f32.mrb[0].mxu0
      %v1491 = vadd.f32 %v1388, %v1490
      %v1492 = vpop.f32.mrb[0].mxu0
      %1493 = vdwg.mxu0
      %v1494 = vld [vmem:[%s407] sm:$0xf]
      %v1495 = vld [vmem:[%s407 + $0x4] sm:$0x1]
      %v1496 = vld [vmem:[%s407 + $0x8] sm:$0xf]
      %v1497 = vld [vmem:[%s407 + $0xc] sm:$0x1]
      %v1498 = vld [vmem:[%s407 + $0x10] sm:$0xf]
      %v1499 = vld [vmem:[%s407 + $0x14] sm:$0x1]
      %v1500 = vld [vmem:[%s407 + $0x18] sm:$0xf]
      %v1501 = vld [vmem:[%s407 + $0x1c] sm:$0x1]
      %v1502 = vld [vmem:[%s407 + $0x20] sm:$0xf]
      %v1503 = vld [vmem:[%s407 + $0x24] sm:$0x1]
      %v1504 = vld [vmem:[%s407 + $0x28] sm:$0xf]
      %v1505 = vld [vmem:[%s407 + $0x2c] sm:$0x1]
      %v1506 = vld [vmem:[%s407 + $0x30] sm:$0xf]
      %v1507 = vld [vmem:[%s407 + $0x34] sm:$0x1]
      %v1508 = vld [vmem:[%s407 + $0x38] sm:$0xf]
      %v1509 = vld [vmem:[%s407 + $0x3c] sm:$0x1]
      %v1510 = vld [vmem:[%s407 + $0x40] sm:$0xf]
      %v1511 = vld [vmem:[%s407 + $0x44] sm:$0x1]
      %v1512 = vld [vmem:[%s407 + $0x48] sm:$0xf]
      %v1513 = vld [vmem:[%s407 + $0x4c] sm:$0x1]
      %v1515 = vshrl.u32 %v1494, 16
      %v1517 = vrot.slane %v1515, 4
      %v1518 = vshll.u32 %v1494, 16
      %v1520 = vrot.slane %v1518, 5
      %v1521 = vor.u32 %v1517, %v1520
      %v1522 = vrot.slane %v1521, 4
      %v1524 = vshll.u32 %v1495, 16
      %v1526 = vrot.slane %v1524, 5
      %v1527 = vsel %vm457, %v1522, %v1526
      %v1529 = vshrl.u32 %v1496, 16
      %v1531 = vrot.slane %v1529, 4
      %v1532 = vshll.u32 %v1496, 16
      %v1534 = vrot.slane %v1532, 5
      %v1535 = vor.u32 %v1531, %v1534
      %v1536 = vrot.slane %v1535, 4
      %v1538 = vshll.u32 %v1497, 16
      %v1540 = vrot.slane %v1538, 5
      %v1541 = vsel %vm457, %v1536, %v1540
      %v1543 = vshrl.u32 %v1498, 16
      %v1545 = vrot.slane %v1543, 4
      %v1546 = vshll.u32 %v1498, 16
      %v1548 = vrot.slane %v1546, 5
      %v1549 = vor.u32 %v1545, %v1548
      %v1550 = vrot.slane %v1549, 4
      %v1552 = vshll.u32 %v1499, 16
      %v1554 = vrot.slane %v1552, 5
      %v1555 = vsel %vm457, %v1550, %v1554
      %v1557 = vshrl.u32 %v1500, 16
      %v1559 = vrot.slane %v1557, 4
      %v1560 = vshll.u32 %v1500, 16
      %v1562 = vrot.slane %v1560, 5
      %v1563 = vor.u32 %v1559, %v1562
      %v1564 = vrot.slane %v1563, 4
      %v1566 = vshll.u32 %v1501, 16
      %v1568 = vrot.slane %v1566, 5
      %v1569 = vsel %vm457, %v1564, %v1568
      %v1571 = vshrl.u32 %v1502, 16
      %v1573 = vrot.slane %v1571, 4
      %v1574 = vshll.u32 %v1502, 16
      %v1576 = vrot.slane %v1574, 5
      %v1577 = vor.u32 %v1573, %v1576
      %v1578 = vrot.slane %v1577, 4
      %v1580 = vshll.u32 %v1503, 16
      %v1582 = vrot.slane %v1580, 5
      %v1583 = vsel %vm457, %v1578, %v1582
      %v1585 = vshrl.u32 %v1504, 16
      %v1587 = vrot.slane %v1585, 4
      %v1588 = vshll.u32 %v1504, 16
      %v1590 = vrot.slane %v1588, 5
      %v1591 = vor.u32 %v1587, %v1590
      %v1592 = vrot.slane %v1591, 4
      %v1594 = vshll.u32 %v1505, 16
      %v1596 = vrot.slane %v1594, 5
      %v1597 = vsel %vm457, %v1592, %v1596
      %v1599 = vshrl.u32 %v1506, 16
      %v1601 = vrot.slane %v1599, 4
      %v1602 = vshll.u32 %v1506, 16
      %v1604 = vrot.slane %v1602, 5
      %v1605 = vor.u32 %v1601, %v1604
      %v1606 = vrot.slane %v1605, 4
      %v1608 = vshll.u32 %v1507, 16
      %v1610 = vrot.slane %v1608, 5
      %v1611 = vsel %vm457, %v1606, %v1610
      %v1613 = vshrl.u32 %v1508, 16
      %v1615 = vrot.slane %v1613, 4
      %v1616 = vshll.u32 %v1508, 16
      %v1618 = vrot.slane %v1616, 5
      %v1619 = vor.u32 %v1615, %v1618
      %v1620 = vrot.slane %v1619, 4
      %v1622 = vshll.u32 %v1509, 16
      %v1624 = vrot.slane %v1622, 5
      %v1625 = vsel %vm457, %v1620, %v1624
      %v1642 = vrot.slane %v1494, 5
      %v1643 = vrot.slane %v1642, 4
      %v1644 = vrot.slane %v1495, 5
      %v1645 = vsel %vm588, %v1643, %v1644
      %v1646 = vrot.slane %v1496, 5
      %v1647 = vrot.slane %v1646, 4
      %v1648 = vrot.slane %v1497, 5
      %v1649 = vsel %vm588, %v1647, %v1648
      %v1650 = vrot.slane %v1498, 5
      %v1651 = vrot.slane %v1650, 4
      %v1652 = vrot.slane %v1499, 5
      %v1653 = vsel %vm588, %v1651, %v1652
      %v1654 = vrot.slane %v1500, 5
      %v1655 = vrot.slane %v1654, 4
      %v1656 = vrot.slane %v1501, 5
      %v1657 = vsel %vm588, %v1655, %v1656
      %v1658 = vrot.slane %v1502, 5
      %v1659 = vrot.slane %v1658, 4
      %v1660 = vrot.slane %v1503, 5
      %v1661 = vsel %vm588, %v1659, %v1660
      %v1662 = vrot.slane %v1504, 5
      %v1663 = vrot.slane %v1662, 4
      %v1664 = vrot.slane %v1505, 5
      %v1665 = vsel %vm588, %v1663, %v1664
      %v1666 = vrot.slane %v1506, 5
      %v1667 = vrot.slane %v1666, 4
      %v1668 = vrot.slane %v1507, 5
      %v1669 = vsel %vm588, %v1667, %v1668
      %v1670 = vrot.slane %v1508, 5
      %v1671 = vrot.slane %v1670, 4
      %v1672 = vrot.slane %v1509, 5
      %v1673 = vsel %vm588, %v1671, %v1672
      %v1675 = vshrl.u32 %v1510, 16
      %v1677 = vrot.slane %v1675, 4
      %v1678 = vshll.u32 %v1510, 16
      %v1680 = vrot.slane %v1678, 5
      %v1681 = vor.u32 %v1677, %v1680
      %v1682 = vrot.slane %v1681, 4
      %v1684 = vshll.u32 %v1511, 16
      %v1686 = vrot.slane %v1684, 5
      %v1687 = vsel %vm457, %v1682, %v1686
      %v1690 = vrot.slane %v1510, 5
      %v1691 = vrot.slane %v1690, 4
      %v1692 = vrot.slane %v1511, 5
      %v1693 = vsel %vm588, %v1691, %v1692
      %v1695 = vshrl.u32 %v1512, 16
      %v1697 = vrot.slane %v1695, 4
      %v1698 = vshll.u32 %v1512, 16
      %v1700 = vrot.slane %v1698, 5
      %v1701 = vor.u32 %v1697, %v1700
      %v1702 = vrot.slane %v1701, 4
      %v1704 = vshll.u32 %v1513, 16
      %v1706 = vrot.slane %v1704, 5
      %v1707 = vsel %vm457, %v1702, %v1706
      %v1710 = vrot.slane %v1512, 5
      %v1711 = vrot.slane %v1710, 4
      %v1712 = vrot.slane %v1513, 5
      %v1713 = vsel %vm588, %v1711, %v1712
      %v1714 = vunpack.c.l.b16 %v1494
      %v1715 = vunpack.c.l.b16 %v1496
      %v1716 = vunpack.c.l.b16 %v1498
      %v1717 = vunpack.c.l.b16 %v1500
      %v1718 = vunpack.c.l.b16 %v1502
      %v1719 = vunpack.c.l.b16 %v1504
      %v1720 = vunpack.c.l.b16 %v1506
      %v1721 = vunpack.c.l.b16 %v1508
      %v1722 = vpack.c.b16 %v1715, %v1714
      %v1723 = vpack.c.b16 %v1717, %v1716
      %v1724 = vpack.c.b16 %v1719, %v1718
      %v1725 = vpack.c.b16 %v1721, %v1720
      %v1726 = vunpack.c.l.b16 %v1527
      %v1727 = vunpack.c.l.b16 %v1541
      %v1728 = vunpack.c.l.b16 %v1555
      %v1729 = vunpack.c.l.b16 %v1569
      %v1730 = vunpack.c.l.b16 %v1583
      %v1731 = vunpack.c.l.b16 %v1597
      %v1732 = vunpack.c.l.b16 %v1611
      %v1733 = vunpack.c.l.b16 %v1625
      %v1734 = vpack.c.b16 %v1727, %v1726
      %v1735 = vpack.c.b16 %v1729, %v1728
      %v1736 = vpack.c.b16 %v1731, %v1730
      %v1737 = vpack.c.b16 %v1733, %v1732
      %1738 = vrot.lane.b32.xlu0 %v1734, 8
      %v1739 = vpop.permute.xlu0 %1738
      %1740 = vrot.lane.b32.xlu0 %v1735, 8
      %v1741 = vpop.permute.xlu0 %1740
      %1742 = vrot.lane.b32.xlu0 %v1736, 8
      %v1743 = vpop.permute.xlu0 %1742
      %1744 = vrot.lane.b32.xlu0 %v1737, 8
      %v1745 = vpop.permute.xlu0 %1744
      %v1746 = vunpack.c.l.b16 %v1645
      %v1747 = vunpack.c.l.b16 %v1649
      %v1748 = vunpack.c.l.b16 %v1653
      %v1749 = vunpack.c.l.b16 %v1657
      %v1750 = vunpack.c.l.b16 %v1661
      %v1751 = vunpack.c.l.b16 %v1665
      %v1752 = vunpack.c.l.b16 %v1669
      %v1753 = vunpack.c.l.b16 %v1673
      %v1754 = vpack.c.b16 %v1747, %v1746
      %v1755 = vpack.c.b16 %v1749, %v1748
      %v1756 = vpack.c.b16 %v1751, %v1750
      %v1757 = vpack.c.b16 %v1753, %v1752
      %1758 = vrot.lane.b32.xlu0 %v1754, 16
      %v1759 = vpop.permute.xlu0 %1758
      %1760 = vrot.lane.b32.xlu0 %v1755, 16
      %v1761 = vpop.permute.xlu0 %1760
      %1762 = vrot.lane.b32.xlu0 %v1756, 16
      %v1763 = vpop.permute.xlu0 %1762
      %1764 = vrot.lane.b32.xlu0 %v1757, 16
      %v1765 = vpop.permute.xlu0 %1764
      %v1766 = vunpack.c.l.b16 %v1510
      %v1767 = vpack.c.b16 %v1716, %v1715
      %v1768 = vpack.c.b16 %v1718, %v1717
      %v1769 = vpack.c.b16 %v1720, %v1719
      %v1770 = vpack.c.b16 %v1766, %v1721
      %1771 = vrot.lane.b32.xlu0 %v1767, 24
      %v1772 = vpop.permute.xlu0 %1771
      %1773 = vrot.lane.b32.xlu0 %v1768, 24
      %v1774 = vpop.permute.xlu0 %1773
      %1775 = vrot.lane.b32.xlu0 %v1769, 24
      %v1776 = vpop.permute.xlu0 %1775
      %1777 = vrot.lane.b32.xlu0 %v1770, 24
      %v1778 = vpop.permute.xlu0 %1777
      %v1779 = vunpack.c.l.b16 %v1687
      %v1780 = vpack.c.b16 %v1728, %v1727
      %v1781 = vpack.c.b16 %v1730, %v1729
      %v1782 = vpack.c.b16 %v1732, %v1731
      %v1783 = vpack.c.b16 %v1779, %v1733
      %1784 = vrot.lane.b32.xlu0 %v1780, 32
      %v1785 = vpop.permute.xlu0 %1784
      %1786 = vrot.lane.b32.xlu0 %v1781, 32
      %v1787 = vpop.permute.xlu0 %1786
      %1788 = vrot.lane.b32.xlu0 %v1782, 32
      %v1789 = vpop.permute.xlu0 %1788
      %1790 = vrot.lane.b32.xlu0 %v1783, 32
      %v1791 = vpop.permute.xlu0 %1790
      %v1792 = vunpack.c.l.b16 %v1693
      %v1793 = vpack.c.b16 %v1748, %v1747
      %v1794 = vpack.c.b16 %v1750, %v1749
      %v1795 = vpack.c.b16 %v1752, %v1751
      %v1796 = vpack.c.b16 %v1792, %v1753
      %1797 = vrot.lane.b32.xlu0 %v1793, 40
      %v1798 = vpop.permute.xlu0 %1797
      %1799 = vrot.lane.b32.xlu0 %v1794, 40
      %v1800 = vpop.permute.xlu0 %1799
      %1801 = vrot.lane.b32.xlu0 %v1795, 40
      %v1802 = vpop.permute.xlu0 %1801
      %1803 = vrot.lane.b32.xlu0 %v1796, 40
      %v1804 = vpop.permute.xlu0 %1803
      %v1805 = vunpack.c.l.b16 %v1512
      %v1806 = vpack.c.b16 %v1805, %v1766
      %1807 = vrot.lane.b32.xlu0 %v1723, 48
      %v1808 = vpop.permute.xlu0 %1807
      %1809 = vrot.lane.b32.xlu0 %v1724, 48
      %v1810 = vpop.permute.xlu0 %1809
      %1811 = vrot.lane.b32.xlu0 %v1725, 48
      %v1812 = vpop.permute.xlu0 %1811
      %1813 = vrot.lane.b32.xlu0 %v1806, 48
      %v1814 = vpop.permute.xlu0 %1813
      %v1815 = vunpack.c.l.b16 %v1707
      %v1816 = vpack.c.b16 %v1815, %v1779
      %1817 = vrot.lane.b32.xlu0 %v1735, 56
      %v1818 = vpop.permute.xlu0 %1817
      %1819 = vrot.lane.b32.xlu0 %v1736, 56
      %v1820 = vpop.permute.xlu0 %1819
      %1821 = vrot.lane.b32.xlu0 %v1737, 56
      %v1822 = vpop.permute.xlu0 %1821
      %1823 = vrot.lane.b32.xlu0 %v1816, 56
      %v1824 = vpop.permute.xlu0 %1823
      %v1825 = vunpack.c.l.b16 %v1713
      %v1826 = vpack.c.b16 %v1825, %v1792
      %1827 = vrot.lane.b32.xlu0 %v1755, 64
      %v1828 = vpop.permute.xlu0 %1827
      %1829 = vrot.lane.b32.xlu0 %v1756, 64
      %v1830 = vpop.permute.xlu0 %1829
      %1831 = vrot.lane.b32.xlu0 %v1757, 64
      %v1832 = vpop.permute.xlu0 %1831
      %1833 = vrot.lane.b32.xlu0 %v1826, 64
      %v1834 = vpop.permute.xlu0 %1833
      %v1837 = vsel %vm782, %v1722, %v1739
      %v1840 = vsel %vm782, %v1723, %v1741
      %v1843 = vsel %vm782, %v1724, %v1743
      %v1846 = vsel %vm782, %v1725, %v1745
      %v1848 = vsel %vm795, %v1837, %v1759
      %v1850 = vsel %vm795, %v1840, %v1761
      %v1852 = vsel %vm795, %v1843, %v1763
      %v1854 = vsel %vm795, %v1846, %v1765
      %v1856 = vsel %vm804, %v1848, %v1772
      %v1858 = vsel %vm804, %v1850, %v1774
      %v1860 = vsel %vm804, %v1852, %v1776
      %v1862 = vsel %vm804, %v1854, %v1778
      %v1864 = vsel %vm813, %v1856, %v1785
      %v1866 = vsel %vm813, %v1858, %v1787
      %v1868 = vsel %vm813, %v1860, %v1789
      %v1870 = vsel %vm813, %v1862, %v1791
      %v1872 = vsel %vm822, %v1864, %v1798
      %v1874 = vsel %vm822, %v1866, %v1800
      %v1876 = vsel %vm822, %v1868, %v1802
      %v1878 = vsel %vm822, %v1870, %v1804
      %v1880 = vsel %vm831, %v1872, %v1808
      %v1882 = vsel %vm831, %v1874, %v1810
      %v1884 = vsel %vm831, %v1876, %v1812
      %v1886 = vsel %vm831, %v1878, %v1814
      %v1888 = vsel %vm840, %v1880, %v1818
      %v1890 = vsel %vm840, %v1882, %v1820
      %v1892 = vsel %vm840, %v1884, %v1822
      %v1894 = vsel %vm840, %v1886, %v1824
      %v1896 = vsel %vm849, %v1888, %v1828
      %v1898 = vsel %vm849, %v1890, %v1830
      %v1900 = vsel %vm849, %v1892, %v1832
      %v1902 = vsel %vm849, %v1894, %v1834
      %s1903 = scalar_lea.vmem %s3, 72
      %v1904 = vld [vmem:[%s1903] sm:$0xf]
      %v1905 = vld [vmem:[%s1903 + $0x4] sm:$0xf]
      %v1906 = vld [vmem:[%s1903 + $0x8] sm:$0xf]
      %v1907 = vld [vmem:[%s1903 + $0xc] sm:$0xf]
      %v1908 = vld [vmem:[%s1903 + $0x10] sm:$0xf]
      %v1909 = vld [vmem:[%s1903 + $0x14] sm:$0xf]
      %v1910 = vld [vmem:[%s1903 + $0x18] sm:$0xf]
      %v1911 = vld [vmem:[%s1903 + $0x1c] sm:$0xf]
      %v1912 = vld [vmem:[%s1903 + $0x20] sm:$0xf]
      %v1922 = vunpack.c.l.b16 %v1904
      %v1923 = vunpack.c.l.b16 %v1905
      %v1924 = vunpack.c.l.b16 %v1906
      %v1925 = vunpack.c.l.b16 %v1907
      %v1926 = vunpack.c.l.b16 %v1908
      %v1927 = vunpack.c.l.b16 %v1909
      %v1928 = vunpack.c.l.b16 %v1910
      %v1929 = vunpack.c.l.b16 %v1911
      %v1930 = vunpack.c.l.b16 %v1912
      %v1931 = vpack.c.b16 %v1923, %v1922
      %v1932 = vpack.c.b16 %v1925, %v1924
      %v1933 = vpack.c.b16 %v1927, %v1926
      %v1934 = vpack.c.b16 %v1929, %v1928
      %v1935 = vpack.c.b16 %v1930, %v1930
      %v1940 = vsel %vm1313, %v1896, 0
      %v1942 = vsel %vm1313, %v1898, 0
      %v1944 = vsel %vm1313, %v1900, 0
      %v1946 = vsel %vm1313, %v1902, 0
      %v1949 = vsel %vm1322, %v1935, 0
      %1951 = vmatprep.subr.bf16.mxu0 0
      %1952 = vmatpush1.bf16.msra.mxu0 %v1931
      %1953 = vmatprep.subr.bf16.mxu0 0
      %1954 = vmatpush1.bf16.msra.mxu0 %v1932
      %1955 = vmatprep.subr.bf16.mxu0 0
      %1956 = vmatpush1.bf16.msra.mxu0 %v1933
      %1957 = vmatprep.subr.bf16.mxu0 0
      %1958 = vmatpush1.bf16.msra.mxu0 %v1934
      %1959 = vmatprep.subr.bf16.mxu0 0
      %1960 = vmatpush1.bf16.msra.mxu0 %v1949
      %1961 = vmatprep.subr.bf16.mxu0 0
      %1962 = vmatpush1.bf16.msra.mxu0 0
      %1963 = vmatprep.subr.bf16.mxu0 0
      %1964 = vmatpush1.bf16.msra.mxu0 0
      %1965 = vmatprep.subr.bf16.mxu0 0
      %1966 = vmatpush1.bf16.msra.mxu0 0
      %1967 = vmatprep.subr.bf16.mxu0 0
      %1968 = vmatpush1.bf16.msra.mxu0 0
      %1969 = vmatprep.subr.bf16.mxu0 0
      %1970 = vmatpush1.bf16.msra.mxu0 0
      %1971 = vmatprep.subr.bf16.mxu0 0
      %1972 = vmatpush1.bf16.msra.mxu0 0
      %1973 = vmatprep.subr.bf16.mxu0 0
      %1974 = vmatpush1.bf16.msra.mxu0 0
      %1975 = vmatprep.subr.bf16.mxu0 0
      %1976 = vmatpush1.bf16.msra.mxu0 0
      %1977 = vmatprep.subr.bf16.mxu0 0
      %1978 = vmatpush1.bf16.msra.mxu0 0
      %1979 = vmatprep.subr.bf16.mxu0 0
      %1980 = vmatpush1.bf16.msra.mxu0 0
      %1981 = vmatprep.subr.bf16.mxu0 0
      %1982 = vmatpush1.bf16.msra.mxu0 0
      %1983 = vmatprep.mubr.bf16.mxu0 0
      %1984 = vmatmul.mubr.bf16.gmra.mrb[0].mxu0 %v1940
      %v1985 = vpop.f32.mrb[0].mxu0
      %v1986 = vadd.f32 0.0, %v1985
      %v1987 = vpop.f32.mrb[0].mxu0
      %v1988 = vpop.f32.mrb[0].mxu0
      %v1989 = vadd.f32 0.0, %v1988
      %v1990 = vpop.f32.mrb[0].mxu0
      %1991 = vmatprep.mubr.bf16.mxu0 0
      %1992 = vmatmul.mubr.bf16.gmra.mrb[0].mxu0 %v1942
      %v1993 = vpop.f32.mrb[0].mxu0
      %v1994 = vadd.f32 0.0, %v1993
      %v1995 = vpop.f32.mrb[0].mxu0
      %v1996 = vpop.f32.mrb[0].mxu0
      %v1997 = vadd.f32 0.0, %v1996
      %v1998 = vpop.f32.mrb[0].mxu0
      %1999 = vmatprep.mubr.bf16.mxu0 0
      %2000 = vmatmul.mubr.bf16.gmra.mrb[0].mxu0 %v1944
      %v2001 = vpop.f32.mrb[0].mxu0
      %v2002 = vadd.f32 0.0, %v2001
      %v2003 = vpop.f32.mrb[0].mxu0
      %v2004 = vpop.f32.mrb[0].mxu0
      %v2005 = vadd.f32 0.0, %v2004
      %v2006 = vpop.f32.mrb[0].mxu0
      %2007 = vmatprep.mubr.bf16.mxu0 0
      %2008 = vmatmul.mubr.bf16.gmra.mrb[0].mxu0 %v1946
      %v2009 = vpop.f32.mrb[0].mxu0
      %v2010 = vadd.f32 0.0, %v2009
      %v2011 = vpop.f32.mrb[0].mxu0
      %v2012 = vpop.f32.mrb[0].mxu0
      %v2013 = vadd.f32 0.0, %v2012
      %v2014 = vpop.f32.mrb[0].mxu0
      %2015 = vdwg.mxu0
      %v2016 = vadd.f32 %v1464, %v1986
      %v2017 = vadd.f32 %v1467, %v1989
      %v2018 = vadd.f32 %v1472, %v1994
      %v2019 = vadd.f32 %v1475, %v1997
      %v2020 = vadd.f32 %v1480, %v2002
      %v2021 = vadd.f32 %v1483, %v2005
      %v2022 = vadd.f32 %v1488, %v2010
      %v2023 = vadd.f32 %v1491, %v2013
      %v2024 = vld [vmem:[%s4] sm:$0x1]
      %v2026 = vlaneseq
      %v2027 = vshrl.u32 %v2026, 7
      %v2028 = vsub.s32 0, %v2027
      %v2029 = vrot.slane %v2024, %v2028
      %v2031 = vadd.f32 %v2016, %v2029
      %v2032 = vadd.f32 %v2017, %v2029
      %v2033 = vadd.f32 %v2018, %v2029
      %v2034 = vadd.f32 %v2019, %v2029
      %v2035 = vadd.f32 %v2020, %v2029
      %v2036 = vadd.f32 %v2021, %v2029
      %v2037 = vadd.f32 %v2022, %v2029
      %v2038 = vadd.f32 %v2023, %v2029
      %v2039 = vpack.c.bf16 %v2032, %v2031
      %v2040 = vpack.c.bf16 %v2034, %v2033
      %v2041 = vpack.c.bf16 %v2036, %v2035
      %v2042 = vpack.c.bf16 %v2038, %v2037
      %v2047 = vunpack.c.l.b16 %v2039
      %v2048 = vunpack.c.h.b16 %v2039
      %v2049 = vunpack.c.l.b16 %v2040
      %v2050 = vunpack.c.h.b16 %v2040
      %v2051 = vunpack.c.l.b16 %v2041
      %v2052 = vunpack.c.h.b16 %v2041
      %v2053 = vunpack.c.l.b16 %v2042
      %v2054 = vunpack.c.h.b16 %v2042
      %v2055 = vpack.c.b16 %v2047, %v2047
      %v2056 = vpack.c.b16 %v2048, %v2048
      %v2057 = vpack.c.b16 %v2049, %v2049
      %v2058 = vpack.c.b16 %v2050, %v2050
      %v2059 = vpack.c.b16 %v2051, %v2051
      %v2060 = vpack.c.b16 %v2052, %v2052
      %v2061 = vpack.c.b16 %v2053, %v2053
      %v2062 = vpack.c.b16 %v2054, %v2054
      %vm2071 = vcmask 60416
      %2072 = vst.msk [vmem:[%s417] sm:$0xf] %vm2071, %v2055
      %2073 = vst.msk [vmem:[%s417 + $0x4] sm:$0xf] %vm2071, %v2056
      %2074 = vst.msk [vmem:[%s417 + $0x8] sm:$0xf] %vm2071, %v2057
      %2075 = vst.msk [vmem:[%s417 + $0xc] sm:$0xf] %vm2071, %v2058
      %2076 = vst.msk [vmem:[%s417 + $0x10] sm:$0xf] %vm2071, %v2059
      %2077 = vst.msk [vmem:[%s417 + $0x14] sm:$0xf] %vm2071, %v2060
      %2078 = vst.msk [vmem:[%s417 + $0x18] sm:$0xf] %vm2071, %v2061
      %2079 = vst.msk [vmem:[%s417 + $0x1c] sm:$0xf] %vm2071, %v2062
      %v2080 = vsel %vm782, %v2031, 0.0
      %v2081 = vsel %vm782, %v2032, 0.0
      %v2082 = vadd.f32 %v2080, %v2081
      %v2083 = vsel %vm782, %v2033, 0.0
      %v2084 = vadd.f32 %v2082, %v2083
      %v2085 = vsel %vm782, %v2034, 0.0
      %v2086 = vadd.f32 %v2084, %v2085
      %v2087 = vsel %vm782, %v2035, 0.0
      %v2088 = vadd.f32 %v2086, %v2087
      %v2089 = vsel %vm782, %v2036, 0.0
      %v2090 = vadd.f32 %v2088, %v2089
      %v2091 = vsel %vm782, %v2037, 0.0
      %v2092 = vadd.f32 %v2090, %v2091
      %v2093 = vsel %vm782, %v2038, 0.0
      %v2094 = vadd.f32 %v2092, %v2093
      %v2095 = vrot.slane %v2094, 4
      %v2096 = vadd.f32 %v2094, %v2095
      %v2097 = vrot.slane %v2096, 2
      %v2098 = vadd.f32 %v2096, %v2097
      %v2099 = vrot.slane %v2098, 1
      %v2100 = vadd.f32 %v2098, %v2099
      %vm2101 = vcmask 57344
      %2102 = vst.msk [vmem:[%s424] sm:$0x1] %vm2101, %v2100
      %v2103 = vmul.f32 %v2031, %v2031
      %v2104 = vmul.f32 %v2032, %v2032
      %v2105 = vmul.f32 %v2033, %v2033
      %v2106 = vmul.f32 %v2034, %v2034
      %v2107 = vmul.f32 %v2035, %v2035
      %v2108 = vmul.f32 %v2036, %v2036
      %v2109 = vmul.f32 %v2037, %v2037
      %v2110 = vmul.f32 %v2038, %v2038
      %v2111 = vsel %vm782, %v2103, 0.0
      %v2112 = vsel %vm782, %v2104, 0.0
      %v2113 = vadd.f32 %v2111, %v2112
      %v2114 = vsel %vm782, %v2105, 0.0
      %v2115 = vadd.f32 %v2113, %v2114
      %v2116 = vsel %vm782, %v2106, 0.0
      %v2117 = vadd.f32 %v2115, %v2116
      %v2118 = vsel %vm782, %v2107, 0.0
      %v2119 = vadd.f32 %v2117, %v2118
      %v2120 = vsel %vm782, %v2108, 0.0
      %v2121 = vadd.f32 %v2119, %v2120
      %v2122 = vsel %vm782, %v2109, 0.0
      %v2123 = vadd.f32 %v2121, %v2122
      %v2124 = vsel %vm782, %v2110, 0.0
      %v2125 = vadd.f32 %v2123, %v2124
      %v2126 = vrot.slane %v2125, 4
      %v2127 = vadd.f32 %v2125, %v2126
      %v2128 = vrot.slane %v2127, 2
      %v2129 = vadd.f32 %v2127, %v2128
      %v2130 = vrot.slane %v2129, 1
      %v2131 = vadd.f32 %v2129, %v2130
      %2132 = vst.msk [vmem:[%s431] sm:$0x1] %vm2101, %v2131
      %s2133 = smul.u32 %s23, 8
      %s2134 = sadd.s32 %s2133, %s24
      %p2135 = scmp.lt.s32.totalorder %s2134, 15
      %s2136 = scalar_select %p2135, %s2134, 15
      %s2137 = smul.addr %s2136, 8
      %s2138 = smul.addr %s2137, 4
      %s2139 = scalar_lea.vmem %s5, %s2138
      %s2140 = smul.u32 %s23, 8
      %s2141 = sadd.s32 %s2140, %s24
      %p2142 = scmp.lt.s32.totalorder %s2141, 15
      %s2143 = scalar_select %p2142, %s2141, 15
      %s2144 = scalar_lea.vmem %s6, %s2143
      %s2145 = smul.u32 %s23, 8
      %s2146 = sadd.s32 %s2145, %s24
      %p2147 = scmp.lt.s32.totalorder %s2146, 15
      %s2148 = scalar_select %p2147, %s2146, 15
      %s2149 = scalar_lea.vmem %s7, %s2148
      // Predicated region
      $region41: #{resnet_block_forward.6} parent=39 // pred_check
        %p2150 = pneg %p189
      $region42: #{resnet_block_forward.6} parent=39 // pred_check_branch
        %2152 = sbr.rel (%p2150) target = $region44
      $region43: #{resnet_block_forward.6} parent=39 // pred_region
        %s2153 = smul.u32 %s23, 8
        %s2154 = sadd.s32 %s2153, %s24
      $region44: #{resnet_block_forward.6} parent=39 // pred_fallthru
        _
      // Predicated region
      $region45: #{resnet_block_forward.6} parent=39 // pred_check
        %p2155 = pneg %p219
      $region46: #{resnet_block_forward.6} parent=39 // pred_check_branch
        %2157 = sbr.rel (%p2155) target = $region48
      $region47: #{resnet_block_forward.6} parent=39 // pred_region
        %s2158 = smul.u32 %s23, 8
        %s2159 = sadd.s32 %s2158, %s24
      $region48: #{resnet_block_forward.6} parent=39 // pred_fallthru
        _
      // Predicated region
      $region49: #{resnet_block_forward.6} parent=39 // pred_check
        %p2160 = pneg %p249
      $region50: #{resnet_block_forward.6} parent=39 // pred_check_branch
        %2162 = sbr.rel (%p2160) target = $region52
      $region51: #{resnet_block_forward.6} parent=39 // pred_region
        %s2163 = smul.u32 %s23, 8
        %s2164 = sadd.s32 %s2163, %s24
      $region52: #{resnet_block_forward.6} parent=39 // pred_fallthru
        _
    $region40: #{resnet_block_forward.6} parent=5 // pred_fallthru
      _
    %p2165 = scmp.le.s32.totalorder 2, %s14
    // Predicated region
    $region53: #{resnet_block_forward.6} parent=5 // pred_check
      %p2166 = pneg %p2165
    $region54: #{resnet_block_forward.6} parent=5 // pred_check_branch
      %2168 = sbr.rel (%p2166) target = $region56
    $region55: #{resnet_block_forward.6} parent=5 // pred_region
      %s2169 = ssub.s32 %s14, 2
      // Predicated region
      $region57: #{resnet_block_forward.6} parent=55 // pred_check
        %p2170 = pneg %p195
      $region58: #{resnet_block_forward.6} parent=55 // pred_check_branch
        %2172 = sbr.rel (%p2170) target = $region60
      $region59: #{resnet_block_forward.6} parent=55 // pred_region
        %s2173 = smul.u32 %s25, 8
        %s2174 = sadd.s32 %s2173, %s26
        %p2175 = scmp.lt.s32.totalorder %s2174, 15
        %s2176 = scalar_select %p2175, %s2174, 15
        %s2177 = smul.addr %s2176, 8
        %s2178 = smul.addr %s2177, 4
        %s2179 = scalar_lea.vmem %s5, %s2178
      $region60: #{resnet_block_forward.6} parent=55 // pred_fallthru
        _
      // Predicated region
      $region61: #{resnet_block_forward.6} parent=55 // pred_check
        %p2180 = pneg %p225
      $region62: #{resnet_block_forward.6} parent=55 // pred_check_branch
        %2182 = sbr.rel (%p2180) target = $region64
      $region63: #{resnet_block_forward.6} parent=55 // pred_region
        %s2183 = smul.u32 %s25, 8
        %s2184 = sadd.s32 %s2183, %s26
        %p2185 = scmp.lt.s32.totalorder %s2184, 15
        %s2186 = scalar_select %p2185, %s2184, 15
        %s2187 = scalar_lea.vmem %s6, %s2186
      $region64: #{resnet_block_forward.6} parent=55 // pred_fallthru
        _
      // Predicated region
      $region65: #{resnet_block_forward.6} parent=55 // pred_check
        %p2188 = pneg %p255
      $region66: #{resnet_block_forward.6} parent=55 // pred_check_branch
        %2190 = sbr.rel (%p2188) target = $region68
      $region67: #{resnet_block_forward.6} parent=55 // pred_region
        %s2191 = smul.u32 %s25, 8
        %s2192 = sadd.s32 %s2191, %s26
        %p2193 = scmp.lt.s32.totalorder %s2192, 15
        %s2194 = scalar_select %p2193, %s2192, 15
        %s2195 = scalar_lea.vmem %s7, %s2194
      $region68: #{resnet_block_forward.6} parent=55 // pred_fallthru
        _
    $region56: #{resnet_block_forward.6} parent=5 // pred_fallthru
      _
  $region6: #{resnet_block_forward.6} parent=0 // loop_footer
    %s18 = sadd.s32 1, %s14
  $region7: #{resnet_block_forward.6} parent=0 // loop_footer_branch
    %13 = sbr.rel target = $region3
  $region8: #{resnet_block_forward.6} parent=0 // loop_exit
    _

</llo_original>
